<compile_context>
chip_gen: v7x
topology: tpu7x:2x2x1
jax: 0.10.0
libtpu: 0.0.40
codegen_flags: <defaults>
</compile_context>

<pallas_src>
import functools
import math

import numpy as np
import jax
import jax.numpy as jnp
from jax import lax
from jax.experimental import pallas as pl
from jax.experimental.pallas import tpu as pltpu

BN_EPS = 1e-5
LANE = 128
_VMEM_LIMIT = 32 * 1024 * 1024          # safe on v5e (raises 16MiB default) and v7x (<=64MiB)
_ROW_BUDGET = 6 * 1024 * 1024           # per-kernel budget for the row-tiled streams


def _cparams():
    return pltpu.CompilerParams(dimension_semantics=("parallel",),
                                vmem_limit_bytes=_VMEM_LIMIT)


# --------------------------------------------------------------------------- #
# tiling helpers
# --------------------------------------------------------------------------- #
def _pick_rows(R, per_row_bytes, *, budget=_ROW_BUDGET, mult=8):
    """Largest divisor of R whose block fits the VMEM budget.

    Returned tile is a multiple of `mult` (sublane alignment) unless it equals
    the full extent.  Falls back to the full extent when no aligned divisor
    fits the budget (the raised vmem_limit_bytes keeps that compiling).
    # TODO(synk): masked last tile for non-divisible row counts.
    """
    cap = max(1, min(R, budget // max(per_row_bytes, 1)))
    if cap >= R:
        return R
    for d in range(cap, 0, -1):
        if R % d == 0 and d % mult == 0:
            return d
    return R


def _pick_lanes(total, c, max_lanes=1024):
    """Widest lane width (multiple of lcm(c, 128), <= max_lanes) dividing `total`."""
    base = c * (LANE // math.gcd(LANE, c))
    assert total % base == 0, "batch*spatial*channel extent must tile the lane width"
    best, k = base, 2
    while base * k <= max_lanes:
        if total % (base * k) == 0:
            best = base * k
        k += 1
    return best


def _kfold(din, dout, target=256):
    """Row-fold factor k so that k*din and k*dout are both multiples of `target`."""
    a = target // math.gcd(target, din)
    b = target // math.gcd(target, dout)
    return a * b // math.gcd(a, b)


def tile_lanes(vec_c, lanes):
    """Tile a per-channel vector to a per-lane vector (channel fastest on lanes)."""
    c = vec_c.shape[0]
    assert lanes % c == 0
    return jnp.tile(vec_c, lanes // c)


def bn_affine(stats, count, gamma, beta, channels, eps=BN_EPS):
    """Training-mode BatchNorm scale/shift from per-lane (sum, sumsq) statistics."""
    s = stats.reshape(2, -1, channels).sum(axis=1)          # -> per-channel
    mean = s[0] / count
    var = s[1] / count - mean * mean                        # biased variance
    inv = gamma * lax.rsqrt(var + eps)
    return inv, beta - mean * inv


# --------------------------------------------------------------------------- #
# K1: MultiStepLIFNode with fused (optional) BatchNorm-apply, lane-dense.
# --------------------------------------------------------------------------- #
def _lif_kernel(x_ref, sc_ref, sh_ref, o_ref, *, tau, v_th, t_unroll):
    T, tm, L = x_ref.shape
    inv_tau = 1.0 / tau
    sc = sc_ref[...]
    sh = sh_ref[...]

    def step(t, v):
        xt = x_ref[t].astype(jnp.float32) * sc + sh
        v = v + (xt - v) * inv_tau
        spk = v >= v_th
        o_ref[t] = spk.astype(o_ref.dtype)
        return jnp.where(spk, 0.0, v)                       # hard reset

    lax.fori_loop(0, T, step, jnp.zeros((tm, L), jnp.float32), unroll=t_unroll)


def lif_forward(x_trl, scale=None, shift=None, *, tau=2.0, v_th=1.0,
                out_dtype=jnp.bfloat16):
    T, R, L = x_trl.shape
    if scale is None:
        scale = jnp.ones((1, L), jnp.float32)
        shift = jnp.zeros((1, L), jnp.float32)
    per_row = 2 * T * L * (x_trl.dtype.itemsize + 2)        # in + bf16 out, double-buffered
    tm = _pick_rows(R, per_row)
    return pl.pallas_call(
        functools.partial(_lif_kernel, tau=tau, v_th=v_th, t_unroll=(T <= 4)),
        out_shape=jax.ShapeDtypeStruct((T, R, L), out_dtype),
        grid=(R // tm,),
        in_specs=[pl.BlockSpec((T, tm, L), lambda i: (0, i, 0)),
                  pl.BlockSpec((1, L), lambda i: (0, 0)),
                  pl.BlockSpec((1, L), lambda i: (0, 0))],
        out_specs=pl.BlockSpec((T, tm, L), lambda i: (0, i, 0)),
        compiler_params=_cparams(),
    )(x_trl, scale, shift)


# --------------------------------------------------------------------------- #
# K2: affine-combine + LIF, fused.  Emits BOTH the combined tensor (residual
#     identity) and the spike tensor so the combined value is never re-read
#     from HBM by a separate LIF pass.
# --------------------------------------------------------------------------- #
def _combine_lif_kernel(sc_ref, sh_ref, *refs, n, tau, v_th, t_unroll):
    comb_ref, spk_ref = refs[n], refs[n + 1]
    T, tm, L = refs[0].shape
    inv_tau = 1.0 / tau
    sc = sc_ref[...]                                        # (n, L)
    sh = sh_ref[...]                                        # (1, L)

    def step(t, v):
        c = refs[0][t].astype(jnp.float32) * sc[0:1] + sh
        for i in range(1, n):
            c = c + refs[i][t].astype(jnp.float32) * sc[i:i + 1]
        comb_ref[t] = c.astype(comb_ref.dtype)
        v = v + (c - v) * inv_tau
        spk = v >= v_th
        spk_ref[t] = spk.astype(spk_ref.dtype)
        return jnp.where(spk, 0.0, v)                       # hard reset

    lax.fori_loop(0, T, step, jnp.zeros((tm, L), jnp.float32), unroll=t_unroll)


def combine_lif(tensors, scales, shift, *, tau=2.0, v_th=1.0,
                comb_dtype=jnp.bfloat16, spk_dtype=jnp.bfloat16):
    n = len(tensors)
    T, R, L = tensors[0].shape
    per_row = 2 * T * L * (sum(t.dtype.itemsize for t in tensors) + 2 + 2)
    tm = _pick_rows(R, per_row)
    g = R // tm
    sc = jnp.stack(scales, axis=0).astype(jnp.float32)
    sh = shift.reshape(1, L).astype(jnp.float32)
    in_specs = [pl.BlockSpec((n, L), lambda i: (0, 0)),
                pl.BlockSpec((1, L), lambda i: (0, 0))]
    in_specs += [pl.BlockSpec((T, tm, L), lambda i: (0, i, 0)) for _ in range(n)]
    return pl.pallas_call(
        functools.partial(_combine_lif_kernel, n=n, tau=tau, v_th=v_th,
                          t_unroll=(T <= 4)),
        out_shape=(jax.ShapeDtypeStruct((T, R, L), comb_dtype),
                   jax.ShapeDtypeStruct((T, R, L), spk_dtype)),
        grid=(g,),
        in_specs=in_specs,
        out_specs=(pl.BlockSpec((T, tm, L), lambda i: (0, i, 0)),
                   pl.BlockSpec((T, tm, L), lambda i: (0, i, 0))),
        compiler_params=_cparams(),
    )(sc, sh, *tensors)


# --------------------------------------------------------------------------- #
# K3: Haar 2-D transform with NegIF in between (+ input affine, + BN stats).
#     Row-Haar (A @ .) hoisted out of the recurrence as one batched bf16
#     matmul; NegIF recurrence vectorized over the full tb*H row tile.
# --------------------------------------------------------------------------- #
def _haar_negif_kernel(a_ref, k_ref, sc_ref, sh_ref, x_ref, o_ref, st_ref, *, vth, h):
    T, RB, WC = x_ref.shape                                 # RB = tb*H
    tb = RB // h
    a = a_ref[...].astype(jnp.bfloat16)                     # (H, H)
    km = k_ref[...]                                         # (WC, WC) bf16
    sc = sc_ref[...]
    sh = sh_ref[...]

    # ---- hoisted non-recurrent row-Haar for the whole (T, tb) block ----------
    x = x_ref[...]                                          # (T, RB, WC)
    xf = x.reshape(T * tb, h, WC).astype(jnp.float32) * sc + sh
    a_b = jnp.broadcast_to(a[None], (T * tb, h, h))
    u = jnp.einsum('sij,sjl->sil', a_b, xf.astype(jnp.bfloat16),
                   preferred_element_type=jnp.float32)
    u = u.reshape(T, RB, WC)

    # ---- NegIF recurrence over T, vectorized over all tb*H rows --------------
    v = jnp.zeros((RB, WC), jnp.float32)
    ssum = jnp.zeros((1, WC), jnp.float32)
    ssq = jnp.zeros((1, WC), jnp.float32)
    for t in range(T):                                      # T is small & static
        v = v + u[t]
        pos = v >= vth
        neg = v <= -vth
        s = pos.astype(jnp.float32) - neg.astype(jnp.float32)
        v = jnp.where(pos | neg, 0.0, v)                    # hard reset
        out = jnp.dot(s.astype(jnp.bfloat16), km, preferred_element_type=jnp.float32)
        o_ref[t] = out.astype(o_ref.dtype)
        ssum = ssum + jnp.sum(out, axis=0, keepdims=True)
        ssq = ssq + jnp.sum(out * out, axis=0, keepdims=True)
    st_ref[0] = jnp.concatenate([ssum, ssq], axis=0)


def haar_negif(x_tbh, a, kron_m, scale, shift, *, vth, B, H):
    T, BH, WC = x_tbh.shape
    assert BH == B * H
    mult_b = max(1, 8 // H) if H < 8 else 1
    per_b = 2 * T * H * WC * (x_tbh.dtype.itemsize + 2) + T * H * WC * 4
    tb = _pick_rows(B, per_b, mult=mult_b)
    g = B // tb
    y, st = pl.pallas_call(
        functools.partial(_haar_negif_kernel, vth=vth, h=H),
        out_shape=(jax.ShapeDtypeStruct((T, BH, WC), jnp.bfloat16),
                   jax.ShapeDtypeStruct((g, 2, WC), jnp.float32)),
        grid=(g,),
        in_specs=[pl.BlockSpec((H, H), lambda i: (0, 0)),
                  pl.BlockSpec((WC, WC), lambda i: (0, 0)),
                  pl.BlockSpec((1, WC), lambda i: (0, 0)),
                  pl.BlockSpec((1, WC), lambda i: (0, 0)),
                  pl.BlockSpec((T, tb * H, WC), lambda i: (0, i, 0))],
        out_specs=(pl.BlockSpec((T, tb * H, WC), lambda i: (0, i, 0)),
                   pl.BlockSpec((1, 2, WC), lambda i: (i, 0, 0))),
        compiler_params=_cparams(),
    )(a, kron_m, scale, shift, x_tbh)
    return y, jnp.sum(st, axis=0)


# --------------------------------------------------------------------------- #
# K4: lane-dense matmul (kron-folded block-diagonal weight) + BN statistics.
# --------------------------------------------------------------------------- #
def _matmul_stats_kernel(x_ref, w_ref, o_ref, st_ref):
    y = jnp.dot(x_ref[...], w_ref[...], preferred_element_type=jnp.float32)
    o_ref[...] = y.astype(o_ref.dtype)
    st_ref[0] = jnp.concatenate([jnp.sum(y, axis=0, keepdims=True),
                                 jnp.sum(y * y, axis=0, keepdims=True)], axis=0)


def matmul_stats(x2d, w2d, *, out_dtype=jnp.bfloat16):
    R, K = x2d.shape
    N = w2d.shape[1]
    w_bytes = 2 * K * N * w2d.dtype.itemsize
    per_row = 2 * (K * x2d.dtype.itemsize + N * 2)
    tm = _pick_rows(R, per_row, budget=max(1 << 20, _ROW_BUDGET - w_bytes))
    g = R // tm
    y, st = pl.pallas_call(
        _matmul_stats_kernel,
        out_shape=(jax.ShapeDtypeStruct((R, N), out_dtype),
                   jax.ShapeDtypeStruct((g, 2, N), jnp.float32)),
        grid=(g,),
        in_specs=[pl.BlockSpec((tm, K), lambda i: (i, 0)),
                  pl.BlockSpec((K, N), lambda i: (0, 0))],
        out_specs=(pl.BlockSpec((tm, N), lambda i: (i, 0)),
                   pl.BlockSpec((1, 2, N), lambda i: (i, 0, 0))),
        compiler_params=_cparams(),
    )(x2d, w2d)
    return y, jnp.sum(st, axis=0)


# --------------------------------------------------------------------------- #
# K5: 3x3 conv (pad=1, block-diag over channel groups) + fused 1x1 conv.
#     One matmul per H-tap over the unpadded tensor; vertical halo is built
#     in-VMEM by row-shifted adds (no HBM pad pass).  Emits BN stats for both.
# --------------------------------------------------------------------------- #
def _conv_dual_kernel(g2_ref, g1_ref, x_ref, o2_ref, o1_ref, st_ref):
    tn, H, WC = x_ref.shape
    xf = x_ref[...].reshape(tn * H, WC)                     # bf16 spikes
    y0 = jnp.dot(xf, g2_ref[0], preferred_element_type=jnp.float32).reshape(tn, H, WC)
    y1 = jnp.dot(xf, g2_ref[1], preferred_element_type=jnp.float32).reshape(tn, H, WC)
    y2 = jnp.dot(xf, g2_ref[2], preferred_element_type=jnp.float32).reshape(tn, H, WC)
    c1 = jnp.dot(xf, g1_ref[...], preferred_element_type=jnp.float32)
    zero = jnp.zeros((tn, 1, WC), jnp.float32)
    acc = (y1
           + jnp.concatenate([zero, y0[:, :H - 1, :]], axis=1)    # input row h-1
           + jnp.concatenate([y2[:, 1:, :], zero], axis=1))       # input row h+1
    o2_ref[...] = acc.astype(o2_ref.dtype)
    o1_ref[...] = c1.reshape(tn, H, WC).astype(o1_ref.dtype)
    accf = acc.reshape(tn * H, WC)
    st_ref[0] = jnp.concatenate(
        [jnp.sum(c1, axis=0, keepdims=True),
         jnp.sum(c1 * c1, axis=0, keepdims=True),
         jnp.sum(accf, axis=0, keepdims=True),
         jnp.sum(accf * accf, axis=0, keepdims=True)], axis=0)


def conv_dual(x_nhl, g2, g1):
    N, H, WC = x_nhl.shape
    per_n = 2 * H * WC * (x_nhl.dtype.itemsize + 2 + 2) + 4 * H * WC * 4
    tn = _pick_rows(N, per_n, mult=1)
    g = N // tn
    c2, c1, st = pl.pallas_call(
        _conv_dual_kernel,
        out_shape=(jax.ShapeDtypeStruct((N, H, WC), jnp.bfloat16),
                   jax.ShapeDtypeStruct((N, H, WC), jnp.bfloat16),
                   jax.ShapeDtypeStruct((g, 4, WC), jnp.float32)),
        grid=(g,),
        in_specs=[pl.BlockSpec((3, WC, WC), lambda i: (0, 0, 0)),
                  pl.BlockSpec((WC, WC), lambda i: (0, 0)),
                  pl.BlockSpec((tn, H, WC), lambda i: (i, 0, 0))],
        out_specs=(pl.BlockSpec((tn, H, WC), lambda i: (i, 0, 0)),
                   pl.BlockSpec((tn, H, WC), lambda i: (i, 0, 0)),
                   pl.BlockSpec((1, 4, WC), lambda i: (i, 0, 0))),
        compiler_params=_cparams(),
    )(g2, g1, x_nhl)
    return c2, c1, jnp.sum(st, axis=0)


# --------------------------------------------------------------------------- #
# K6: lane-dense affine-combine:  out = sum_i (scale_i * x_i) + shift
# --------------------------------------------------------------------------- #
def _make_combine_kernel(n):
    def kernel(sc_ref, sh_ref, *refs):
        out_ref = refs[n]
        sc = sc_ref[...]
        acc = refs[0][...].astype(jnp.float32) * sc[0:1] + sh_ref[...]
        for i in range(1, n):
            acc = acc + refs[i][...].astype(jnp.float32) * sc[i:i + 1]
        out_ref[...] = acc.astype(out_ref.dtype)
    return kernel


def combine_affine(tensors, scales, shift, *, out_dtype=jnp.float32):
    n = len(tensors)
    R, L = tensors[0].shape
    per_row = 2 * L * (sum(t.dtype.itemsize for t in tensors) + 4)
    tm = _pick_rows(R, per_row)
    g = R // tm
    sc = jnp.stack(scales, axis=0).astype(jnp.float32)
    sh = shift.reshape(1, L).astype(jnp.float32)
    in_specs = [pl.BlockSpec((n, L), lambda i: (0, 0)),
                pl.BlockSpec((1, L), lambda i: (0, 0))]
    in_specs += [pl.BlockSpec((tm, L), lambda i: (i, 0)) for _ in range(n)]
    return pl.pallas_call(
        _make_combine_kernel(n),
        out_shape=jax.ShapeDtypeStruct((R, L), out_dtype),
        grid=(g,),
        in_specs=in_specs,
        out_specs=pl.BlockSpec((tm, L), lambda i: (i, 0)),
        compiler_params=_cparams(),
    )(sc, sh, *tensors)


# --------------------------------------------------------------------------- #
# host-side constant preparation (Haar matrices, block-diag / kron weights)
# --------------------------------------------------------------------------- #
def haar_matrix_np(n):
    assert n & (n - 1) == 0 and n > 0
    h = np.array([[1.0]])
    k = 1
    while k < n:
        top = np.kron(h, [1.0, 1.0])
        bot = np.kron(np.eye(k), [1.0, -1.0])
        h = np.concatenate([top, bot], axis=0) / np.sqrt(2.0)
        k *= 2
    return h.astype(np.float32)


def _block_diag_np(blocks):
    nb, a, b = blocks.shape
    out = np.zeros((nb * a, nb * b), np.float32)
    for i in range(nb):
        out[i * a:(i + 1) * a, i * b:(i + 1) * b] = blocks[i]
    return out


def prepare_constants(p, *, C, H, W, nb, hidden, fold_target=256):
    WC = W * C
    hm = haar_matrix_np(H)                                  # orthonormal Haar
    eye_c = np.eye(C, dtype=np.float32)

    w_mix = _block_diag_np(np.asarray(p['haar_weight'], np.float32))       # (C, C)
    w_c1 = np.kron(np.eye(nb, dtype=np.float32),
                   np.asarray(p['conv1_w'], np.float32))                   # (C, C)
    w_fc1 = np.asarray(p['fc1_w'], np.float32)                             # (C, hidden)
    w_fc2 = np.asarray(p['fc2_w'], np.float32)                             # (hidden, C)

    # conv2 as three banded row-tap matrices G2[dh] : (W*C, W*C)
    w2 = np.asarray(p['conv2_w'], np.float32)                              # (3,3,in,out)
    g2 = np.zeros((3, WC, WC), np.float32)
    for dh in range(3):
        for dw in range(3):
            tap = np.kron(np.eye(nb, dtype=np.float32), w2[dh, dw])        # (C, C)
            for w_out in range(W):
                w_in = w_out + dw - 1
                if 0 <= w_in < W:
                    g2[dh, w_in * C:(w_in + 1) * C, w_out * C:(w_out + 1) * C] = tap
    g1 = np.kron(np.eye(W, dtype=np.float32), w_c1)                        # (WC, WC)

    k_mix = _kfold(C, C, fold_target)
    k_fc1 = _kfold(C, hidden, fold_target)
    k_fc2 = _kfold(hidden, C, fold_target)
    return {
        'hm': jnp.asarray(hm, jnp.float32),
        'hm_T': jnp.asarray(hm.T, jnp.float32),
        'kron_fwd': jnp.asarray(np.kron(hm.T, eye_c), jnp.bfloat16),  # s @ Hm^T per chan
        'kron_inv': jnp.asarray(np.kron(hm, eye_c), jnp.bfloat16),    # s @ Hm   per chan
        'w_mix_kron': jnp.asarray(np.kron(np.eye(k_mix, dtype=np.float32), w_mix),
                                  jnp.bfloat16),
        'w_fc1_kron': jnp.asarray(np.kron(np.eye(k_fc1, dtype=np.float32), w_fc1),
                                  jnp.bfloat16),
        'w_fc2_kron': jnp.asarray(np.kron(np.eye(k_fc2, dtype=np.float32), w_fc2),
                                  jnp.bfloat16),
        'g2': jnp.asarray(g2, jnp.bfloat16),
        'g1': jnp.asarray(g1, jnp.bfloat16),
        'k_mix': k_mix, 'k_fc1': k_fc1, 'k_fc2': k_fc2,
    }


# --------------------------------------------------------------------------- #
# FATM branch computation (combine with identity is fused with the MLP LIF)
# --------------------------------------------------------------------------- #
def fatm_branches(x_cl, p, consts, vth):
    T, B, H, W, C = x_cl.shape
    WC = W * C
    M = T * B * H * W
    assert H == W and WC % LANE == 0
    L = _pick_lanes(B * H * W * C, C)
    ones_l = jnp.ones((L,), jnp.float32)

    # --- x_neuron (LIF) -> bf16 spikes ----------------------------------------
    xs = lif_forward(x_cl.reshape(T, -1, L))

    # --- haar_forward (Hm @ X @ Hm^T with NegIF) + haar_forward_bn stats -------
    haar_raw, st = haar_negif(xs.reshape(T, B * H, WC), consts['hm'],
                              consts['kron_fwd'],
                              jnp.ones((1, WC), jnp.float32),
                              jnp.zeros((1, WC), jnp.float32), vth=vth, B=B, H=H)
    a_hf, b_hf = bn_affine(st, M, p['haar_forward_bn_g'], p['haar_forward_bn_b'], C)

    # --- haar_neuron: BN-apply fused into the LIF kernel ------------------------
    hn = lif_forward(haar_raw.reshape(T, -1, L),
                     tile_lanes(a_hf, L).reshape(1, L),
                     tile_lanes(b_hf, L).reshape(1, L))

    # --- block-diagonal channel mixing (haar_weight) + haar_bn stats ------------
    k_mix = consts['k_mix']
    assert (T * B * H * W) % k_mix == 0
    ymix, st = matmul_stats(hn.reshape(-1, k_mix * C), consts['w_mix_kron'])
    a_mx, b_mx = bn_affine(st, M, p['haar_bn_g'], p['haar_bn_b'], C)

    # --- haar_inverse (Hm^T @ X @ Hm, NegIF); haar_bn applied at its input ------
    hinv_raw, st = haar_negif(ymix.reshape(T, B * H, WC), consts['hm_T'],
                              consts['kron_inv'],
                              tile_lanes(a_mx, WC).reshape(1, WC),
                              tile_lanes(b_mx, WC).reshape(1, WC), vth=vth, B=B, H=H)
    a_hi, b_hi = bn_affine(st, M, p['haar_inverse_bn_g'], p['haar_inverse_bn_b'], C)

    # --- conv1 (1x1) + conv2 (3x3 pad=1) fused, halo built in-VMEM --------------
    c2_raw, c1_raw, cst = conv_dual(xs.reshape(T * B, H, WC), consts['g2'], consts['g1'])
    a_c1, b_c1 = bn_affine(cst[0:2], M, p['conv1_bn_g'], p['conv1_bn_b'], C)
    a_c2, b_c2 = bn_affine(cst[2:4], M, p['conv2_bn_g'], p['conv2_bn_b'], C)

    branches = [hinv_raw.reshape(T, -1, L), c1_raw.reshape(T, -1, L),
                c2_raw.reshape(T, -1, L), x_cl.reshape(T, -1, L)]
    scales = [tile_lanes(a_hi, L), tile_lanes(a_c1, L), tile_lanes(a_c2, L), ones_l]
    shift = tile_lanes(b_hi + b_c1 + b_c2, L)
    return branches, scales, shift


# --------------------------------------------------------------------------- #
# MS_MLP_Conv forward, starting from the fused (FATM-output, fc1_lif spikes)
# --------------------------------------------------------------------------- #
def mlp_from_spikes(x_attn, s1, shape5, p, consts):
    T, B, H, W, C = shape5
    M = T * B * H * W
    hidden = p['fc1_bn_g'].shape[0]
    L_c = x_attn.shape[-1]
    ones_lc = jnp.ones((L_c,), jnp.float32)
    k1, k2 = consts['k_fc1'], consts['k_fc2']
    assert (T * B * H * W) % k1 == 0 and (T * B * H * W) % k2 == 0

    y1, st = matmul_stats(s1.reshape(-1, k1 * C), consts['w_fc1_kron'])
    a1, b1 = bn_affine(st, M, p['fc1_bn_g'], p['fc1_bn_b'], hidden)

    if C == hidden:
        # residual: h = BN(fc1) + identity, and fc2_lif(h) fused with the combine
        identity, s2 = combine_lif([y1.reshape(x_attn.shape), x_attn],
                                   [tile_lanes(a1, L_c), ones_lc],
                                   tile_lanes(b1, L_c))
    else:
        L_h = _pick_lanes(B * H * W * hidden, hidden)
        s2 = lif_forward(y1.reshape(T, -1, L_h),
                         tile_lanes(a1, L_h).reshape(1, L_h),
                         tile_lanes(b1, L_h).reshape(1, L_h))
        identity = x_attn

    y2, st = matmul_stats(s2.reshape(-1, k2 * hidden), consts['w_fc2_kron'])
    a2, b2 = bn_affine(st, M, p['fc2_bn_g'], p['fc2_bn_b'], C)

    out = combine_affine([y2.reshape(-1, L_c), identity.reshape(-1, L_c)],
                         [tile_lanes(a2, L_c), ones_lc],
                         tile_lanes(b2, L_c))
    return out.reshape(T, B, H, W, C)


# --------------------------------------------------------------------------- #
# MS_Block_Conv forward
# --------------------------------------------------------------------------- #
def ms_block_conv_forward(x, p, consts, vth=1.0):
    # x: (T, B, C, H, W) as in the PyTorch reference; channels-last internally.
    x_cl = jnp.transpose(x, (0, 1, 3, 4, 2)).astype(jnp.float32)
    T, B, H, W, C = x_cl.shape

    branches, scales, shift = fatm_branches(x_cl, p, consts, vth)
    # FATM branch-combine fused with the MLP's fc1_lif: one pass emits both the
    # combined FATM output (residual identity for the MLP) and the spikes.
    x_attn, s1 = combine_lif(branches, scales, shift)

    out_cl = mlp_from_spikes(x_attn, s1, (T, B, H, W, C), p, consts)
    return jnp.transpose(out_cl, (0, 1, 4, 2, 3))


# --------------------------------------------------------------------------- #
if __name__ == "__main__":
    T, B, C, H, W = 2, 2, 16, 8, 8
    FL_blocks = 4
    mlp_ratio = 4.0
    nb = FL_blocks
    bs = C // nb
    hidden = int(C * mlp_ratio)

    keys = jax.random.split(jax.random.PRNGKey(0), 6)
    p = {
        'haar_weight': 0.02 * jax.random.normal(keys[0], (nb, bs, bs), jnp.float32),
        'conv1_w': 0.1 * jax.random.normal(keys[1], (bs, bs), jnp.float32),        # [in, out]
        'conv2_w': 0.1 * jax.random.normal(keys[2], (3, 3, bs, bs), jnp.float32),  # [kh,kw,in,out]
        'fc1_w': 0.1 * jax.random.normal(keys[3], (C, hidden), jnp.float32),       # [in, out]
        'fc2_w': 0.1 * jax.random.normal(keys[4], (hidden, C), jnp.float32),
        # conv/fc biases omitted: exactly cancelled by the training-mode BN that follows.
        # BatchNorm2d defaults (training-mode batch statistics): gamma=1, beta=0
        'haar_forward_bn_g': jnp.ones((C,), jnp.float32),
        'haar_forward_bn_b': jnp.zeros((C,), jnp.float32),
        'haar_bn_g': jnp.ones((C,), jnp.float32),
        'haar_bn_b': jnp.zeros((C,), jnp.float32),
        'conv1_bn_g': jnp.ones((C,), jnp.float32),
        'conv1_bn_b': jnp.zeros((C,), jnp.float32),
        'conv2_bn_g': jnp.ones((C,), jnp.float32),
        'conv2_bn_b': jnp.zeros((C,), jnp.float32),
        'haar_inverse_bn_g': jnp.ones((C,), jnp.float32),
        'haar_inverse_bn_b': jnp.zeros((C,), jnp.float32),
        'fc1_bn_g': jnp.ones((hidden,), jnp.float32),
        'fc1_bn_b': jnp.zeros((hidden,), jnp.float32),
        'fc2_bn_g': jnp.ones((C,), jnp.float32),
        'fc2_bn_b': jnp.zeros((C,), jnp.float32),
    }

    consts = prepare_constants(p, C=C, H=H, W=W, nb=nb, hidden=hidden)
    x = 2.0 * jax.random.normal(keys[5], (T, B, C, H, W), jnp.float32)

    forward = jax.jit(lambda xx: ms_block_conv_forward(xx, p, consts, vth=1.0))
    out = jax.block_until_ready(forward(x))
    assert out.shape == (T, B, C, H, W)
    assert bool(jnp.all(jnp.isfinite(out)))
    print("KERNEL_OK")
</pallas_src>

<mosaic_0001>
module attributes {stable_mosaic.version = 11 : i64} {
  func.func @_lif_kernel(%arg0: i32, %arg1: memref<2x2x1024xf32, #tpu.memory_space<vmem>>, %arg2: memref<1x1024xf32, #tpu.memory_space<vmem>>, %arg3: memref<1x1024xf32, #tpu.memory_space<vmem>>, %arg4: memref<2x2x1024xbf16, #tpu.memory_space<vmem>>) attributes {dimension_semantics = [#tpu.dimension_semantics<parallel>], iteration_bounds = array<i64: 1>, scalar_prefetch = 0 : i64, scratch_operands = 0 : i64, tpu.core_type = #tpu.core_type<tc>, window_params = [{transform_indices = @transform_0, window_bounds = array<i64: 2, 2, 1024>}, {pipeline_mode = #tpu.pipeline_mode<synchronous>, transform_indices = @transform_1, window_bounds = array<i64: 1, 1024>}, {pipeline_mode = #tpu.pipeline_mode<synchronous>, transform_indices = @transform_2, window_bounds = array<i64: 1, 1024>}, {transform_indices = @transform_3, window_bounds = array<i64: 2, 2, 1024>}]} {
    %c0 = arith.constant 0 : index
    %c0_0 = arith.constant 0 : index
    %0 = vector.load %arg2[%c0, %c0_0] : memref<1x1024xf32, #tpu.memory_space<vmem>>, vector<1x1024xf32>
    %c0_1 = arith.constant 0 : index
    %c0_2 = arith.constant 0 : index
    %1 = vector.load %arg3[%c0_1, %c0_2] : memref<1x1024xf32, #tpu.memory_space<vmem>>, vector<1x1024xf32>
    %cst = arith.constant 0.000000e+00 : f32
    %2 = vector.broadcast %cst : f32 to vector<2x1024xf32>
    %c0_i32 = arith.constant 0 : i32
    %3 = arith.index_cast %c0_i32 : i32 to index
    %c0_3 = arith.constant 0 : index
    %c0_4 = arith.constant 0 : index
    %4 = vector.load %arg1[%3, %c0_3, %c0_4] : memref<2x2x1024xf32, #tpu.memory_space<vmem>>, vector<1x2x1024xf32>
    %5 = vector.shape_cast %4 : vector<1x2x1024xf32> to vector<2x1024xf32>
    %6 = vector.broadcast %0 : vector<1x1024xf32> to vector<2x1024xf32>
    %7 = arith.mulf %5, %6 : vector<2x1024xf32>
    %8 = vector.broadcast %1 : vector<1x1024xf32> to vector<2x1024xf32>
    %9 = arith.addf %7, %8 : vector<2x1024xf32>
    %10 = arith.subf %9, %2 : vector<2x1024xf32>
    %cst_5 = arith.constant 5.000000e-01 : f32
    %11 = vector.broadcast %cst_5 : f32 to vector<2x1024xf32>
    %12 = arith.mulf %10, %11 : vector<2x1024xf32>
    %13 = arith.addf %2, %12 : vector<2x1024xf32>
    %cst_6 = arith.constant 1.000000e+00 : f32
    %14 = vector.broadcast %cst_6 : f32 to vector<2x1024xf32>
    %15 = arith.cmpf oge, %13, %14 : vector<2x1024xf32>
    %16 = arith.extui %15 : vector<2x1024xi1> to vector<2x1024xi32>
    %17 = arith.sitofp %16 : vector<2x1024xi32> to vector<2x1024xf32>
    %18 = arith.truncf %17 : vector<2x1024xf32> to vector<2x1024xbf16>
    %19 = arith.index_cast %c0_i32 : i32 to index
    %c0_7 = arith.constant 0 : index
    %c0_8 = arith.constant 0 : index
    %20 = vector.load %arg4[%19, %c0_7, %c0_8] : memref<2x2x1024xbf16, #tpu.memory_space<vmem>>, vector<1x2x1024xbf16>
    %21 = vector.shape_cast %20 : vector<1x2x1024xbf16> to vector<2x1024xbf16>
    %22 = vector.shape_cast %18 : vector<2x1024xbf16> to vector<1x2x1024xbf16>
    tpu.vector_store %arg4[%19, %c0_7, %c0_8], %22 {strides = array<i32>} : memref<2x2x1024xbf16, #tpu.memory_space<vmem>>, vector<1x2x1024xbf16>,
    %cst_9 = arith.constant 0.000000e+00 : f32
    %23 = vector.broadcast %cst_9 : f32 to vector<2x1024xf32>
    %24 = arith.select %15, %23, %13 : vector<2x1024xi1>, vector<2x1024xf32>
    %c1_i32 = arith.constant 1 : i32
    %25 = arith.index_cast %c1_i32 : i32 to index
    %c0_10 = arith.constant 0 : index
    %c0_11 = arith.constant 0 : index
    %26 = vector.load %arg1[%25, %c0_10, %c0_11] : memref<2x2x1024xf32, #tpu.memory_space<vmem>>, vector<1x2x1024xf32>
    %27 = vector.shape_cast %26 : vector<1x2x1024xf32> to vector<2x1024xf32>
    %28 = vector.broadcast %0 : vector<1x1024xf32> to vector<2x1024xf32>
    %29 = arith.mulf %27, %28 : vector<2x1024xf32>
    %30 = vector.broadcast %1 : vector<1x1024xf32> to vector<2x1024xf32>
    %31 = arith.addf %29, %30 : vector<2x1024xf32>
    %32 = arith.subf %31, %24 : vector<2x1024xf32>
    %cst_12 = arith.constant 5.000000e-01 : f32
    %33 = vector.broadcast %cst_12 : f32 to vector<2x1024xf32>
    %34 = arith.mulf %32, %33 : vector<2x1024xf32>
    %35 = arith.addf %24, %34 : vector<2x1024xf32>
    %cst_13 = arith.constant 1.000000e+00 : f32
    %36 = vector.broadcast %cst_13 : f32 to vector<2x1024xf32>
    %37 = arith.cmpf oge, %35, %36 : vector<2x1024xf32>
    %38 = arith.extui %37 : vector<2x1024xi1> to vector<2x1024xi32>
    %39 = arith.sitofp %38 : vector<2x1024xi32> to vector<2x1024xf32>
    %40 = arith.truncf %39 : vector<2x1024xf32> to vector<2x1024xbf16>
    %41 = arith.index_cast %c1_i32 : i32 to index
    %c0_14 = arith.constant 0 : index
    %c0_15 = arith.constant 0 : index
    %42 = vector.load %arg4[%41, %c0_14, %c0_15] : memref<2x2x1024xbf16, #tpu.memory_space<vmem>>, vector<1x2x1024xbf16>
    %43 = vector.shape_cast %42 : vector<1x2x1024xbf16> to vector<2x1024xbf16>
    %44 = vector.shape_cast %40 : vector<2x1024xbf16> to vector<1x2x1024xbf16>
    tpu.vector_store %arg4[%41, %c0_14, %c0_15], %44 {strides = array<i32>} : memref<2x2x1024xbf16, #tpu.memory_space<vmem>>, vector<1x2x1024xbf16>,
    %cst_16 = arith.constant 0.000000e+00 : f32
    %45 = vector.broadcast %cst_16 : f32 to vector<2x1024xf32>
    %46 = arith.select %37, %45, %35 : vector<2x1024xi1>, vector<2x1024xf32>
    %c2_i32 = arith.constant 2 : i32
    return
  }
  func.func @transform_0(%arg0: i32) -> (i32, i32, i32) {
    %c0_i32 = arith.constant 0 : i32
    %c0_i32_0 = arith.constant 0 : i32
    %c0_i32_1 = arith.constant 0 : i32
    return %c0_i32, %arg0, %c0_i32_0 : i32, i32, i32
  }
  func.func @transform_1(%arg0: i32) -> (i32, i32) {
    %c0_i32 = arith.constant 0 : i32
    %c0_i32_0 = arith.constant 0 : i32
    %c0_i32_1 = arith.constant 0 : i32
    return %c0_i32, %c0_i32_0 : i32, i32
  }
  func.func @transform_2(%arg0: i32) -> (i32, i32) {
    %c0_i32 = arith.constant 0 : i32
    %c0_i32_0 = arith.constant 0 : i32
    %c0_i32_1 = arith.constant 0 : i32
    return %c0_i32, %c0_i32_0 : i32, i32
  }
  func.func @transform_3(%arg0: i32) -> (i32, i32, i32) {
    %c0_i32 = arith.constant 0 : i32
    %c0_i32_0 = arith.constant 0 : i32
    %c0_i32_1 = arith.constant 0 : i32
    return %c0_i32, %arg0, %c0_i32_0 : i32, i32, i32
  }
}

module attributes {stable_mosaic.version = 11 : i64} {
  func.func @_haar_negif_kernel(%arg0: i32, %arg1: memref<8x8xf32, #tpu.memory_space<vmem>>, %arg2: memref<128x128xbf16, #tpu.memory_space<vmem>>, %arg3: memref<1x128xf32, #tpu.memory_space<vmem>>, %arg4: memref<1x128xf32, #tpu.memory_space<vmem>>, %arg5: memref<2x16x128xbf16, #tpu.memory_space<vmem>>, %arg6: memref<2x16x128xbf16, #tpu.memory_space<vmem>>, %arg7: memref<1x2x128xf32, #tpu.memory_space<vmem>>) attributes {dimension_semantics = [#tpu.dimension_semantics<parallel>], iteration_bounds = array<i64: 1>, scalar_prefetch = 0 : i64, scratch_operands = 0 : i64, tpu.core_type = #tpu.core_type<tc>, window_params = [{pipeline_mode = #tpu.pipeline_mode<synchronous>, transform_indices = @transform_0, window_bounds = array<i64: 8, 8>}, {pipeline_mode = #tpu.pipeline_mode<synchronous>, transform_indices = @transform_1, window_bounds = array<i64: 128, 128>}, {pipeline_mode = #tpu.pipeline_mode<synchronous>, transform_indices = @transform_2, window_bounds = array<i64: 1, 128>}, {pipeline_mode = #tpu.pipeline_mode<synchronous>, transform_indices = @transform_3, window_bounds = array<i64: 1, 128>}, {transform_indices = @transform_4, window_bounds = array<i64: 2, 16, 128>}, {transform_indices = @transform_5, window_bounds = array<i64: 2, 16, 128>}, {transform_indices = @transform_6, window_bounds = array<i64: 1, 2, 128>}]} {
    %c0 = arith.constant 0 : index
    %c0_0 = arith.constant 0 : index
    %0 = vector.load %arg1[%c0, %c0_0] : memref<8x8xf32, #tpu.memory_space<vmem>>, vector<8x8xf32>
    %1 = arith.truncf %0 : vector<8x8xf32> to vector<8x8xbf16>
    %c0_1 = arith.constant 0 : index
    %c0_2 = arith.constant 0 : index
    %2 = vector.load %arg2[%c0_1, %c0_2] : memref<128x128xbf16, #tpu.memory_space<vmem>>, vector<128x128xbf16>
    %c0_3 = arith.constant 0 : index
    %c0_4 = arith.constant 0 : index
    %3 = vector.load %arg3[%c0_3, %c0_4] : memref<1x128xf32, #tpu.memory_space<vmem>>, vector<1x128xf32>
    %c0_5 = arith.constant 0 : index
    %c0_6 = arith.constant 0 : index
    %4 = vector.load %arg4[%c0_5, %c0_6] : memref<1x128xf32, #tpu.memory_space<vmem>>, vector<1x128xf32>
    %c0_7 = arith.constant 0 : index
    %c0_8 = arith.constant 0 : index
    %c0_9 = arith.constant 0 : index
    %5 = vector.load %arg5[%c0_7, %c0_8, %c0_9] : memref<2x16x128xbf16, #tpu.memory_space<vmem>>, vector<2x16x128xbf16>
    %6 = vector.shape_cast %5 : vector<2x16x128xbf16> to vector<4x8x128xbf16>
    %7 = arith.extf %6 : vector<4x8x128xbf16> to vector<4x8x128xf32>
    %8 = vector.shape_cast %3 : vector<1x128xf32> to vector<1x1x128xf32>
    %9 = vector.broadcast %8 : vector<1x1x128xf32> to vector<4x8x128xf32>
    %10 = arith.mulf %7, %9 : vector<4x8x128xf32>
    %11 = vector.shape_cast %4 : vector<1x128xf32> to vector<1x1x128xf32>
    %12 = vector.broadcast %11 : vector<1x1x128xf32> to vector<4x8x128xf32>
    %13 = arith.addf %10, %12 : vector<4x8x128xf32>
    %14 = vector.shape_cast %1 : vector<8x8xbf16> to vector<1x8x8xbf16>
    %15 = vector.shape_cast %14 : vector<1x8x8xbf16> to vector<1x8x8xbf16>
    %16 = vector.broadcast %15 : vector<1x8x8xbf16> to vector<4x8x8xbf16>
    %17 = arith.truncf %13 : vector<4x8x128xf32> to vector<4x8x128xbf16>
    "tpu.trace_start"() <{level = 10 : i32, message = "sij,sjl->sil"}> : () -> ()
    %cst = arith.constant dense<0.000000e+00> : vector<4x8x128xf32>
    %18 = tpu.matmul %16, %17, %cst {dimension_numbers = #tpu.dot_dimension_numbers<[2], [1], [1], [2], [0, 0, 0, 1, 1, 2], [0], [0]>} : vector<4x8x8xbf16>, vector<4x8x128xbf16>, vector<4x8x128xf32> -> vector<4x8x128xf32>
    "tpu.trace_stop"() : () -> ()
    %19 = vector.shape_cast %18 : vector<4x8x128xf32> to vector<2x16x128xf32>
    %cst_10 = arith.constant 0.000000e+00 : f32
    %20 = vector.broadcast %cst_10 : f32 to vector<16x128xf32>
    %cst_11 = arith.constant 0.000000e+00 : f32
    %21 = vector.broadcast %cst_11 : f32 to vector<1x128xf32>
    %cst_12 = arith.constant 0.000000e+00 : f32
    %22 = vector.broadcast %cst_12 : f32 to vector<1x128xf32>
    %23 = vector.extract_strided_slice %19 {offsets = [0, 0, 0], sizes = [1, 16, 128], strides = [1, 1, 1]} : vector<2x16x128xf32> to vector<1x16x128xf32>
    %24 = vector.shape_cast %23 : vector<1x16x128xf32> to vector<16x128xf32>
    %25 = arith.addf %20, %24 : vector<16x128xf32>
    %cst_13 = arith.constant 1.000000e+00 : f32
    %26 = vector.broadcast %cst_13 : f32 to vector<16x128xf32>
    %27 = arith.cmpf oge, %25, %26 : vector<16x128xf32>
    %cst_14 = arith.constant -1.000000e+00 : f32
    %28 = vector.broadcast %cst_14 : f32 to vector<16x128xf32>
    %29 = arith.cmpf ole, %25, %28 : vector<16x128xf32>
    %30 = arith.extui %27 : vector<16x128xi1> to vector<16x128xi32>
    %31 = arith.sitofp %30 : vector<16x128xi32> to vector<16x128xf32>
    %32 = arith.extui %29 : vector<16x128xi1> to vector<16x128xi32>
    %33 = arith.sitofp %32 : vector<16x128xi32> to vector<16x128xf32>
    %34 = arith.subf %31, %33 : vector<16x128xf32>
    %35 = arith.ori %27, %29 : vector<16x128xi1>
    %cst_15 = arith.constant 0.000000e+00 : f32
    %36 = vector.broadcast %cst_15 : f32 to vector<16x128xf32>
    %37 = arith.select %35, %36, %25 : vector<16x128xi1>, vector<16x128xf32>
    %38 = arith.truncf %34 : vector<16x128xf32> to vector<16x128xbf16>
    %cst_16 = arith.constant dense<0.000000e+00> : vector<16x128xf32>
    %39 = tpu.matmul %38, %2, %cst_16 {dimension_numbers = #tpu.dot_dimension_numbers<[1], [0], [0], [1], [0, 0, 1, 1], [], []>} : vector<16x128xbf16>, vector<128x128xbf16>, vector<16x128xf32> -> vector<16x128xf32>
    %40 = arith.truncf %39 : vector<16x128xf32> to vector<16x128xbf16>
    %c0_17 = arith.constant 0 : index
    %c0_18 = arith.constant 0 : index
    %c0_19 = arith.constant 0 : index
    %41 = vector.load %arg6[%c0_17, %c0_18, %c0_19] : memref<2x16x128xbf16, #tpu.memory_space<vmem>>, vector<1x16x128xbf16>
    %42 = vector.shape_cast %41 : vector<1x16x128xbf16> to vector<16x128xbf16>
    %43 = vector.shape_cast %40 : vector<16x128xbf16> to vector<1x16x128xbf16>
    tpu.vector_store %arg6[%c0_17, %c0_18, %c0_19], %43 {strides = array<i32>} : memref<2x16x128xbf16, #tpu.memory_space<vmem>>, vector<1x16x128xbf16>,
    %cst_20 = arith.constant dense<0.000000e+00> : vector<128xf32>
    %44 = vector.multi_reduction <add>, %39, %cst_20 [0] : vector<16x128xf32> to vector<128xf32>
    %45 = vector.shape_cast %44 : vector<128xf32> to vector<1x128xf32>
    %46 = arith.addf %21, %45 : vector<1x128xf32>
    %47 = arith.mulf %39, %39 : vector<16x128xf32>
    %cst_21 = arith.constant dense<0.000000e+00> : vector<128xf32>
    %48 = vector.multi_reduction <add>, %47, %cst_21 [0] : vector<16x128xf32> to vector<128xf32>
    %49 = vector.shape_cast %48 : vector<128xf32> to vector<1x128xf32>
    %50 = arith.addf %22, %49 : vector<1x128xf32>
    %51 = vector.extract_strided_slice %19 {offsets = [1, 0, 0], sizes = [1, 16, 128], strides = [1, 1, 1]} : vector<2x16x128xf32> to vector<1x16x128xf32>
    %52 = vector.shape_cast %51 : vector<1x16x128xf32> to vector<16x128xf32>
    %53 = arith.addf %37, %52 : vector<16x128xf32>
    %cst_22 = arith.constant 1.000000e+00 : f32
    %54 = vector.broadcast %cst_22 : f32 to vector<16x128xf32>
    %55 = arith.cmpf oge, %53, %54 : vector<16x128xf32>
    %cst_23 = arith.constant -1.000000e+00 : f32
    %56 = vector.broadcast %cst_23 : f32 to vector<16x128xf32>
    %57 = arith.cmpf ole, %53, %56 : vector<16x128xf32>
    %58 = arith.extui %55 : vector<16x128xi1> to vector<16x128xi32>
    %59 = arith.sitofp %58 : vector<16x128xi32> to vector<16x128xf32>
    %60 = arith.extui %57 : vector<16x128xi1> to vector<16x128xi32>
    %61 = arith.sitofp %60 : vector<16x128xi32> to vector<16x128xf32>
    %62 = arith.subf %59, %61 : vector<16x128xf32>
    %63 = arith.truncf %62 : vector<16x128xf32> to vector<16x128xbf16>
    %cst_24 = arith.constant dense<0.000000e+00> : vector<16x128xf32>
    %64 = tpu.matmul %63, %2, %cst_24 {dimension_numbers = #tpu.dot_dimension_numbers<[1], [0], [0], [1], [0, 0, 1, 1], [], []>} : vector<16x128xbf16>, vector<128x128xbf16>, vector<16x128xf32> -> vector<16x128xf32>
    %65 = arith.truncf %64 : vector<16x128xf32> to vector<16x128xbf16>
    %c1 = arith.constant 1 : index
    %c0_25 = arith.constant 0 : index
    %c0_26 = arith.constant 0 : index
    %66 = vector.load %arg6[%c1, %c0_25, %c0_26] : memref<2x16x128xbf16, #tpu.memory_space<vmem>>, vector<1x16x128xbf16>
    %67 = vector.shape_cast %66 : vector<1x16x128xbf16> to vector<16x128xbf16>
    %68 = vector.shape_cast %65 : vector<16x128xbf16> to vector<1x16x128xbf16>
    tpu.vector_store %arg6[%c1, %c0_25, %c0_26], %68 {strides = array<i32>} : memref<2x16x128xbf16, #tpu.memory_space<vmem>>, vector<1x16x128xbf16>,
    %cst_27 = arith.constant dense<0.000000e+00> : vector<128xf32>
    %69 = vector.multi_reduction <add>, %64, %cst_27 [0] : vector<16x128xf32> to vector<128xf32>
    %70 = vector.shape_cast %69 : vector<128xf32> to vector<1x128xf32>
    %71 = arith.addf %46, %70 : vector<1x128xf32>
    %72 = arith.mulf %64, %64 : vector<16x128xf32>
    %cst_28 = arith.constant dense<0.000000e+00> : vector<128xf32>
    %73 = vector.multi_reduction <add>, %72, %cst_28 [0] : vector<16x128xf32> to vector<128xf32>
    %74 = vector.shape_cast %73 : vector<128xf32> to vector<1x128xf32>
    %75 = arith.addf %50, %74 : vector<1x128xf32>
    %76 = tpu.concatenate %71, %75 in 0 : vector<1x128xf32>, vector<1x128xf32> -> vector<2x128xf32>
    %c0_29 = arith.constant 0 : index
    %c0_30 = arith.constant 0 : index
    %c0_31 = arith.constant 0 : index
    %77 = vector.load %arg7[%c0_29, %c0_30, %c0_31] : memref<1x2x128xf32, #tpu.memory_space<vmem>>, vector<1x2x128xf32>
    %78 = vector.shape_cast %77 : vector<1x2x128xf32> to vector<2x128xf32>
    %79 = vector.shape_cast %76 : vector<2x128xf32> to vector<1x2x128xf32>
    tpu.vector_store %arg7[%c0_29, %c0_30, %c0_31], %79 {strides = array<i32>} : memref<1x2x128xf32, #tpu.memory_space<vmem>>, vector<1x2x128xf32>,
    return
  }
  func.func @transform_0(%arg0: i32) -> (i32, i32) {
    %c0_i32 = arith.constant 0 : i32
    %c0_i32_0 = arith.constant 0 : i32
    %c0_i32_1 = arith.constant 0 : i32
    return %c0_i32, %c0_i32_0 : i32, i32
  }
  func.func @transform_1(%arg0: i32) -> (i32, i32) {
    %c0_i32 = arith.constant 0 : i32
    %c0_i32_0 = arith.constant 0 : i32
    %c0_i32_1 = arith.constant 0 : i32
    return %c0_i32, %c0_i32_0 : i32, i32
  }
  func.func @transform_2(%arg0: i32) -> (i32, i32) {
    %c0_i32 = arith.constant 0 : i32
    %c0_i32_0 = arith.constant 0 : i32
    %c0_i32_1 = arith.constant 0 : i32
    return %c0_i32, %c0_i32_0 : i32, i32
  }
  func.func @transform_3(%arg0: i32) -> (i32, i32) {
    %c0_i32 = arith.constant 0 : i32
    %c0_i32_0 = arith.constant 0 : i32
    %c0_i32_1 = arith.constant 0 : i32
    return %c0_i32, %c0_i32_0 : i32, i32
  }
  func.func @transform_4(%arg0: i32) -> (i32, i32, i32) {
    %c0_i32 = arith.constant 0 : i32
    %c0_i32_0 = arith.constant 0 : i32
    %c0_i32_1 = arith.constant 0 : i32
    return %c0_i32, %arg0, %c0_i32_0 : i32, i32, i32
  }
  func.func @transform_5(%arg0: i32) -> (i32, i32, i32) {
    %c0_i32 = arith.constant 0 : i32
    %c0_i32_0 = arith.constant 0 : i32
    %c0_i32_1 = arith.constant 0 : i32
    return %c0_i32, %arg0, %c0_i32_0 : i32, i32, i32
  }
  func.func @transform_6(%arg0: i32) -> (i32, i32, i32) {
    %c0_i32 = arith.constant 0 : i32
    %c0_i32_0 = arith.constant 0 : i32
    %c0_i32_1 = arith.constant 0 : i32
    return %arg0, %c0_i32, %c0_i32_0 : i32, i32, i32
  }
}

module attributes {stable_mosaic.version = 11 : i64} {
  func.func @_conv_dual_kernel(%arg0: i32, %arg1: memref<3x128x128xbf16, #tpu.memory_space<vmem>>, %arg2: memref<128x128xbf16, #tpu.memory_space<vmem>>, %arg3: memref<4x8x128xbf16, #tpu.memory_space<vmem>>, %arg4: memref<4x8x128xbf16, #tpu.memory_space<vmem>>, %arg5: memref<4x8x128xbf16, #tpu.memory_space<vmem>>, %arg6: memref<1x4x128xf32, #tpu.memory_space<vmem>>) attributes {dimension_semantics = [#tpu.dimension_semantics<parallel>], iteration_bounds = array<i64: 1>, scalar_prefetch = 0 : i64, scratch_operands = 0 : i64, tpu.core_type = #tpu.core_type<tc>, window_params = [{pipeline_mode = #tpu.pipeline_mode<synchronous>, transform_indices = @transform_0, window_bounds = array<i64: 3, 128, 128>}, {pipeline_mode = #tpu.pipeline_mode<synchronous>, transform_indices = @transform_1, window_bounds = array<i64: 128, 128>}, {transform_indices = @transform_2, window_bounds = array<i64: 4, 8, 128>}, {transform_indices = @transform_3, window_bounds = array<i64: 4, 8, 128>}, {transform_indices = @transform_4, window_bounds = array<i64: 4, 8, 128>}, {transform_indices = @transform_5, window_bounds = array<i64: 1, 4, 128>}]} {
    %c0 = arith.constant 0 : index
    %c0_0 = arith.constant 0 : index
    %c0_1 = arith.constant 0 : index
    %0 = vector.load %arg3[%c0, %c0_0, %c0_1] : memref<4x8x128xbf16, #tpu.memory_space<vmem>>, vector<4x8x128xbf16>
    %1 = vector.shape_cast %0 : vector<4x8x128xbf16> to vector<32x128xbf16>
    %c0_2 = arith.constant 0 : index
    %c0_3 = arith.constant 0 : index
    %c0_4 = arith.constant 0 : index
    %2 = vector.load %arg1[%c0_2, %c0_3, %c0_4] : memref<3x128x128xbf16, #tpu.memory_space<vmem>>, vector<1x128x128xbf16>
    %3 = vector.shape_cast %2 : vector<1x128x128xbf16> to vector<128x128xbf16>
    %cst = arith.constant dense<0.000000e+00> : vector<32x128xf32>
    %4 = tpu.matmul %1, %3, %cst {dimension_numbers = #tpu.dot_dimension_numbers<[1], [0], [0], [1], [0, 0, 1, 1], [], []>} : vector<32x128xbf16>, vector<128x128xbf16>, vector<32x128xf32> -> vector<32x128xf32>
    %5 = vector.shape_cast %4 : vector<32x128xf32> to vector<4x8x128xf32>
    %c1 = arith.constant 1 : index
    %c0_5 = arith.constant 0 : index
    %c0_6 = arith.constant 0 : index
    %6 = vector.load %arg1[%c1, %c0_5, %c0_6] : memref<3x128x128xbf16, #tpu.memory_space<vmem>>, vector<1x128x128xbf16>
    %7 = vector.shape_cast %6 : vector<1x128x128xbf16> to vector<128x128xbf16>
    %cst_7 = arith.constant dense<0.000000e+00> : vector<32x128xf32>
    %8 = tpu.matmul %1, %7, %cst_7 {dimension_numbers = #tpu.dot_dimension_numbers<[1], [0], [0], [1], [0, 0, 1, 1], [], []>} : vector<32x128xbf16>, vector<128x128xbf16>, vector<32x128xf32> -> vector<32x128xf32>
    %9 = vector.shape_cast %8 : vector<32x128xf32> to vector<4x8x128xf32>
    %c2 = arith.constant 2 : index
    %c0_8 = arith.constant 0 : index
    %c0_9 = arith.constant 0 : index
    %10 = vector.load %arg1[%c2, %c0_8, %c0_9] : memref<3x128x128xbf16, #tpu.memory_space<vmem>>, vector<1x128x128xbf16>
    %11 = vector.shape_cast %10 : vector<1x128x128xbf16> to vector<128x128xbf16>
    %cst_10 = arith.constant dense<0.000000e+00> : vector<32x128xf32>
    %12 = tpu.matmul %1, %11, %cst_10 {dimension_numbers = #tpu.dot_dimension_numbers<[1], [0], [0], [1], [0, 0, 1, 1], [], []>} : vector<32x128xbf16>, vector<128x128xbf16>, vector<32x128xf32> -> vector<32x128xf32>
    %13 = vector.shape_cast %12 : vector<32x128xf32> to vector<4x8x128xf32>
    %c0_11 = arith.constant 0 : index
    %c0_12 = arith.constant 0 : index
    %14 = vector.load %arg2[%c0_11, %c0_12] : memref<128x128xbf16, #tpu.memory_space<vmem>>, vector<128x128xbf16>
    %cst_13 = arith.constant dense<0.000000e+00> : vector<32x128xf32>
    %15 = tpu.matmul %1, %14, %cst_13 {dimension_numbers = #tpu.dot_dimension_numbers<[1], [0], [0], [1], [0, 0, 1, 1], [], []>} : vector<32x128xbf16>, vector<128x128xbf16>, vector<32x128xf32> -> vector<32x128xf32>
    %cst_14 = arith.constant 0.000000e+00 : f32
    %16 = vector.broadcast %cst_14 : f32 to vector<4x1x128xf32>
    %17 = vector.extract_strided_slice %5 {offsets = [0, 0, 0], sizes = [4, 7, 128], strides = [1, 1, 1]} : vector<4x8x128xf32> to vector<4x7x128xf32>
    %18 = tpu.concatenate %16, %17 in 1 : vector<4x1x128xf32>, vector<4x7x128xf32> -> vector<4x8x128xf32>
    %19 = arith.addf %9, %18 : vector<4x8x128xf32>
    %20 = vector.extract_strided_slice %13 {offsets = [0, 1, 0], sizes = [4, 7, 128], strides = [1, 1, 1]} : vector<4x8x128xf32> to vector<4x7x128xf32>
    %21 = tpu.concatenate %20, %16 in 1 : vector<4x7x128xf32>, vector<4x1x128xf32> -> vector<4x8x128xf32>
    %22 = arith.addf %19, %21 : vector<4x8x128xf32>
    %23 = arith.truncf %22 : vector<4x8x128xf32> to vector<4x8x128xbf16>
    %c0_15 = arith.constant 0 : index
    %c0_16 = arith.constant 0 : index
    %c0_17 = arith.constant 0 : index
    %24 = vector.load %arg4[%c0_15, %c0_16, %c0_17] : memref<4x8x128xbf16, #tpu.memory_space<vmem>>, vector<4x8x128xbf16>
    tpu.vector_store %arg4[%c0_15, %c0_16, %c0_17], %23 {strides = array<i32>} : memref<4x8x128xbf16, #tpu.memory_space<vmem>>, vector<4x8x128xbf16>,
    %25 = vector.shape_cast %15 : vector<32x128xf32> to vector<4x8x128xf32>
    %26 = arith.truncf %25 : vector<4x8x128xf32> to vector<4x8x128xbf16>
    %c0_18 = arith.constant 0 : index
    %c0_19 = arith.constant 0 : index
    %c0_20 = arith.constant 0 : index
    %27 = vector.load %arg5[%c0_18, %c0_19, %c0_20] : memref<4x8x128xbf16, #tpu.memory_space<vmem>>, vector<4x8x128xbf16>
    tpu.vector_store %arg5[%c0_18, %c0_19, %c0_20], %26 {strides = array<i32>} : memref<4x8x128xbf16, #tpu.memory_space<vmem>>, vector<4x8x128xbf16>,
    %28 = vector.shape_cast %22 : vector<4x8x128xf32> to vector<32x128xf32>
    %cst_21 = arith.constant dense<0.000000e+00> : vector<128xf32>
    %29 = vector.multi_reduction <add>, %15, %cst_21 [0] : vector<32x128xf32> to vector<128xf32>
    %30 = vector.shape_cast %29 : vector<128xf32> to vector<1x128xf32>
    %31 = arith.mulf %15, %15 : vector<32x128xf32>
    %cst_22 = arith.constant dense<0.000000e+00> : vector<128xf32>
    %32 = vector.multi_reduction <add>, %31, %cst_22 [0] : vector<32x128xf32> to vector<128xf32>
    %33 = vector.shape_cast %32 : vector<128xf32> to vector<1x128xf32>
    %cst_23 = arith.constant dense<0.000000e+00> : vector<128xf32>
    %34 = vector.multi_reduction <add>, %28, %cst_23 [0] : vector<32x128xf32> to vector<128xf32>
    %35 = vector.shape_cast %34 : vector<128xf32> to vector<1x128xf32>
    %36 = arith.mulf %28, %28 : vector<32x128xf32>
    %cst_24 = arith.constant dense<0.000000e+00> : vector<128xf32>
    %37 = vector.multi_reduction <add>, %36, %cst_24 [0] : vector<32x128xf32> to vector<128xf32>
    %38 = vector.shape_cast %37 : vector<128xf32> to vector<1x128xf32>
    %39 = tpu.concatenate %30, %33, %35, %38 in 0 : vector<1x128xf32>, vector<1x128xf32>, vector<1x128xf32>, vector<1x128xf32> -> vector<4x128xf32>
    %c0_25 = arith.constant 0 : index
    %c0_26 = arith.constant 0 : index
    %c0_27 = arith.constant 0 : index
    %40 = vector.load %arg6[%c0_25, %c0_26, %c0_27] : memref<1x4x128xf32, #tpu.memory_space<vmem>>, vector<1x4x128xf32>
    %41 = vector.shape_cast %40 : vector<1x4x128xf32> to vector<4x128xf32>
    %42 = vector.shape_cast %39 : vector<4x128xf32> to vector<1x4x128xf32>
    tpu.vector_store %arg6[%c0_25, %c0_26, %c0_27], %42 {strides = array<i32>} : memref<1x4x128xf32, #tpu.memory_space<vmem>>, vector<1x4x128xf32>,
    return
  }
  func.func @transform_0(%arg0: i32) -> (i32, i32, i32) {
    %c0_i32 = arith.constant 0 : i32
    %c0_i32_0 = arith.constant 0 : i32
    %c0_i32_1 = arith.constant 0 : i32
    %c0_i32_2 = arith.constant 0 : i32
    return %c0_i32, %c0_i32_0, %c0_i32_1 : i32, i32, i32
  }
  func.func @transform_1(%arg0: i32) -> (i32, i32) {
    %c0_i32 = arith.constant 0 : i32
    %c0_i32_0 = arith.constant 0 : i32
    %c0_i32_1 = arith.constant 0 : i32
    return %c0_i32, %c0_i32_0 : i32, i32
  }
  func.func @transform_2(%arg0: i32) -> (i32, i32, i32) {
    %c0_i32 = arith.constant 0 : i32
    %c0_i32_0 = arith.constant 0 : i32
    %c0_i32_1 = arith.constant 0 : i32
    return %arg0, %c0_i32, %c0_i32_0 : i32, i32, i32
  }
  func.func @transform_3(%arg0: i32) -> (i32, i32, i32) {
    %c0_i32 = arith.constant 0 : i32
    %c0_i32_0 = arith.constant 0 : i32
    %c0_i32_1 = arith.constant 0 : i32
    return %arg0, %c0_i32, %c0_i32_0 : i32, i32, i32
  }
  func.func @transform_4(%arg0: i32) -> (i32, i32, i32) {
    %c0_i32 = arith.constant 0 : i32
    %c0_i32_0 = arith.constant 0 : i32
    %c0_i32_1 = arith.constant 0 : i32
    return %arg0, %c0_i32, %c0_i32_0 : i32, i32, i32
  }
  func.func @transform_5(%arg0: i32) -> (i32, i32, i32) {
    %c0_i32 = arith.constant 0 : i32
    %c0_i32_0 = arith.constant 0 : i32
    %c0_i32_1 = arith.constant 0 : i32
    return %arg0, %c0_i32, %c0_i32_0 : i32, i32, i32
  }
}

module attributes {stable_mosaic.version = 11 : i64} {
  func.func @_lif_kernel(%arg0: i32, %arg1: memref<2x2x1024xbf16, #tpu.memory_space<vmem>>, %arg2: memref<1x1024xf32, #tpu.memory_space<vmem>>, %arg3: memref<1x1024xf32, #tpu.memory_space<vmem>>, %arg4: memref<2x2x1024xbf16, #tpu.memory_space<vmem>>) attributes {dimension_semantics = [#tpu.dimension_semantics<parallel>], iteration_bounds = array<i64: 1>, scalar_prefetch = 0 : i64, scratch_operands = 0 : i64, tpu.core_type = #tpu.core_type<tc>, window_params = [{transform_indices = @transform_0, window_bounds = array<i64: 2, 2, 1024>}, {pipeline_mode = #tpu.pipeline_mode<synchronous>, transform_indices = @transform_1, window_bounds = array<i64: 1, 1024>}, {pipeline_mode = #tpu.pipeline_mode<synchronous>, transform_indices = @transform_2, window_bounds = array<i64: 1, 1024>}, {transform_indices = @transform_3, window_bounds = array<i64: 2, 2, 1024>}]} {
    %c0 = arith.constant 0 : index
    %c0_0 = arith.constant 0 : index
    %0 = vector.load %arg2[%c0, %c0_0] : memref<1x1024xf32, #tpu.memory_space<vmem>>, vector<1x1024xf32>
    %c0_1 = arith.constant 0 : index
    %c0_2 = arith.constant 0 : index
    %1 = vector.load %arg3[%c0_1, %c0_2] : memref<1x1024xf32, #tpu.memory_space<vmem>>, vector<1x1024xf32>
    %cst = arith.constant 0.000000e+00 : f32
    %2 = vector.broadcast %cst : f32 to vector<2x1024xf32>
    %c0_i32 = arith.constant 0 : i32
    %3 = arith.index_cast %c0_i32 : i32 to index
    %c0_3 = arith.constant 0 : index
    %c0_4 = arith.constant 0 : index
    %4 = vector.load %arg1[%3, %c0_3, %c0_4] : memref<2x2x1024xbf16, #tpu.memory_space<vmem>>, vector<1x2x1024xbf16>
    %5 = vector.shape_cast %4 : vector<1x2x1024xbf16> to vector<2x1024xbf16>
    %6 = arith.extf %5 : vector<2x1024xbf16> to vector<2x1024xf32>
    %7 = vector.broadcast %0 : vector<1x1024xf32> to vector<2x1024xf32>
    %8 = arith.mulf %6, %7 : vector<2x1024xf32>
    %9 = vector.broadcast %1 : vector<1x1024xf32> to vector<2x1024xf32>
    %10 = arith.addf %8, %9 : vector<2x1024xf32>
    %11 = arith.subf %10, %2 : vector<2x1024xf32>
    %cst_5 = arith.constant 5.000000e-01 : f32
    %12 = vector.broadcast %cst_5 : f32 to vector<2x1024xf32>
    %13 = arith.mulf %11, %12 : vector<2x1024xf32>
    %14 = arith.addf %2, %13 : vector<2x1024xf32>
    %cst_6 = arith.constant 1.000000e+00 : f32
    %15 = vector.broadcast %cst_6 : f32 to vector<2x1024xf32>
    %16 = arith.cmpf oge, %14, %15 : vector<2x1024xf32>
    %17 = arith.extui %16 : vector<2x1024xi1> to vector<2x1024xi32>
    %18 = arith.sitofp %17 : vector<2x1024xi32> to vector<2x1024xf32>
    %19 = arith.truncf %18 : vector<2x1024xf32> to vector<2x1024xbf16>
    %20 = arith.index_cast %c0_i32 : i32 to index
    %c0_7 = arith.constant 0 : index
    %c0_8 = arith.constant 0 : index
    %21 = vector.load %arg4[%20, %c0_7, %c0_8] : memref<2x2x1024xbf16, #tpu.memory_space<vmem>>, vector<1x2x1024xbf16>
    %22 = vector.shape_cast %21 : vector<1x2x1024xbf16> to vector<2x1024xbf16>
    %23 = vector.shape_cast %19 : vector<2x1024xbf16> to vector<1x2x1024xbf16>
    tpu.vector_store %arg4[%20, %c0_7, %c0_8], %23 {strides = array<i32>} : memref<2x2x1024xbf16, #tpu.memory_space<vmem>>, vector<1x2x1024xbf16>,
    %cst_9 = arith.constant 0.000000e+00 : f32
    %24 = vector.broadcast %cst_9 : f32 to vector<2x1024xf32>
    %25 = arith.select %16, %24, %14 : vector<2x1024xi1>, vector<2x1024xf32>
    %c1_i32 = arith.constant 1 : i32
    %26 = arith.index_cast %c1_i32 : i32 to index
    %c0_10 = arith.constant 0 : index
    %c0_11 = arith.constant 0 : index
    %27 = vector.load %arg1[%26, %c0_10, %c0_11] : memref<2x2x1024xbf16, #tpu.memory_space<vmem>>, vector<1x2x1024xbf16>
    %28 = vector.shape_cast %27 : vector<1x2x1024xbf16> to vector<2x1024xbf16>
    %29 = arith.extf %28 : vector<2x1024xbf16> to vector<2x1024xf32>
    %30 = vector.broadcast %0 : vector<1x1024xf32> to vector<2x1024xf32>
    %31 = arith.mulf %29, %30 : vector<2x1024xf32>
    %32 = vector.broadcast %1 : vector<1x1024xf32> to vector<2x1024xf32>
    %33 = arith.addf %31, %32 : vector<2x1024xf32>
    %34 = arith.subf %33, %25 : vector<2x1024xf32>
    %cst_12 = arith.constant 5.000000e-01 : f32
    %35 = vector.broadcast %cst_12 : f32 to vector<2x1024xf32>
    %36 = arith.mulf %34, %35 : vector<2x1024xf32>
    %37 = arith.addf %25, %36 : vector<2x1024xf32>
    %cst_13 = arith.constant 1.000000e+00 : f32
    %38 = vector.broadcast %cst_13 : f32 to vector<2x1024xf32>
    %39 = arith.cmpf oge, %37, %38 : vector<2x1024xf32>
    %40 = arith.extui %39 : vector<2x1024xi1> to vector<2x1024xi32>
    %41 = arith.sitofp %40 : vector<2x1024xi32> to vector<2x1024xf32>
    %42 = arith.truncf %41 : vector<2x1024xf32> to vector<2x1024xbf16>
    %43 = arith.index_cast %c1_i32 : i32 to index
    %c0_14 = arith.constant 0 : index
    %c0_15 = arith.constant 0 : index
    %44 = vector.load %arg4[%43, %c0_14, %c0_15] : memref<2x2x1024xbf16, #tpu.memory_space<vmem>>, vector<1x2x1024xbf16>
    %45 = vector.shape_cast %44 : vector<1x2x1024xbf16> to vector<2x1024xbf16>
    %46 = vector.shape_cast %42 : vector<2x1024xbf16> to vector<1x2x1024xbf16>
    tpu.vector_store %arg4[%43, %c0_14, %c0_15], %46 {strides = array<i32>} : memref<2x2x1024xbf16, #tpu.memory_space<vmem>>, vector<1x2x1024xbf16>,
    %cst_16 = arith.constant 0.000000e+00 : f32
    %47 = vector.broadcast %cst_16 : f32 to vector<2x1024xf32>
    %48 = arith.select %39, %47, %37 : vector<2x1024xi1>, vector<2x1024xf32>
    %c2_i32 = arith.constant 2 : i32
    return
  }
  func.func @transform_0(%arg0: i32) -> (i32, i32, i32) {
    %c0_i32 = arith.constant 0 : i32
    %c0_i32_0 = arith.constant 0 : i32
    %c0_i32_1 = arith.constant 0 : i32
    return %c0_i32, %arg0, %c0_i32_0 : i32, i32, i32
  }
  func.func @transform_1(%arg0: i32) -> (i32, i32) {
    %c0_i32 = arith.constant 0 : i32
    %c0_i32_0 = arith.constant 0 : i32
    %c0_i32_1 = arith.constant 0 : i32
    return %c0_i32, %c0_i32_0 : i32, i32
  }
  func.func @transform_2(%arg0: i32) -> (i32, i32) {
    %c0_i32 = arith.constant 0 : i32
    %c0_i32_0 = arith.constant 0 : i32
    %c0_i32_1 = arith.constant 0 : i32
    return %c0_i32, %c0_i32_0 : i32, i32
  }
  func.func @transform_3(%arg0: i32) -> (i32, i32, i32) {
    %c0_i32 = arith.constant 0 : i32
    %c0_i32_0 = arith.constant 0 : i32
    %c0_i32_1 = arith.constant 0 : i32
    return %c0_i32, %arg0, %c0_i32_0 : i32, i32, i32
  }
}

module attributes {stable_mosaic.version = 11 : i64} {
  func.func @_matmul_stats_kernel(%arg0: i32, %arg1: memref<16x256xbf16, #tpu.memory_space<vmem>>, %arg2: memref<256x256xbf16, #tpu.memory_space<vmem>>, %arg3: memref<16x256xbf16, #tpu.memory_space<vmem>>, %arg4: memref<1x2x256xf32, #tpu.memory_space<vmem>>) attributes {dimension_semantics = [#tpu.dimension_semantics<parallel>], iteration_bounds = array<i64: 1>, scalar_prefetch = 0 : i64, scratch_operands = 0 : i64, tpu.core_type = #tpu.core_type<tc>, window_params = [{transform_indices = @transform_0, window_bounds = array<i64: 16, 256>}, {pipeline_mode = #tpu.pipeline_mode<synchronous>, transform_indices = @transform_1, window_bounds = array<i64: 256, 256>}, {transform_indices = @transform_2, window_bounds = array<i64: 16, 256>}, {transform_indices = @transform_3, window_bounds = array<i64: 1, 2, 256>}]} {
    %c0 = arith.constant 0 : index
    %c0_0 = arith.constant 0 : index
    %0 = vector.load %arg1[%c0, %c0_0] : memref<16x256xbf16, #tpu.memory_space<vmem>>, vector<16x256xbf16>
    %c0_1 = arith.constant 0 : index
    %c0_2 = arith.constant 0 : index
    %1 = vector.load %arg2[%c0_1, %c0_2] : memref<256x256xbf16, #tpu.memory_space<vmem>>, vector<256x256xbf16>
    %cst = arith.constant dense<0.000000e+00> : vector<16x256xf32>
    %2 = tpu.matmul %0, %1, %cst {dimension_numbers = #tpu.dot_dimension_numbers<[1], [0], [0], [1], [0, 0, 1, 1], [], []>} : vector<16x256xbf16>, vector<256x256xbf16>, vector<16x256xf32> -> vector<16x256xf32>
    %3 = arith.truncf %2 : vector<16x256xf32> to vector<16x256xbf16>
    %c0_3 = arith.constant 0 : index
    %c0_4 = arith.constant 0 : index
    %4 = vector.load %arg3[%c0_3, %c0_4] : memref<16x256xbf16, #tpu.memory_space<vmem>>, vector<16x256xbf16>
    tpu.vector_store %arg3[%c0_3, %c0_4], %3 {strides = array<i32>} : memref<16x256xbf16, #tpu.memory_space<vmem>>, vector<16x256xbf16>,
    %cst_5 = arith.constant dense<0.000000e+00> : vector<256xf32>
    %5 = vector.multi_reduction <add>, %2, %cst_5 [0] : vector<16x256xf32> to vector<256xf32>
    %6 = vector.shape_cast %5 : vector<256xf32> to vector<1x256xf32>
    %7 = arith.mulf %2, %2 : vector<16x256xf32>
    %cst_6 = arith.constant dense<0.000000e+00> : vector<256xf32>
    %8 = vector.multi_reduction <add>, %7, %cst_6 [0] : vector<16x256xf32> to vector<256xf32>
    %9 = vector.shape_cast %8 : vector<256xf32> to vector<1x256xf32>
    %10 = tpu.concatenate %6, %9 in 0 : vector<1x256xf32>, vector<1x256xf32> -> vector<2x256xf32>
    %c0_7 = arith.constant 0 : index
    %c0_8 = arith.constant 0 : index
    %c0_9 = arith.constant 0 : index
    %11 = vector.load %arg4[%c0_7, %c0_8, %c0_9] : memref<1x2x256xf32, #tpu.memory_space<vmem>>, vector<1x2x256xf32>
    %12 = vector.shape_cast %11 : vector<1x2x256xf32> to vector<2x256xf32>
    %13 = vector.shape_cast %10 : vector<2x256xf32> to vector<1x2x256xf32>
    tpu.vector_store %arg4[%c0_7, %c0_8, %c0_9], %13 {strides = array<i32>} : memref<1x2x256xf32, #tpu.memory_space<vmem>>, vector<1x2x256xf32>,
    return
  }
  func.func @transform_0(%arg0: i32) -> (i32, i32) {
    %c0_i32 = arith.constant 0 : i32
    %c0_i32_0 = arith.constant 0 : i32
    return %arg0, %c0_i32 : i32, i32
  }
  func.func @transform_1(%arg0: i32) -> (i32, i32) {
    %c0_i32 = arith.constant 0 : i32
    %c0_i32_0 = arith.constant 0 : i32
    %c0_i32_1 = arith.constant 0 : i32
    return %c0_i32, %c0_i32_0 : i32, i32
  }
  func.func @transform_2(%arg0: i32) -> (i32, i32) {
    %c0_i32 = arith.constant 0 : i32
    %c0_i32_0 = arith.constant 0 : i32
    return %arg0, %c0_i32 : i32, i32
  }
  func.func @transform_3(%arg0: i32) -> (i32, i32, i32) {
    %c0_i32 = arith.constant 0 : i32
    %c0_i32_0 = arith.constant 0 : i32
    %c0_i32_1 = arith.constant 0 : i32
    return %arg0, %c0_i32, %c0_i32_0 : i32, i32, i32
  }
}

module attributes {stable_mosaic.version = 11 : i64} {
  func.func @_matmul_stats_kernel(%arg0: i32, %arg1: memref<16x256xbf16, #tpu.memory_space<vmem>>, %arg2: memref<256x1024xbf16, #tpu.memory_space<vmem>>, %arg3: memref<16x1024xbf16, #tpu.memory_space<vmem>>, %arg4: memref<1x2x1024xf32, #tpu.memory_space<vmem>>) attributes {dimension_semantics = [#tpu.dimension_semantics<parallel>], iteration_bounds = array<i64: 1>, scalar_prefetch = 0 : i64, scratch_operands = 0 : i64, tpu.core_type = #tpu.core_type<tc>, window_params = [{transform_indices = @transform_0, window_bounds = array<i64: 16, 256>}, {pipeline_mode = #tpu.pipeline_mode<synchronous>, transform_indices = @transform_1, window_bounds = array<i64: 256, 1024>}, {transform_indices = @transform_2, window_bounds = array<i64: 16, 1024>}, {transform_indices = @transform_3, window_bounds = array<i64: 1, 2, 1024>}]} {
    %c0 = arith.constant 0 : index
    %c0_0 = arith.constant 0 : index
    %0 = vector.load %arg1[%c0, %c0_0] : memref<16x256xbf16, #tpu.memory_space<vmem>>, vector<16x256xbf16>
    %c0_1 = arith.constant 0 : index
    %c0_2 = arith.constant 0 : index
    %1 = vector.load %arg2[%c0_1, %c0_2] : memref<256x1024xbf16, #tpu.memory_space<vmem>>, vector<256x1024xbf16>
    %cst = arith.constant dense<0.000000e+00> : vector<16x1024xf32>
    %2 = tpu.matmul %0, %1, %cst {dimension_numbers = #tpu.dot_dimension_numbers<[1], [0], [0], [1], [0, 0, 1, 1], [], []>} : vector<16x256xbf16>, vector<256x1024xbf16>, vector<16x1024xf32> -> vector<16x1024xf32>
    %3 = arith.truncf %2 : vector<16x1024xf32> to vector<16x1024xbf16>
    %c0_3 = arith.constant 0 : index
    %c0_4 = arith.constant 0 : index
    %4 = vector.load %arg3[%c0_3, %c0_4] : memref<16x1024xbf16, #tpu.memory_space<vmem>>, vector<16x1024xbf16>
    tpu.vector_store %arg3[%c0_3, %c0_4], %3 {strides = array<i32>} : memref<16x1024xbf16, #tpu.memory_space<vmem>>, vector<16x1024xbf16>,
    %cst_5 = arith.constant dense<0.000000e+00> : vector<1024xf32>
    %5 = vector.multi_reduction <add>, %2, %cst_5 [0] : vector<16x1024xf32> to vector<1024xf32>
    %6 = vector.shape_cast %5 : vector<1024xf32> to vector<1x1024xf32>
    %7 = arith.mulf %2, %2 : vector<16x1024xf32>
    %cst_6 = arith.constant dense<0.000000e+00> : vector<1024xf32>
    %8 = vector.multi_reduction <add>, %7, %cst_6 [0] : vector<16x1024xf32> to vector<1024xf32>
    %9 = vector.shape_cast %8 : vector<1024xf32> to vector<1x1024xf32>
    %10 = tpu.concatenate %6, %9 in 0 : vector<1x1024xf32>, vector<1x1024xf32> -> vector<2x1024xf32>
    %c0_7 = arith.constant 0 : index
    %c0_8 = arith.constant 0 : index
    %c0_9 = arith.constant 0 : index
    %11 = vector.load %arg4[%c0_7, %c0_8, %c0_9] : memref<1x2x1024xf32, #tpu.memory_space<vmem>>, vector<1x2x1024xf32>
    %12 = vector.shape_cast %11 : vector<1x2x1024xf32> to vector<2x1024xf32>
    %13 = vector.shape_cast %10 : vector<2x1024xf32> to vector<1x2x1024xf32>
    tpu.vector_store %arg4[%c0_7, %c0_8, %c0_9], %13 {strides = array<i32>} : memref<1x2x1024xf32, #tpu.memory_space<vmem>>, vector<1x2x1024xf32>,
    return
  }
  func.func @transform_0(%arg0: i32) -> (i32, i32) {
    %c0_i32 = arith.constant 0 : i32
    %c0_i32_0 = arith.constant 0 : i32
    return %arg0, %c0_i32 : i32, i32
  }
  func.func @transform_1(%arg0: i32) -> (i32, i32) {
    %c0_i32 = arith.constant 0 : i32
    %c0_i32_0 = arith.constant 0 : i32
    %c0_i32_1 = arith.constant 0 : i32
    return %c0_i32, %c0_i32_0 : i32, i32
  }
  func.func @transform_2(%arg0: i32) -> (i32, i32) {
    %c0_i32 = arith.constant 0 : i32
    %c0_i32_0 = arith.constant 0 : i32
    return %arg0, %c0_i32 : i32, i32
  }
  func.func @transform_3(%arg0: i32) -> (i32, i32, i32) {
    %c0_i32 = arith.constant 0 : i32
    %c0_i32_0 = arith.constant 0 : i32
    %c0_i32_1 = arith.constant 0 : i32
    return %arg0, %c0_i32, %c0_i32_0 : i32, i32, i32
  }
}

module attributes {stable_mosaic.version = 11 : i64} {
  func.func @_combine_lif_kernel(%arg0: i32, %arg1: memref<4x1024xf32, #tpu.memory_space<vmem>>, %arg2: memref<1x1024xf32, #tpu.memory_space<vmem>>, %arg3: memref<2x2x1024xbf16, #tpu.memory_space<vmem>>, %arg4: memref<2x2x1024xbf16, #tpu.memory_space<vmem>>, %arg5: memref<2x2x1024xbf16, #tpu.memory_space<vmem>>, %arg6: memref<2x2x1024xf32, #tpu.memory_space<vmem>>, %arg7: memref<2x2x1024xbf16, #tpu.memory_space<vmem>>, %arg8: memref<2x2x1024xbf16, #tpu.memory_space<vmem>>) attributes {dimension_semantics = [#tpu.dimension_semantics<parallel>], iteration_bounds = array<i64: 1>, scalar_prefetch = 0 : i64, scratch_operands = 0 : i64, tpu.core_type = #tpu.core_type<tc>, window_params = [{pipeline_mode = #tpu.pipeline_mode<synchronous>, transform_indices = @transform_0, window_bounds = array<i64: 4, 1024>}, {pipeline_mode = #tpu.pipeline_mode<synchronous>, transform_indices = @transform_1, window_bounds = array<i64: 1, 1024>}, {transform_indices = @transform_2, window_bounds = array<i64: 2, 2, 1024>}, {transform_indices = @transform_3, window_bounds = array<i64: 2, 2, 1024>}, {transform_indices = @transform_4, window_bounds = array<i64: 2, 2, 1024>}, {transform_indices = @transform_5, window_bounds = array<i64: 2, 2, 1024>}, {transform_indices = @transform_6, window_bounds = array<i64: 2, 2, 1024>}, {transform_indices = @transform_7, window_bounds = array<i64: 2, 2, 1024>}]} {
    %c0 = arith.constant 0 : index
    %c0_0 = arith.constant 0 : index
    %0 = vector.load %arg1[%c0, %c0_0] : memref<4x1024xf32, #tpu.memory_space<vmem>>, vector<4x1024xf32>
    %c0_1 = arith.constant 0 : index
    %c0_2 = arith.constant 0 : index
    %1 = vector.load %arg2[%c0_1, %c0_2] : memref<1x1024xf32, #tpu.memory_space<vmem>>, vector<1x1024xf32>
    %cst = arith.constant 0.000000e+00 : f32
    %2 = vector.broadcast %cst : f32 to vector<2x1024xf32>
    %c0_i32 = arith.constant 0 : i32
    %3 = arith.index_cast %c0_i32 : i32 to index
    %c0_3 = arith.constant 0 : index
    %c0_4 = arith.constant 0 : index
    %4 = vector.load %arg3[%3, %c0_3, %c0_4] : memref<2x2x1024xbf16, #tpu.memory_space<vmem>>, vector<1x2x1024xbf16>
    %5 = vector.shape_cast %4 : vector<1x2x1024xbf16> to vector<2x1024xbf16>
    %6 = arith.extf %5 : vector<2x1024xbf16> to vector<2x1024xf32>
    %7 = vector.extract_strided_slice %0 {offsets = [0, 0], sizes = [1, 1024], strides = [1, 1]} : vector<4x1024xf32> to vector<1x1024xf32>
    %8 = vector.broadcast %7 : vector<1x1024xf32> to vector<2x1024xf32>
    %9 = arith.mulf %6, %8 : vector<2x1024xf32>
    %10 = vector.broadcast %1 : vector<1x1024xf32> to vector<2x1024xf32>
    %11 = arith.addf %9, %10 : vector<2x1024xf32>
    %12 = arith.index_cast %c0_i32 : i32 to index
    %c0_5 = arith.constant 0 : index
    %c0_6 = arith.constant 0 : index
    %13 = vector.load %arg4[%12, %c0_5, %c0_6] : memref<2x2x1024xbf16, #tpu.memory_space<vmem>>, vector<1x2x1024xbf16>
    %14 = vector.shape_cast %13 : vector<1x2x1024xbf16> to vector<2x1024xbf16>
    %15 = arith.extf %14 : vector<2x1024xbf16> to vector<2x1024xf32>
    %16 = vector.extract_strided_slice %0 {offsets = [1, 0], sizes = [1, 1024], strides = [1, 1]} : vector<4x1024xf32> to vector<1x1024xf32>
    %17 = vector.broadcast %16 : vector<1x1024xf32> to vector<2x1024xf32>
    %18 = arith.mulf %15, %17 : vector<2x1024xf32>
    %19 = arith.addf %11, %18 : vector<2x1024xf32>
    %20 = arith.index_cast %c0_i32 : i32 to index
    %c0_7 = arith.constant 0 : index
    %c0_8 = arith.constant 0 : index
    %21 = vector.load %arg5[%20, %c0_7, %c0_8] : memref<2x2x1024xbf16, #tpu.memory_space<vmem>>, vector<1x2x1024xbf16>
    %22 = vector.shape_cast %21 : vector<1x2x1024xbf16> to vector<2x1024xbf16>
    %23 = arith.extf %22 : vector<2x1024xbf16> to vector<2x1024xf32>
    %24 = vector.extract_strided_slice %0 {offsets = [2, 0], sizes = [1, 1024], strides = [1, 1]} : vector<4x1024xf32> to vector<1x1024xf32>
    %25 = vector.broadcast %24 : vector<1x1024xf32> to vector<2x1024xf32>
    %26 = arith.mulf %23, %25 : vector<2x1024xf32>
    %27 = arith.addf %19, %26 : vector<2x1024xf32>
    %28 = arith.index_cast %c0_i32 : i32 to index
    %c0_9 = arith.constant 0 : index
    %c0_10 = arith.constant 0 : index
    %29 = vector.load %arg6[%28, %c0_9, %c0_10] : memref<2x2x1024xf32, #tpu.memory_space<vmem>>, vector<1x2x1024xf32>
    %30 = vector.shape_cast %29 : vector<1x2x1024xf32> to vector<2x1024xf32>
    %31 = vector.extract_strided_slice %0 {offsets = [3, 0], sizes = [1, 1024], strides = [1, 1]} : vector<4x1024xf32> to vector<1x1024xf32>
    %32 = vector.broadcast %31 : vector<1x1024xf32> to vector<2x1024xf32>
    %33 = arith.mulf %30, %32 : vector<2x1024xf32>
    %34 = arith.addf %27, %33 : vector<2x1024xf32>
    %35 = arith.truncf %34 : vector<2x1024xf32> to vector<2x1024xbf16>
    %36 = arith.index_cast %c0_i32 : i32 to index
    %c0_11 = arith.constant 0 : index
    %c0_12 = arith.constant 0 : index
    %37 = vector.load %arg7[%36, %c0_11, %c0_12] : memref<2x2x1024xbf16, #tpu.memory_space<vmem>>, vector<1x2x1024xbf16>
    %38 = vector.shape_cast %37 : vector<1x2x1024xbf16> to vector<2x1024xbf16>
    %39 = vector.shape_cast %35 : vector<2x1024xbf16> to vector<1x2x1024xbf16>
    tpu.vector_store %arg7[%36, %c0_11, %c0_12], %39 {strides = array<i32>} : memref<2x2x1024xbf16, #tpu.memory_space<vmem>>, vector<1x2x1024xbf16>,
    %40 = arith.subf %34, %2 : vector<2x1024xf32>
    %cst_13 = arith.constant 5.000000e-01 : f32
    %41 = vector.broadcast %cst_13 : f32 to vector<2x1024xf32>
    %42 = arith.mulf %40, %41 : vector<2x1024xf32>
    %43 = arith.addf %2, %42 : vector<2x1024xf32>
    %cst_14 = arith.constant 1.000000e+00 : f32
    %44 = vector.broadcast %cst_14 : f32 to vector<2x1024xf32>
    %45 = arith.cmpf oge, %43, %44 : vector<2x1024xf32>
    %46 = arith.extui %45 : vector<2x1024xi1> to vector<2x1024xi32>
    %47 = arith.sitofp %46 : vector<2x1024xi32> to vector<2x1024xf32>
    %48 = arith.truncf %47 : vector<2x1024xf32> to vector<2x1024xbf16>
    %49 = arith.index_cast %c0_i32 : i32 to index
    %c0_15 = arith.constant 0 : index
    %c0_16 = arith.constant 0 : index
    %50 = vector.load %arg8[%49, %c0_15, %c0_16] : memref<2x2x1024xbf16, #tpu.memory_space<vmem>>, vector<1x2x1024xbf16>
    %51 = vector.shape_cast %50 : vector<1x2x1024xbf16> to vector<2x1024xbf16>
    %52 = vector.shape_cast %48 : vector<2x1024xbf16> to vector<1x2x1024xbf16>
    tpu.vector_store %arg8[%49, %c0_15, %c0_16], %52 {strides = array<i32>} : memref<2x2x1024xbf16, #tpu.memory_space<vmem>>, vector<1x2x1024xbf16>,
    %cst_17 = arith.constant 0.000000e+00 : f32
    %53 = vector.broadcast %cst_17 : f32 to vector<2x1024xf32>
    %54 = arith.select %45, %53, %43 : vector<2x1024xi1>, vector<2x1024xf32>
    %c1_i32 = arith.constant 1 : i32
    %55 = arith.index_cast %c1_i32 : i32 to index
    %c0_18 = arith.constant 0 : index
    %c0_19 = arith.constant 0 : index
    %56 = vector.load %arg3[%55, %c0_18, %c0_19] : memref<2x2x1024xbf16, #tpu.memory_space<vmem>>, vector<1x2x1024xbf16>
    %57 = vector.shape_cast %56 : vector<1x2x1024xbf16> to vector<2x1024xbf16>
    %58 = arith.extf %57 : vector<2x1024xbf16> to vector<2x1024xf32>
    %59 = vector.extract_strided_slice %0 {offsets = [0, 0], sizes = [1, 1024], strides = [1, 1]} : vector<4x1024xf32> to vector<1x1024xf32>
    %60 = vector.broadcast %59 : vector<1x1024xf32> to vector<2x1024xf32>
    %61 = arith.mulf %58, %60 : vector<2x1024xf32>
    %62 = vector.broadcast %1 : vector<1x1024xf32> to vector<2x1024xf32>
    %63 = arith.addf %61, %62 : vector<2x1024xf32>
    %64 = arith.index_cast %c1_i32 : i32 to index
    %c0_20 = arith.constant 0 : index
    %c0_21 = arith.constant 0 : index
    %65 = vector.load %arg4[%64, %c0_20, %c0_21] : memref<2x2x1024xbf16, #tpu.memory_space<vmem>>, vector<1x2x1024xbf16>
    %66 = vector.shape_cast %65 : vector<1x2x1024xbf16> to vector<2x1024xbf16>
    %67 = arith.extf %66 : vector<2x1024xbf16> to vector<2x1024xf32>
    %68 = vector.extract_strided_slice %0 {offsets = [1, 0], sizes = [1, 1024], strides = [1, 1]} : vector<4x1024xf32> to vector<1x1024xf32>
    %69 = vector.broadcast %68 : vector<1x1024xf32> to vector<2x1024xf32>
    %70 = arith.mulf %67, %69 : vector<2x1024xf32>
    %71 = arith.addf %63, %70 : vector<2x1024xf32>
    %72 = arith.index_cast %c1_i32 : i32 to index
    %c0_22 = arith.constant 0 : index
    %c0_23 = arith.constant 0 : index
    %73 = vector.load %arg5[%72, %c0_22, %c0_23] : memref<2x2x1024xbf16, #tpu.memory_space<vmem>>, vector<1x2x1024xbf16>
    %74 = vector.shape_cast %73 : vector<1x2x1024xbf16> to vector<2x1024xbf16>
    %75 = arith.extf %74 : vector<2x1024xbf16> to vector<2x1024xf32>
    %76 = vector.extract_strided_slice %0 {offsets = [2, 0], sizes = [1, 1024], strides = [1, 1]} : vector<4x1024xf32> to vector<1x1024xf32>
    %77 = vector.broadcast %76 : vector<1x1024xf32> to vector<2x1024xf32>
    %78 = arith.mulf %75, %77 : vector<2x1024xf32>
    %79 = arith.addf %71, %78 : vector<2x1024xf32>
    %80 = arith.index_cast %c1_i32 : i32 to index
    %c0_24 = arith.constant 0 : index
    %c0_25 = arith.constant 0 : index
    %81 = vector.load %arg6[%80, %c0_24, %c0_25] : memref<2x2x1024xf32, #tpu.memory_space<vmem>>, vector<1x2x1024xf32>
    %82 = vector.shape_cast %81 : vector<1x2x1024xf32> to vector<2x1024xf32>
    %83 = vector.extract_strided_slice %0 {offsets = [3, 0], sizes = [1, 1024], strides = [1, 1]} : vector<4x1024xf32> to vector<1x1024xf32>
    %84 = vector.broadcast %83 : vector<1x1024xf32> to vector<2x1024xf32>
    %85 = arith.mulf %82, %84 : vector<2x1024xf32>
    %86 = arith.addf %79, %85 : vector<2x1024xf32>
    %87 = arith.truncf %86 : vector<2x1024xf32> to vector<2x1024xbf16>
    %88 = arith.index_cast %c1_i32 : i32 to index
    %c0_26 = arith.constant 0 : index
    %c0_27 = arith.constant 0 : index
    %89 = vector.load %arg7[%88, %c0_26, %c0_27] : memref<2x2x1024xbf16, #tpu.memory_space<vmem>>, vector<1x2x1024xbf16>
    %90 = vector.shape_cast %89 : vector<1x2x1024xbf16> to vector<2x1024xbf16>
    %91 = vector.shape_cast %87 : vector<2x1024xbf16> to vector<1x2x1024xbf16>
    tpu.vector_store %arg7[%88, %c0_26, %c0_27], %91 {strides = array<i32>} : memref<2x2x1024xbf16, #tpu.memory_space<vmem>>, vector<1x2x1024xbf16>,
    %92 = arith.subf %86, %54 : vector<2x1024xf32>
    %cst_28 = arith.constant 5.000000e-01 : f32
    %93 = vector.broadcast %cst_28 : f32 to vector<2x1024xf32>
    %94 = arith.mulf %92, %93 : vector<2x1024xf32>
    %95 = arith.addf %54, %94 : vector<2x1024xf32>
    %cst_29 = arith.constant 1.000000e+00 : f32
    %96 = vector.broadcast %cst_29 : f32 to vector<2x1024xf32>
    %97 = arith.cmpf oge, %95, %96 : vector<2x1024xf32>
    %98 = arith.extui %97 : vector<2x1024xi1> to vector<2x1024xi32>
    %99 = arith.sitofp %98 : vector<2x1024xi32> to vector<2x1024xf32>
    %100 = arith.truncf %99 : vector<2x1024xf32> to vector<2x1024xbf16>
    %101 = arith.index_cast %c1_i32 : i32 to index
    %c0_30 = arith.constant 0 : index
    %c0_31 = arith.constant 0 : index
    %102 = vector.load %arg8[%101, %c0_30, %c0_31] : memref<2x2x1024xbf16, #tpu.memory_space<vmem>>, vector<1x2x1024xbf16>
    %103 = vector.shape_cast %102 : vector<1x2x1024xbf16> to vector<2x1024xbf16>
    %104 = vector.shape_cast %100 : vector<2x1024xbf16> to vector<1x2x1024xbf16>
    tpu.vector_store %arg8[%101, %c0_30, %c0_31], %104 {strides = array<i32>} : memref<2x2x1024xbf16, #tpu.memory_space<vmem>>, vector<1x2x1024xbf16>,
    %cst_32 = arith.constant 0.000000e+00 : f32
    %105 = vector.broadcast %cst_32 : f32 to vector<2x1024xf32>
    %106 = arith.select %97, %105, %95 : vector<2x1024xi1>, vector<2x1024xf32>
    %c2_i32 = arith.constant 2 : i32
    return
  }
  func.func @transform_0(%arg0: i32) -> (i32, i32) {
    %c0_i32 = arith.constant 0 : i32
    %c0_i32_0 = arith.constant 0 : i32
    %c0_i32_1 = arith.constant 0 : i32
    return %c0_i32, %c0_i32_0 : i32, i32
  }
  func.func @transform_1(%arg0: i32) -> (i32, i32) {
    %c0_i32 = arith.constant 0 : i32
    %c0_i32_0 = arith.constant 0 : i32
    %c0_i32_1 = arith.constant 0 : i32
    return %c0_i32, %c0_i32_0 : i32, i32
  }
  func.func @transform_2(%arg0: i32) -> (i32, i32, i32) {
    %c0_i32 = arith.constant 0 : i32
    %c0_i32_0 = arith.constant 0 : i32
    %c0_i32_1 = arith.constant 0 : i32
    return %c0_i32, %arg0, %c0_i32_0 : i32, i32, i32
  }
  func.func @transform_3(%arg0: i32) -> (i32, i32, i32) {
    %c0_i32 = arith.constant 0 : i32
    %c0_i32_0 = arith.constant 0 : i32
    %c0_i32_1 = arith.constant 0 : i32
    return %c0_i32, %arg0, %c0_i32_0 : i32, i32, i32
  }
  func.func @transform_4(%arg0: i32) -> (i32, i32, i32) {
    %c0_i32 = arith.constant 0 : i32
    %c0_i32_0 = arith.constant 0 : i32
    %c0_i32_1 = arith.constant 0 : i32
    return %c0_i32, %arg0, %c0_i32_0 : i32, i32, i32
  }
  func.func @transform_5(%arg0: i32) -> (i32, i32, i32) {
    %c0_i32 = arith.constant 0 : i32
    %c0_i32_0 = arith.constant 0 : i32
    %c0_i32_1 = arith.constant 0 : i32
    return %c0_i32, %arg0, %c0_i32_0 : i32, i32, i32
  }
  func.func @transform_6(%arg0: i32) -> (i32, i32, i32) {
    %c0_i32 = arith.constant 0 : i32
    %c0_i32_0 = arith.constant 0 : i32
    %c0_i32_1 = arith.constant 0 : i32
    return %c0_i32, %arg0, %c0_i32_0 : i32, i32, i32
  }
  func.func @transform_7(%arg0: i32) -> (i32, i32, i32) {
    %c0_i32 = arith.constant 0 : i32
    %c0_i32_0 = arith.constant 0 : i32
    %c0_i32_1 = arith.constant 0 : i32
    return %c0_i32, %arg0, %c0_i32_0 : i32, i32, i32
  }
}

module attributes {stable_mosaic.version = 11 : i64} {
  func.func @_lif_kernel(%arg0: i32, %arg1: memref<2x8x1024xbf16, #tpu.memory_space<vmem>>, %arg2: memref<1x1024xf32, #tpu.memory_space<vmem>>, %arg3: memref<1x1024xf32, #tpu.memory_space<vmem>>, %arg4: memref<2x8x1024xbf16, #tpu.memory_space<vmem>>) attributes {dimension_semantics = [#tpu.dimension_semantics<parallel>], iteration_bounds = array<i64: 1>, scalar_prefetch = 0 : i64, scratch_operands = 0 : i64, tpu.core_type = #tpu.core_type<tc>, window_params = [{transform_indices = @transform_0, window_bounds = array<i64: 2, 8, 1024>}, {pipeline_mode = #tpu.pipeline_mode<synchronous>, transform_indices = @transform_1, window_bounds = array<i64: 1, 1024>}, {pipeline_mode = #tpu.pipeline_mode<synchronous>, transform_indices = @transform_2, window_bounds = array<i64: 1, 1024>}, {transform_indices = @transform_3, window_bounds = array<i64: 2, 8, 1024>}]} {
    %c0 = arith.constant 0 : index
    %c0_0 = arith.constant 0 : index
    %0 = vector.load %arg2[%c0, %c0_0] : memref<1x1024xf32, #tpu.memory_space<vmem>>, vector<1x1024xf32>
    %c0_1 = arith.constant 0 : index
    %c0_2 = arith.constant 0 : index
    %1 = vector.load %arg3[%c0_1, %c0_2] : memref<1x1024xf32, #tpu.memory_space<vmem>>, vector<1x1024xf32>
    %cst = arith.constant 0.000000e+00 : f32
    %2 = vector.broadcast %cst : f32 to vector<8x1024xf32>
    %c0_i32 = arith.constant 0 : i32
    %3 = arith.index_cast %c0_i32 : i32 to index
    %c0_3 = arith.constant 0 : index
    %c0_4 = arith.constant 0 : index
    %4 = vector.load %arg1[%3, %c0_3, %c0_4] : memref<2x8x1024xbf16, #tpu.memory_space<vmem>>, vector<1x8x1024xbf16>
    %5 = vector.shape_cast %4 : vector<1x8x1024xbf16> to vector<8x1024xbf16>
    %6 = arith.extf %5 : vector<8x1024xbf16> to vector<8x1024xf32>
    %7 = vector.broadcast %0 : vector<1x1024xf32> to vector<8x1024xf32>
    %8 = arith.mulf %6, %7 : vector<8x1024xf32>
    %9 = vector.broadcast %1 : vector<1x1024xf32> to vector<8x1024xf32>
    %10 = arith.addf %8, %9 : vector<8x1024xf32>
    %11 = arith.subf %10, %2 : vector<8x1024xf32>
    %cst_5 = arith.constant 5.000000e-01 : f32
    %12 = vector.broadcast %cst_5 : f32 to vector<8x1024xf32>
    %13 = arith.mulf %11, %12 : vector<8x1024xf32>
    %14 = arith.addf %2, %13 : vector<8x1024xf32>
    %cst_6 = arith.constant 1.000000e+00 : f32
    %15 = vector.broadcast %cst_6 : f32 to vector<8x1024xf32>
    %16 = arith.cmpf oge, %14, %15 : vector<8x1024xf32>
    %17 = arith.extui %16 : vector<8x1024xi1> to vector<8x1024xi32>
    %18 = arith.sitofp %17 : vector<8x1024xi32> to vector<8x1024xf32>
    %19 = arith.truncf %18 : vector<8x1024xf32> to vector<8x1024xbf16>
    %20 = arith.index_cast %c0_i32 : i32 to index
    %c0_7 = arith.constant 0 : index
    %c0_8 = arith.constant 0 : index
    %21 = vector.load %arg4[%20, %c0_7, %c0_8] : memref<2x8x1024xbf16, #tpu.memory_space<vmem>>, vector<1x8x1024xbf16>
    %22 = vector.shape_cast %21 : vector<1x8x1024xbf16> to vector<8x1024xbf16>
    %23 = vector.shape_cast %19 : vector<8x1024xbf16> to vector<1x8x1024xbf16>
    tpu.vector_store %arg4[%20, %c0_7, %c0_8], %23 {strides = array<i32>} : memref<2x8x1024xbf16, #tpu.memory_space<vmem>>, vector<1x8x1024xbf16>,
    %cst_9 = arith.constant 0.000000e+00 : f32
    %24 = vector.broadcast %cst_9 : f32 to vector<8x1024xf32>
    %25 = arith.select %16, %24, %14 : vector<8x1024xi1>, vector<8x1024xf32>
    %c1_i32 = arith.constant 1 : i32
    %26 = arith.index_cast %c1_i32 : i32 to index
    %c0_10 = arith.constant 0 : index
    %c0_11 = arith.constant 0 : index
    %27 = vector.load %arg1[%26, %c0_10, %c0_11] : memref<2x8x1024xbf16, #tpu.memory_space<vmem>>, vector<1x8x1024xbf16>
    %28 = vector.shape_cast %27 : vector<1x8x1024xbf16> to vector<8x1024xbf16>
    %29 = arith.extf %28 : vector<8x1024xbf16> to vector<8x1024xf32>
    %30 = vector.broadcast %0 : vector<1x1024xf32> to vector<8x1024xf32>
    %31 = arith.mulf %29, %30 : vector<8x1024xf32>
    %32 = vector.broadcast %1 : vector<1x1024xf32> to vector<8x1024xf32>
    %33 = arith.addf %31, %32 : vector<8x1024xf32>
    %34 = arith.subf %33, %25 : vector<8x1024xf32>
    %cst_12 = arith.constant 5.000000e-01 : f32
    %35 = vector.broadcast %cst_12 : f32 to vector<8x1024xf32>
    %36 = arith.mulf %34, %35 : vector<8x1024xf32>
    %37 = arith.addf %25, %36 : vector<8x1024xf32>
    %cst_13 = arith.constant 1.000000e+00 : f32
    %38 = vector.broadcast %cst_13 : f32 to vector<8x1024xf32>
    %39 = arith.cmpf oge, %37, %38 : vector<8x1024xf32>
    %40 = arith.extui %39 : vector<8x1024xi1> to vector<8x1024xi32>
    %41 = arith.sitofp %40 : vector<8x1024xi32> to vector<8x1024xf32>
    %42 = arith.truncf %41 : vector<8x1024xf32> to vector<8x1024xbf16>
    %43 = arith.index_cast %c1_i32 : i32 to index
    %c0_14 = arith.constant 0 : index
    %c0_15 = arith.constant 0 : index
    %44 = vector.load %arg4[%43, %c0_14, %c0_15] : memref<2x8x1024xbf16, #tpu.memory_space<vmem>>, vector<1x8x1024xbf16>
    %45 = vector.shape_cast %44 : vector<1x8x1024xbf16> to vector<8x1024xbf16>
    %46 = vector.shape_cast %42 : vector<8x1024xbf16> to vector<1x8x1024xbf16>
    tpu.vector_store %arg4[%43, %c0_14, %c0_15], %46 {strides = array<i32>} : memref<2x8x1024xbf16, #tpu.memory_space<vmem>>, vector<1x8x1024xbf16>,
    %cst_16 = arith.constant 0.000000e+00 : f32
    %47 = vector.broadcast %cst_16 : f32 to vector<8x1024xf32>
    %48 = arith.select %39, %47, %37 : vector<8x1024xi1>, vector<8x1024xf32>
    %c2_i32 = arith.constant 2 : i32
    return
  }
  func.func @transform_0(%arg0: i32) -> (i32, i32, i32) {
    %c0_i32 = arith.constant 0 : i32
    %c0_i32_0 = arith.constant 0 : i32
    %c0_i32_1 = arith.constant 0 : i32
    return %c0_i32, %arg0, %c0_i32_0 : i32, i32, i32
  }
  func.func @transform_1(%arg0: i32) -> (i32, i32) {
    %c0_i32 = arith.constant 0 : i32
    %c0_i32_0 = arith.constant 0 : i32
    %c0_i32_1 = arith.constant 0 : i32
    return %c0_i32, %c0_i32_0 : i32, i32
  }
  func.func @transform_2(%arg0: i32) -> (i32, i32) {
    %c0_i32 = arith.constant 0 : i32
    %c0_i32_0 = arith.constant 0 : i32
    %c0_i32_1 = arith.constant 0 : i32
    return %c0_i32, %c0_i32_0 : i32, i32
  }
  func.func @transform_3(%arg0: i32) -> (i32, i32, i32) {
    %c0_i32 = arith.constant 0 : i32
    %c0_i32_0 = arith.constant 0 : i32
    %c0_i32_1 = arith.constant 0 : i32
    return %c0_i32, %arg0, %c0_i32_0 : i32, i32, i32
  }
}

module attributes {stable_mosaic.version = 11 : i64} {
  func.func @_matmul_stats_kernel(%arg0: i32, %arg1: memref<16x1024xbf16, #tpu.memory_space<vmem>>, %arg2: memref<1024x256xbf16, #tpu.memory_space<vmem>>, %arg3: memref<16x256xbf16, #tpu.memory_space<vmem>>, %arg4: memref<1x2x256xf32, #tpu.memory_space<vmem>>) attributes {dimension_semantics = [#tpu.dimension_semantics<parallel>], iteration_bounds = array<i64: 1>, scalar_prefetch = 0 : i64, scratch_operands = 0 : i64, tpu.core_type = #tpu.core_type<tc>, window_params = [{transform_indices = @transform_0, window_bounds = array<i64: 16, 1024>}, {pipeline_mode = #tpu.pipeline_mode<synchronous>, transform_indices = @transform_1, window_bounds = array<i64: 1024, 256>}, {transform_indices = @transform_2, window_bounds = array<i64: 16, 256>}, {transform_indices = @transform_3, window_bounds = array<i64: 1, 2, 256>}]} {
    %c0 = arith.constant 0 : index
    %c0_0 = arith.constant 0 : index
    %0 = vector.load %arg1[%c0, %c0_0] : memref<16x1024xbf16, #tpu.memory_space<vmem>>, vector<16x1024xbf16>
    %c0_1 = arith.constant 0 : index
    %c0_2 = arith.constant 0 : index
    %1 = vector.load %arg2[%c0_1, %c0_2] : memref<1024x256xbf16, #tpu.memory_space<vmem>>, vector<1024x256xbf16>
    %cst = arith.constant dense<0.000000e+00> : vector<16x256xf32>
    %2 = tpu.matmul %0, %1, %cst {dimension_numbers = #tpu.dot_dimension_numbers<[1], [0], [0], [1], [0, 0, 1, 1], [], []>} : vector<16x1024xbf16>, vector<1024x256xbf16>, vector<16x256xf32> -> vector<16x256xf32>
    %3 = arith.truncf %2 : vector<16x256xf32> to vector<16x256xbf16>
    %c0_3 = arith.constant 0 : index
    %c0_4 = arith.constant 0 : index
    %4 = vector.load %arg3[%c0_3, %c0_4] : memref<16x256xbf16, #tpu.memory_space<vmem>>, vector<16x256xbf16>
    tpu.vector_store %arg3[%c0_3, %c0_4], %3 {strides = array<i32>} : memref<16x256xbf16, #tpu.memory_space<vmem>>, vector<16x256xbf16>,
    %cst_5 = arith.constant dense<0.000000e+00> : vector<256xf32>
    %5 = vector.multi_reduction <add>, %2, %cst_5 [0] : vector<16x256xf32> to vector<256xf32>
    %6 = vector.shape_cast %5 : vector<256xf32> to vector<1x256xf32>
    %7 = arith.mulf %2, %2 : vector<16x256xf32>
    %cst_6 = arith.constant dense<0.000000e+00> : vector<256xf32>
    %8 = vector.multi_reduction <add>, %7, %cst_6 [0] : vector<16x256xf32> to vector<256xf32>
    %9 = vector.shape_cast %8 : vector<256xf32> to vector<1x256xf32>
    %10 = tpu.concatenate %6, %9 in 0 : vector<1x256xf32>, vector<1x256xf32> -> vector<2x256xf32>
    %c0_7 = arith.constant 0 : index
    %c0_8 = arith.constant 0 : index
    %c0_9 = arith.constant 0 : index
    %11 = vector.load %arg4[%c0_7, %c0_8, %c0_9] : memref<1x2x256xf32, #tpu.memory_space<vmem>>, vector<1x2x256xf32>
    %12 = vector.shape_cast %11 : vector<1x2x256xf32> to vector<2x256xf32>
    %13 = vector.shape_cast %10 : vector<2x256xf32> to vector<1x2x256xf32>
    tpu.vector_store %arg4[%c0_7, %c0_8, %c0_9], %13 {strides = array<i32>} : memref<1x2x256xf32, #tpu.memory_space<vmem>>, vector<1x2x256xf32>,
    return
  }
  func.func @transform_0(%arg0: i32) -> (i32, i32) {
    %c0_i32 = arith.constant 0 : i32
    %c0_i32_0 = arith.constant 0 : i32
    return %arg0, %c0_i32 : i32, i32
  }
  func.func @transform_1(%arg0: i32) -> (i32, i32) {
    %c0_i32 = arith.constant 0 : i32
    %c0_i32_0 = arith.constant 0 : i32
    %c0_i32_1 = arith.constant 0 : i32
    return %c0_i32, %c0_i32_0 : i32, i32
  }
  func.func @transform_2(%arg0: i32) -> (i32, i32) {
    %c0_i32 = arith.constant 0 : i32
    %c0_i32_0 = arith.constant 0 : i32
    return %arg0, %c0_i32 : i32, i32
  }
  func.func @transform_3(%arg0: i32) -> (i32, i32, i32) {
    %c0_i32 = arith.constant 0 : i32
    %c0_i32_0 = arith.constant 0 : i32
    %c0_i32_1 = arith.constant 0 : i32
    return %arg0, %c0_i32, %c0_i32_0 : i32, i32, i32
  }
}

module attributes {stable_mosaic.version = 11 : i64} {
  func.func @kernel(%arg0: i32, %arg1: memref<2x1024xf32, #tpu.memory_space<vmem>>, %arg2: memref<1x1024xf32, #tpu.memory_space<vmem>>, %arg3: memref<4x1024xbf16, #tpu.memory_space<vmem>>, %arg4: memref<4x1024xbf16, #tpu.memory_space<vmem>>, %arg5: memref<4x1024xf32, #tpu.memory_space<vmem>>) attributes {dimension_semantics = [#tpu.dimension_semantics<parallel>], iteration_bounds = array<i64: 1>, scalar_prefetch = 0 : i64, scratch_operands = 0 : i64, tpu.core_type = #tpu.core_type<tc>, window_params = [{pipeline_mode = #tpu.pipeline_mode<synchronous>, transform_indices = @transform_0, window_bounds = array<i64: 2, 1024>}, {pipeline_mode = #tpu.pipeline_mode<synchronous>, transform_indices = @transform_1, window_bounds = array<i64: 1, 1024>}, {transform_indices = @transform_2, window_bounds = array<i64: 4, 1024>}, {transform_indices = @transform_3, window_bounds = array<i64: 4, 1024>}, {transform_indices = @transform_4, window_bounds = array<i64: 4, 1024>}]} {
    %c0 = arith.constant 0 : index
    %c0_0 = arith.constant 0 : index
    %0 = vector.load %arg1[%c0, %c0_0] : memref<2x1024xf32, #tpu.memory_space<vmem>>, vector<2x1024xf32>
    %c0_1 = arith.constant 0 : index
    %c0_2 = arith.constant 0 : index
    %1 = vector.load %arg3[%c0_1, %c0_2] : memref<4x1024xbf16, #tpu.memory_space<vmem>>, vector<4x1024xbf16>
    %2 = arith.extf %1 : vector<4x1024xbf16> to vector<4x1024xf32>
    %3 = vector.extract_strided_slice %0 {offsets = [0, 0], sizes = [1, 1024], strides = [1, 1]} : vector<2x1024xf32> to vector<1x1024xf32>
    %4 = vector.broadcast %3 : vector<1x1024xf32> to vector<4x1024xf32>
    %5 = arith.mulf %2, %4 : vector<4x1024xf32>
    %c0_3 = arith.constant 0 : index
    %c0_4 = arith.constant 0 : index
    %6 = vector.load %arg2[%c0_3, %c0_4] : memref<1x1024xf32, #tpu.memory_space<vmem>>, vector<1x1024xf32>
    %7 = vector.broadcast %6 : vector<1x1024xf32> to vector<4x1024xf32>
    %8 = arith.addf %5, %7 : vector<4x1024xf32>
    %c0_5 = arith.constant 0 : index
    %c0_6 = arith.constant 0 : index
    %9 = vector.load %arg4[%c0_5, %c0_6] : memref<4x1024xbf16, #tpu.memory_space<vmem>>, vector<4x1024xbf16>
    %10 = arith.extf %9 : vector<4x1024xbf16> to vector<4x1024xf32>
    %11 = vector.extract_strided_slice %0 {offsets = [1, 0], sizes = [1, 1024], strides = [1, 1]} : vector<2x1024xf32> to vector<1x1024xf32>
    %12 = vector.broadcast %11 : vector<1x1024xf32> to vector<4x1024xf32>
    %13 = arith.mulf %10, %12 : vector<4x1024xf32>
    %14 = arith.addf %8, %13 : vector<4x1024xf32>
    %c0_7 = arith.constant 0 : index
    %c0_8 = arith.constant 0 : index
    %15 = vector.load %arg5[%c0_7, %c0_8] : memref<4x1024xf32, #tpu.memory_space<vmem>>, vector<4x1024xf32>
    tpu.vector_store %arg5[%c0_7, %c0_8], %14 {strides = array<i32>} : memref<4x1024xf32, #tpu.memory_space<vmem>>, vector<4x1024xf32>,
    return
  }
  func.func @transform_0(%arg0: i32) -> (i32, i32) {
    %c0_i32 = arith.constant 0 : i32
    %c0_i32_0 = arith.constant 0 : i32
    %c0_i32_1 = arith.constant 0 : i32
    return %c0_i32, %c0_i32_0 : i32, i32
  }
  func.func @transform_1(%arg0: i32) -> (i32, i32) {
    %c0_i32 = arith.constant 0 : i32
    %c0_i32_0 = arith.constant 0 : i32
    %c0_i32_1 = arith.constant 0 : i32
    return %c0_i32, %c0_i32_0 : i32, i32
  }
  func.func @transform_2(%arg0: i32) -> (i32, i32) {
    %c0_i32 = arith.constant 0 : i32
    %c0_i32_0 = arith.constant 0 : i32
    return %arg0, %c0_i32 : i32, i32
  }
  func.func @transform_3(%arg0: i32) -> (i32, i32) {
    %c0_i32 = arith.constant 0 : i32
    %c0_i32_0 = arith.constant 0 : i32
    return %arg0, %c0_i32 : i32, i32
  }
  func.func @transform_4(%arg0: i32) -> (i32, i32) {
    %c0_i32 = arith.constant 0 : i32
    %c0_i32_0 = arith.constant 0 : i32
    return %arg0, %c0_i32 : i32, i32
  }
}

</mosaic_0001>

<llo_original>
// kernel: tile.63
$region0: #{tile.63}
  #allocation0 [shape = 's32[1]{0}', space=sflag, size = 0x4, scoped, tag = 'scoped memory for tile.63']
  %s0 = inlined_call_operand.vmem [shape: f32[16], index: 0, kind: input, shape index: {}]
  %s1 = inlined_call_operand.vmem [shape: f32[64,16], index: 1, kind: output, shape index: {}]
  // Predicated region
  $region2: #{tile.63} parent=0 // pred_check
    _
  $region3: #{tile.63} parent=0 // pred_check_branch
    %3 = sbr.rel (0) target = $region5
  $region4: #{tile.63} parent=0 // pred_region
    _
  $region5: #{tile.63} parent=0 // pred_fallthru
    _
  %v4 = vld [vmem:[%s0] ss:$0 sm:$0xff]
  %5 = vst [vmem:[%s1] sm:$0xff] %v4
  %s6 = scalar_lea.vmem %s1, 8
  %7 = vst [vmem:[%s6] sm:$0xff] %v4
  %s8 = scalar_lea.vmem %s1, 16
  %9 = vst [vmem:[%s8] sm:$0xff] %v4
  %s10 = scalar_lea.vmem %s1, 24
  %11 = vst [vmem:[%s10] sm:$0xff] %v4
  %s12 = scalar_lea.vmem %s1, 32
  %13 = vst [vmem:[%s12] sm:$0xff] %v4
  %s14 = scalar_lea.vmem %s1, 40
  %15 = vst [vmem:[%s14] sm:$0xff] %v4
  %s16 = scalar_lea.vmem %s1, 48
  %17 = vst [vmem:[%s16] sm:$0xff] %v4
  %s18 = scalar_lea.vmem %s1, 56
  %19 = vst [vmem:[%s18] sm:$0xff] %v4

// kernel: tile.64
$region0: #{tile.64}
  %s0 = inlined_call_operand.vmem [shape: f32[64,16], index: 0, kind: input, shape index: {}]
  %s1 = inlined_call_operand.vmem [shape: f32[1,1024], index: 1, kind: output, shape index: {}]
  $region1: #{tile.64} parent=0
    #allocation0 [shape = 'u8[32768]{0}', space=vmem, size = 0x8000, scoped, tag = 'scoped mem for output reshape']
    %v2 = vld [vmem:[%s0] ss:$8 sm:$0xf]
    %v3 = vld [vmem:[%s0] ss:$8 sm:$0xf0]
    %vm4 = vcmask 1047556
    %v5 = vsel %vm4, %v3, %v2
    %vm6 = vcmask 130048
    %7 = vst.msk [vmem:[#allocation0] ss:$8 sm:$0xf] %vm6, %v5
    %8 = vst.msk [vmem:[#allocation0] ss:$8 sm:$0xf0] %vm6, %v5
    %s9 = scalar_lea.vmem %s0, 7
    %v10 = vld [vmem:[%s9] ss:$8 sm:$0xf]
    %s11 = scalar_lea.vmem %s0, 7
    %v12 = vld [vmem:[%s11] ss:$8 sm:$0xf0]
    %vm13 = vcmask 1047556
    %v14 = vsel %vm13, %v12, %v10
    %15 = vrot.lane.b32.xlu0 %v14, 112
    %v16 = vpop.permute.xlu0 %15
    %vm17 = vcmask 1048448
    %18 = vst.msk [vmem:[#allocation0] ss:$8 sm:$0xf] %vm17, %v16
    %19 = vst.msk [vmem:[#allocation0] ss:$8 sm:$0xf0] %vm17, %v16
    %s20 = scalar_lea.vmem %s0, 6
    %v21 = vld [vmem:[%s20] ss:$8 sm:$0xf]
    %s22 = scalar_lea.vmem %s0, 6
    %v23 = vld [vmem:[%s22] ss:$8 sm:$0xf0]
    %vm24 = vcmask 1047556
    %v25 = vsel %vm24, %v23, %v21
    %26 = vrot.lane.b32.xlu0 %v25, 96
    %v27 = vpop.permute.xlu0 %26
    %vm28 = vcmask 917248
    %29 = vst.msk [vmem:[#allocation0] ss:$8 sm:$0xf] %vm28, %v27
    %30 = vst.msk [vmem:[#allocation0] ss:$8 sm:$0xf0] %vm28, %v27
    %s31 = scalar_lea.vmem %s0, 5
    %v32 = vld [vmem:[%s31] ss:$8 sm:$0xf]
    %s33 = scalar_lea.vmem %s0, 5
    %v34 = vld [vmem:[%s33] ss:$8 sm:$0xf0]
    %vm35 = vcmask 1047556
    %v36 = vsel %vm35, %v34, %v32
    %37 = vrot.lane.b32.xlu0 %v36, 80
    %v38 = vpop.permute.xlu0 %37
    %vm39 = vcmask 786048
    %40 = vst.msk [vmem:[#allocation0] ss:$8 sm:$0xf] %vm39, %v38
    %41 = vst.msk [vmem:[#allocation0] ss:$8 sm:$0xf0] %vm39, %v38
    %s42 = scalar_lea.vmem %s0, 4
    %v43 = vld [vmem:[%s42] ss:$8 sm:$0xf]
    %s44 = scalar_lea.vmem %s0, 4
    %v45 = vld [vmem:[%s44] ss:$8 sm:$0xf0]
    %vm46 = vcmask 1047556
    %v47 = vsel %vm46, %v45, %v43
    %48 = vrot.lane.b32.xlu0 %v47, 64
    %v49 = vpop.permute.xlu0 %48
    %vm50 = vcmask 654848
    %51 = vst.msk [vmem:[#allocation0] ss:$8 sm:$0xf] %vm50, %v49
    %52 = vst.msk [vmem:[#allocation0] ss:$8 sm:$0xf0] %vm50, %v49
    %s53 = scalar_lea.vmem %s0, 3
    %v54 = vld [vmem:[%s53] ss:$8 sm:$0xf]
    %s55 = scalar_lea.vmem %s0, 3
    %v56 = vld [vmem:[%s55] ss:$8 sm:$0xf0]
    %vm57 = vcmask 1047556
    %v58 = vsel %vm57, %v56, %v54
    %59 = vrot.lane.b32.xlu0 %v58, 48
    %v60 = vpop.permute.xlu0 %59
    %vm61 = vcmask 523648
    %62 = vst.msk [vmem:[#allocation0] ss:$8 sm:$0xf] %vm61, %v60
    %63 = vst.msk [vmem:[#allocation0] ss:$8 sm:$0xf0] %vm61, %v60
    %s64 = scalar_lea.vmem %s0, 2
    %v65 = vld [vmem:[%s64] ss:$8 sm:$0xf]
    %s66 = scalar_lea.vmem %s0, 2
    %v67 = vld [vmem:[%s66] ss:$8 sm:$0xf0]
    %vm68 = vcmask 1047556
    %v69 = vsel %vm68, %v67, %v65
    %70 = vrot.lane.b32.xlu0 %v69, 32
    %v71 = vpop.permute.xlu0 %70
    %vm72 = vcmask 392448
    %73 = vst.msk [vmem:[#allocation0] ss:$8 sm:$0xf] %vm72, %v71
    %74 = vst.msk [vmem:[#allocation0] ss:$8 sm:$0xf0] %vm72, %v71
    %s75 = scalar_lea.vmem %s0, 1
    %v76 = vld [vmem:[%s75] ss:$8 sm:$0xf]
    %s77 = scalar_lea.vmem %s0, 1
    %v78 = vld [vmem:[%s77] ss:$8 sm:$0xf0]
    %vm79 = vcmask 1047556
    %v80 = vsel %vm79, %v78, %v76
    %81 = vrot.lane.b32.xlu0 %v80, 16
    %v82 = vpop.permute.xlu0 %81
    %vm83 = vcmask 261248
    %84 = vst.msk [vmem:[#allocation0] ss:$8 sm:$0xf] %vm83, %v82
    %85 = vst.msk [vmem:[#allocation0] ss:$8 sm:$0xf0] %vm83, %v82
    %s87 = sshllo.u32 0, 1
    %v89 = vld [vmem:[#allocation0] sm:%s87]
    %s90 = sshllo.u32 0, 1
    %91 = vst [vmem:[%s1] sm:%s90] %v89
    %s92 = scalar_lea.vmem [#allocation0], 8
    %v93 = vld [vmem:[%s92] sm:%s87]
    %s94 = sshllo.u32 0, 1
    %s95 = scalar_lea.vmem %s1, 1
    %96 = vst [vmem:[%s95] sm:%s94] %v93
    %s97 = scalar_lea.vmem [#allocation0], 16
    %v98 = vld [vmem:[%s97] sm:%s87]
    %s99 = sshllo.u32 0, 1
    %s100 = smul.addr 1, 2
    %s101 = scalar_lea.vmem %s1, %s100
    %102 = vst [vmem:[%s101] sm:%s99] %v98
    %s103 = scalar_lea.vmem [#allocation0], 24
    %v104 = vld [vmem:[%s103] sm:%s87]
    %s105 = sshllo.u32 0, 1
    %s106 = smul.addr 1, 3
    %s107 = scalar_lea.vmem %s1, %s106
    %108 = vst [vmem:[%s107] sm:%s105] %v104
    %s109 = scalar_lea.vmem [#allocation0], 32
    %v110 = vld [vmem:[%s109] sm:%s87]
    %s111 = sshllo.u32 0, 1
    %s112 = smul.addr 1, 4
    %s113 = scalar_lea.vmem %s1, %s112
    %114 = vst [vmem:[%s113] sm:%s111] %v110
    %s115 = scalar_lea.vmem [#allocation0], 40
    %v116 = vld [vmem:[%s115] sm:%s87]
    %s117 = sshllo.u32 0, 1
    %s118 = smul.addr 1, 5
    %s119 = scalar_lea.vmem %s1, %s118
    %120 = vst [vmem:[%s119] sm:%s117] %v116
    %s121 = scalar_lea.vmem [#allocation0], 48
    %v122 = vld [vmem:[%s121] sm:%s87]
    %s123 = sshllo.u32 0, 1
    %s124 = smul.addr 1, 6
    %s125 = scalar_lea.vmem %s1, %s124
    %126 = vst [vmem:[%s125] sm:%s123] %v122
    %s127 = scalar_lea.vmem [#allocation0], 56
    %v128 = vld [vmem:[%s127] sm:%s87]
    %s129 = sshllo.u32 0, 1
    %s130 = smul.addr 1, 7
    %s131 = scalar_lea.vmem %s1, %s130
    %132 = vst [vmem:[%s131] sm:%s129] %v128

// kernel: _lambda_.11
$region0: #{_lambda_.11}
  #allocation0 [shape = 'u32[]', space=smem, size = 0x4, offset = 0x4, fixed_abs, tag = 'smem constant byte address 0x4 - core index']
  #allocation1 [shape = 'u32[144,128]{1,0:T(1,128)}', space=vmem, size = 0x12000, scoped, tag = 'internal scratch']
  %s0 = inlined_call_operand.vmem [shape: f32[2,2,1024], index: 0, kind: input, shape index: {}]
  %s1 = inlined_call_operand.vmem [shape: f32[1,1024], index: 1, kind: input, shape index: {}]
  %s2 = inlined_call_operand.vmem [shape: f32[1,1024], index: 2, kind: input, shape index: {}]
  %s3 = inlined_call_operand.vmem [shape: bf16[2,2,1024], index: 3, kind: output, shape index: {}]
  %s4 = sld [smem:[#allocation0]]
  $region22: #{_lambda_.11} parent=0
    _
  %s6 = ssub.s32 1, %s4
  %s7 = scalar_select 0, %s6, %s4
  // Predicated region
  $region2: #{_lambda_.11} parent=0 // pred_check
    _
  $region3: #{_lambda_.11} parent=0 // pred_check_branch
    %9 = sbr.rel (0) target = $region5
  $region4: #{_lambda_.11} parent=0 // pred_region
    _
  $region5: #{_lambda_.11} parent=0 // pred_fallthru
    _
  // Predicated region
  $region6: #{_lambda_.11} parent=0 // pred_check
    _
  $region7: #{_lambda_.11} parent=0 // pred_check_branch
    %11 = sbr.rel (0) target = $region9
  $region8: #{_lambda_.11} parent=0 // pred_region
    _
  $region9: #{_lambda_.11} parent=0 // pred_fallthru
    _
  // Predicated region
  $region10: #{_lambda_.11} parent=0 // pred_check
    _
  $region11: #{_lambda_.11} parent=0 // pred_check_branch
    %13 = sbr.rel (0) target = $region13
  $region12: #{_lambda_.11} parent=0 // pred_region
    _
  $region13: #{_lambda_.11} parent=0 // pred_fallthru
    _
  %v14 = vld [vmem:[%s1] sm:$0xff]
  %v15 = vld [vmem:[%s2] sm:$0xff]
  %v16 = vld [vmem:[%s0] sm:$0xff]
  %v17 = vld [vmem:[%s0 + $0x8] sm:$0xff]
  %v19 = vlaneseq
  %v20 = vshrl.u32 %v19, 7
  %v21 = vsub.s32 0, %v20
  %v22 = vrot.slane %v14, %v21
  %v23 = vlaneseq
  %v24 = vshrl.u32 %v23, 7
  %v25 = vsub.s32 1, %v24
  %v26 = vrot.slane %v14, %v25
  %v27 = vlaneseq
  %v28 = vshrl.u32 %v27, 7
  %v29 = vsub.s32 2, %v28
  %v30 = vrot.slane %v14, %v29
  %v31 = vlaneseq
  %v32 = vshrl.u32 %v31, 7
  %v33 = vsub.s32 3, %v32
  %v34 = vrot.slane %v14, %v33
  %v35 = vlaneseq
  %v36 = vshrl.u32 %v35, 7
  %v37 = vsub.s32 4, %v36
  %v38 = vrot.slane %v14, %v37
  %v39 = vlaneseq
  %v40 = vshrl.u32 %v39, 7
  %v41 = vsub.s32 5, %v40
  %v42 = vrot.slane %v14, %v41
  %v43 = vlaneseq
  %v44 = vshrl.u32 %v43, 7
  %v45 = vsub.s32 6, %v44
  %v46 = vrot.slane %v14, %v45
  %v47 = vlaneseq
  %v48 = vshrl.u32 %v47, 7
  %v49 = vsub.s32 7, %v48
  %v50 = vrot.slane %v14, %v49
  %v51 = vcombine.low %v22, %v26
  %v52 = vcombine.low %v30, %v34
  %v54 = vunpack.c.l.s4 1983009808
  %v55 = vunpack.c.0.s8 %v54
  %v56 = vlaneseq
  %v57 = vshrl.u32 %v56, 7
  %v58 = vsub.s32 %v55, %v57
  %v59 = vrot.slane %v51, %v58
  %v61 = vunpack.c.l.s4 1983009808
  %v62 = vunpack.c.0.s8 %v61
  %v63 = vlaneseq
  %v64 = vshrl.u32 %v63, 7
  %v65 = vsub.s32 %v62, %v64
  %v66 = vrot.slane %v52, %v65
  %v67 = vcombine.low %v59, %v66
  %v68 = vcombine.low %v38, %v42
  %v69 = vcombine.low %v46, %v50
  %v71 = vunpack.c.l.s4 1983009808
  %v72 = vunpack.c.0.s8 %v71
  %v73 = vlaneseq
  %v74 = vshrl.u32 %v73, 7
  %v75 = vsub.s32 %v72, %v74
  %v76 = vrot.slane %v68, %v75
  %v78 = vunpack.c.l.s4 1983009808
  %v79 = vunpack.c.0.s8 %v78
  %v80 = vlaneseq
  %v81 = vshrl.u32 %v80, 7
  %v82 = vsub.s32 %v79, %v81
  %v83 = vrot.slane %v69, %v82
  %v84 = vcombine.low %v76, %v83
  %v87 = vmul.f32 %v16, %v67
  %v88 = vmul.f32 %v17, %v84
  %v90 = vlaneseq
  %v91 = vshrl.u32 %v90, 7
  %v92 = vsub.s32 0, %v91
  %v93 = vrot.slane %v15, %v92
  %v94 = vlaneseq
  %v95 = vshrl.u32 %v94, 7
  %v96 = vsub.s32 1, %v95
  %v97 = vrot.slane %v15, %v96
  %v98 = vlaneseq
  %v99 = vshrl.u32 %v98, 7
  %v100 = vsub.s32 2, %v99
  %v101 = vrot.slane %v15, %v100
  %v102 = vlaneseq
  %v103 = vshrl.u32 %v102, 7
  %v104 = vsub.s32 3, %v103
  %v105 = vrot.slane %v15, %v104
  %v106 = vlaneseq
  %v107 = vshrl.u32 %v106, 7
  %v108 = vsub.s32 4, %v107
  %v109 = vrot.slane %v15, %v108
  %v110 = vlaneseq
  %v111 = vshrl.u32 %v110, 7
  %v112 = vsub.s32 5, %v111
  %v113 = vrot.slane %v15, %v112
  %v114 = vlaneseq
  %v115 = vshrl.u32 %v114, 7
  %v116 = vsub.s32 6, %v115
  %v117 = vrot.slane %v15, %v116
  %v118 = vlaneseq
  %v119 = vshrl.u32 %v118, 7
  %v120 = vsub.s32 7, %v119
  %v121 = vrot.slane %v15, %v120
  %v122 = vcombine.low %v93, %v97
  %v123 = vcombine.low %v101, %v105
  %v125 = vunpack.c.l.s4 1983009808
  %v126 = vunpack.c.0.s8 %v125
  %v127 = vlaneseq
  %v128 = vshrl.u32 %v127, 7
  %v129 = vsub.s32 %v126, %v128
  %v130 = vrot.slane %v122, %v129
  %v132 = vunpack.c.l.s4 1983009808
  %v133 = vunpack.c.0.s8 %v132
  %v134 = vlaneseq
  %v135 = vshrl.u32 %v134, 7
  %v136 = vsub.s32 %v133, %v135
  %v137 = vrot.slane %v123, %v136
  %v138 = vcombine.low %v130, %v137
  %v139 = vcombine.low %v109, %v113
  %v140 = vcombine.low %v117, %v121
  %v142 = vunpack.c.l.s4 1983009808
  %v143 = vunpack.c.0.s8 %v142
  %v144 = vlaneseq
  %v145 = vshrl.u32 %v144, 7
  %v146 = vsub.s32 %v143, %v145
  %v147 = vrot.slane %v139, %v146
  %v149 = vunpack.c.l.s4 1983009808
  %v150 = vunpack.c.0.s8 %v149
  %v151 = vlaneseq
  %v152 = vshrl.u32 %v151, 7
  %v153 = vsub.s32 %v150, %v152
  %v154 = vrot.slane %v140, %v153
  %v155 = vcombine.low %v147, %v154
  %v158 = vadd.f32 %v87, %v138
  %v159 = vadd.f32 %v88, %v155
  %v160 = vmul.f32 %v158, 0.5
  %v161 = vmul.f32 %v159, 0.5
  %v162 = vadd.f32 %v160, 0.0
  %v163 = vadd.f32 %v161, 0.0
  %vm164 = vcmp.ge.f32.partialorder %v162, 1.0
  %vm165 = vcmp.ge.f32.partialorder %v163, 1.0
  %v166 = vsel %vm164, 1, 0
  %v167 = vsel %vm165, 1, 0
  %v168 = vcvt.s32.f32 %v166
  %v169 = vcvt.s32.f32 %v167
  %v172 = vcombine.high %v168, %v168
  %v174 = vunpack.c.l.s4 1983009808
  %v175 = vunpack.c.0.s8 %v174
  %v176 = vlaneseq
  %v177 = vshrl.u32 %v176, 7
  %v178 = vsub.s32 %v175, %v177
  %v179 = vrot.slane %v168, %v178
  %v181 = vunpack.c.l.s4 1983009808
  %v182 = vunpack.c.0.s8 %v181
  %v183 = vlaneseq
  %v184 = vshrl.u32 %v183, 7
  %v185 = vsub.s32 %v182, %v184
  %v186 = vrot.slane %v172, %v185
  %v187 = vcombine.high %v179, %v179
  %v188 = vcombine.high %v186, %v186
  %v189 = vcombine.high %v169, %v169
  %v191 = vunpack.c.l.s4 1983009808
  %v192 = vunpack.c.0.s8 %v191
  %v193 = vlaneseq
  %v194 = vshrl.u32 %v193, 7
  %v195 = vsub.s32 %v192, %v194
  %v196 = vrot.slane %v169, %v195
  %v198 = vunpack.c.l.s4 1983009808
  %v199 = vunpack.c.0.s8 %v198
  %v200 = vlaneseq
  %v201 = vshrl.u32 %v200, 7
  %v202 = vsub.s32 %v199, %v201
  %v203 = vrot.slane %v189, %v202
  %v204 = vcombine.high %v196, %v196
  %v205 = vcombine.high %v203, %v203
  %v214 = vpack.c.bf16 %v179, %v179
  %v215 = vpack.c.bf16 %v187, %v187
  %v216 = vpack.c.bf16 %v186, %v186
  %v217 = vpack.c.bf16 %v188, %v188
  %v218 = vpack.c.bf16 %v196, %v196
  %v219 = vpack.c.bf16 %v204, %v204
  %v220 = vpack.c.bf16 %v203, %v203
  %v221 = vpack.c.bf16 %v205, %v205
  %v230 = vcombine.low %v214, %v215
  %v231 = vcombine.low %v216, %v217
  %v232 = vcombine.low %v218, %v219
  %v233 = vcombine.low %v220, %v221
  %v235 = vunpack.c.l.s4 1966171168
  %v236 = vunpack.c.0.s8 %v235
  %v237 = vlaneseq
  %v238 = vshrl.u32 %v237, 7
  %v239 = vsub.s32 %v236, %v238
  %v240 = vrot.slane %v230, %v239
  %v242 = vunpack.c.l.s4 1966171168
  %v243 = vunpack.c.0.s8 %v242
  %v244 = vlaneseq
  %v245 = vshrl.u32 %v244, 7
  %v246 = vsub.s32 %v243, %v245
  %v247 = vrot.slane %v231, %v246
  %v249 = vunpack.c.l.s4 1966171168
  %v250 = vunpack.c.0.s8 %v249
  %v251 = vlaneseq
  %v252 = vshrl.u32 %v251, 7
  %v253 = vsub.s32 %v250, %v252
  %v254 = vrot.slane %v232, %v253
  %v256 = vunpack.c.l.s4 1966171168
  %v257 = vunpack.c.0.s8 %v256
  %v258 = vlaneseq
  %v259 = vshrl.u32 %v258, 7
  %v260 = vsub.s32 %v257, %v259
  %v261 = vrot.slane %v233, %v260
  %v262 = vcombine.low %v240, %v247
  %v263 = vcombine.low %v254, %v261
  %v265 = vunpack.c.l.s4 1966171168
  %v266 = vunpack.c.0.s8 %v265
  %v267 = vlaneseq
  %v268 = vshrl.u32 %v267, 7
  %v269 = vsub.s32 %v266, %v268
  %v270 = vrot.slane %v262, %v269
  %v272 = vunpack.c.l.s4 1966171168
  %v273 = vunpack.c.0.s8 %v272
  %v274 = vlaneseq
  %v275 = vshrl.u32 %v274, 7
  %v276 = vsub.s32 %v273, %v275
  %v277 = vrot.slane %v263, %v276
  %v278 = vcombine.low %v270, %v277
  %280 = vst [vmem:[%s3] sm:$0xff] %v278
  %v281 = vsel %vm164, 0.0, %v162
  %v282 = vsel %vm165, 0.0, %v163
  %s283 = scalar_lea.vmem %s0, 16
  %v284 = vld [vmem:[%s283] sm:$0xff]
  %v285 = vld [vmem:[%s283 + $0x8] sm:$0xff]
  %v286 = vmul.f32 %v284, %v67
  %v287 = vmul.f32 %v285, %v84
  %v288 = vadd.f32 %v286, %v138
  %v289 = vadd.f32 %v287, %v155
  %v290 = vsub.f32 %v288, %v281
  %v291 = vsub.f32 %v289, %v282
  %v292 = vmul.f32 %v290, 0.5
  %v293 = vmul.f32 %v291, 0.5
  %v294 = vadd.f32 %v281, %v292
  %v295 = vadd.f32 %v282, %v293
  %vm296 = vcmp.ge.f32.partialorder %v294, 1.0
  %vm297 = vcmp.ge.f32.partialorder %v295, 1.0
  %v298 = vsel %vm296, 1, 0
  %v299 = vsel %vm297, 1, 0
  %v300 = vcvt.s32.f32 %v298
  %v301 = vcvt.s32.f32 %v299
  %v304 = vcombine.high %v300, %v300
  %v306 = vunpack.c.l.s4 1983009808
  %v307 = vunpack.c.0.s8 %v306
  %v308 = vlaneseq
  %v309 = vshrl.u32 %v308, 7
  %v310 = vsub.s32 %v307, %v309
  %v311 = vrot.slane %v300, %v310
  %v313 = vunpack.c.l.s4 1983009808
  %v314 = vunpack.c.0.s8 %v313
  %v315 = vlaneseq
  %v316 = vshrl.u32 %v315, 7
  %v317 = vsub.s32 %v314, %v316
  %v318 = vrot.slane %v304, %v317
  %v319 = vcombine.high %v311, %v311
  %v320 = vcombine.high %v318, %v318
  %v321 = vcombine.high %v301, %v301
  %v323 = vunpack.c.l.s4 1983009808
  %v324 = vunpack.c.0.s8 %v323
  %v325 = vlaneseq
  %v326 = vshrl.u32 %v325, 7
  %v327 = vsub.s32 %v324, %v326
  %v328 = vrot.slane %v301, %v327
  %v330 = vunpack.c.l.s4 1983009808
  %v331 = vunpack.c.0.s8 %v330
  %v332 = vlaneseq
  %v333 = vshrl.u32 %v332, 7
  %v334 = vsub.s32 %v331, %v333
  %v335 = vrot.slane %v321, %v334
  %v336 = vcombine.high %v328, %v328
  %v337 = vcombine.high %v335, %v335
  %v346 = vpack.c.bf16 %v311, %v311
  %v347 = vpack.c.bf16 %v319, %v319
  %v348 = vpack.c.bf16 %v318, %v318
  %v349 = vpack.c.bf16 %v320, %v320
  %v350 = vpack.c.bf16 %v328, %v328
  %v351 = vpack.c.bf16 %v336, %v336
  %v352 = vpack.c.bf16 %v335, %v335
  %v353 = vpack.c.bf16 %v337, %v337
  %v362 = vcombine.low %v346, %v347
  %v363 = vcombine.low %v348, %v349
  %v364 = vcombine.low %v350, %v351
  %v365 = vcombine.low %v352, %v353
  %v367 = vunpack.c.l.s4 1966171168
  %v368 = vunpack.c.0.s8 %v367
  %v369 = vlaneseq
  %v370 = vshrl.u32 %v369, 7
  %v371 = vsub.s32 %v368, %v370
  %v372 = vrot.slane %v362, %v371
  %v374 = vunpack.c.l.s4 1966171168
  %v375 = vunpack.c.0.s8 %v374
  %v376 = vlaneseq
  %v377 = vshrl.u32 %v376, 7
  %v378 = vsub.s32 %v375, %v377
  %v379 = vrot.slane %v363, %v378
  %v381 = vunpack.c.l.s4 1966171168
  %v382 = vunpack.c.0.s8 %v381
  %v383 = vlaneseq
  %v384 = vshrl.u32 %v383, 7
  %v385 = vsub.s32 %v382, %v384
  %v386 = vrot.slane %v364, %v385
  %v388 = vunpack.c.l.s4 1966171168
  %v389 = vunpack.c.0.s8 %v388
  %v390 = vlaneseq
  %v391 = vshrl.u32 %v390, 7
  %v392 = vsub.s32 %v389, %v391
  %v393 = vrot.slane %v365, %v392
  %v394 = vcombine.low %v372, %v379
  %v395 = vcombine.low %v386, %v393
  %v397 = vunpack.c.l.s4 1966171168
  %v398 = vunpack.c.0.s8 %v397
  %v399 = vlaneseq
  %v400 = vshrl.u32 %v399, 7
  %v401 = vsub.s32 %v398, %v400
  %v402 = vrot.slane %v394, %v401
  %v404 = vunpack.c.l.s4 1966171168
  %v405 = vunpack.c.0.s8 %v404
  %v406 = vlaneseq
  %v407 = vshrl.u32 %v406, 7
  %v408 = vsub.s32 %v405, %v407
  %v409 = vrot.slane %v395, %v408
  %v410 = vcombine.low %v402, %v409
  %s412 = scalar_lea.vmem %s3, 8
  %413 = vst [vmem:[%s412] sm:$0xff] %v410
  // Predicated region
  $region14: #{_lambda_.11} parent=0 // pred_check
    _
  $region15: #{_lambda_.11} parent=0 // pred_check_branch
    %415 = sbr.rel (0) target = $region17
  $region16: #{_lambda_.11} parent=0 // pred_region
    _
  $region17: #{_lambda_.11} parent=0 // pred_fallthru
    _
  // Predicated region
  $region18: #{_lambda_.11} parent=0 // pred_check
    _
  $region19: #{_lambda_.11} parent=0 // pred_check_branch
    %417 = sbr.rel (0) target = $region21
  $region20: #{_lambda_.11} parent=0 // pred_region
    _
  $region21: #{_lambda_.11} parent=0 // pred_fallthru
    _

// kernel: _lambda_.12
$region0: #{_lambda_.12}
  #allocation0 [shape = 'u32[]', space=smem, size = 0x4, offset = 0x4, fixed_abs, tag = 'smem constant byte address 0x4 - core index']
  #allocation1 [shape = 'u32[144,128]{1,0:T(1,128)}', space=vmem, size = 0x12000, scoped, tag = 'internal scratch']
  %s0 = inlined_call_operand.vmem [shape: f32[8,8], index: 0, kind: input, shape index: {}]
  %s1 = inlined_call_operand.vmem [shape: bf16[128,128], index: 1, kind: input, shape index: {}]
  %s2 = inlined_call_operand.vmem [shape: f32[1,128], index: 2, kind: input, shape index: {}]
  %s3 = inlined_call_operand.vmem [shape: f32[1,128], index: 3, kind: input, shape index: {}]
  %s4 = inlined_call_operand.vmem [shape: bf16[2,16,128], index: 4, kind: input, shape index: {}]
  %s5 = inlined_call_operand.vmem [shape: bf16[2,16,128], index: 5, kind: output, shape index: {0}]
  %s6 = inlined_call_operand.vmem [shape: f32[1,2,128], index: 6, kind: output, shape index: {1}]
  %7 = xla_tuple %s5, %s6
  %s8 = sld [smem:[#allocation0]]
  $region38: #{_lambda_.12} parent=0
    _
  %s10 = ssub.s32 1, %s8
  %s11 = scalar_select 0, %s10, %s8
  // Predicated region
  $region2: #{_lambda_.12} parent=0 // pred_check
    _
  $region3: #{_lambda_.12} parent=0 // pred_check_branch
    %13 = sbr.rel (0) target = $region5
  $region4: #{_lambda_.12} parent=0 // pred_region
    _
  $region5: #{_lambda_.12} parent=0 // pred_fallthru
    _
  // Predicated region
  $region6: #{_lambda_.12} parent=0 // pred_check
    _
  $region7: #{_lambda_.12} parent=0 // pred_check_branch
    %15 = sbr.rel (0) target = $region9
  $region8: #{_lambda_.12} parent=0 // pred_region
    _
  $region9: #{_lambda_.12} parent=0 // pred_fallthru
    _
  // Predicated region
  $region10: #{_lambda_.12} parent=0 // pred_check
    _
  $region11: #{_lambda_.12} parent=0 // pred_check_branch
    %17 = sbr.rel (0) target = $region13
  $region12: #{_lambda_.12} parent=0 // pred_region
    _
  $region13: #{_lambda_.12} parent=0 // pred_fallthru
    _
  // Predicated region
  $region14: #{_lambda_.12} parent=0 // pred_check
    _
  $region15: #{_lambda_.12} parent=0 // pred_check_branch
    %19 = sbr.rel (0) target = $region17
  $region16: #{_lambda_.12} parent=0 // pred_region
    _
  $region17: #{_lambda_.12} parent=0 // pred_fallthru
    _
  // Predicated region
  $region18: #{_lambda_.12} parent=0 // pred_check
    _
  $region19: #{_lambda_.12} parent=0 // pred_check_branch
    %21 = sbr.rel (0) target = $region21
  $region20: #{_lambda_.12} parent=0 // pred_region
    _
  $region21: #{_lambda_.12} parent=0 // pred_fallthru
    _
  %v23 = vld [vmem:[%s0] sm:$0xff]
  %v24 = vpack.c.bf16 %v23, %v23
  %v25 = vld [vmem:[%s1] sm:$0xf]
  %v26 = vld [vmem:[%s1 + $0x4] sm:$0xf]
  %v27 = vld [vmem:[%s1 + $0x8] sm:$0xf]
  %v28 = vld [vmem:[%s1 + $0xc] sm:$0xf]
  %v29 = vld [vmem:[%s1 + $0x10] sm:$0xf]
  %v30 = vld [vmem:[%s1 + $0x14] sm:$0xf]
  %v31 = vld [vmem:[%s1 + $0x18] sm:$0xf]
  %v32 = vld [vmem:[%s1 + $0x1c] sm:$0xf]
  %v33 = vld [vmem:[%s1 + $0x20] sm:$0xf]
  %v34 = vld [vmem:[%s1 + $0x24] sm:$0xf]
  %v35 = vld [vmem:[%s1 + $0x28] sm:$0xf]
  %v36 = vld [vmem:[%s1 + $0x2c] sm:$0xf]
  %v37 = vld [vmem:[%s1 + $0x30] sm:$0xf]
  %v38 = vld [vmem:[%s1 + $0x34] sm:$0xf]
  %v39 = vld [vmem:[%s1 + $0x38] sm:$0xf]
  %v40 = vld [vmem:[%s1 + $0x3c] sm:$0xf]
  %v41 = vld [vmem:[%s2] sm:$0x1]
  %v42 = vld [vmem:[%s3] sm:$0x1]
  %v43 = vld [vmem:[%s4] sm:$0xf]
  %v44 = vld [vmem:[%s4 + $0x4] sm:$0xf]
  %v45 = vld [vmem:[%s4 + $0x8] sm:$0xf]
  %v46 = vld [vmem:[%s4 + $0xc] sm:$0xf]
  %v47 = vunpack.c.l.bf16 %v43
  %v48 = vunpack.c.l.bf16 %v44
  %v49 = vunpack.c.l.bf16 %v45
  %v50 = vunpack.c.l.bf16 %v46
  %v52 = vlaneseq
  %v53 = vshrl.u32 %v52, 7
  %v54 = vsub.s32 0, %v53
  %v55 = vrot.slane %v41, %v54
  %v57 = vmul.f32 %v47, %v55
  %v58 = vmul.f32 %v48, %v55
  %v59 = vmul.f32 %v49, %v55
  %v60 = vmul.f32 %v50, %v55
  %v62 = vlaneseq
  %v63 = vshrl.u32 %v62, 7
  %v64 = vsub.s32 0, %v63
  %v65 = vrot.slane %v42, %v64
  %v67 = vadd.f32 %v57, %v65
  %v68 = vadd.f32 %v58, %v65
  %v69 = vadd.f32 %v59, %v65
  %v70 = vadd.f32 %v60, %v65
  %v71 = vpack.c.bf16 %v67, %v67
  %v72 = vpack.c.bf16 %v68, %v68
  %v73 = vpack.c.bf16 %v69, %v69
  %v74 = vpack.c.bf16 %v70, %v70
  %vm75 = vcmask 64512
  %v77 = vsel %vm75, %v24, 0
  %vm79 = vcmask 1043456
  %v81 = vsel %vm79, %v71, 0
  %83 = vmatprep.subr.bf16.mxu0 0
  %84 = vmatpush1.bf16.msra.mxu0 %v81
  %85 = vmatprep.subr.bf16.mxu0 0
  %86 = vmatpush1.bf16.msra.mxu0 0
  %87 = vmatprep.subr.bf16.mxu0 0
  %88 = vmatpush1.bf16.msra.mxu0 0
  %89 = vmatprep.subr.bf16.mxu0 0
  %90 = vmatpush1.bf16.msra.mxu0 0
  %91 = vmatprep.subr.bf16.mxu0 0
  %92 = vmatpush1.bf16.msra.mxu0 0
  %93 = vmatprep.subr.bf16.mxu0 0
  %94 = vmatpush1.bf16.msra.mxu0 0
  %95 = vmatprep.subr.bf16.mxu0 0
  %96 = vmatpush1.bf16.msra.mxu0 0
  %97 = vmatprep.subr.bf16.mxu0 0
  %98 = vmatpush1.bf16.msra.mxu0 0
  %99 = vmatprep.subr.bf16.mxu0 0
  %100 = vmatpush1.bf16.msra.mxu0 0
  %101 = vmatprep.subr.bf16.mxu0 0
  %102 = vmatpush1.bf16.msra.mxu0 0
  %103 = vmatprep.subr.bf16.mxu0 0
  %104 = vmatpush1.bf16.msra.mxu0 0
  %105 = vmatprep.subr.bf16.mxu0 0
  %106 = vmatpush1.bf16.msra.mxu0 0
  %107 = vmatprep.subr.bf16.mxu0 0
  %108 = vmatpush1.bf16.msra.mxu0 0
  %109 = vmatprep.subr.bf16.mxu0 0
  %110 = vmatpush1.bf16.msra.mxu0 0
  %111 = vmatprep.subr.bf16.mxu0 0
  %112 = vmatpush1.bf16.msra.mxu0 0
  %113 = vmatprep.subr.bf16.mxu0 0
  %114 = vmatpush1.bf16.msra.mxu0 0
  %115 = vmatprep.mubr.bf16.mxu0 0
  %116 = vmatmul.mubr.bf16.gmra.mrb[0].mxu0 %v77
  %v117 = vpop.f32.mrb[0].mxu0
  %v118 = vadd.f32 0.0, %v117
  %v119 = vpop.f32.mrb[0].mxu0
  %v120 = vpop.f32.mrb[0].mxu0
  %v121 = vpop.f32.mrb[0].mxu0
  %122 = vdwg.mxu0
  %v124 = vsel %vm79, %v72, 0
  %126 = vmatprep.subr.bf16.mxu0 0
  %127 = vmatpush1.bf16.msra.mxu0 %v124
  %128 = vmatprep.subr.bf16.mxu0 0
  %129 = vmatpush1.bf16.msra.mxu0 0
  %130 = vmatprep.subr.bf16.mxu0 0
  %131 = vmatpush1.bf16.msra.mxu0 0
  %132 = vmatprep.subr.bf16.mxu0 0
  %133 = vmatpush1.bf16.msra.mxu0 0
  %134 = vmatprep.subr.bf16.mxu0 0
  %135 = vmatpush1.bf16.msra.mxu0 0
  %136 = vmatprep.subr.bf16.mxu0 0
  %137 = vmatpush1.bf16.msra.mxu0 0
  %138 = vmatprep.subr.bf16.mxu0 0
  %139 = vmatpush1.bf16.msra.mxu0 0
  %140 = vmatprep.subr.bf16.mxu0 0
  %141 = vmatpush1.bf16.msra.mxu0 0
  %142 = vmatprep.subr.bf16.mxu0 0
  %143 = vmatpush1.bf16.msra.mxu0 0
  %144 = vmatprep.subr.bf16.mxu0 0
  %145 = vmatpush1.bf16.msra.mxu0 0
  %146 = vmatprep.subr.bf16.mxu0 0
  %147 = vmatpush1.bf16.msra.mxu0 0
  %148 = vmatprep.subr.bf16.mxu0 0
  %149 = vmatpush1.bf16.msra.mxu0 0
  %150 = vmatprep.subr.bf16.mxu0 0
  %151 = vmatpush1.bf16.msra.mxu0 0
  %152 = vmatprep.subr.bf16.mxu0 0
  %153 = vmatpush1.bf16.msra.mxu0 0
  %154 = vmatprep.subr.bf16.mxu0 0
  %155 = vmatpush1.bf16.msra.mxu0 0
  %156 = vmatprep.subr.bf16.mxu0 0
  %157 = vmatpush1.bf16.msra.mxu0 0
  %158 = vmatprep.mubr.bf16.mxu0 0
  %159 = vmatmul.mubr.bf16.gmra.mrb[0].mxu0 %v77
  %v160 = vpop.f32.mrb[0].mxu0
  %v161 = vadd.f32 0.0, %v160
  %v162 = vpop.f32.mrb[0].mxu0
  %v163 = vpop.f32.mrb[0].mxu0
  %v164 = vpop.f32.mrb[0].mxu0
  %165 = vdwg.mxu0
  %v167 = vsel %vm79, %v73, 0
  %169 = vmatprep.subr.bf16.mxu0 0
  %170 = vmatpush1.bf16.msra.mxu0 %v167
  %171 = vmatprep.subr.bf16.mxu0 0
  %172 = vmatpush1.bf16.msra.mxu0 0
  %173 = vmatprep.subr.bf16.mxu0 0
  %174 = vmatpush1.bf16.msra.mxu0 0
  %175 = vmatprep.subr.bf16.mxu0 0
  %176 = vmatpush1.bf16.msra.mxu0 0
  %177 = vmatprep.subr.bf16.mxu0 0
  %178 = vmatpush1.bf16.msra.mxu0 0
  %179 = vmatprep.subr.bf16.mxu0 0
  %180 = vmatpush1.bf16.msra.mxu0 0
  %181 = vmatprep.subr.bf16.mxu0 0
  %182 = vmatpush1.bf16.msra.mxu0 0
  %183 = vmatprep.subr.bf16.mxu0 0
  %184 = vmatpush1.bf16.msra.mxu0 0
  %185 = vmatprep.subr.bf16.mxu0 0
  %186 = vmatpush1.bf16.msra.mxu0 0
  %187 = vmatprep.subr.bf16.mxu0 0
  %188 = vmatpush1.bf16.msra.mxu0 0
  %189 = vmatprep.subr.bf16.mxu0 0
  %190 = vmatpush1.bf16.msra.mxu0 0
  %191 = vmatprep.subr.bf16.mxu0 0
  %192 = vmatpush1.bf16.msra.mxu0 0
  %193 = vmatprep.subr.bf16.mxu0 0
  %194 = vmatpush1.bf16.msra.mxu0 0
  %195 = vmatprep.subr.bf16.mxu0 0
  %196 = vmatpush1.bf16.msra.mxu0 0
  %197 = vmatprep.subr.bf16.mxu0 0
  %198 = vmatpush1.bf16.msra.mxu0 0
  %199 = vmatprep.subr.bf16.mxu0 0
  %200 = vmatpush1.bf16.msra.mxu0 0
  %201 = vmatprep.mubr.bf16.mxu0 0
  %202 = vmatmul.mubr.bf16.gmra.mrb[0].mxu0 %v77
  %v203 = vpop.f32.mrb[0].mxu0
  %v204 = vadd.f32 0.0, %v203
  %v205 = vpop.f32.mrb[0].mxu0
  %v206 = vpop.f32.mrb[0].mxu0
  %v207 = vpop.f32.mrb[0].mxu0
  %208 = vdwg.mxu0
  %v210 = vsel %vm79, %v74, 0
  %212 = vmatprep.subr.bf16.mxu0 0
  %213 = vmatpush1.bf16.msra.mxu0 %v210
  %214 = vmatprep.subr.bf16.mxu0 0
  %215 = vmatpush1.bf16.msra.mxu0 0
  %216 = vmatprep.subr.bf16.mxu0 0
  %217 = vmatpush1.bf16.msra.mxu0 0
  %218 = vmatprep.subr.bf16.mxu0 0
  %219 = vmatpush1.bf16.msra.mxu0 0
  %220 = vmatprep.subr.bf16.mxu0 0
  %221 = vmatpush1.bf16.msra.mxu0 0
  %222 = vmatprep.subr.bf16.mxu0 0
  %223 = vmatpush1.bf16.msra.mxu0 0
  %224 = vmatprep.subr.bf16.mxu0 0
  %225 = vmatpush1.bf16.msra.mxu0 0
  %226 = vmatprep.subr.bf16.mxu0 0
  %227 = vmatpush1.bf16.msra.mxu0 0
  %228 = vmatprep.subr.bf16.mxu0 0
  %229 = vmatpush1.bf16.msra.mxu0 0
  %230 = vmatprep.subr.bf16.mxu0 0
  %231 = vmatpush1.bf16.msra.mxu0 0
  %232 = vmatprep.subr.bf16.mxu0 0
  %233 = vmatpush1.bf16.msra.mxu0 0
  %234 = vmatprep.subr.bf16.mxu0 0
  %235 = vmatpush1.bf16.msra.mxu0 0
  %236 = vmatprep.subr.bf16.mxu0 0
  %237 = vmatpush1.bf16.msra.mxu0 0
  %238 = vmatprep.subr.bf16.mxu0 0
  %239 = vmatpush1.bf16.msra.mxu0 0
  %240 = vmatprep.subr.bf16.mxu0 0
  %241 = vmatpush1.bf16.msra.mxu0 0
  %242 = vmatprep.subr.bf16.mxu0 0
  %243 = vmatpush1.bf16.msra.mxu0 0
  %244 = vmatprep.mubr.bf16.mxu0 0
  %245 = vmatmul.mubr.bf16.gmra.mrb[0].mxu0 %v77
  %v246 = vpop.f32.mrb[0].mxu0
  %v247 = vadd.f32 0.0, %v246
  %v248 = vpop.f32.mrb[0].mxu0
  %v249 = vpop.f32.mrb[0].mxu0
  %v250 = vpop.f32.mrb[0].mxu0
  %251 = vdwg.mxu0
  %v252 = vadd.f32 %v118, 0.0
  %v253 = vadd.f32 %v161, 0.0
  %vm254 = vcmp.ge.f32.partialorder %v252, 1.0
  %vm255 = vcmp.ge.f32.partialorder %v253, 1.0
  %vm256 = vcmp.le.f32.partialorder %v252, -1.0
  %vm257 = vcmp.le.f32.partialorder %v253, -1.0
  %v258 = vsel %vm254, 1, 0
  %v259 = vsel %vm255, 1, 0
  %v260 = vcvt.s32.f32 %v258
  %v261 = vcvt.s32.f32 %v259
  %v262 = vsel %vm256, 1, 0
  %v263 = vsel %vm257, 1, 0
  %v264 = vcvt.s32.f32 %v262
  %v265 = vcvt.s32.f32 %v263
  %v266 = vsub.f32 %v260, %v264
  %v267 = vsub.f32 %v261, %v265
  %vm268 = vmor %vm254, %vm256
  %vm269 = vmor %vm255, %vm257
  %v270 = vsel %vm268, 0.0, %v252
  %v271 = vsel %vm269, 0.0, %v253
  %v272 = vpack.c.bf16 %v267, %v266
  %v289 = vunpack.c.l.b16 %v25
  %v290 = vunpack.c.l.b16 %v26
  %v291 = vunpack.c.l.b16 %v27
  %v292 = vunpack.c.l.b16 %v28
  %v293 = vunpack.c.l.b16 %v29
  %v294 = vunpack.c.l.b16 %v30
  %v295 = vunpack.c.l.b16 %v31
  %v296 = vunpack.c.l.b16 %v32
  %v297 = vunpack.c.l.b16 %v33
  %v298 = vunpack.c.l.b16 %v34
  %v299 = vunpack.c.l.b16 %v35
  %v300 = vunpack.c.l.b16 %v36
  %v301 = vunpack.c.l.b16 %v37
  %v302 = vunpack.c.l.b16 %v38
  %v303 = vunpack.c.l.b16 %v39
  %v304 = vunpack.c.l.b16 %v40
  %v305 = vpack.c.b16 %v290, %v289
  %v306 = vpack.c.b16 %v292, %v291
  %v307 = vpack.c.b16 %v294, %v293
  %v308 = vpack.c.b16 %v296, %v295
  %v309 = vpack.c.b16 %v298, %v297
  %v310 = vpack.c.b16 %v300, %v299
  %v311 = vpack.c.b16 %v302, %v301
  %v312 = vpack.c.b16 %v304, %v303
  %321 = vmatprep.subr.bf16.mxu0 0
  %322 = vmatpush1.bf16.msra.mxu0 %v305
  %323 = vmatprep.subr.bf16.mxu0 0
  %324 = vmatpush1.bf16.msra.mxu0 %v306
  %325 = vmatprep.subr.bf16.mxu0 0
  %326 = vmatpush1.bf16.msra.mxu0 %v307
  %327 = vmatprep.subr.bf16.mxu0 0
  %328 = vmatpush1.bf16.msra.mxu0 %v308
  %329 = vmatprep.subr.bf16.mxu0 0
  %330 = vmatpush1.bf16.msra.mxu0 %v309
  %331 = vmatprep.subr.bf16.mxu0 0
  %332 = vmatpush1.bf16.msra.mxu0 %v310
  %333 = vmatprep.subr.bf16.mxu0 0
  %334 = vmatpush1.bf16.msra.mxu0 %v311
  %335 = vmatprep.subr.bf16.mxu0 0
  %336 = vmatpush1.bf16.msra.mxu0 %v312
  %337 = vmatprep.subr.bf16.mxu0 0
  %338 = vmatpush1.bf16.msra.mxu0 0
  %339 = vmatprep.subr.bf16.mxu0 0
  %340 = vmatpush1.bf16.msra.mxu0 0
  %341 = vmatprep.subr.bf16.mxu0 0
  %342 = vmatpush1.bf16.msra.mxu0 0
  %343 = vmatprep.subr.bf16.mxu0 0
  %344 = vmatpush1.bf16.msra.mxu0 0
  %345 = vmatprep.subr.bf16.mxu0 0
  %346 = vmatpush1.bf16.msra.mxu0 0
  %347 = vmatprep.subr.bf16.mxu0 0
  %348 = vmatpush1.bf16.msra.mxu0 0
  %349 = vmatprep.subr.bf16.mxu0 0
  %350 = vmatpush1.bf16.msra.mxu0 0
  %351 = vmatprep.subr.bf16.mxu0 0
  %352 = vmatpush1.bf16.msra.mxu0 0
  %353 = vmatprep.mubr.bf16.mxu0 0
  %354 = vmatmul.mubr.bf16.gmra.mrb[0].mxu0 %v272
  %v355 = vpop.f32.mrb[0].mxu0
  %v356 = vadd.f32 0.0, %v355
  %v357 = vpop.f32.mrb[0].mxu0
  %v358 = vpop.f32.mrb[0].mxu0
  %v359 = vadd.f32 0.0, %v358
  %v360 = vpop.f32.mrb[0].mxu0
  %361 = vdwg.mxu0
  %v362 = vpack.c.bf16 %v359, %v356
  %v364 = vunpack.c.l.b16 %v362
  %v365 = vunpack.c.h.b16 %v362
  %v366 = vpack.c.b16 %v364, %v364
  %v367 = vpack.c.b16 %v365, %v365
  %370 = vst [vmem:[%s5] sm:$0xf] %v366
  %371 = vst [vmem:[%s5 + $0x4] sm:$0xf] %v367
  %v372 = vadd.f32 %v356, %v359
  %v373 = vrot.slane %v372, 4
  %v374 = vadd.f32 %v372, %v373
  %v375 = vrot.slane %v374, 2
  %v376 = vadd.f32 %v374, %v375
  %v377 = vrot.slane %v376, 1
  %v378 = vadd.f32 %v376, %v377
  %v379 = vadd.f32 %v378, 0.0
  %v380 = vmul.f32 %v356, %v356
  %v381 = vmul.f32 %v359, %v359
  %v382 = vadd.f32 %v380, %v381
  %v383 = vrot.slane %v382, 4
  %v384 = vadd.f32 %v382, %v383
  %v385 = vrot.slane %v384, 2
  %v386 = vadd.f32 %v384, %v385
  %v387 = vrot.slane %v386, 1
  %v388 = vadd.f32 %v386, %v387
  %v389 = vadd.f32 %v388, 0.0
  %v390 = vadd.f32 %v270, %v204
  %v391 = vadd.f32 %v271, %v247
  %vm392 = vcmp.ge.f32.partialorder %v390, 1.0
  %vm393 = vcmp.ge.f32.partialorder %v391, 1.0
  %vm394 = vcmp.le.f32.partialorder %v390, -1.0
  %vm395 = vcmp.le.f32.partialorder %v391, -1.0
  %v396 = vsel %vm392, 1, 0
  %v397 = vsel %vm393, 1, 0
  %v398 = vcvt.s32.f32 %v396
  %v399 = vcvt.s32.f32 %v397
  %v400 = vsel %vm394, 1, 0
  %v401 = vsel %vm395, 1, 0
  %v402 = vcvt.s32.f32 %v400
  %v403 = vcvt.s32.f32 %v401
  %v404 = vsub.f32 %v398, %v402
  %v405 = vsub.f32 %v399, %v403
  %v406 = vpack.c.bf16 %v405, %v404
  %407 = vmatprep.subr.bf16.mxu0 0
  %408 = vmatpush1.bf16.msra.mxu0 %v305
  %409 = vmatprep.subr.bf16.mxu0 0
  %410 = vmatpush1.bf16.msra.mxu0 %v306
  %411 = vmatprep.subr.bf16.mxu0 0
  %412 = vmatpush1.bf16.msra.mxu0 %v307
  %413 = vmatprep.subr.bf16.mxu0 0
  %414 = vmatpush1.bf16.msra.mxu0 %v308
  %415 = vmatprep.subr.bf16.mxu0 0
  %416 = vmatpush1.bf16.msra.mxu0 %v309
  %417 = vmatprep.subr.bf16.mxu0 0
  %418 = vmatpush1.bf16.msra.mxu0 %v310
  %419 = vmatprep.subr.bf16.mxu0 0
  %420 = vmatpush1.bf16.msra.mxu0 %v311
  %421 = vmatprep.subr.bf16.mxu0 0
  %422 = vmatpush1.bf16.msra.mxu0 %v312
  %423 = vmatprep.subr.bf16.mxu0 0
  %424 = vmatpush1.bf16.msra.mxu0 0
  %425 = vmatprep.subr.bf16.mxu0 0
  %426 = vmatpush1.bf16.msra.mxu0 0
  %427 = vmatprep.subr.bf16.mxu0 0
  %428 = vmatpush1.bf16.msra.mxu0 0
  %429 = vmatprep.subr.bf16.mxu0 0
  %430 = vmatpush1.bf16.msra.mxu0 0
  %431 = vmatprep.subr.bf16.mxu0 0
  %432 = vmatpush1.bf16.msra.mxu0 0
  %433 = vmatprep.subr.bf16.mxu0 0
  %434 = vmatpush1.bf16.msra.mxu0 0
  %435 = vmatprep.subr.bf16.mxu0 0
  %436 = vmatpush1.bf16.msra.mxu0 0
  %437 = vmatprep.subr.bf16.mxu0 0
  %438 = vmatpush1.bf16.msra.mxu0 0
  %439 = vmatprep.mubr.bf16.mxu0 0
  %440 = vmatmul.mubr.bf16.gmra.mrb[0].mxu0 %v406
  %v441 = vpop.f32.mrb[0].mxu0
  %v442 = vadd.f32 0.0, %v441
  %v443 = vpop.f32.mrb[0].mxu0
  %v444 = vpop.f32.mrb[0].mxu0
  %v445 = vadd.f32 0.0, %v444
  %v446 = vpop.f32.mrb[0].mxu0
  %447 = vdwg.mxu0
  %v448 = vpack.c.bf16 %v445, %v442
  %v450 = vunpack.c.l.b16 %v448
  %v451 = vunpack.c.h.b16 %v448
  %v452 = vpack.c.b16 %v450, %v450
  %v453 = vpack.c.b16 %v451, %v451
  %s456 = scalar_lea.vmem %s5, 8
  %457 = vst [vmem:[%s456] sm:$0xf] %v452
  %458 = vst [vmem:[%s456 + $0x4] sm:$0xf] %v453
  %v459 = vadd.f32 %v442, %v445
  %v460 = vrot.slane %v459, 4
  %v461 = vadd.f32 %v459, %v460
  %v462 = vrot.slane %v461, 2
  %v463 = vadd.f32 %v461, %v462
  %v464 = vrot.slane %v463, 1
  %v465 = vadd.f32 %v463, %v464
  %v466 = vadd.f32 %v379, %v465
  %v467 = vmul.f32 %v442, %v442
  %v468 = vmul.f32 %v445, %v445
  %v469 = vadd.f32 %v467, %v468
  %v470 = vrot.slane %v469, 4
  %v471 = vadd.f32 %v469, %v470
  %v472 = vrot.slane %v471, 2
  %v473 = vadd.f32 %v471, %v472
  %v474 = vrot.slane %v473, 1
  %v475 = vadd.f32 %v473, %v474
  %v476 = vadd.f32 %v389, %v475
  %vm477 = vcmask 1040384
  %v478 = vsel %vm477, %v466, %v476
  %479 = vst [vmem:[%s6] sm:$0x3] %v478
  // Predicated region
  $region22: #{_lambda_.12} parent=0 // pred_check
    _
  $region23: #{_lambda_.12} parent=0 // pred_check_branch
    %481 = sbr.rel (0) target = $region25
  $region24: #{_lambda_.12} parent=0 // pred_region
    _
  $region25: #{_lambda_.12} parent=0 // pred_fallthru
    _
  // Predicated region
  $region26: #{_lambda_.12} parent=0 // pred_check
    _
  $region27: #{_lambda_.12} parent=0 // pred_check_branch
    %483 = sbr.rel (0) target = $region29
  $region28: #{_lambda_.12} parent=0 // pred_region
    _
  $region29: #{_lambda_.12} parent=0 // pred_fallthru
    _
  // Predicated region
  $region30: #{_lambda_.12} parent=0 // pred_check
    _
  $region31: #{_lambda_.12} parent=0 // pred_check_branch
    %485 = sbr.rel (0) target = $region33
  $region32: #{_lambda_.12} parent=0 // pred_region
    _
  $region33: #{_lambda_.12} parent=0 // pred_fallthru
    _
  // Predicated region
  $region34: #{_lambda_.12} parent=0 // pred_check
    _
  $region35: #{_lambda_.12} parent=0 // pred_check_branch
    %487 = sbr.rel (0) target = $region37
  $region36: #{_lambda_.12} parent=0 // pred_region
    _
  $region37: #{_lambda_.12} parent=0 // pred_fallthru
    _

// kernel: _lambda_.16
$region0: #{_lambda_.16}
  #allocation0 [shape = 'u32[]', space=smem, size = 0x4, offset = 0x4, fixed_abs, tag = 'smem constant byte address 0x4 - core index']
  #allocation1 [shape = 'u32[144,128]{1,0:T(1,128)}', space=vmem, size = 0x12000, scoped, tag = 'internal scratch']
  %s0 = inlined_call_operand.vmem [shape: bf16[3,128,128], index: 0, kind: input, shape index: {}]
  %s1 = inlined_call_operand.vmem [shape: bf16[128,128], index: 1, kind: input, shape index: {}]
  %s2 = inlined_call_operand.vmem [shape: bf16[4,8,128], index: 2, kind: input, shape index: {}]
  %s3 = inlined_call_operand.vmem [shape: bf16[4,8,128], index: 3, kind: output, shape index: {0}]
  %s4 = inlined_call_operand.vmem [shape: bf16[4,8,128], index: 4, kind: output, shape index: {1}]
  %s5 = inlined_call_operand.vmem [shape: f32[1,4,128], index: 5, kind: output, shape index: {2}]
  %6 = xla_tuple %s3, %s4, %s5
  %s7 = sld [smem:[#allocation0]]
  $region38: #{_lambda_.16} parent=0
    _
  %s9 = ssub.s32 1, %s7
  %s10 = scalar_select 0, %s9, %s7
  // Predicated region
  $region2: #{_lambda_.16} parent=0 // pred_check
    _
  $region3: #{_lambda_.16} parent=0 // pred_check_branch
    %12 = sbr.rel (0) target = $region5
  $region4: #{_lambda_.16} parent=0 // pred_region
    _
  $region5: #{_lambda_.16} parent=0 // pred_fallthru
    _
  // Predicated region
  $region6: #{_lambda_.16} parent=0 // pred_check
    _
  $region7: #{_lambda_.16} parent=0 // pred_check_branch
    %14 = sbr.rel (0) target = $region9
  $region8: #{_lambda_.16} parent=0 // pred_region
    _
  $region9: #{_lambda_.16} parent=0 // pred_fallthru
    _
  // Predicated region
  $region10: #{_lambda_.16} parent=0 // pred_check
    _
  $region11: #{_lambda_.16} parent=0 // pred_check_branch
    %16 = sbr.rel (0) target = $region13
  $region12: #{_lambda_.16} parent=0 // pred_region
    _
  $region13: #{_lambda_.16} parent=0 // pred_fallthru
    _
  %v18 = vld [vmem:[%s2] sm:$0xf]
  %v19 = vld [vmem:[%s2 + $0x4] sm:$0xf]
  %v20 = vld [vmem:[%s2 + $0x8] sm:$0xf]
  %v21 = vld [vmem:[%s2 + $0xc] sm:$0xf]
  %v22 = vld [vmem:[%s0] sm:$0xf]
  %v23 = vld [vmem:[%s0 + $0x4] sm:$0xf]
  %v24 = vld [vmem:[%s0 + $0x8] sm:$0xf]
  %v25 = vld [vmem:[%s0 + $0xc] sm:$0xf]
  %v26 = vld [vmem:[%s0 + $0x10] sm:$0xf]
  %v27 = vld [vmem:[%s0 + $0x14] sm:$0xf]
  %v28 = vld [vmem:[%s0 + $0x18] sm:$0xf]
  %v29 = vld [vmem:[%s0 + $0x1c] sm:$0xf]
  %v30 = vld [vmem:[%s0 + $0x20] sm:$0xf]
  %v31 = vld [vmem:[%s0 + $0x24] sm:$0xf]
  %v32 = vld [vmem:[%s0 + $0x28] sm:$0xf]
  %v33 = vld [vmem:[%s0 + $0x2c] sm:$0xf]
  %v34 = vld [vmem:[%s0 + $0x30] sm:$0xf]
  %v35 = vld [vmem:[%s0 + $0x34] sm:$0xf]
  %v36 = vld [vmem:[%s0 + $0x38] sm:$0xf]
  %v37 = vld [vmem:[%s0 + $0x3c] sm:$0xf]
  %v42 = vunpack.c.l.b16 %v18
  %v43 = vunpack.c.l.b16 %v19
  %v44 = vunpack.c.l.b16 %v20
  %v45 = vunpack.c.l.b16 %v21
  %v46 = vpack.c.b16 %v43, %v42
  %v47 = vpack.c.b16 %v45, %v44
  %v66 = vunpack.c.l.b16 %v22
  %v67 = vunpack.c.l.b16 %v23
  %v68 = vunpack.c.l.b16 %v24
  %v69 = vunpack.c.l.b16 %v25
  %v70 = vunpack.c.l.b16 %v26
  %v71 = vunpack.c.l.b16 %v27
  %v72 = vunpack.c.l.b16 %v28
  %v73 = vunpack.c.l.b16 %v29
  %v74 = vunpack.c.l.b16 %v30
  %v75 = vunpack.c.l.b16 %v31
  %v76 = vunpack.c.l.b16 %v32
  %v77 = vunpack.c.l.b16 %v33
  %v78 = vunpack.c.l.b16 %v34
  %v79 = vunpack.c.l.b16 %v35
  %v80 = vunpack.c.l.b16 %v36
  %v81 = vunpack.c.l.b16 %v37
  %v82 = vpack.c.b16 %v67, %v66
  %v83 = vpack.c.b16 %v69, %v68
  %v84 = vpack.c.b16 %v71, %v70
  %v85 = vpack.c.b16 %v73, %v72
  %v86 = vpack.c.b16 %v75, %v74
  %v87 = vpack.c.b16 %v77, %v76
  %v88 = vpack.c.b16 %v79, %v78
  %v89 = vpack.c.b16 %v81, %v80
  %98 = vmatprep.subr.bf16.mxu0 0
  %99 = vmatpush1.bf16.msra.mxu0 %v82
  %100 = vmatprep.subr.bf16.mxu0 0
  %101 = vmatpush1.bf16.msra.mxu0 %v83
  %102 = vmatprep.subr.bf16.mxu0 0
  %103 = vmatpush1.bf16.msra.mxu0 %v84
  %104 = vmatprep.subr.bf16.mxu0 0
  %105 = vmatpush1.bf16.msra.mxu0 %v85
  %106 = vmatprep.subr.bf16.mxu0 0
  %107 = vmatpush1.bf16.msra.mxu0 %v86
  %108 = vmatprep.subr.bf16.mxu0 0
  %109 = vmatpush1.bf16.msra.mxu0 %v87
  %110 = vmatprep.subr.bf16.mxu0 0
  %111 = vmatpush1.bf16.msra.mxu0 %v88
  %112 = vmatprep.subr.bf16.mxu0 0
  %113 = vmatpush1.bf16.msra.mxu0 %v89
  %114 = vmatprep.subr.bf16.mxu0 0
  %115 = vmatpush1.bf16.msra.mxu0 0
  %116 = vmatprep.subr.bf16.mxu0 0
  %117 = vmatpush1.bf16.msra.mxu0 0
  %118 = vmatprep.subr.bf16.mxu0 0
  %119 = vmatpush1.bf16.msra.mxu0 0
  %120 = vmatprep.subr.bf16.mxu0 0
  %121 = vmatpush1.bf16.msra.mxu0 0
  %122 = vmatprep.subr.bf16.mxu0 0
  %123 = vmatpush1.bf16.msra.mxu0 0
  %124 = vmatprep.subr.bf16.mxu0 0
  %125 = vmatpush1.bf16.msra.mxu0 0
  %126 = vmatprep.subr.bf16.mxu0 0
  %127 = vmatpush1.bf16.msra.mxu0 0
  %128 = vmatprep.subr.bf16.mxu0 0
  %129 = vmatpush1.bf16.msra.mxu0 0
  %130 = vmatprep.mubr.bf16.mxu0 0
  %131 = vmatmul.mubr.bf16.gmra.mrb[0].mxu0 %v46
  %v132 = vpop.f32.mrb[0].mxu0
  %v133 = vadd.f32 0.0, %v132
  %v134 = vpop.f32.mrb[0].mxu0
  %v135 = vpop.f32.mrb[0].mxu0
  %v136 = vadd.f32 0.0, %v135
  %v137 = vpop.f32.mrb[0].mxu0
  %138 = vmatprep.mubr.bf16.mxu0 0
  %139 = vmatmul.mubr.bf16.gmra.mrb[0].mxu0 %v47
  %v140 = vpop.f32.mrb[0].mxu0
  %v141 = vadd.f32 0.0, %v140
  %v142 = vpop.f32.mrb[0].mxu0
  %v143 = vpop.f32.mrb[0].mxu0
  %v144 = vadd.f32 0.0, %v143
  %v145 = vpop.f32.mrb[0].mxu0
  %146 = vdwg.mxu0
  %s147 = scalar_lea.vmem %s0, 64
  %v148 = vld [vmem:[%s147] sm:$0xf]
  %v149 = vld [vmem:[%s147 + $0x4] sm:$0xf]
  %v150 = vld [vmem:[%s147 + $0x8] sm:$0xf]
  %v151 = vld [vmem:[%s147 + $0xc] sm:$0xf]
  %v152 = vld [vmem:[%s147 + $0x10] sm:$0xf]
  %v153 = vld [vmem:[%s147 + $0x14] sm:$0xf]
  %v154 = vld [vmem:[%s147 + $0x18] sm:$0xf]
  %v155 = vld [vmem:[%s147 + $0x1c] sm:$0xf]
  %v156 = vld [vmem:[%s147 + $0x20] sm:$0xf]
  %v157 = vld [vmem:[%s147 + $0x24] sm:$0xf]
  %v158 = vld [vmem:[%s147 + $0x28] sm:$0xf]
  %v159 = vld [vmem:[%s147 + $0x2c] sm:$0xf]
  %v160 = vld [vmem:[%s147 + $0x30] sm:$0xf]
  %v161 = vld [vmem:[%s147 + $0x34] sm:$0xf]
  %v162 = vld [vmem:[%s147 + $0x38] sm:$0xf]
  %v163 = vld [vmem:[%s147 + $0x3c] sm:$0xf]
  %v180 = vunpack.c.l.b16 %v148
  %v181 = vunpack.c.l.b16 %v149
  %v182 = vunpack.c.l.b16 %v150
  %v183 = vunpack.c.l.b16 %v151
  %v184 = vunpack.c.l.b16 %v152
  %v185 = vunpack.c.l.b16 %v153
  %v186 = vunpack.c.l.b16 %v154
  %v187 = vunpack.c.l.b16 %v155
  %v188 = vunpack.c.l.b16 %v156
  %v189 = vunpack.c.l.b16 %v157
  %v190 = vunpack.c.l.b16 %v158
  %v191 = vunpack.c.l.b16 %v159
  %v192 = vunpack.c.l.b16 %v160
  %v193 = vunpack.c.l.b16 %v161
  %v194 = vunpack.c.l.b16 %v162
  %v195 = vunpack.c.l.b16 %v163
  %v196 = vpack.c.b16 %v181, %v180
  %v197 = vpack.c.b16 %v183, %v182
  %v198 = vpack.c.b16 %v185, %v184
  %v199 = vpack.c.b16 %v187, %v186
  %v200 = vpack.c.b16 %v189, %v188
  %v201 = vpack.c.b16 %v191, %v190
  %v202 = vpack.c.b16 %v193, %v192
  %v203 = vpack.c.b16 %v195, %v194
  %212 = vmatprep.subr.bf16.mxu0 0
  %213 = vmatpush1.bf16.msra.mxu0 %v196
  %214 = vmatprep.subr.bf16.mxu0 0
  %215 = vmatpush1.bf16.msra.mxu0 %v197
  %216 = vmatprep.subr.bf16.mxu0 0
  %217 = vmatpush1.bf16.msra.mxu0 %v198
  %218 = vmatprep.subr.bf16.mxu0 0
  %219 = vmatpush1.bf16.msra.mxu0 %v199
  %220 = vmatprep.subr.bf16.mxu0 0
  %221 = vmatpush1.bf16.msra.mxu0 %v200
  %222 = vmatprep.subr.bf16.mxu0 0
  %223 = vmatpush1.bf16.msra.mxu0 %v201
  %224 = vmatprep.subr.bf16.mxu0 0
  %225 = vmatpush1.bf16.msra.mxu0 %v202
  %226 = vmatprep.subr.bf16.mxu0 0
  %227 = vmatpush1.bf16.msra.mxu0 %v203
  %228 = vmatprep.subr.bf16.mxu0 0
  %229 = vmatpush1.bf16.msra.mxu0 0
  %230 = vmatprep.subr.bf16.mxu0 0
  %231 = vmatpush1.bf16.msra.mxu0 0
  %232 = vmatprep.subr.bf16.mxu0 0
  %233 = vmatpush1.bf16.msra.mxu0 0
  %234 = vmatprep.subr.bf16.mxu0 0
  %235 = vmatpush1.bf16.msra.mxu0 0
  %236 = vmatprep.subr.bf16.mxu0 0
  %237 = vmatpush1.bf16.msra.mxu0 0
  %238 = vmatprep.subr.bf16.mxu0 0
  %239 = vmatpush1.bf16.msra.mxu0 0
  %240 = vmatprep.subr.bf16.mxu0 0
  %241 = vmatpush1.bf16.msra.mxu0 0
  %242 = vmatprep.subr.bf16.mxu0 0
  %243 = vmatpush1.bf16.msra.mxu0 0
  %244 = vmatprep.mubr.bf16.mxu0 0
  %245 = vmatmul.mubr.bf16.gmra.mrb[0].mxu0 %v46
  %v246 = vpop.f32.mrb[0].mxu0
  %v247 = vadd.f32 0.0, %v246
  %v248 = vpop.f32.mrb[0].mxu0
  %v249 = vpop.f32.mrb[0].mxu0
  %v250 = vadd.f32 0.0, %v249
  %v251 = vpop.f32.mrb[0].mxu0
  %252 = vmatprep.mubr.bf16.mxu0 0
  %253 = vmatmul.mubr.bf16.gmra.mrb[0].mxu0 %v47
  %v254 = vpop.f32.mrb[0].mxu0
  %v255 = vadd.f32 0.0, %v254
  %v256 = vpop.f32.mrb[0].mxu0
  %v257 = vpop.f32.mrb[0].mxu0
  %v258 = vadd.f32 0.0, %v257
  %v259 = vpop.f32.mrb[0].mxu0
  %260 = vdwg.mxu0
  %s261 = scalar_lea.vmem %s0, 128
  %v262 = vld [vmem:[%s261] sm:$0xf]
  %v263 = vld [vmem:[%s261 + $0x4] sm:$0xf]
  %v264 = vld [vmem:[%s261 + $0x8] sm:$0xf]
  %v265 = vld [vmem:[%s261 + $0xc] sm:$0xf]
  %v266 = vld [vmem:[%s261 + $0x10] sm:$0xf]
  %v267 = vld [vmem:[%s261 + $0x14] sm:$0xf]
  %v268 = vld [vmem:[%s261 + $0x18] sm:$0xf]
  %v269 = vld [vmem:[%s261 + $0x1c] sm:$0xf]
  %v270 = vld [vmem:[%s261 + $0x20] sm:$0xf]
  %v271 = vld [vmem:[%s261 + $0x24] sm:$0xf]
  %v272 = vld [vmem:[%s261 + $0x28] sm:$0xf]
  %v273 = vld [vmem:[%s261 + $0x2c] sm:$0xf]
  %v274 = vld [vmem:[%s261 + $0x30] sm:$0xf]
  %v275 = vld [vmem:[%s261 + $0x34] sm:$0xf]
  %v276 = vld [vmem:[%s261 + $0x38] sm:$0xf]
  %v277 = vld [vmem:[%s261 + $0x3c] sm:$0xf]
  %v294 = vunpack.c.l.b16 %v262
  %v295 = vunpack.c.l.b16 %v263
  %v296 = vunpack.c.l.b16 %v264
  %v297 = vunpack.c.l.b16 %v265
  %v298 = vunpack.c.l.b16 %v266
  %v299 = vunpack.c.l.b16 %v267
  %v300 = vunpack.c.l.b16 %v268
  %v301 = vunpack.c.l.b16 %v269
  %v302 = vunpack.c.l.b16 %v270
  %v303 = vunpack.c.l.b16 %v271
  %v304 = vunpack.c.l.b16 %v272
  %v305 = vunpack.c.l.b16 %v273
  %v306 = vunpack.c.l.b16 %v274
  %v307 = vunpack.c.l.b16 %v275
  %v308 = vunpack.c.l.b16 %v276
  %v309 = vunpack.c.l.b16 %v277
  %v310 = vpack.c.b16 %v295, %v294
  %v311 = vpack.c.b16 %v297, %v296
  %v312 = vpack.c.b16 %v299, %v298
  %v313 = vpack.c.b16 %v301, %v300
  %v314 = vpack.c.b16 %v303, %v302
  %v315 = vpack.c.b16 %v305, %v304
  %v316 = vpack.c.b16 %v307, %v306
  %v317 = vpack.c.b16 %v309, %v308
  %326 = vmatprep.subr.bf16.mxu0 0
  %327 = vmatpush1.bf16.msra.mxu0 %v310
  %328 = vmatprep.subr.bf16.mxu0 0
  %329 = vmatpush1.bf16.msra.mxu0 %v311
  %330 = vmatprep.subr.bf16.mxu0 0
  %331 = vmatpush1.bf16.msra.mxu0 %v312
  %332 = vmatprep.subr.bf16.mxu0 0
  %333 = vmatpush1.bf16.msra.mxu0 %v313
  %334 = vmatprep.subr.bf16.mxu0 0
  %335 = vmatpush1.bf16.msra.mxu0 %v314
  %336 = vmatprep.subr.bf16.mxu0 0
  %337 = vmatpush1.bf16.msra.mxu0 %v315
  %338 = vmatprep.subr.bf16.mxu0 0
  %339 = vmatpush1.bf16.msra.mxu0 %v316
  %340 = vmatprep.subr.bf16.mxu0 0
  %341 = vmatpush1.bf16.msra.mxu0 %v317
  %342 = vmatprep.subr.bf16.mxu0 0
  %343 = vmatpush1.bf16.msra.mxu0 0
  %344 = vmatprep.subr.bf16.mxu0 0
  %345 = vmatpush1.bf16.msra.mxu0 0
  %346 = vmatprep.subr.bf16.mxu0 0
  %347 = vmatpush1.bf16.msra.mxu0 0
  %348 = vmatprep.subr.bf16.mxu0 0
  %349 = vmatpush1.bf16.msra.mxu0 0
  %350 = vmatprep.subr.bf16.mxu0 0
  %351 = vmatpush1.bf16.msra.mxu0 0
  %352 = vmatprep.subr.bf16.mxu0 0
  %353 = vmatpush1.bf16.msra.mxu0 0
  %354 = vmatprep.subr.bf16.mxu0 0
  %355 = vmatpush1.bf16.msra.mxu0 0
  %356 = vmatprep.subr.bf16.mxu0 0
  %357 = vmatpush1.bf16.msra.mxu0 0
  %358 = vmatprep.mubr.bf16.mxu0 0
  %359 = vmatmul.mubr.bf16.gmra.mrb[0].mxu0 %v46
  %v360 = vpop.f32.mrb[0].mxu0
  %v361 = vadd.f32 0.0, %v360
  %v362 = vpop.f32.mrb[0].mxu0
  %v363 = vpop.f32.mrb[0].mxu0
  %v364 = vadd.f32 0.0, %v363
  %v365 = vpop.f32.mrb[0].mxu0
  %366 = vmatprep.mubr.bf16.mxu0 0
  %367 = vmatmul.mubr.bf16.gmra.mrb[0].mxu0 %v47
  %v368 = vpop.f32.mrb[0].mxu0
  %v369 = vadd.f32 0.0, %v368
  %v370 = vpop.f32.mrb[0].mxu0
  %v371 = vpop.f32.mrb[0].mxu0
  %v372 = vadd.f32 0.0, %v371
  %v373 = vpop.f32.mrb[0].mxu0
  %374 = vdwg.mxu0
  %v375 = vld [vmem:[%s1] sm:$0xf]
  %v376 = vld [vmem:[%s1 + $0x4] sm:$0xf]
  %v377 = vld [vmem:[%s1 + $0x8] sm:$0xf]
  %v378 = vld [vmem:[%s1 + $0xc] sm:$0xf]
  %v379 = vld [vmem:[%s1 + $0x10] sm:$0xf]
  %v380 = vld [vmem:[%s1 + $0x14] sm:$0xf]
  %v381 = vld [vmem:[%s1 + $0x18] sm:$0xf]
  %v382 = vld [vmem:[%s1 + $0x1c] sm:$0xf]
  %v383 = vld [vmem:[%s1 + $0x20] sm:$0xf]
  %v384 = vld [vmem:[%s1 + $0x24] sm:$0xf]
  %v385 = vld [vmem:[%s1 + $0x28] sm:$0xf]
  %v386 = vld [vmem:[%s1 + $0x2c] sm:$0xf]
  %v387 = vld [vmem:[%s1 + $0x30] sm:$0xf]
  %v388 = vld [vmem:[%s1 + $0x34] sm:$0xf]
  %v389 = vld [vmem:[%s1 + $0x38] sm:$0xf]
  %v390 = vld [vmem:[%s1 + $0x3c] sm:$0xf]
  %v407 = vunpack.c.l.b16 %v375
  %v408 = vunpack.c.l.b16 %v376
  %v409 = vunpack.c.l.b16 %v377
  %v410 = vunpack.c.l.b16 %v378
  %v411 = vunpack.c.l.b16 %v379
  %v412 = vunpack.c.l.b16 %v380
  %v413 = vunpack.c.l.b16 %v381
  %v414 = vunpack.c.l.b16 %v382
  %v415 = vunpack.c.l.b16 %v383
  %v416 = vunpack.c.l.b16 %v384
  %v417 = vunpack.c.l.b16 %v385
  %v418 = vunpack.c.l.b16 %v386
  %v419 = vunpack.c.l.b16 %v387
  %v420 = vunpack.c.l.b16 %v388
  %v421 = vunpack.c.l.b16 %v389
  %v422 = vunpack.c.l.b16 %v390
  %v423 = vpack.c.b16 %v408, %v407
  %v424 = vpack.c.b16 %v410, %v409
  %v425 = vpack.c.b16 %v412, %v411
  %v426 = vpack.c.b16 %v414, %v413
  %v427 = vpack.c.b16 %v416, %v415
  %v428 = vpack.c.b16 %v418, %v417
  %v429 = vpack.c.b16 %v420, %v419
  %v430 = vpack.c.b16 %v422, %v421
  %439 = vmatprep.subr.bf16.mxu0 0
  %440 = vmatpush1.bf16.msra.mxu0 %v423
  %441 = vmatprep.subr.bf16.mxu0 0
  %442 = vmatpush1.bf16.msra.mxu0 %v424
  %443 = vmatprep.subr.bf16.mxu0 0
  %444 = vmatpush1.bf16.msra.mxu0 %v425
  %445 = vmatprep.subr.bf16.mxu0 0
  %446 = vmatpush1.bf16.msra.mxu0 %v426
  %447 = vmatprep.subr.bf16.mxu0 0
  %448 = vmatpush1.bf16.msra.mxu0 %v427
  %449 = vmatprep.subr.bf16.mxu0 0
  %450 = vmatpush1.bf16.msra.mxu0 %v428
  %451 = vmatprep.subr.bf16.mxu0 0
  %452 = vmatpush1.bf16.msra.mxu0 %v429
  %453 = vmatprep.subr.bf16.mxu0 0
  %454 = vmatpush1.bf16.msra.mxu0 %v430
  %455 = vmatprep.subr.bf16.mxu0 0
  %456 = vmatpush1.bf16.msra.mxu0 0
  %457 = vmatprep.subr.bf16.mxu0 0
  %458 = vmatpush1.bf16.msra.mxu0 0
  %459 = vmatprep.subr.bf16.mxu0 0
  %460 = vmatpush1.bf16.msra.mxu0 0
  %461 = vmatprep.subr.bf16.mxu0 0
  %462 = vmatpush1.bf16.msra.mxu0 0
  %463 = vmatprep.subr.bf16.mxu0 0
  %464 = vmatpush1.bf16.msra.mxu0 0
  %465 = vmatprep.subr.bf16.mxu0 0
  %466 = vmatpush1.bf16.msra.mxu0 0
  %467 = vmatprep.subr.bf16.mxu0 0
  %468 = vmatpush1.bf16.msra.mxu0 0
  %469 = vmatprep.subr.bf16.mxu0 0
  %470 = vmatpush1.bf16.msra.mxu0 0
  %471 = vmatprep.mubr.bf16.mxu0 0
  %472 = vmatmul.mubr.bf16.gmra.mrb[0].mxu0 %v46
  %v473 = vpop.f32.mrb[0].mxu0
  %v474 = vadd.f32 0.0, %v473
  %v475 = vpop.f32.mrb[0].mxu0
  %v476 = vpop.f32.mrb[0].mxu0
  %v477 = vadd.f32 0.0, %v476
  %v478 = vpop.f32.mrb[0].mxu0
  %479 = vmatprep.mubr.bf16.mxu0 0
  %480 = vmatmul.mubr.bf16.gmra.mrb[0].mxu0 %v47
  %v481 = vpop.f32.mrb[0].mxu0
  %v482 = vadd.f32 0.0, %v481
  %v483 = vpop.f32.mrb[0].mxu0
  %v484 = vpop.f32.mrb[0].mxu0
  %v485 = vadd.f32 0.0, %v484
  %v486 = vpop.f32.mrb[0].mxu0
  %487 = vdwg.mxu0
  %v492 = vrot.slane %v133, 7
  %v493 = vrot.slane %v136, 7
  %v494 = vrot.slane %v141, 7
  %v495 = vrot.slane %v144, 7
  %vm500 = vcmask 1040384
  %v501 = vsel %vm500, 0.0, %v492
  %v502 = vsel %vm500, 0.0, %v493
  %v503 = vsel %vm500, 0.0, %v494
  %v504 = vsel %vm500, 0.0, %v495
  %v505 = vadd.f32 %v247, %v501
  %v506 = vadd.f32 %v250, %v502
  %v507 = vadd.f32 %v255, %v503
  %v508 = vadd.f32 %v258, %v504
  %v513 = vrot.slane %v361, 1
  %v514 = vrot.slane %v364, 1
  %v515 = vrot.slane %v369, 1
  %v516 = vrot.slane %v372, 1
  %vm521 = vcmask 1046528
  %v522 = vsel %vm521, %v513, 0.0
  %v523 = vsel %vm521, %v514, 0.0
  %v524 = vsel %vm521, %v515, 0.0
  %v525 = vsel %vm521, %v516, 0.0
  %v526 = vadd.f32 %v505, %v522
  %v527 = vadd.f32 %v506, %v523
  %v528 = vadd.f32 %v507, %v524
  %v529 = vadd.f32 %v508, %v525
  %v530 = vpack.c.bf16 %v526, %v526
  %v531 = vpack.c.bf16 %v527, %v527
  %v532 = vpack.c.bf16 %v528, %v528
  %v533 = vpack.c.bf16 %v529, %v529
  %534 = vst [vmem:[%s3] sm:$0xf] %v530
  %535 = vst [vmem:[%s3 + $0x4] sm:$0xf] %v531
  %536 = vst [vmem:[%s3 + $0x8] sm:$0xf] %v532
  %537 = vst [vmem:[%s3 + $0xc] sm:$0xf] %v533
  %v538 = vpack.c.bf16 %v474, %v474
  %v539 = vpack.c.bf16 %v477, %v477
  %v540 = vpack.c.bf16 %v482, %v482
  %v541 = vpack.c.bf16 %v485, %v485
  %542 = vst [vmem:[%s4] sm:$0xf] %v538
  %543 = vst [vmem:[%s4 + $0x4] sm:$0xf] %v539
  %544 = vst [vmem:[%s4 + $0x8] sm:$0xf] %v540
  %545 = vst [vmem:[%s4 + $0xc] sm:$0xf] %v541
  %v546 = vadd.f32 %v474, %v477
  %v547 = vadd.f32 %v546, %v482
  %v548 = vadd.f32 %v547, %v485
  %v549 = vrot.slane %v548, 4
  %v550 = vadd.f32 %v548, %v549
  %v551 = vrot.slane %v550, 2
  %v552 = vadd.f32 %v550, %v551
  %v553 = vrot.slane %v552, 1
  %v554 = vadd.f32 %v552, %v553
  %v555 = vmul.f32 %v474, %v474
  %v556 = vmul.f32 %v477, %v477
  %v557 = vmul.f32 %v482, %v482
  %v558 = vmul.f32 %v485, %v485
  %v559 = vadd.f32 %v555, %v556
  %v560 = vadd.f32 %v559, %v557
  %v561 = vadd.f32 %v560, %v558
  %v562 = vrot.slane %v561, 4
  %v563 = vadd.f32 %v561, %v562
  %v564 = vrot.slane %v563, 2
  %v565 = vadd.f32 %v563, %v564
  %v566 = vrot.slane %v565, 1
  %v567 = vadd.f32 %v565, %v566
  %v568 = vadd.f32 %v526, %v527
  %v569 = vadd.f32 %v568, %v528
  %v570 = vadd.f32 %v569, %v529
  %v571 = vrot.slane %v570, 4
  %v572 = vadd.f32 %v570, %v571
  %v573 = vrot.slane %v572, 2
  %v574 = vadd.f32 %v572, %v573
  %v575 = vrot.slane %v574, 1
  %v576 = vadd.f32 %v574, %v575
  %v577 = vmul.f32 %v526, %v526
  %v578 = vmul.f32 %v527, %v527
  %v579 = vmul.f32 %v528, %v528
  %v580 = vmul.f32 %v529, %v529
  %v581 = vadd.f32 %v577, %v578
  %v582 = vadd.f32 %v581, %v579
  %v583 = vadd.f32 %v582, %v580
  %v584 = vrot.slane %v583, 4
  %v585 = vadd.f32 %v583, %v584
  %v586 = vrot.slane %v585, 2
  %v587 = vadd.f32 %v585, %v586
  %v588 = vrot.slane %v587, 1
  %v589 = vadd.f32 %v587, %v588
  %v590 = vsel %vm500, %v554, %v567
  %vm591 = vcmask 1041408
  %v592 = vsel %vm591, %v590, %v576
  %vm593 = vcmask 1042432
  %v594 = vsel %vm593, %v592, %v589
  %595 = vst [vmem:[%s5] sm:$0xf] %v594
  // Predicated region
  $region14: #{_lambda_.16} parent=0 // pred_check
    _
  $region15: #{_lambda_.16} parent=0 // pred_check_branch
    %597 = sbr.rel (0) target = $region17
  $region16: #{_lambda_.16} parent=0 // pred_region
    _
  $region17: #{_lambda_.16} parent=0 // pred_fallthru
    _
  // Predicated region
  $region18: #{_lambda_.16} parent=0 // pred_check
    _
  $region19: #{_lambda_.16} parent=0 // pred_check_branch
    %599 = sbr.rel (0) target = $region21
  $region20: #{_lambda_.16} parent=0 // pred_region
    _
  $region21: #{_lambda_.16} parent=0 // pred_fallthru
    _
  // Predicated region
  $region22: #{_lambda_.16} parent=0 // pred_check
    _
  $region23: #{_lambda_.16} parent=0 // pred_check_branch
    %601 = sbr.rel (0) target = $region25
  $region24: #{_lambda_.16} parent=0 // pred_region
    _
  $region25: #{_lambda_.16} parent=0 // pred_fallthru
    _
  // Predicated region
  $region26: #{_lambda_.16} parent=0 // pred_check
    _
  $region27: #{_lambda_.16} parent=0 // pred_check_branch
    %603 = sbr.rel (0) target = $region29
  $region28: #{_lambda_.16} parent=0 // pred_region
    _
  $region29: #{_lambda_.16} parent=0 // pred_fallthru
    _
  // Predicated region
  $region30: #{_lambda_.16} parent=0 // pred_check
    _
  $region31: #{_lambda_.16} parent=0 // pred_check_branch
    %605 = sbr.rel (0) target = $region33
  $region32: #{_lambda_.16} parent=0 // pred_region
    _
  $region33: #{_lambda_.16} parent=0 // pred_fallthru
    _
  // Predicated region
  $region34: #{_lambda_.16} parent=0 // pred_check
    _
  $region35: #{_lambda_.16} parent=0 // pred_check_branch
    %607 = sbr.rel (0) target = $region37
  $region36: #{_lambda_.16} parent=0 // pred_region
    _
  $region37: #{_lambda_.16} parent=0 // pred_fallthru
    _

// kernel: tile.73
$region0: #{tile.73}
  #allocation0 [shape = 's32[1]{0}', space=sflag, size = 0x4, scoped, tag = 'scoped memory for tile.73']
  %s0 = inlined_call_operand.vmem [shape: f32[16], index: 0, kind: input, shape index: {}]
  %s1 = inlined_call_operand.vmem [shape: f32[8,16], index: 1, kind: output, shape index: {}]
  // Predicated region
  $region2: #{tile.73} parent=0 // pred_check
    _
  $region3: #{tile.73} parent=0 // pred_check_branch
    %3 = sbr.rel (0) target = $region5
  $region4: #{tile.73} parent=0 // pred_region
    _
  $region5: #{tile.73} parent=0 // pred_fallthru
    _
  %v4 = vld [vmem:[%s0] ss:$0 sm:$0xff]
  %5 = vst [vmem:[%s1] sm:$0xff] %v4

// kernel: tile.74
$region0: #{tile.74}
  %s0 = inlined_call_operand.vmem [shape: f32[8,16], index: 0, kind: input, shape index: {}]
  %s1 = inlined_call_operand.vmem [shape: f32[1,128], index: 1, kind: output, shape index: {}]
  $region1: #{tile.74} parent=0
    #allocation0 [shape = 'u8[4096]{0}', space=vmem, size = 0x1000, scoped, tag = 'scoped mem for output reshape']
    %v2 = vld [vmem:[%s0] sm:$0x1]
    %vm3 = vcmask 130048
    %4 = vst.msk [vmem:[#allocation0] sm:$0x1] %vm3, %v2
    %s5 = scalar_lea.vmem %s0, 7
    %v6 = vld [vmem:[%s5] sm:$0x1]
    %7 = vrot.lane.b32.xlu0 %v6, 112
    %v8 = vpop.permute.xlu0 %7
    %vm9 = vcmask 1048448
    %10 = vst.msk [vmem:[#allocation0] sm:$0x1] %vm9, %v8
    %s11 = scalar_lea.vmem %s0, 6
    %v12 = vld [vmem:[%s11] sm:$0x1]
    %13 = vrot.lane.b32.xlu0 %v12, 96
    %v14 = vpop.permute.xlu0 %13
    %vm15 = vcmask 917248
    %16 = vst.msk [vmem:[#allocation0] sm:$0x1] %vm15, %v14
    %s17 = scalar_lea.vmem %s0, 5
    %v18 = vld [vmem:[%s17] sm:$0x1]
    %19 = vrot.lane.b32.xlu0 %v18, 80
    %v20 = vpop.permute.xlu0 %19
    %vm21 = vcmask 786048
    %22 = vst.msk [vmem:[#allocation0] sm:$0x1] %vm21, %v20
    %s23 = scalar_lea.vmem %s0, 4
    %v24 = vld [vmem:[%s23] sm:$0x1]
    %25 = vrot.lane.b32.xlu0 %v24, 64
    %v26 = vpop.permute.xlu0 %25
    %vm27 = vcmask 654848
    %28 = vst.msk [vmem:[#allocation0] sm:$0x1] %vm27, %v26
    %s29 = scalar_lea.vmem %s0, 3
    %v30 = vld [vmem:[%s29] sm:$0x1]
    %31 = vrot.lane.b32.xlu0 %v30, 48
    %v32 = vpop.permute.xlu0 %31
    %vm33 = vcmask 523648
    %34 = vst.msk [vmem:[#allocation0] sm:$0x1] %vm33, %v32
    %s35 = scalar_lea.vmem %s0, 2
    %v36 = vld [vmem:[%s35] sm:$0x1]
    %37 = vrot.lane.b32.xlu0 %v36, 32
    %v38 = vpop.permute.xlu0 %37
    %vm39 = vcmask 392448
    %40 = vst.msk [vmem:[#allocation0] sm:$0x1] %vm39, %v38
    %s41 = scalar_lea.vmem %s0, 1
    %v42 = vld [vmem:[%s41] sm:$0x1]
    %43 = vrot.lane.b32.xlu0 %v42, 16
    %v44 = vpop.permute.xlu0 %43
    %vm45 = vcmask 261248
    %46 = vst.msk [vmem:[#allocation0] sm:$0x1] %vm45, %v44
    %s48 = sshllo.u32 0, 1
    %v50 = vld [vmem:[#allocation0] sm:%s48]
    %s51 = sshllo.u32 0, 1
    %52 = vst [vmem:[%s1] sm:%s51] %v50

// kernel: _lambda_.13
$region0: #{_lambda_.13}
  #allocation0 [shape = 'u32[]', space=smem, size = 0x4, offset = 0x4, fixed_abs, tag = 'smem constant byte address 0x4 - core index']
  #allocation1 [shape = 'u32[144,128]{1,0:T(1,128)}', space=vmem, size = 0x12000, scoped, tag = 'internal scratch']
  %s0 = inlined_call_operand.vmem [shape: bf16[2,2,1024], index: 0, kind: input, shape index: {}]
  %s1 = inlined_call_operand.vmem [shape: f32[1,1024], index: 1, kind: input, shape index: {}]
  %s2 = inlined_call_operand.vmem [shape: f32[1,1024], index: 2, kind: input, shape index: {}]
  %s3 = inlined_call_operand.vmem [shape: bf16[2,2,1024], index: 3, kind: output, shape index: {}]
  %s4 = sld [smem:[#allocation0]]
  $region22: #{_lambda_.13} parent=0
    _
  %s6 = ssub.s32 1, %s4
  %s7 = scalar_select 0, %s6, %s4
  // Predicated region
  $region2: #{_lambda_.13} parent=0 // pred_check
    _
  $region3: #{_lambda_.13} parent=0 // pred_check_branch
    %9 = sbr.rel (0) target = $region5
  $region4: #{_lambda_.13} parent=0 // pred_region
    _
  $region5: #{_lambda_.13} parent=0 // pred_fallthru
    _
  // Predicated region
  $region6: #{_lambda_.13} parent=0 // pred_check
    _
  $region7: #{_lambda_.13} parent=0 // pred_check_branch
    %11 = sbr.rel (0) target = $region9
  $region8: #{_lambda_.13} parent=0 // pred_region
    _
  $region9: #{_lambda_.13} parent=0 // pred_fallthru
    _
  // Predicated region
  $region10: #{_lambda_.13} parent=0 // pred_check
    _
  $region11: #{_lambda_.13} parent=0 // pred_check_branch
    %13 = sbr.rel (0) target = $region13
  $region12: #{_lambda_.13} parent=0 // pred_region
    _
  $region13: #{_lambda_.13} parent=0 // pred_fallthru
    _
  %v14 = vld [vmem:[%s1] sm:$0xff]
  %v15 = vld [vmem:[%s2] sm:$0xff]
  %v16 = vld [vmem:[%s0] sm:$0xff]
  %v17 = vunpack.c.l.bf16 %v16
  %v18 = vunpack.c.h.bf16 %v16
  %v20 = vlaneseq
  %v21 = vshrl.u32 %v20, 7
  %v22 = vsub.s32 0, %v21
  %v23 = vrot.slane %v14, %v22
  %v24 = vlaneseq
  %v25 = vshrl.u32 %v24, 7
  %v26 = vsub.s32 1, %v25
  %v27 = vrot.slane %v14, %v26
  %v28 = vlaneseq
  %v29 = vshrl.u32 %v28, 7
  %v30 = vsub.s32 2, %v29
  %v31 = vrot.slane %v14, %v30
  %v32 = vlaneseq
  %v33 = vshrl.u32 %v32, 7
  %v34 = vsub.s32 3, %v33
  %v35 = vrot.slane %v14, %v34
  %v36 = vlaneseq
  %v37 = vshrl.u32 %v36, 7
  %v38 = vsub.s32 4, %v37
  %v39 = vrot.slane %v14, %v38
  %v40 = vlaneseq
  %v41 = vshrl.u32 %v40, 7
  %v42 = vsub.s32 5, %v41
  %v43 = vrot.slane %v14, %v42
  %v44 = vlaneseq
  %v45 = vshrl.u32 %v44, 7
  %v46 = vsub.s32 6, %v45
  %v47 = vrot.slane %v14, %v46
  %v48 = vlaneseq
  %v49 = vshrl.u32 %v48, 7
  %v50 = vsub.s32 7, %v49
  %v51 = vrot.slane %v14, %v50
  %v52 = vcombine.low %v23, %v27
  %v53 = vcombine.low %v31, %v35
  %v55 = vunpack.c.l.s4 1983009808
  %v56 = vunpack.c.0.s8 %v55
  %v57 = vlaneseq
  %v58 = vshrl.u32 %v57, 7
  %v59 = vsub.s32 %v56, %v58
  %v60 = vrot.slane %v52, %v59
  %v62 = vunpack.c.l.s4 1983009808
  %v63 = vunpack.c.0.s8 %v62
  %v64 = vlaneseq
  %v65 = vshrl.u32 %v64, 7
  %v66 = vsub.s32 %v63, %v65
  %v67 = vrot.slane %v53, %v66
  %v68 = vcombine.low %v60, %v67
  %v69 = vcombine.low %v39, %v43
  %v70 = vcombine.low %v47, %v51
  %v72 = vunpack.c.l.s4 1983009808
  %v73 = vunpack.c.0.s8 %v72
  %v74 = vlaneseq
  %v75 = vshrl.u32 %v74, 7
  %v76 = vsub.s32 %v73, %v75
  %v77 = vrot.slane %v69, %v76
  %v79 = vunpack.c.l.s4 1983009808
  %v80 = vunpack.c.0.s8 %v79
  %v81 = vlaneseq
  %v82 = vshrl.u32 %v81, 7
  %v83 = vsub.s32 %v80, %v82
  %v84 = vrot.slane %v70, %v83
  %v85 = vcombine.low %v77, %v84
  %v88 = vmul.f32 %v17, %v68
  %v89 = vmul.f32 %v18, %v85
  %v91 = vlaneseq
  %v92 = vshrl.u32 %v91, 7
  %v93 = vsub.s32 0, %v92
  %v94 = vrot.slane %v15, %v93
  %v95 = vlaneseq
  %v96 = vshrl.u32 %v95, 7
  %v97 = vsub.s32 1, %v96
  %v98 = vrot.slane %v15, %v97
  %v99 = vlaneseq
  %v100 = vshrl.u32 %v99, 7
  %v101 = vsub.s32 2, %v100
  %v102 = vrot.slane %v15, %v101
  %v103 = vlaneseq
  %v104 = vshrl.u32 %v103, 7
  %v105 = vsub.s32 3, %v104
  %v106 = vrot.slane %v15, %v105
  %v107 = vlaneseq
  %v108 = vshrl.u32 %v107, 7
  %v109 = vsub.s32 4, %v108
  %v110 = vrot.slane %v15, %v109
  %v111 = vlaneseq
  %v112 = vshrl.u32 %v111, 7
  %v113 = vsub.s32 5, %v112
  %v114 = vrot.slane %v15, %v113
  %v115 = vlaneseq
  %v116 = vshrl.u32 %v115, 7
  %v117 = vsub.s32 6, %v116
  %v118 = vrot.slane %v15, %v117
  %v119 = vlaneseq
  %v120 = vshrl.u32 %v119, 7
  %v121 = vsub.s32 7, %v120
  %v122 = vrot.slane %v15, %v121
  %v123 = vcombine.low %v94, %v98
  %v124 = vcombine.low %v102, %v106
  %v126 = vunpack.c.l.s4 1983009808
  %v127 = vunpack.c.0.s8 %v126
  %v128 = vlaneseq
  %v129 = vshrl.u32 %v128, 7
  %v130 = vsub.s32 %v127, %v129
  %v131 = vrot.slane %v123, %v130
  %v133 = vunpack.c.l.s4 1983009808
  %v134 = vunpack.c.0.s8 %v133
  %v135 = vlaneseq
  %v136 = vshrl.u32 %v135, 7
  %v137 = vsub.s32 %v134, %v136
  %v138 = vrot.slane %v124, %v137
  %v139 = vcombine.low %v131, %v138
  %v140 = vcombine.low %v110, %v114
  %v141 = vcombine.low %v118, %v122
  %v143 = vunpack.c.l.s4 1983009808
  %v144 = vunpack.c.0.s8 %v143
  %v145 = vlaneseq
  %v146 = vshrl.u32 %v145, 7
  %v147 = vsub.s32 %v144, %v146
  %v148 = vrot.slane %v140, %v147
  %v150 = vunpack.c.l.s4 1983009808
  %v151 = vunpack.c.0.s8 %v150
  %v152 = vlaneseq
  %v153 = vshrl.u32 %v152, 7
  %v154 = vsub.s32 %v151, %v153
  %v155 = vrot.slane %v141, %v154
  %v156 = vcombine.low %v148, %v155
  %v159 = vadd.f32 %v88, %v139
  %v160 = vadd.f32 %v89, %v156
  %v161 = vmul.f32 %v159, 0.5
  %v162 = vmul.f32 %v160, 0.5
  %v163 = vadd.f32 %v161, 0.0
  %v164 = vadd.f32 %v162, 0.0
  %vm165 = vcmp.ge.f32.partialorder %v163, 1.0
  %vm166 = vcmp.ge.f32.partialorder %v164, 1.0
  %v167 = vsel %vm165, 1, 0
  %v168 = vsel %vm166, 1, 0
  %v169 = vcvt.s32.f32 %v167
  %v170 = vcvt.s32.f32 %v168
  %v173 = vcombine.high %v169, %v169
  %v175 = vunpack.c.l.s4 1983009808
  %v176 = vunpack.c.0.s8 %v175
  %v177 = vlaneseq
  %v178 = vshrl.u32 %v177, 7
  %v179 = vsub.s32 %v176, %v178
  %v180 = vrot.slane %v169, %v179
  %v182 = vunpack.c.l.s4 1983009808
  %v183 = vunpack.c.0.s8 %v182
  %v184 = vlaneseq
  %v185 = vshrl.u32 %v184, 7
  %v186 = vsub.s32 %v183, %v185
  %v187 = vrot.slane %v173, %v186
  %v188 = vcombine.high %v180, %v180
  %v189 = vcombine.high %v187, %v187
  %v190 = vcombine.high %v170, %v170
  %v192 = vunpack.c.l.s4 1983009808
  %v193 = vunpack.c.0.s8 %v192
  %v194 = vlaneseq
  %v195 = vshrl.u32 %v194, 7
  %v196 = vsub.s32 %v193, %v195
  %v197 = vrot.slane %v170, %v196
  %v199 = vunpack.c.l.s4 1983009808
  %v200 = vunpack.c.0.s8 %v199
  %v201 = vlaneseq
  %v202 = vshrl.u32 %v201, 7
  %v203 = vsub.s32 %v200, %v202
  %v204 = vrot.slane %v190, %v203
  %v205 = vcombine.high %v197, %v197
  %v206 = vcombine.high %v204, %v204
  %v215 = vpack.c.bf16 %v180, %v180
  %v216 = vpack.c.bf16 %v188, %v188
  %v217 = vpack.c.bf16 %v187, %v187
  %v218 = vpack.c.bf16 %v189, %v189
  %v219 = vpack.c.bf16 %v197, %v197
  %v220 = vpack.c.bf16 %v205, %v205
  %v221 = vpack.c.bf16 %v204, %v204
  %v222 = vpack.c.bf16 %v206, %v206
  %v231 = vcombine.low %v215, %v216
  %v232 = vcombine.low %v217, %v218
  %v233 = vcombine.low %v219, %v220
  %v234 = vcombine.low %v221, %v222
  %v236 = vunpack.c.l.s4 1966171168
  %v237 = vunpack.c.0.s8 %v236
  %v238 = vlaneseq
  %v239 = vshrl.u32 %v238, 7
  %v240 = vsub.s32 %v237, %v239
  %v241 = vrot.slane %v231, %v240
  %v243 = vunpack.c.l.s4 1966171168
  %v244 = vunpack.c.0.s8 %v243
  %v245 = vlaneseq
  %v246 = vshrl.u32 %v245, 7
  %v247 = vsub.s32 %v244, %v246
  %v248 = vrot.slane %v232, %v247
  %v250 = vunpack.c.l.s4 1966171168
  %v251 = vunpack.c.0.s8 %v250
  %v252 = vlaneseq
  %v253 = vshrl.u32 %v252, 7
  %v254 = vsub.s32 %v251, %v253
  %v255 = vrot.slane %v233, %v254
  %v257 = vunpack.c.l.s4 1966171168
  %v258 = vunpack.c.0.s8 %v257
  %v259 = vlaneseq
  %v260 = vshrl.u32 %v259, 7
  %v261 = vsub.s32 %v258, %v260
  %v262 = vrot.slane %v234, %v261
  %v263 = vcombine.low %v241, %v248
  %v264 = vcombine.low %v255, %v262
  %v266 = vunpack.c.l.s4 1966171168
  %v267 = vunpack.c.0.s8 %v266
  %v268 = vlaneseq
  %v269 = vshrl.u32 %v268, 7
  %v270 = vsub.s32 %v267, %v269
  %v271 = vrot.slane %v263, %v270
  %v273 = vunpack.c.l.s4 1966171168
  %v274 = vunpack.c.0.s8 %v273
  %v275 = vlaneseq
  %v276 = vshrl.u32 %v275, 7
  %v277 = vsub.s32 %v274, %v276
  %v278 = vrot.slane %v264, %v277
  %v279 = vcombine.low %v271, %v278
  %281 = vst [vmem:[%s3] sm:$0xff] %v279
  %v282 = vsel %vm165, 0.0, %v163
  %v283 = vsel %vm166, 0.0, %v164
  %s284 = scalar_lea.vmem %s0, 8
  %v285 = vld [vmem:[%s284] sm:$0xff]
  %v286 = vunpack.c.l.bf16 %v285
  %v287 = vunpack.c.h.bf16 %v285
  %v288 = vmul.f32 %v286, %v68
  %v289 = vmul.f32 %v287, %v85
  %v290 = vadd.f32 %v288, %v139
  %v291 = vadd.f32 %v289, %v156
  %v292 = vsub.f32 %v290, %v282
  %v293 = vsub.f32 %v291, %v283
  %v294 = vmul.f32 %v292, 0.5
  %v295 = vmul.f32 %v293, 0.5
  %v296 = vadd.f32 %v282, %v294
  %v297 = vadd.f32 %v283, %v295
  %vm298 = vcmp.ge.f32.partialorder %v296, 1.0
  %vm299 = vcmp.ge.f32.partialorder %v297, 1.0
  %v300 = vsel %vm298, 1, 0
  %v301 = vsel %vm299, 1, 0
  %v302 = vcvt.s32.f32 %v300
  %v303 = vcvt.s32.f32 %v301
  %v306 = vcombine.high %v302, %v302
  %v308 = vunpack.c.l.s4 1983009808
  %v309 = vunpack.c.0.s8 %v308
  %v310 = vlaneseq
  %v311 = vshrl.u32 %v310, 7
  %v312 = vsub.s32 %v309, %v311
  %v313 = vrot.slane %v302, %v312
  %v315 = vunpack.c.l.s4 1983009808
  %v316 = vunpack.c.0.s8 %v315
  %v317 = vlaneseq
  %v318 = vshrl.u32 %v317, 7
  %v319 = vsub.s32 %v316, %v318
  %v320 = vrot.slane %v306, %v319
  %v321 = vcombine.high %v313, %v313
  %v322 = vcombine.high %v320, %v320
  %v323 = vcombine.high %v303, %v303
  %v325 = vunpack.c.l.s4 1983009808
  %v326 = vunpack.c.0.s8 %v325
  %v327 = vlaneseq
  %v328 = vshrl.u32 %v327, 7
  %v329 = vsub.s32 %v326, %v328
  %v330 = vrot.slane %v303, %v329
  %v332 = vunpack.c.l.s4 1983009808
  %v333 = vunpack.c.0.s8 %v332
  %v334 = vlaneseq
  %v335 = vshrl.u32 %v334, 7
  %v336 = vsub.s32 %v333, %v335
  %v337 = vrot.slane %v323, %v336
  %v338 = vcombine.high %v330, %v330
  %v339 = vcombine.high %v337, %v337
  %v348 = vpack.c.bf16 %v313, %v313
  %v349 = vpack.c.bf16 %v321, %v321
  %v350 = vpack.c.bf16 %v320, %v320
  %v351 = vpack.c.bf16 %v322, %v322
  %v352 = vpack.c.bf16 %v330, %v330
  %v353 = vpack.c.bf16 %v338, %v338
  %v354 = vpack.c.bf16 %v337, %v337
  %v355 = vpack.c.bf16 %v339, %v339
  %v364 = vcombine.low %v348, %v349
  %v365 = vcombine.low %v350, %v351
  %v366 = vcombine.low %v352, %v353
  %v367 = vcombine.low %v354, %v355
  %v369 = vunpack.c.l.s4 1966171168
  %v370 = vunpack.c.0.s8 %v369
  %v371 = vlaneseq
  %v372 = vshrl.u32 %v371, 7
  %v373 = vsub.s32 %v370, %v372
  %v374 = vrot.slane %v364, %v373
  %v376 = vunpack.c.l.s4 1966171168
  %v377 = vunpack.c.0.s8 %v376
  %v378 = vlaneseq
  %v379 = vshrl.u32 %v378, 7
  %v380 = vsub.s32 %v377, %v379
  %v381 = vrot.slane %v365, %v380
  %v383 = vunpack.c.l.s4 1966171168
  %v384 = vunpack.c.0.s8 %v383
  %v385 = vlaneseq
  %v386 = vshrl.u32 %v385, 7
  %v387 = vsub.s32 %v384, %v386
  %v388 = vrot.slane %v366, %v387
  %v390 = vunpack.c.l.s4 1966171168
  %v391 = vunpack.c.0.s8 %v390
  %v392 = vlaneseq
  %v393 = vshrl.u32 %v392, 7
  %v394 = vsub.s32 %v391, %v393
  %v395 = vrot.slane %v367, %v394
  %v396 = vcombine.low %v374, %v381
  %v397 = vcombine.low %v388, %v395
  %v399 = vunpack.c.l.s4 1966171168
  %v400 = vunpack.c.0.s8 %v399
  %v401 = vlaneseq
  %v402 = vshrl.u32 %v401, 7
  %v403 = vsub.s32 %v400, %v402
  %v404 = vrot.slane %v396, %v403
  %v406 = vunpack.c.l.s4 1966171168
  %v407 = vunpack.c.0.s8 %v406
  %v408 = vlaneseq
  %v409 = vshrl.u32 %v408, 7
  %v410 = vsub.s32 %v407, %v409
  %v411 = vrot.slane %v397, %v410
  %v412 = vcombine.low %v404, %v411
  %s414 = scalar_lea.vmem %s3, 8
  %415 = vst [vmem:[%s414] sm:$0xff] %v412
  // Predicated region
  $region14: #{_lambda_.13} parent=0 // pred_check
    _
  $region15: #{_lambda_.13} parent=0 // pred_check_branch
    %417 = sbr.rel (0) target = $region17
  $region16: #{_lambda_.13} parent=0 // pred_region
    _
  $region17: #{_lambda_.13} parent=0 // pred_fallthru
    _
  // Predicated region
  $region18: #{_lambda_.13} parent=0 // pred_check
    _
  $region19: #{_lambda_.13} parent=0 // pred_check_branch
    %419 = sbr.rel (0) target = $region21
  $region20: #{_lambda_.13} parent=0 // pred_region
    _
  $region21: #{_lambda_.13} parent=0 // pred_fallthru
    _

// kernel: _lambda_.14
$region0: #{_lambda_.14}
  #allocation0 [shape = 'u32[]', space=smem, size = 0x4, offset = 0x4, fixed_abs, tag = 'smem constant byte address 0x4 - core index']
  #allocation1 [shape = 'u32[144,128]{1,0:T(1,128)}', space=vmem, size = 0x12000, scoped, tag = 'internal scratch']
  %s0 = inlined_call_operand.vmem [shape: bf16[16,256], index: 0, kind: input, shape index: {}]
  %s1 = inlined_call_operand.vmem [shape: bf16[256,256], index: 1, kind: input, shape index: {}]
  %s2 = inlined_call_operand.vmem [shape: bf16[16,256], index: 2, kind: output, shape index: {0}]
  %s3 = inlined_call_operand.vmem [shape: f32[1,2,256], index: 3, kind: output, shape index: {1}]
  %4 = xla_tuple %s2, %s3
  %s5 = sld [smem:[#allocation0]]
  $region26: #{_lambda_.14} parent=0
    _
  %s7 = ssub.s32 1, %s5
  %s8 = scalar_select 0, %s7, %s5
  // Predicated region
  $region2: #{_lambda_.14} parent=0 // pred_check
    _
  $region3: #{_lambda_.14} parent=0 // pred_check_branch
    %10 = sbr.rel (0) target = $region5
  $region4: #{_lambda_.14} parent=0 // pred_region
    _
  $region5: #{_lambda_.14} parent=0 // pred_fallthru
    _
  // Predicated region
  $region6: #{_lambda_.14} parent=0 // pred_check
    _
  $region7: #{_lambda_.14} parent=0 // pred_check_branch
    %12 = sbr.rel (0) target = $region9
  $region8: #{_lambda_.14} parent=0 // pred_region
    _
  $region9: #{_lambda_.14} parent=0 // pred_fallthru
    _
  %v13 = vld [vmem:[%s0] sm:$0xff]
  %v14 = vld [vmem:[%s0 + $0x8] sm:$0xff]
  %v15 = vld [vmem:[%s1] sm:$0xff]
  %v16 = vld [vmem:[%s1 + $0x8] sm:$0xff]
  %v17 = vld [vmem:[%s1 + $0x10] sm:$0xff]
  %v18 = vld [vmem:[%s1 + $0x18] sm:$0xff]
  %v19 = vld [vmem:[%s1 + $0x20] sm:$0xff]
  %v20 = vld [vmem:[%s1 + $0x28] sm:$0xff]
  %v21 = vld [vmem:[%s1 + $0x30] sm:$0xff]
  %v22 = vld [vmem:[%s1 + $0x38] sm:$0xff]
  %v23 = vld [vmem:[%s1 + $0x40] sm:$0xff]
  %v24 = vld [vmem:[%s1 + $0x48] sm:$0xff]
  %v25 = vld [vmem:[%s1 + $0x50] sm:$0xff]
  %v26 = vld [vmem:[%s1 + $0x58] sm:$0xff]
  %v27 = vld [vmem:[%s1 + $0x60] sm:$0xff]
  %v28 = vld [vmem:[%s1 + $0x68] sm:$0xff]
  %v29 = vld [vmem:[%s1 + $0x70] sm:$0xff]
  %v30 = vld [vmem:[%s1 + $0x78] sm:$0xff]
  %v31 = vld [vmem:[%s1 + $0x80] sm:$0xff]
  %v32 = vld [vmem:[%s1 + $0x88] sm:$0xff]
  %v33 = vld [vmem:[%s1 + $0x90] sm:$0xff]
  %v34 = vld [vmem:[%s1 + $0x98] sm:$0xff]
  %v35 = vld [vmem:[%s1 + $0xa0] sm:$0xff]
  %v36 = vld [vmem:[%s1 + $0xa8] sm:$0xff]
  %v37 = vld [vmem:[%s1 + $0xb0] sm:$0xff]
  %v38 = vld [vmem:[%s1 + $0xb8] sm:$0xff]
  %v39 = vld [vmem:[%s1 + $0xc0] sm:$0xff]
  %v40 = vld [vmem:[%s1 + $0xc8] sm:$0xff]
  %v41 = vld [vmem:[%s1 + $0xd0] sm:$0xff]
  %v42 = vld [vmem:[%s1 + $0xd8] sm:$0xff]
  %v43 = vld [vmem:[%s1 + $0xe0] sm:$0xff]
  %v44 = vld [vmem:[%s1 + $0xe8] sm:$0xff]
  %v45 = vld [vmem:[%s1 + $0xf0] sm:$0xff]
  %v46 = vld [vmem:[%s1 + $0xf8] sm:$0xff]
  %v49 = vunpack.c.l.b16 %v13
  %v50 = vunpack.c.h.b16 %v13
  %v51 = vunpack.c.l.b16 %v14
  %v52 = vunpack.c.h.b16 %v14
  %v53 = vpack.c.b16 %v51, %v49
  %v54 = vpack.c.b16 %v52, %v50
  %v89 = vunpack.c.l.b16 %v15
  %v90 = vunpack.c.h.b16 %v15
  %v91 = vunpack.c.l.b16 %v16
  %v92 = vunpack.c.h.b16 %v16
  %v93 = vunpack.c.l.b16 %v17
  %v94 = vunpack.c.h.b16 %v17
  %v95 = vunpack.c.l.b16 %v18
  %v96 = vunpack.c.h.b16 %v18
  %v97 = vunpack.c.l.b16 %v19
  %v98 = vunpack.c.h.b16 %v19
  %v99 = vunpack.c.l.b16 %v20
  %v100 = vunpack.c.h.b16 %v20
  %v101 = vunpack.c.l.b16 %v21
  %v102 = vunpack.c.h.b16 %v21
  %v103 = vunpack.c.l.b16 %v22
  %v104 = vunpack.c.h.b16 %v22
  %v105 = vunpack.c.l.b16 %v23
  %v106 = vunpack.c.h.b16 %v23
  %v107 = vunpack.c.l.b16 %v24
  %v108 = vunpack.c.h.b16 %v24
  %v109 = vunpack.c.l.b16 %v25
  %v110 = vunpack.c.h.b16 %v25
  %v111 = vunpack.c.l.b16 %v26
  %v112 = vunpack.c.h.b16 %v26
  %v113 = vunpack.c.l.b16 %v27
  %v114 = vunpack.c.h.b16 %v27
  %v115 = vunpack.c.l.b16 %v28
  %v116 = vunpack.c.h.b16 %v28
  %v117 = vunpack.c.l.b16 %v29
  %v118 = vunpack.c.h.b16 %v29
  %v119 = vunpack.c.l.b16 %v30
  %v120 = vunpack.c.h.b16 %v30
  %v121 = vunpack.c.l.b16 %v31
  %v122 = vunpack.c.h.b16 %v31
  %v123 = vunpack.c.l.b16 %v32
  %v124 = vunpack.c.h.b16 %v32
  %v125 = vunpack.c.l.b16 %v33
  %v126 = vunpack.c.h.b16 %v33
  %v127 = vunpack.c.l.b16 %v34
  %v128 = vunpack.c.h.b16 %v34
  %v129 = vunpack.c.l.b16 %v35
  %v130 = vunpack.c.h.b16 %v35
  %v131 = vunpack.c.l.b16 %v36
  %v132 = vunpack.c.h.b16 %v36
  %v133 = vunpack.c.l.b16 %v37
  %v134 = vunpack.c.h.b16 %v37
  %v135 = vunpack.c.l.b16 %v38
  %v136 = vunpack.c.h.b16 %v38
  %v137 = vunpack.c.l.b16 %v39
  %v138 = vunpack.c.h.b16 %v39
  %v139 = vunpack.c.l.b16 %v40
  %v140 = vunpack.c.h.b16 %v40
  %v141 = vunpack.c.l.b16 %v41
  %v142 = vunpack.c.h.b16 %v41
  %v143 = vunpack.c.l.b16 %v42
  %v144 = vunpack.c.h.b16 %v42
  %v145 = vunpack.c.l.b16 %v43
  %v146 = vunpack.c.h.b16 %v43
  %v147 = vunpack.c.l.b16 %v44
  %v148 = vunpack.c.h.b16 %v44
  %v149 = vunpack.c.l.b16 %v45
  %v150 = vunpack.c.h.b16 %v45
  %v151 = vunpack.c.l.b16 %v46
  %v152 = vunpack.c.h.b16 %v46
  %v153 = vpack.c.b16 %v91, %v89
  %v154 = vpack.c.b16 %v92, %v90
  %v155 = vpack.c.b16 %v95, %v93
  %v156 = vpack.c.b16 %v96, %v94
  %v157 = vpack.c.b16 %v99, %v97
  %v158 = vpack.c.b16 %v100, %v98
  %v159 = vpack.c.b16 %v103, %v101
  %v160 = vpack.c.b16 %v104, %v102
  %v161 = vpack.c.b16 %v107, %v105
  %v162 = vpack.c.b16 %v108, %v106
  %v163 = vpack.c.b16 %v111, %v109
  %v164 = vpack.c.b16 %v112, %v110
  %v165 = vpack.c.b16 %v115, %v113
  %v166 = vpack.c.b16 %v116, %v114
  %v167 = vpack.c.b16 %v119, %v117
  %v168 = vpack.c.b16 %v120, %v118
  %v169 = vpack.c.b16 %v123, %v121
  %v170 = vpack.c.b16 %v124, %v122
  %v171 = vpack.c.b16 %v127, %v125
  %v172 = vpack.c.b16 %v128, %v126
  %v173 = vpack.c.b16 %v131, %v129
  %v174 = vpack.c.b16 %v132, %v130
  %v175 = vpack.c.b16 %v135, %v133
  %v176 = vpack.c.b16 %v136, %v134
  %v177 = vpack.c.b16 %v139, %v137
  %v178 = vpack.c.b16 %v140, %v138
  %v179 = vpack.c.b16 %v143, %v141
  %v180 = vpack.c.b16 %v144, %v142
  %v181 = vpack.c.b16 %v147, %v145
  %v182 = vpack.c.b16 %v148, %v146
  %v183 = vpack.c.b16 %v151, %v149
  %v184 = vpack.c.b16 %v152, %v150
  %217 = vmatprep.subr.bf16.mxu0 %v154
  %218 = vmatpush1.bf16.msra.mxu0 %v153
  %219 = vmatprep.subr.bf16.mxu0 %v156
  %220 = vmatpush1.bf16.msra.mxu0 %v155
  %221 = vmatprep.subr.bf16.mxu0 %v158
  %222 = vmatpush1.bf16.msra.mxu0 %v157
  %223 = vmatprep.subr.bf16.mxu0 %v160
  %224 = vmatpush1.bf16.msra.mxu0 %v159
  %225 = vmatprep.subr.bf16.mxu0 %v162
  %226 = vmatpush1.bf16.msra.mxu0 %v161
  %227 = vmatprep.subr.bf16.mxu0 %v164
  %228 = vmatpush1.bf16.msra.mxu0 %v163
  %229 = vmatprep.subr.bf16.mxu0 %v166
  %230 = vmatpush1.bf16.msra.mxu0 %v165
  %231 = vmatprep.subr.bf16.mxu0 %v168
  %232 = vmatpush1.bf16.msra.mxu0 %v167
  %233 = vmatprep.subr.bf16.mxu0 %v170
  %234 = vmatpush1.bf16.msra.mxu0 %v169
  %235 = vmatprep.subr.bf16.mxu0 %v172
  %236 = vmatpush1.bf16.msra.mxu0 %v171
  %237 = vmatprep.subr.bf16.mxu0 %v174
  %238 = vmatpush1.bf16.msra.mxu0 %v173
  %239 = vmatprep.subr.bf16.mxu0 %v176
  %240 = vmatpush1.bf16.msra.mxu0 %v175
  %241 = vmatprep.subr.bf16.mxu0 %v178
  %242 = vmatpush1.bf16.msra.mxu0 %v177
  %243 = vmatprep.subr.bf16.mxu0 %v180
  %244 = vmatpush1.bf16.msra.mxu0 %v179
  %245 = vmatprep.subr.bf16.mxu0 %v182
  %246 = vmatpush1.bf16.msra.mxu0 %v181
  %247 = vmatprep.subr.bf16.mxu0 %v184
  %248 = vmatpush1.bf16.msra.mxu0 %v183
  %249 = vmatprep.mubr.bf16.mxu0 %v54
  %250 = vmatmul.mubr.bf16.gmra.mrb[0].mxu0 %v53
  %v251 = vpop.f32.mrb[0].mxu0
  %v252 = vadd.f32 0.0, %v251
  %v253 = vpop.f32.mrb[0].mxu0
  %v254 = vadd.f32 0.0, %v253
  %v255 = vpop.f32.mrb[0].mxu0
  %v256 = vadd.f32 0.0, %v255
  %v257 = vpop.f32.mrb[0].mxu0
  %v258 = vadd.f32 0.0, %v257
  %259 = vdwg.mxu0
  %v260 = vpack.c.bf16 %v256, %v252
  %v261 = vpack.c.bf16 %v258, %v254
  %v264 = vunpack.c.l.b16 %v260
  %v265 = vunpack.c.l.b16 %v261
  %v266 = vunpack.c.h.b16 %v260
  %v267 = vunpack.c.h.b16 %v261
  %v268 = vpack.c.b16 %v265, %v264
  %v269 = vpack.c.b16 %v267, %v266
  %272 = vst [vmem:[%s2] sm:$0xff] %v268
  %273 = vst [vmem:[%s2 + $0x8] sm:$0xff] %v269
  %v274 = vadd.f32 %v252, %v256
  %v275 = vrot.slane %v274, 4
  %v276 = vadd.f32 %v274, %v275
  %v277 = vrot.slane %v276, 2
  %v278 = vadd.f32 %v276, %v277
  %v279 = vrot.slane %v278, 1
  %v280 = vadd.f32 %v278, %v279
  %v281 = vadd.f32 %v254, %v258
  %v282 = vrot.slane %v281, 4
  %v283 = vadd.f32 %v281, %v282
  %v284 = vrot.slane %v283, 2
  %v285 = vadd.f32 %v283, %v284
  %v286 = vrot.slane %v285, 1
  %v287 = vadd.f32 %v285, %v286
  %v288 = vmul.f32 %v252, %v252
  %v289 = vmul.f32 %v254, %v254
  %v290 = vmul.f32 %v256, %v256
  %v291 = vmul.f32 %v258, %v258
  %v292 = vadd.f32 %v288, %v290
  %v293 = vrot.slane %v292, 4
  %v294 = vadd.f32 %v292, %v293
  %v295 = vrot.slane %v294, 2
  %v296 = vadd.f32 %v294, %v295
  %v297 = vrot.slane %v296, 1
  %v298 = vadd.f32 %v296, %v297
  %v299 = vadd.f32 %v289, %v291
  %v300 = vrot.slane %v299, 4
  %v301 = vadd.f32 %v299, %v300
  %v302 = vrot.slane %v301, 2
  %v303 = vadd.f32 %v301, %v302
  %v304 = vrot.slane %v303, 1
  %v305 = vadd.f32 %v303, %v304
  %vm306 = vcmask 1040384
  %v307 = vsel %vm306, %v280, %v298
  %v308 = vsel %vm306, %v287, %v305
  %v311 = vcombine.low %v307, %v308
  %v313 = vunpack.c.l.s4 1983009808
  %v314 = vunpack.c.0.s8 %v313
  %v315 = vlaneseq
  %v316 = vshrl.u32 %v315, 7
  %v317 = vsub.s32 %v314, %v316
  %v318 = vrot.slane %v311, %v317
  %320 = vst [vmem:[%s3] sm:$0xf] %v318
  // Predicated region
  $region10: #{_lambda_.14} parent=0 // pred_check
    _
  $region11: #{_lambda_.14} parent=0 // pred_check_branch
    %322 = sbr.rel (0) target = $region13
  $region12: #{_lambda_.14} parent=0 // pred_region
    _
  $region13: #{_lambda_.14} parent=0 // pred_fallthru
    _
  // Predicated region
  $region14: #{_lambda_.14} parent=0 // pred_check
    _
  $region15: #{_lambda_.14} parent=0 // pred_check_branch
    %324 = sbr.rel (0) target = $region17
  $region16: #{_lambda_.14} parent=0 // pred_region
    _
  $region17: #{_lambda_.14} parent=0 // pred_fallthru
    _
  // Predicated region
  $region18: #{_lambda_.14} parent=0 // pred_check
    _
  $region19: #{_lambda_.14} parent=0 // pred_check_branch
    %326 = sbr.rel (0) target = $region21
  $region20: #{_lambda_.14} parent=0 // pred_region
    _
  $region21: #{_lambda_.14} parent=0 // pred_fallthru
    _
  // Predicated region
  $region22: #{_lambda_.14} parent=0 // pred_check
    _
  $region23: #{_lambda_.14} parent=0 // pred_check_branch
    %328 = sbr.rel (0) target = $region25
  $region24: #{_lambda_.14} parent=0 // pred_region
    _
  $region25: #{_lambda_.14} parent=0 // pred_fallthru
    _

// kernel: tile.103
$region0: #{tile.103}
  #allocation0 [shape = 's32[1]{0}', space=sflag, size = 0x4, scoped, tag = 'scoped memory for tile.103']
  %s0 = inlined_call_operand.vmem [shape: f32[64], index: 0, kind: input, shape index: {}]
  %s1 = inlined_call_operand.vmem [shape: f32[16,64], index: 1, kind: output, shape index: {}]
  // Predicated region
  $region2: #{tile.103} parent=0 // pred_check
    _
  $region3: #{tile.103} parent=0 // pred_check_branch
    %3 = sbr.rel (0) target = $region5
  $region4: #{tile.103} parent=0 // pred_region
    _
  $region5: #{tile.103} parent=0 // pred_fallthru
    _
  %v4 = vld [vmem:[%s0] ss:$0 sm:$0xff]
  %5 = vst [vmem:[%s1] sm:$0xff] %v4
  %s6 = scalar_lea.vmem %s1, 8
  %7 = vst [vmem:[%s6] sm:$0xff] %v4

// kernel: tile.104
$region0: #{tile.104}
  %s0 = inlined_call_operand.vmem [shape: f32[16,64], index: 0, kind: input, shape index: {}]
  %s1 = inlined_call_operand.vmem [shape: f32[1,1024], index: 1, kind: output, shape index: {}]
  $region1: #{tile.104} parent=0
    #allocation0 [shape = 'u8[32768]{0}', space=vmem, size = 0x8000, scoped, tag = 'scoped mem for output reshape']
    %v2 = vld [vmem:[%s0] ss:$2 sm:$0xff]
    %vm3 = vcmask 523264
    %4 = vst.msk [vmem:[#allocation0] ss:$8 sm:$0xf] %vm3, %v2
    %5 = vst.msk [vmem:[#allocation0] ss:$8 sm:$0xf0] %vm3, %v2
    %s6 = scalar_lea.vmem %s0, 1
    %v7 = vld [vmem:[%s6] ss:$2 sm:$0xff]
    %8 = vrot.lane.b32.xlu0 %v7, 64
    %v9 = vpop.permute.xlu0 %8
    %vm10 = vcmask 1048064
    %11 = vst.msk [vmem:[#allocation0] ss:$8 sm:$0xf] %vm10, %v9
    %12 = vst.msk [vmem:[#allocation0] ss:$8 sm:$0xf0] %vm10, %v9
    %s14 = sshllo.u32 0, 1
    %v16 = vld [vmem:[#allocation0] sm:%s14]
    %s17 = sshllo.u32 0, 1
    %18 = vst [vmem:[%s1] sm:%s17] %v16
    %s19 = scalar_lea.vmem [#allocation0], 8
    %v20 = vld [vmem:[%s19] sm:%s14]
    %s21 = sshllo.u32 0, 1
    %s22 = scalar_lea.vmem %s1, 1
    %23 = vst [vmem:[%s22] sm:%s21] %v20
    %s24 = scalar_lea.vmem [#allocation0], 16
    %v25 = vld [vmem:[%s24] sm:%s14]
    %s26 = sshllo.u32 0, 1
    %s27 = smul.addr 1, 2
    %s28 = scalar_lea.vmem %s1, %s27
    %29 = vst [vmem:[%s28] sm:%s26] %v25
    %s30 = scalar_lea.vmem [#allocation0], 24
    %v31 = vld [vmem:[%s30] sm:%s14]
    %s32 = sshllo.u32 0, 1
    %s33 = smul.addr 1, 3
    %s34 = scalar_lea.vmem %s1, %s33
    %35 = vst [vmem:[%s34] sm:%s32] %v31
    %s36 = scalar_lea.vmem [#allocation0], 32
    %v37 = vld [vmem:[%s36] sm:%s14]
    %s38 = sshllo.u32 0, 1
    %s39 = smul.addr 1, 4
    %s40 = scalar_lea.vmem %s1, %s39
    %41 = vst [vmem:[%s40] sm:%s38] %v37
    %s42 = scalar_lea.vmem [#allocation0], 40
    %v43 = vld [vmem:[%s42] sm:%s14]
    %s44 = sshllo.u32 0, 1
    %s45 = smul.addr 1, 5
    %s46 = scalar_lea.vmem %s1, %s45
    %47 = vst [vmem:[%s46] sm:%s44] %v43
    %s48 = scalar_lea.vmem [#allocation0], 48
    %v49 = vld [vmem:[%s48] sm:%s14]
    %s50 = sshllo.u32 0, 1
    %s51 = smul.addr 1, 6
    %s52 = scalar_lea.vmem %s1, %s51
    %53 = vst [vmem:[%s52] sm:%s50] %v49
    %s54 = scalar_lea.vmem [#allocation0], 56
    %v55 = vld [vmem:[%s54] sm:%s14]
    %s56 = sshllo.u32 0, 1
    %s57 = smul.addr 1, 7
    %s58 = scalar_lea.vmem %s1, %s57
    %59 = vst [vmem:[%s58] sm:%s56] %v55

// kernel: _lambda_.17
$region0: #{_lambda_.17}
  #allocation0 [shape = 'u32[]', space=smem, size = 0x4, offset = 0x4, fixed_abs, tag = 'smem constant byte address 0x4 - core index']
  #allocation1 [shape = 'u32[144,128]{1,0:T(1,128)}', space=vmem, size = 0x12000, scoped, tag = 'internal scratch']
  %s0 = inlined_call_operand.vmem [shape: f32[4,1024], index: 0, kind: input, shape index: {}]
  %s1 = inlined_call_operand.vmem [shape: f32[1,1024], index: 1, kind: input, shape index: {}]
  %s2 = inlined_call_operand.vmem [shape: bf16[2,2,1024], index: 2, kind: input, shape index: {}]
  %s3 = inlined_call_operand.vmem [shape: bf16[2,2,1024], index: 3, kind: input, shape index: {}]
  %s4 = inlined_call_operand.vmem [shape: bf16[2,2,1024], index: 4, kind: input, shape index: {}]
  %s5 = inlined_call_operand.vmem [shape: f32[2,2,1024], index: 5, kind: input, shape index: {}]
  %s6 = inlined_call_operand.vmem [shape: bf16[2,2,1024], index: 6, kind: output, shape index: {0}]
  %s7 = inlined_call_operand.vmem [shape: bf16[2,2,1024], index: 7, kind: output, shape index: {1}]
  %8 = xla_tuple %s6, %s7
  %s9 = sld [smem:[#allocation0]]
  $region42: #{_lambda_.17} parent=0
    _
  %s11 = ssub.s32 1, %s9
  %s12 = scalar_select 0, %s11, %s9
  // Predicated region
  $region2: #{_lambda_.17} parent=0 // pred_check
    _
  $region3: #{_lambda_.17} parent=0 // pred_check_branch
    %14 = sbr.rel (0) target = $region5
  $region4: #{_lambda_.17} parent=0 // pred_region
    _
  $region5: #{_lambda_.17} parent=0 // pred_fallthru
    _
  // Predicated region
  $region6: #{_lambda_.17} parent=0 // pred_check
    _
  $region7: #{_lambda_.17} parent=0 // pred_check_branch
    %16 = sbr.rel (0) target = $region9
  $region8: #{_lambda_.17} parent=0 // pred_region
    _
  $region9: #{_lambda_.17} parent=0 // pred_fallthru
    _
  // Predicated region
  $region10: #{_lambda_.17} parent=0 // pred_check
    _
  $region11: #{_lambda_.17} parent=0 // pred_check_branch
    %18 = sbr.rel (0) target = $region13
  $region12: #{_lambda_.17} parent=0 // pred_region
    _
  $region13: #{_lambda_.17} parent=0 // pred_fallthru
    _
  // Predicated region
  $region14: #{_lambda_.17} parent=0 // pred_check
    _
  $region15: #{_lambda_.17} parent=0 // pred_check_branch
    %20 = sbr.rel (0) target = $region17
  $region16: #{_lambda_.17} parent=0 // pred_region
    _
  $region17: #{_lambda_.17} parent=0 // pred_fallthru
    _
  // Predicated region
  $region18: #{_lambda_.17} parent=0 // pred_check
    _
  $region19: #{_lambda_.17} parent=0 // pred_check_branch
    %22 = sbr.rel (0) target = $region21
  $region20: #{_lambda_.17} parent=0 // pred_region
    _
  $region21: #{_lambda_.17} parent=0 // pred_fallthru
    _
  // Predicated region
  $region22: #{_lambda_.17} parent=0 // pred_check
    _
  $region23: #{_lambda_.17} parent=0 // pred_check_branch
    %24 = sbr.rel (0) target = $region25
  $region24: #{_lambda_.17} parent=0 // pred_region
    _
  $region25: #{_lambda_.17} parent=0 // pred_fallthru
    _
  %v25 = vld [vmem:[%s0] sm:$0xff]
  %v26 = vld [vmem:[%s0 + $0x8] sm:$0xff]
  %v27 = vld [vmem:[%s0 + $0x10] sm:$0xff]
  %v28 = vld [vmem:[%s0 + $0x18] sm:$0xff]
  %v29 = vld [vmem:[%s1] sm:$0xff]
  %v30 = vld [vmem:[%s2] sm:$0xff]
  %v31 = vunpack.c.l.bf16 %v30
  %v32 = vunpack.c.h.bf16 %v30
  %v37 = vlaneseq
  %v38 = vshrl.u32 %v37, 7
  %v39 = vsub.s32 0, %v38
  %v40 = vrot.slane %v25, %v39
  %v41 = vlaneseq
  %v42 = vshrl.u32 %v41, 7
  %v43 = vsub.s32 4, %v42
  %v44 = vrot.slane %v25, %v43
  %v45 = vlaneseq
  %v46 = vshrl.u32 %v45, 7
  %v47 = vsub.s32 0, %v46
  %v48 = vrot.slane %v26, %v47
  %v49 = vlaneseq
  %v50 = vshrl.u32 %v49, 7
  %v51 = vsub.s32 4, %v50
  %v52 = vrot.slane %v26, %v51
  %v53 = vlaneseq
  %v54 = vshrl.u32 %v53, 7
  %v55 = vsub.s32 0, %v54
  %v56 = vrot.slane %v27, %v55
  %v57 = vlaneseq
  %v58 = vshrl.u32 %v57, 7
  %v59 = vsub.s32 4, %v58
  %v60 = vrot.slane %v27, %v59
  %v61 = vlaneseq
  %v62 = vshrl.u32 %v61, 7
  %v63 = vsub.s32 0, %v62
  %v64 = vrot.slane %v28, %v63
  %v65 = vlaneseq
  %v66 = vshrl.u32 %v65, 7
  %v67 = vsub.s32 4, %v66
  %v68 = vrot.slane %v28, %v67
  %v77 = vlaneseq
  %v78 = vshrl.u32 %v77, 7
  %v79 = vsub.s32 0, %v78
  %v80 = vrot.slane %v40, %v79
  %v81 = vlaneseq
  %v82 = vshrl.u32 %v81, 7
  %v83 = vsub.s32 0, %v82
  %v84 = vrot.slane %v44, %v83
  %v85 = vlaneseq
  %v86 = vshrl.u32 %v85, 7
  %v87 = vsub.s32 0, %v86
  %v88 = vrot.slane %v48, %v87
  %v89 = vlaneseq
  %v90 = vshrl.u32 %v89, 7
  %v91 = vsub.s32 0, %v90
  %v92 = vrot.slane %v52, %v91
  %v93 = vlaneseq
  %v94 = vshrl.u32 %v93, 7
  %v95 = vsub.s32 0, %v94
  %v96 = vrot.slane %v56, %v95
  %v97 = vlaneseq
  %v98 = vshrl.u32 %v97, 7
  %v99 = vsub.s32 0, %v98
  %v100 = vrot.slane %v60, %v99
  %v101 = vlaneseq
  %v102 = vshrl.u32 %v101, 7
  %v103 = vsub.s32 0, %v102
  %v104 = vrot.slane %v64, %v103
  %v105 = vlaneseq
  %v106 = vshrl.u32 %v105, 7
  %v107 = vsub.s32 0, %v106
  %v108 = vrot.slane %v68, %v107
  %v117 = vcombine.low %v80, %v84
  %v118 = vcombine.low %v88, %v92
  %v120 = vunpack.c.l.s4 1983009808
  %v121 = vunpack.c.0.s8 %v120
  %v122 = vlaneseq
  %v123 = vshrl.u32 %v122, 7
  %v124 = vsub.s32 %v121, %v123
  %v125 = vrot.slane %v117, %v124
  %v127 = vunpack.c.l.s4 1983009808
  %v128 = vunpack.c.0.s8 %v127
  %v129 = vlaneseq
  %v130 = vshrl.u32 %v129, 7
  %v131 = vsub.s32 %v128, %v130
  %v132 = vrot.slane %v118, %v131
  %v133 = vcombine.low %v125, %v132
  %v134 = vcombine.low %v96, %v100
  %v135 = vcombine.low %v104, %v108
  %v137 = vunpack.c.l.s4 1983009808
  %v138 = vunpack.c.0.s8 %v137
  %v139 = vlaneseq
  %v140 = vshrl.u32 %v139, 7
  %v141 = vsub.s32 %v138, %v140
  %v142 = vrot.slane %v134, %v141
  %v144 = vunpack.c.l.s4 1983009808
  %v145 = vunpack.c.0.s8 %v144
  %v146 = vlaneseq
  %v147 = vshrl.u32 %v146, 7
  %v148 = vsub.s32 %v145, %v147
  %v149 = vrot.slane %v135, %v148
  %v150 = vcombine.low %v142, %v149
  %v153 = vmul.f32 %v31, %v133
  %v154 = vmul.f32 %v32, %v150
  %v156 = vlaneseq
  %v157 = vshrl.u32 %v156, 7
  %v158 = vsub.s32 0, %v157
  %v159 = vrot.slane %v29, %v158
  %v160 = vlaneseq
  %v161 = vshrl.u32 %v160, 7
  %v162 = vsub.s32 1, %v161
  %v163 = vrot.slane %v29, %v162
  %v164 = vlaneseq
  %v165 = vshrl.u32 %v164, 7
  %v166 = vsub.s32 2, %v165
  %v167 = vrot.slane %v29, %v166
  %v168 = vlaneseq
  %v169 = vshrl.u32 %v168, 7
  %v170 = vsub.s32 3, %v169
  %v171 = vrot.slane %v29, %v170
  %v172 = vlaneseq
  %v173 = vshrl.u32 %v172, 7
  %v174 = vsub.s32 4, %v173
  %v175 = vrot.slane %v29, %v174
  %v176 = vlaneseq
  %v177 = vshrl.u32 %v176, 7
  %v178 = vsub.s32 5, %v177
  %v179 = vrot.slane %v29, %v178
  %v180 = vlaneseq
  %v181 = vshrl.u32 %v180, 7
  %v182 = vsub.s32 6, %v181
  %v183 = vrot.slane %v29, %v182
  %v184 = vlaneseq
  %v185 = vshrl.u32 %v184, 7
  %v186 = vsub.s32 7, %v185
  %v187 = vrot.slane %v29, %v186
  %v188 = vcombine.low %v159, %v163
  %v189 = vcombine.low %v167, %v171
  %v191 = vunpack.c.l.s4 1983009808
  %v192 = vunpack.c.0.s8 %v191
  %v193 = vlaneseq
  %v194 = vshrl.u32 %v193, 7
  %v195 = vsub.s32 %v192, %v194
  %v196 = vrot.slane %v188, %v195
  %v198 = vunpack.c.l.s4 1983009808
  %v199 = vunpack.c.0.s8 %v198
  %v200 = vlaneseq
  %v201 = vshrl.u32 %v200, 7
  %v202 = vsub.s32 %v199, %v201
  %v203 = vrot.slane %v189, %v202
  %v204 = vcombine.low %v196, %v203
  %v205 = vcombine.low %v175, %v179
  %v206 = vcombine.low %v183, %v187
  %v208 = vunpack.c.l.s4 1983009808
  %v209 = vunpack.c.0.s8 %v208
  %v210 = vlaneseq
  %v211 = vshrl.u32 %v210, 7
  %v212 = vsub.s32 %v209, %v211
  %v213 = vrot.slane %v205, %v212
  %v215 = vunpack.c.l.s4 1983009808
  %v216 = vunpack.c.0.s8 %v215
  %v217 = vlaneseq
  %v218 = vshrl.u32 %v217, 7
  %v219 = vsub.s32 %v216, %v218
  %v220 = vrot.slane %v206, %v219
  %v221 = vcombine.low %v213, %v220
  %v224 = vadd.f32 %v153, %v204
  %v225 = vadd.f32 %v154, %v221
  %v226 = vld [vmem:[%s3] sm:$0xff]
  %v227 = vunpack.c.l.bf16 %v226
  %v228 = vunpack.c.h.bf16 %v226
  %v229 = vlaneseq
  %v230 = vshrl.u32 %v229, 7
  %v231 = vsub.s32 1, %v230
  %v232 = vrot.slane %v25, %v231
  %v233 = vlaneseq
  %v234 = vshrl.u32 %v233, 7
  %v235 = vsub.s32 5, %v234
  %v236 = vrot.slane %v25, %v235
  %v237 = vlaneseq
  %v238 = vshrl.u32 %v237, 7
  %v239 = vsub.s32 1, %v238
  %v240 = vrot.slane %v26, %v239
  %v241 = vlaneseq
  %v242 = vshrl.u32 %v241, 7
  %v243 = vsub.s32 5, %v242
  %v244 = vrot.slane %v26, %v243
  %v245 = vlaneseq
  %v246 = vshrl.u32 %v245, 7
  %v247 = vsub.s32 1, %v246
  %v248 = vrot.slane %v27, %v247
  %v249 = vlaneseq
  %v250 = vshrl.u32 %v249, 7
  %v251 = vsub.s32 5, %v250
  %v252 = vrot.slane %v27, %v251
  %v253 = vlaneseq
  %v254 = vshrl.u32 %v253, 7
  %v255 = vsub.s32 1, %v254
  %v256 = vrot.slane %v28, %v255
  %v257 = vlaneseq
  %v258 = vshrl.u32 %v257, 7
  %v259 = vsub.s32 5, %v258
  %v260 = vrot.slane %v28, %v259
  %v269 = vlaneseq
  %v270 = vshrl.u32 %v269, 7
  %v271 = vsub.s32 1, %v270
  %v272 = vrot.slane %v232, %v271
  %v273 = vlaneseq
  %v274 = vshrl.u32 %v273, 7
  %v275 = vsub.s32 1, %v274
  %v276 = vrot.slane %v236, %v275
  %v277 = vlaneseq
  %v278 = vshrl.u32 %v277, 7
  %v279 = vsub.s32 1, %v278
  %v280 = vrot.slane %v240, %v279
  %v281 = vlaneseq
  %v282 = vshrl.u32 %v281, 7
  %v283 = vsub.s32 1, %v282
  %v284 = vrot.slane %v244, %v283
  %v285 = vlaneseq
  %v286 = vshrl.u32 %v285, 7
  %v287 = vsub.s32 1, %v286
  %v288 = vrot.slane %v248, %v287
  %v289 = vlaneseq
  %v290 = vshrl.u32 %v289, 7
  %v291 = vsub.s32 1, %v290
  %v292 = vrot.slane %v252, %v291
  %v293 = vlaneseq
  %v294 = vshrl.u32 %v293, 7
  %v295 = vsub.s32 1, %v294
  %v296 = vrot.slane %v256, %v295
  %v297 = vlaneseq
  %v298 = vshrl.u32 %v297, 7
  %v299 = vsub.s32 1, %v298
  %v300 = vrot.slane %v260, %v299
  %v309 = vcombine.low %v272, %v276
  %v310 = vcombine.low %v280, %v284
  %v312 = vunpack.c.l.s4 1983009808
  %v313 = vunpack.c.0.s8 %v312
  %v314 = vlaneseq
  %v315 = vshrl.u32 %v314, 7
  %v316 = vsub.s32 %v313, %v315
  %v317 = vrot.slane %v309, %v316
  %v319 = vunpack.c.l.s4 1983009808
  %v320 = vunpack.c.0.s8 %v319
  %v321 = vlaneseq
  %v322 = vshrl.u32 %v321, 7
  %v323 = vsub.s32 %v320, %v322
  %v324 = vrot.slane %v310, %v323
  %v325 = vcombine.low %v317, %v324
  %v326 = vcombine.low %v288, %v292
  %v327 = vcombine.low %v296, %v300
  %v329 = vunpack.c.l.s4 1983009808
  %v330 = vunpack.c.0.s8 %v329
  %v331 = vlaneseq
  %v332 = vshrl.u32 %v331, 7
  %v333 = vsub.s32 %v330, %v332
  %v334 = vrot.slane %v326, %v333
  %v336 = vunpack.c.l.s4 1983009808
  %v337 = vunpack.c.0.s8 %v336
  %v338 = vlaneseq
  %v339 = vshrl.u32 %v338, 7
  %v340 = vsub.s32 %v337, %v339
  %v341 = vrot.slane %v327, %v340
  %v342 = vcombine.low %v334, %v341
  %v345 = vmul.f32 %v227, %v325
  %v346 = vmul.f32 %v228, %v342
  %v347 = vadd.f32 %v224, %v345
  %v348 = vadd.f32 %v225, %v346
  %v349 = vld [vmem:[%s4] sm:$0xff]
  %v350 = vunpack.c.l.bf16 %v349
  %v351 = vunpack.c.h.bf16 %v349
  %v352 = vlaneseq
  %v353 = vshrl.u32 %v352, 7
  %v354 = vsub.s32 2, %v353
  %v355 = vrot.slane %v25, %v354
  %v356 = vlaneseq
  %v357 = vshrl.u32 %v356, 7
  %v358 = vsub.s32 6, %v357
  %v359 = vrot.slane %v25, %v358
  %v360 = vlaneseq
  %v361 = vshrl.u32 %v360, 7
  %v362 = vsub.s32 2, %v361
  %v363 = vrot.slane %v26, %v362
  %v364 = vlaneseq
  %v365 = vshrl.u32 %v364, 7
  %v366 = vsub.s32 6, %v365
  %v367 = vrot.slane %v26, %v366
  %v368 = vlaneseq
  %v369 = vshrl.u32 %v368, 7
  %v370 = vsub.s32 2, %v369
  %v371 = vrot.slane %v27, %v370
  %v372 = vlaneseq
  %v373 = vshrl.u32 %v372, 7
  %v374 = vsub.s32 6, %v373
  %v375 = vrot.slane %v27, %v374
  %v376 = vlaneseq
  %v377 = vshrl.u32 %v376, 7
  %v378 = vsub.s32 2, %v377
  %v379 = vrot.slane %v28, %v378
  %v380 = vlaneseq
  %v381 = vshrl.u32 %v380, 7
  %v382 = vsub.s32 6, %v381
  %v383 = vrot.slane %v28, %v382
  %v392 = vlaneseq
  %v393 = vshrl.u32 %v392, 7
  %v394 = vsub.s32 2, %v393
  %v395 = vrot.slane %v355, %v394
  %v396 = vlaneseq
  %v397 = vshrl.u32 %v396, 7
  %v398 = vsub.s32 2, %v397
  %v399 = vrot.slane %v359, %v398
  %v400 = vlaneseq
  %v401 = vshrl.u32 %v400, 7
  %v402 = vsub.s32 2, %v401
  %v403 = vrot.slane %v363, %v402
  %v404 = vlaneseq
  %v405 = vshrl.u32 %v404, 7
  %v406 = vsub.s32 2, %v405
  %v407 = vrot.slane %v367, %v406
  %v408 = vlaneseq
  %v409 = vshrl.u32 %v408, 7
  %v410 = vsub.s32 2, %v409
  %v411 = vrot.slane %v371, %v410
  %v412 = vlaneseq
  %v413 = vshrl.u32 %v412, 7
  %v414 = vsub.s32 2, %v413
  %v415 = vrot.slane %v375, %v414
  %v416 = vlaneseq
  %v417 = vshrl.u32 %v416, 7
  %v418 = vsub.s32 2, %v417
  %v419 = vrot.slane %v379, %v418
  %v420 = vlaneseq
  %v421 = vshrl.u32 %v420, 7
  %v422 = vsub.s32 2, %v421
  %v423 = vrot.slane %v383, %v422
  %v432 = vcombine.low %v395, %v399
  %v433 = vcombine.low %v403, %v407
  %v435 = vunpack.c.l.s4 1983009808
  %v436 = vunpack.c.0.s8 %v435
  %v437 = vlaneseq
  %v438 = vshrl.u32 %v437, 7
  %v439 = vsub.s32 %v436, %v438
  %v440 = vrot.slane %v432, %v439
  %v442 = vunpack.c.l.s4 1983009808
  %v443 = vunpack.c.0.s8 %v442
  %v444 = vlaneseq
  %v445 = vshrl.u32 %v444, 7
  %v446 = vsub.s32 %v443, %v445
  %v447 = vrot.slane %v433, %v446
  %v448 = vcombine.low %v440, %v447
  %v449 = vcombine.low %v411, %v415
  %v450 = vcombine.low %v419, %v423
  %v452 = vunpack.c.l.s4 1983009808
  %v453 = vunpack.c.0.s8 %v452
  %v454 = vlaneseq
  %v455 = vshrl.u32 %v454, 7
  %v456 = vsub.s32 %v453, %v455
  %v457 = vrot.slane %v449, %v456
  %v459 = vunpack.c.l.s4 1983009808
  %v460 = vunpack.c.0.s8 %v459
  %v461 = vlaneseq
  %v462 = vshrl.u32 %v461, 7
  %v463 = vsub.s32 %v460, %v462
  %v464 = vrot.slane %v450, %v463
  %v465 = vcombine.low %v457, %v464
  %v468 = vmul.f32 %v350, %v448
  %v469 = vmul.f32 %v351, %v465
  %v470 = vadd.f32 %v347, %v468
  %v471 = vadd.f32 %v348, %v469
  %v472 = vld [vmem:[%s5] sm:$0xff]
  %v473 = vld [vmem:[%s5 + $0x8] sm:$0xff]
  %v474 = vlaneseq
  %v475 = vshrl.u32 %v474, 7
  %v476 = vsub.s32 3, %v475
  %v477 = vrot.slane %v25, %v476
  %v478 = vlaneseq
  %v479 = vshrl.u32 %v478, 7
  %v480 = vsub.s32 7, %v479
  %v481 = vrot.slane %v25, %v480
  %v482 = vlaneseq
  %v483 = vshrl.u32 %v482, 7
  %v484 = vsub.s32 3, %v483
  %v485 = vrot.slane %v26, %v484
  %v486 = vlaneseq
  %v487 = vshrl.u32 %v486, 7
  %v488 = vsub.s32 7, %v487
  %v489 = vrot.slane %v26, %v488
  %v490 = vlaneseq
  %v491 = vshrl.u32 %v490, 7
  %v492 = vsub.s32 3, %v491
  %v493 = vrot.slane %v27, %v492
  %v494 = vlaneseq
  %v495 = vshrl.u32 %v494, 7
  %v496 = vsub.s32 7, %v495
  %v497 = vrot.slane %v27, %v496
  %v498 = vlaneseq
  %v499 = vshrl.u32 %v498, 7
  %v500 = vsub.s32 3, %v499
  %v501 = vrot.slane %v28, %v500
  %v502 = vlaneseq
  %v503 = vshrl.u32 %v502, 7
  %v504 = vsub.s32 7, %v503
  %v505 = vrot.slane %v28, %v504
  %v514 = vlaneseq
  %v515 = vshrl.u32 %v514, 7
  %v516 = vsub.s32 3, %v515
  %v517 = vrot.slane %v477, %v516
  %v518 = vlaneseq
  %v519 = vshrl.u32 %v518, 7
  %v520 = vsub.s32 3, %v519
  %v521 = vrot.slane %v481, %v520
  %v522 = vlaneseq
  %v523 = vshrl.u32 %v522, 7
  %v524 = vsub.s32 3, %v523
  %v525 = vrot.slane %v485, %v524
  %v526 = vlaneseq
  %v527 = vshrl.u32 %v526, 7
  %v528 = vsub.s32 3, %v527
  %v529 = vrot.slane %v489, %v528
  %v530 = vlaneseq
  %v531 = vshrl.u32 %v530, 7
  %v532 = vsub.s32 3, %v531
  %v533 = vrot.slane %v493, %v532
  %v534 = vlaneseq
  %v535 = vshrl.u32 %v534, 7
  %v536 = vsub.s32 3, %v535
  %v537 = vrot.slane %v497, %v536
  %v538 = vlaneseq
  %v539 = vshrl.u32 %v538, 7
  %v540 = vsub.s32 3, %v539
  %v541 = vrot.slane %v501, %v540
  %v542 = vlaneseq
  %v543 = vshrl.u32 %v542, 7
  %v544 = vsub.s32 3, %v543
  %v545 = vrot.slane %v505, %v544
  %v554 = vcombine.low %v517, %v521
  %v555 = vcombine.low %v525, %v529
  %v557 = vunpack.c.l.s4 1983009808
  %v558 = vunpack.c.0.s8 %v557
  %v559 = vlaneseq
  %v560 = vshrl.u32 %v559, 7
  %v561 = vsub.s32 %v558, %v560
  %v562 = vrot.slane %v554, %v561
  %v564 = vunpack.c.l.s4 1983009808
  %v565 = vunpack.c.0.s8 %v564
  %v566 = vlaneseq
  %v567 = vshrl.u32 %v566, 7
  %v568 = vsub.s32 %v565, %v567
  %v569 = vrot.slane %v555, %v568
  %v570 = vcombine.low %v562, %v569
  %v571 = vcombine.low %v533, %v537
  %v572 = vcombine.low %v541, %v545
  %v574 = vunpack.c.l.s4 1983009808
  %v575 = vunpack.c.0.s8 %v574
  %v576 = vlaneseq
  %v577 = vshrl.u32 %v576, 7
  %v578 = vsub.s32 %v575, %v577
  %v579 = vrot.slane %v571, %v578
  %v581 = vunpack.c.l.s4 1983009808
  %v582 = vunpack.c.0.s8 %v581
  %v583 = vlaneseq
  %v584 = vshrl.u32 %v583, 7
  %v585 = vsub.s32 %v582, %v584
  %v586 = vrot.slane %v572, %v585
  %v587 = vcombine.low %v579, %v586
  %v590 = vmul.f32 %v472, %v570
  %v591 = vmul.f32 %v473, %v587
  %v592 = vadd.f32 %v470, %v590
  %v593 = vadd.f32 %v471, %v591
  %v596 = vcombine.high %v592, %v592
  %v598 = vunpack.c.l.s4 1983009808
  %v599 = vunpack.c.0.s8 %v598
  %v600 = vlaneseq
  %v601 = vshrl.u32 %v600, 7
  %v602 = vsub.s32 %v599, %v601
  %v603 = vrot.slane %v592, %v602
  %v605 = vunpack.c.l.s4 1983009808
  %v606 = vunpack.c.0.s8 %v605
  %v607 = vlaneseq
  %v608 = vshrl.u32 %v607, 7
  %v609 = vsub.s32 %v606, %v608
  %v610 = vrot.slane %v596, %v609
  %v611 = vcombine.high %v603, %v603
  %v612 = vcombine.high %v610, %v610
  %v613 = vcombine.high %v593, %v593
  %v615 = vunpack.c.l.s4 1983009808
  %v616 = vunpack.c.0.s8 %v615
  %v617 = vlaneseq
  %v618 = vshrl.u32 %v617, 7
  %v619 = vsub.s32 %v616, %v618
  %v620 = vrot.slane %v593, %v619
  %v622 = vunpack.c.l.s4 1983009808
  %v623 = vunpack.c.0.s8 %v622
  %v624 = vlaneseq
  %v625 = vshrl.u32 %v624, 7
  %v626 = vsub.s32 %v623, %v625
  %v627 = vrot.slane %v613, %v626
  %v628 = vcombine.high %v620, %v620
  %v629 = vcombine.high %v627, %v627
  %v638 = vpack.c.bf16 %v603, %v603
  %v639 = vpack.c.bf16 %v611, %v611
  %v640 = vpack.c.bf16 %v610, %v610
  %v641 = vpack.c.bf16 %v612, %v612
  %v642 = vpack.c.bf16 %v620, %v620
  %v643 = vpack.c.bf16 %v628, %v628
  %v644 = vpack.c.bf16 %v627, %v627
  %v645 = vpack.c.bf16 %v629, %v629
  %v654 = vcombine.low %v638, %v639
  %v655 = vcombine.low %v640, %v641
  %v656 = vcombine.low %v642, %v643
  %v657 = vcombine.low %v644, %v645
  %v659 = vunpack.c.l.s4 1966171168
  %v660 = vunpack.c.0.s8 %v659
  %v661 = vlaneseq
  %v662 = vshrl.u32 %v661, 7
  %v663 = vsub.s32 %v660, %v662
  %v664 = vrot.slane %v654, %v663
  %v666 = vunpack.c.l.s4 1966171168
  %v667 = vunpack.c.0.s8 %v666
  %v668 = vlaneseq
  %v669 = vshrl.u32 %v668, 7
  %v670 = vsub.s32 %v667, %v669
  %v671 = vrot.slane %v655, %v670
  %v673 = vunpack.c.l.s4 1966171168
  %v674 = vunpack.c.0.s8 %v673
  %v675 = vlaneseq
  %v676 = vshrl.u32 %v675, 7
  %v677 = vsub.s32 %v674, %v676
  %v678 = vrot.slane %v656, %v677
  %v680 = vunpack.c.l.s4 1966171168
  %v681 = vunpack.c.0.s8 %v680
  %v682 = vlaneseq
  %v683 = vshrl.u32 %v682, 7
  %v684 = vsub.s32 %v681, %v683
  %v685 = vrot.slane %v657, %v684
  %v686 = vcombine.low %v664, %v671
  %v687 = vcombine.low %v678, %v685
  %v689 = vunpack.c.l.s4 1966171168
  %v690 = vunpack.c.0.s8 %v689
  %v691 = vlaneseq
  %v692 = vshrl.u32 %v691, 7
  %v693 = vsub.s32 %v690, %v692
  %v694 = vrot.slane %v686, %v693
  %v696 = vunpack.c.l.s4 1966171168
  %v697 = vunpack.c.0.s8 %v696
  %v698 = vlaneseq
  %v699 = vshrl.u32 %v698, 7
  %v700 = vsub.s32 %v697, %v699
  %v701 = vrot.slane %v687, %v700
  %v702 = vcombine.low %v694, %v701
  %704 = vst [vmem:[%s6] sm:$0xff] %v702
  %v705 = vmul.f32 %v592, 0.5
  %v706 = vmul.f32 %v593, 0.5
  %v707 = vadd.f32 %v705, 0.0
  %v708 = vadd.f32 %v706, 0.0
  %vm709 = vcmp.ge.f32.partialorder %v707, 1.0
  %vm710 = vcmp.ge.f32.partialorder %v708, 1.0
  %v711 = vsel %vm709, 1, 0
  %v712 = vsel %vm710, 1, 0
  %v713 = vcvt.s32.f32 %v711
  %v714 = vcvt.s32.f32 %v712
  %v717 = vcombine.high %v713, %v713
  %v719 = vunpack.c.l.s4 1983009808
  %v720 = vunpack.c.0.s8 %v719
  %v721 = vlaneseq
  %v722 = vshrl.u32 %v721, 7
  %v723 = vsub.s32 %v720, %v722
  %v724 = vrot.slane %v713, %v723
  %v726 = vunpack.c.l.s4 1983009808
  %v727 = vunpack.c.0.s8 %v726
  %v728 = vlaneseq
  %v729 = vshrl.u32 %v728, 7
  %v730 = vsub.s32 %v727, %v729
  %v731 = vrot.slane %v717, %v730
  %v732 = vcombine.high %v724, %v724
  %v733 = vcombine.high %v731, %v731
  %v734 = vcombine.high %v714, %v714
  %v736 = vunpack.c.l.s4 1983009808
  %v737 = vunpack.c.0.s8 %v736
  %v738 = vlaneseq
  %v739 = vshrl.u32 %v738, 7
  %v740 = vsub.s32 %v737, %v739
  %v741 = vrot.slane %v714, %v740
  %v743 = vunpack.c.l.s4 1983009808
  %v744 = vunpack.c.0.s8 %v743
  %v745 = vlaneseq
  %v746 = vshrl.u32 %v745, 7
  %v747 = vsub.s32 %v744, %v746
  %v748 = vrot.slane %v734, %v747
  %v749 = vcombine.high %v741, %v741
  %v750 = vcombine.high %v748, %v748
  %v759 = vpack.c.bf16 %v724, %v724
  %v760 = vpack.c.bf16 %v732, %v732
  %v761 = vpack.c.bf16 %v731, %v731
  %v762 = vpack.c.bf16 %v733, %v733
  %v763 = vpack.c.bf16 %v741, %v741
  %v764 = vpack.c.bf16 %v749, %v749
  %v765 = vpack.c.bf16 %v748, %v748
  %v766 = vpack.c.bf16 %v750, %v750
  %v775 = vcombine.low %v759, %v760
  %v776 = vcombine.low %v761, %v762
  %v777 = vcombine.low %v763, %v764
  %v778 = vcombine.low %v765, %v766
  %v780 = vunpack.c.l.s4 1966171168
  %v781 = vunpack.c.0.s8 %v780
  %v782 = vlaneseq
  %v783 = vshrl.u32 %v782, 7
  %v784 = vsub.s32 %v781, %v783
  %v785 = vrot.slane %v775, %v784
  %v787 = vunpack.c.l.s4 1966171168
  %v788 = vunpack.c.0.s8 %v787
  %v789 = vlaneseq
  %v790 = vshrl.u32 %v789, 7
  %v791 = vsub.s32 %v788, %v790
  %v792 = vrot.slane %v776, %v791
  %v794 = vunpack.c.l.s4 1966171168
  %v795 = vunpack.c.0.s8 %v794
  %v796 = vlaneseq
  %v797 = vshrl.u32 %v796, 7
  %v798 = vsub.s32 %v795, %v797
  %v799 = vrot.slane %v777, %v798
  %v801 = vunpack.c.l.s4 1966171168
  %v802 = vunpack.c.0.s8 %v801
  %v803 = vlaneseq
  %v804 = vshrl.u32 %v803, 7
  %v805 = vsub.s32 %v802, %v804
  %v806 = vrot.slane %v778, %v805
  %v807 = vcombine.low %v785, %v792
  %v808 = vcombine.low %v799, %v806
  %v810 = vunpack.c.l.s4 1966171168
  %v811 = vunpack.c.0.s8 %v810
  %v812 = vlaneseq
  %v813 = vshrl.u32 %v812, 7
  %v814 = vsub.s32 %v811, %v813
  %v815 = vrot.slane %v807, %v814
  %v817 = vunpack.c.l.s4 1966171168
  %v818 = vunpack.c.0.s8 %v817
  %v819 = vlaneseq
  %v820 = vshrl.u32 %v819, 7
  %v821 = vsub.s32 %v818, %v820
  %v822 = vrot.slane %v808, %v821
  %v823 = vcombine.low %v815, %v822
  %825 = vst [vmem:[%s7] sm:$0xff] %v823
  %v826 = vsel %vm709, 0.0, %v707
  %v827 = vsel %vm710, 0.0, %v708
  %s828 = scalar_lea.vmem %s2, 8
  %v829 = vld [vmem:[%s828] sm:$0xff]
  %v830 = vunpack.c.l.bf16 %v829
  %v831 = vunpack.c.h.bf16 %v829
  %v832 = vmul.f32 %v830, %v133
  %v833 = vmul.f32 %v831, %v150
  %v834 = vadd.f32 %v832, %v204
  %v835 = vadd.f32 %v833, %v221
  %s836 = scalar_lea.vmem %s3, 8
  %v837 = vld [vmem:[%s836] sm:$0xff]
  %v838 = vunpack.c.l.bf16 %v837
  %v839 = vunpack.c.h.bf16 %v837
  %v840 = vmul.f32 %v838, %v325
  %v841 = vmul.f32 %v839, %v342
  %v842 = vadd.f32 %v834, %v840
  %v843 = vadd.f32 %v835, %v841
  %s844 = scalar_lea.vmem %s4, 8
  %v845 = vld [vmem:[%s844] sm:$0xff]
  %v846 = vunpack.c.l.bf16 %v845
  %v847 = vunpack.c.h.bf16 %v845
  %v848 = vmul.f32 %v846, %v448
  %v849 = vmul.f32 %v847, %v465
  %v850 = vadd.f32 %v842, %v848
  %v851 = vadd.f32 %v843, %v849
  %s852 = scalar_lea.vmem %s5, 16
  %v853 = vld [vmem:[%s852] sm:$0xff]
  %v854 = vld [vmem:[%s852 + $0x8] sm:$0xff]
  %v855 = vmul.f32 %v853, %v570
  %v856 = vmul.f32 %v854, %v587
  %v857 = vadd.f32 %v850, %v855
  %v858 = vadd.f32 %v851, %v856
  %v861 = vcombine.high %v857, %v857
  %v863 = vunpack.c.l.s4 1983009808
  %v864 = vunpack.c.0.s8 %v863
  %v865 = vlaneseq
  %v866 = vshrl.u32 %v865, 7
  %v867 = vsub.s32 %v864, %v866
  %v868 = vrot.slane %v857, %v867
  %v870 = vunpack.c.l.s4 1983009808
  %v871 = vunpack.c.0.s8 %v870
  %v872 = vlaneseq
  %v873 = vshrl.u32 %v872, 7
  %v874 = vsub.s32 %v871, %v873
  %v875 = vrot.slane %v861, %v874
  %v876 = vcombine.high %v868, %v868
  %v877 = vcombine.high %v875, %v875
  %v878 = vcombine.high %v858, %v858
  %v880 = vunpack.c.l.s4 1983009808
  %v881 = vunpack.c.0.s8 %v880
  %v882 = vlaneseq
  %v883 = vshrl.u32 %v882, 7
  %v884 = vsub.s32 %v881, %v883
  %v885 = vrot.slane %v858, %v884
  %v887 = vunpack.c.l.s4 1983009808
  %v888 = vunpack.c.0.s8 %v887
  %v889 = vlaneseq
  %v890 = vshrl.u32 %v889, 7
  %v891 = vsub.s32 %v888, %v890
  %v892 = vrot.slane %v878, %v891
  %v893 = vcombine.high %v885, %v885
  %v894 = vcombine.high %v892, %v892
  %v903 = vpack.c.bf16 %v868, %v868
  %v904 = vpack.c.bf16 %v876, %v876
  %v905 = vpack.c.bf16 %v875, %v875
  %v906 = vpack.c.bf16 %v877, %v877
  %v907 = vpack.c.bf16 %v885, %v885
  %v908 = vpack.c.bf16 %v893, %v893
  %v909 = vpack.c.bf16 %v892, %v892
  %v910 = vpack.c.bf16 %v894, %v894
  %v919 = vcombine.low %v903, %v904
  %v920 = vcombine.low %v905, %v906
  %v921 = vcombine.low %v907, %v908
  %v922 = vcombine.low %v909, %v910
  %v924 = vunpack.c.l.s4 1966171168
  %v925 = vunpack.c.0.s8 %v924
  %v926 = vlaneseq
  %v927 = vshrl.u32 %v926, 7
  %v928 = vsub.s32 %v925, %v927
  %v929 = vrot.slane %v919, %v928
  %v931 = vunpack.c.l.s4 1966171168
  %v932 = vunpack.c.0.s8 %v931
  %v933 = vlaneseq
  %v934 = vshrl.u32 %v933, 7
  %v935 = vsub.s32 %v932, %v934
  %v936 = vrot.slane %v920, %v935
  %v938 = vunpack.c.l.s4 1966171168
  %v939 = vunpack.c.0.s8 %v938
  %v940 = vlaneseq
  %v941 = vshrl.u32 %v940, 7
  %v942 = vsub.s32 %v939, %v941
  %v943 = vrot.slane %v921, %v942
  %v945 = vunpack.c.l.s4 1966171168
  %v946 = vunpack.c.0.s8 %v945
  %v947 = vlaneseq
  %v948 = vshrl.u32 %v947, 7
  %v949 = vsub.s32 %v946, %v948
  %v950 = vrot.slane %v922, %v949
  %v951 = vcombine.low %v929, %v936
  %v952 = vcombine.low %v943, %v950
  %v954 = vunpack.c.l.s4 1966171168
  %v955 = vunpack.c.0.s8 %v954
  %v956 = vlaneseq
  %v957 = vshrl.u32 %v956, 7
  %v958 = vsub.s32 %v955, %v957
  %v959 = vrot.slane %v951, %v958
  %v961 = vunpack.c.l.s4 1966171168
  %v962 = vunpack.c.0.s8 %v961
  %v963 = vlaneseq
  %v964 = vshrl.u32 %v963, 7
  %v965 = vsub.s32 %v962, %v964
  %v966 = vrot.slane %v952, %v965
  %v967 = vcombine.low %v959, %v966
  %s969 = scalar_lea.vmem %s6, 8
  %970 = vst [vmem:[%s969] sm:$0xff] %v967
  %v971 = vsub.f32 %v857, %v826
  %v972 = vsub.f32 %v858, %v827
  %v973 = vmul.f32 %v971, 0.5
  %v974 = vmul.f32 %v972, 0.5
  %v975 = vadd.f32 %v826, %v973
  %v976 = vadd.f32 %v827, %v974
  %vm977 = vcmp.ge.f32.partialorder %v975, 1.0
  %vm978 = vcmp.ge.f32.partialorder %v976, 1.0
  %v979 = vsel %vm977, 1, 0
  %v980 = vsel %vm978, 1, 0
  %v981 = vcvt.s32.f32 %v979
  %v982 = vcvt.s32.f32 %v980
  %v985 = vcombine.high %v981, %v981
  %v987 = vunpack.c.l.s4 1983009808
  %v988 = vunpack.c.0.s8 %v987
  %v989 = vlaneseq
  %v990 = vshrl.u32 %v989, 7
  %v991 = vsub.s32 %v988, %v990
  %v992 = vrot.slane %v981, %v991
  %v994 = vunpack.c.l.s4 1983009808
  %v995 = vunpack.c.0.s8 %v994
  %v996 = vlaneseq
  %v997 = vshrl.u32 %v996, 7
  %v998 = vsub.s32 %v995, %v997
  %v999 = vrot.slane %v985, %v998
  %v1000 = vcombine.high %v992, %v992
  %v1001 = vcombine.high %v999, %v999
  %v1002 = vcombine.high %v982, %v982
  %v1004 = vunpack.c.l.s4 1983009808
  %v1005 = vunpack.c.0.s8 %v1004
  %v1006 = vlaneseq
  %v1007 = vshrl.u32 %v1006, 7
  %v1008 = vsub.s32 %v1005, %v1007
  %v1009 = vrot.slane %v982, %v1008
  %v1011 = vunpack.c.l.s4 1983009808
  %v1012 = vunpack.c.0.s8 %v1011
  %v1013 = vlaneseq
  %v1014 = vshrl.u32 %v1013, 7
  %v1015 = vsub.s32 %v1012, %v1014
  %v1016 = vrot.slane %v1002, %v1015
  %v1017 = vcombine.high %v1009, %v1009
  %v1018 = vcombine.high %v1016, %v1016
  %v1027 = vpack.c.bf16 %v992, %v992
  %v1028 = vpack.c.bf16 %v1000, %v1000
  %v1029 = vpack.c.bf16 %v999, %v999
  %v1030 = vpack.c.bf16 %v1001, %v1001
  %v1031 = vpack.c.bf16 %v1009, %v1009
  %v1032 = vpack.c.bf16 %v1017, %v1017
  %v1033 = vpack.c.bf16 %v1016, %v1016
  %v1034 = vpack.c.bf16 %v1018, %v1018
  %v1043 = vcombine.low %v1027, %v1028
  %v1044 = vcombine.low %v1029, %v1030
  %v1045 = vcombine.low %v1031, %v1032
  %v1046 = vcombine.low %v1033, %v1034
  %v1048 = vunpack.c.l.s4 1966171168
  %v1049 = vunpack.c.0.s8 %v1048
  %v1050 = vlaneseq
  %v1051 = vshrl.u32 %v1050, 7
  %v1052 = vsub.s32 %v1049, %v1051
  %v1053 = vrot.slane %v1043, %v1052
  %v1055 = vunpack.c.l.s4 1966171168
  %v1056 = vunpack.c.0.s8 %v1055
  %v1057 = vlaneseq
  %v1058 = vshrl.u32 %v1057, 7
  %v1059 = vsub.s32 %v1056, %v1058
  %v1060 = vrot.slane %v1044, %v1059
  %v1062 = vunpack.c.l.s4 1966171168
  %v1063 = vunpack.c.0.s8 %v1062
  %v1064 = vlaneseq
  %v1065 = vshrl.u32 %v1064, 7
  %v1066 = vsub.s32 %v1063, %v1065
  %v1067 = vrot.slane %v1045, %v1066
  %v1069 = vunpack.c.l.s4 1966171168
  %v1070 = vunpack.c.0.s8 %v1069
  %v1071 = vlaneseq
  %v1072 = vshrl.u32 %v1071, 7
  %v1073 = vsub.s32 %v1070, %v1072
  %v1074 = vrot.slane %v1046, %v1073
  %v1075 = vcombine.low %v1053, %v1060
  %v1076 = vcombine.low %v1067, %v1074
  %v1078 = vunpack.c.l.s4 1966171168
  %v1079 = vunpack.c.0.s8 %v1078
  %v1080 = vlaneseq
  %v1081 = vshrl.u32 %v1080, 7
  %v1082 = vsub.s32 %v1079, %v1081
  %v1083 = vrot.slane %v1075, %v1082
  %v1085 = vunpack.c.l.s4 1966171168
  %v1086 = vunpack.c.0.s8 %v1085
  %v1087 = vlaneseq
  %v1088 = vshrl.u32 %v1087, 7
  %v1089 = vsub.s32 %v1086, %v1088
  %v1090 = vrot.slane %v1076, %v1089
  %v1091 = vcombine.low %v1083, %v1090
  %s1093 = scalar_lea.vmem %s7, 8
  %1094 = vst [vmem:[%s1093] sm:$0xff] %v1091
  // Predicated region
  $region26: #{_lambda_.17} parent=0 // pred_check
    _
  $region27: #{_lambda_.17} parent=0 // pred_check_branch
    %1096 = sbr.rel (0) target = $region29
  $region28: #{_lambda_.17} parent=0 // pred_region
    _
  $region29: #{_lambda_.17} parent=0 // pred_fallthru
    _
  // Predicated region
  $region30: #{_lambda_.17} parent=0 // pred_check
    _
  $region31: #{_lambda_.17} parent=0 // pred_check_branch
    %1098 = sbr.rel (0) target = $region33
  $region32: #{_lambda_.17} parent=0 // pred_region
    _
  $region33: #{_lambda_.17} parent=0 // pred_fallthru
    _
  // Predicated region
  $region34: #{_lambda_.17} parent=0 // pred_check
    _
  $region35: #{_lambda_.17} parent=0 // pred_check_branch
    %1100 = sbr.rel (0) target = $region37
  $region36: #{_lambda_.17} parent=0 // pred_region
    _
  $region37: #{_lambda_.17} parent=0 // pred_fallthru
    _
  // Predicated region
  $region38: #{_lambda_.17} parent=0 // pred_check
    _
  $region39: #{_lambda_.17} parent=0 // pred_check_branch
    %1102 = sbr.rel (0) target = $region41
  $region40: #{_lambda_.17} parent=0 // pred_region
    _
  $region41: #{_lambda_.17} parent=0 // pred_fallthru
    _

// kernel: _lambda_.18
$region0: #{_lambda_.18}
  #allocation0 [shape = 'u32[]', space=smem, size = 0x4, offset = 0x4, fixed_abs, tag = 'smem constant byte address 0x4 - core index']
  #allocation1 [shape = 'u32[144,128]{1,0:T(1,128)}', space=vmem, size = 0x12000, scoped, tag = 'internal scratch']
  %s0 = inlined_call_operand.vmem [shape: bf16[16,256], index: 0, kind: input, shape index: {}]
  %s1 = inlined_call_operand.vmem [shape: bf16[256,1024], index: 1, kind: input, shape index: {}]
  %s2 = inlined_call_operand.vmem [shape: bf16[16,1024], index: 2, kind: output, shape index: {0}]
  %s3 = inlined_call_operand.vmem [shape: f32[1,2,1024], index: 3, kind: output, shape index: {1}]
  %4 = xla_tuple %s2, %s3
  %s5 = sld [smem:[#allocation0]]
  $region26: #{_lambda_.18} parent=0
    _
  %s7 = ssub.s32 1, %s5
  %s8 = scalar_select 0, %s7, %s5
  // Predicated region
  $region2: #{_lambda_.18} parent=0 // pred_check
    _
  $region3: #{_lambda_.18} parent=0 // pred_check_branch
    %10 = sbr.rel (0) target = $region5
  $region4: #{_lambda_.18} parent=0 // pred_region
    _
  $region5: #{_lambda_.18} parent=0 // pred_fallthru
    _
  // Predicated region
  $region6: #{_lambda_.18} parent=0 // pred_check
    _
  $region7: #{_lambda_.18} parent=0 // pred_check_branch
    %12 = sbr.rel (0) target = $region9
  $region8: #{_lambda_.18} parent=0 // pred_region
    _
  $region9: #{_lambda_.18} parent=0 // pred_fallthru
    _
  %v13 = vld [vmem:[%s0] sm:$0xff]
  %v14 = vld [vmem:[%s0 + $0x8] sm:$0xff]
  %v15 = vld [vmem:[%s1] sm:$0xff]
  %v16 = vld [vmem:[%s1 + $0x8] sm:$0xff]
  %v17 = vld [vmem:[%s1 + $0x10] sm:$0xff]
  %v18 = vld [vmem:[%s1 + $0x18] sm:$0xff]
  %v19 = vld [vmem:[%s1 + $0x20] sm:$0xff]
  %v20 = vld [vmem:[%s1 + $0x28] sm:$0xff]
  %v21 = vld [vmem:[%s1 + $0x30] sm:$0xff]
  %v22 = vld [vmem:[%s1 + $0x38] sm:$0xff]
  %v23 = vld [vmem:[%s1 + $0x40] sm:$0xff]
  %v24 = vld [vmem:[%s1 + $0x48] sm:$0xff]
  %v25 = vld [vmem:[%s1 + $0x50] sm:$0xff]
  %v26 = vld [vmem:[%s1 + $0x58] sm:$0xff]
  %v27 = vld [vmem:[%s1 + $0x60] sm:$0xff]
  %v28 = vld [vmem:[%s1 + $0x68] sm:$0xff]
  %v29 = vld [vmem:[%s1 + $0x70] sm:$0xff]
  %v30 = vld [vmem:[%s1 + $0x78] sm:$0xff]
  %v31 = vld [vmem:[%s1 + $0x80] sm:$0xff]
  %v32 = vld [vmem:[%s1 + $0x88] sm:$0xff]
  %v33 = vld [vmem:[%s1 + $0x90] sm:$0xff]
  %v34 = vld [vmem:[%s1 + $0x98] sm:$0xff]
  %v35 = vld [vmem:[%s1 + $0xa0] sm:$0xff]
  %v36 = vld [vmem:[%s1 + $0xa8] sm:$0xff]
  %v37 = vld [vmem:[%s1 + $0xb0] sm:$0xff]
  %v38 = vld [vmem:[%s1 + $0xb8] sm:$0xff]
  %v39 = vld [vmem:[%s1 + $0xc0] sm:$0xff]
  %v40 = vld [vmem:[%s1 + $0xc8] sm:$0xff]
  %v41 = vld [vmem:[%s1 + $0xd0] sm:$0xff]
  %v42 = vld [vmem:[%s1 + $0xd8] sm:$0xff]
  %v43 = vld [vmem:[%s1 + $0xe0] sm:$0xff]
  %v44 = vld [vmem:[%s1 + $0xe8] sm:$0xff]
  %v45 = vld [vmem:[%s1 + $0xf0] sm:$0xff]
  %v46 = vld [vmem:[%s1 + $0xf8] sm:$0xff]
  %v47 = vld [vmem:[%s1 + $0x100] sm:$0xff]
  %v48 = vld [vmem:[%s1 + $0x108] sm:$0xff]
  %v49 = vld [vmem:[%s1 + $0x110] sm:$0xff]
  %v50 = vld [vmem:[%s1 + $0x118] sm:$0xff]
  %v51 = vld [vmem:[%s1 + $0x120] sm:$0xff]
  %v52 = vld [vmem:[%s1 + $0x128] sm:$0xff]
  %v53 = vld [vmem:[%s1 + $0x130] sm:$0xff]
  %v54 = vld [vmem:[%s1 + $0x138] sm:$0xff]
  %v55 = vld [vmem:[%s1 + $0x140] sm:$0xff]
  %v56 = vld [vmem:[%s1 + $0x148] sm:$0xff]
  %v57 = vld [vmem:[%s1 + $0x150] sm:$0xff]
  %v58 = vld [vmem:[%s1 + $0x158] sm:$0xff]
  %v59 = vld [vmem:[%s1 + $0x160] sm:$0xff]
  %v60 = vld [vmem:[%s1 + $0x168] sm:$0xff]
  %v61 = vld [vmem:[%s1 + $0x170] sm:$0xff]
  %v62 = vld [vmem:[%s1 + $0x178] sm:$0xff]
  %v63 = vld [vmem:[%s1 + $0x180] sm:$0xff]
  %v64 = vld [vmem:[%s1 + $0x188] sm:$0xff]
  %v65 = vld [vmem:[%s1 + $0x190] sm:$0xff]
  %v66 = vld [vmem:[%s1 + $0x198] sm:$0xff]
  %v67 = vld [vmem:[%s1 + $0x1a0] sm:$0xff]
  %v68 = vld [vmem:[%s1 + $0x1a8] sm:$0xff]
  %v69 = vld [vmem:[%s1 + $0x1b0] sm:$0xff]
  %v70 = vld [vmem:[%s1 + $0x1b8] sm:$0xff]
  %v71 = vld [vmem:[%s1 + $0x1c0] sm:$0xff]
  %v72 = vld [vmem:[%s1 + $0x1c8] sm:$0xff]
  %v73 = vld [vmem:[%s1 + $0x1d0] sm:$0xff]
  %v74 = vld [vmem:[%s1 + $0x1d8] sm:$0xff]
  %v75 = vld [vmem:[%s1 + $0x1e0] sm:$0xff]
  %v76 = vld [vmem:[%s1 + $0x1e8] sm:$0xff]
  %v77 = vld [vmem:[%s1 + $0x1f0] sm:$0xff]
  %v78 = vld [vmem:[%s1 + $0x1f8] sm:$0xff]
  %v79 = vld [vmem:[%s1 + $0x200] sm:$0xff]
  %v80 = vld [vmem:[%s1 + $0x208] sm:$0xff]
  %v81 = vld [vmem:[%s1 + $0x210] sm:$0xff]
  %v82 = vld [vmem:[%s1 + $0x218] sm:$0xff]
  %v83 = vld [vmem:[%s1 + $0x220] sm:$0xff]
  %v84 = vld [vmem:[%s1 + $0x228] sm:$0xff]
  %v85 = vld [vmem:[%s1 + $0x230] sm:$0xff]
  %v86 = vld [vmem:[%s1 + $0x238] sm:$0xff]
  %v87 = vld [vmem:[%s1 + $0x240] sm:$0xff]
  %v88 = vld [vmem:[%s1 + $0x248] sm:$0xff]
  %v89 = vld [vmem:[%s1 + $0x250] sm:$0xff]
  %v90 = vld [vmem:[%s1 + $0x258] sm:$0xff]
  %v91 = vld [vmem:[%s1 + $0x260] sm:$0xff]
  %v92 = vld [vmem:[%s1 + $0x268] sm:$0xff]
  %v93 = vld [vmem:[%s1 + $0x270] sm:$0xff]
  %v94 = vld [vmem:[%s1 + $0x278] sm:$0xff]
  %v95 = vld [vmem:[%s1 + $0x280] sm:$0xff]
  %v96 = vld [vmem:[%s1 + $0x288] sm:$0xff]
  %v97 = vld [vmem:[%s1 + $0x290] sm:$0xff]
  %v98 = vld [vmem:[%s1 + $0x298] sm:$0xff]
  %v99 = vld [vmem:[%s1 + $0x2a0] sm:$0xff]
  %v100 = vld [vmem:[%s1 + $0x2a8] sm:$0xff]
  %v101 = vld [vmem:[%s1 + $0x2b0] sm:$0xff]
  %v102 = vld [vmem:[%s1 + $0x2b8] sm:$0xff]
  %v103 = vld [vmem:[%s1 + $0x2c0] sm:$0xff]
  %v104 = vld [vmem:[%s1 + $0x2c8] sm:$0xff]
  %v105 = vld [vmem:[%s1 + $0x2d0] sm:$0xff]
  %v106 = vld [vmem:[%s1 + $0x2d8] sm:$0xff]
  %v107 = vld [vmem:[%s1 + $0x2e0] sm:$0xff]
  %v108 = vld [vmem:[%s1 + $0x2e8] sm:$0xff]
  %v109 = vld [vmem:[%s1 + $0x2f0] sm:$0xff]
  %v110 = vld [vmem:[%s1 + $0x2f8] sm:$0xff]
  %v111 = vld [vmem:[%s1 + $0x300] sm:$0xff]
  %v112 = vld [vmem:[%s1 + $0x308] sm:$0xff]
  %v113 = vld [vmem:[%s1 + $0x310] sm:$0xff]
  %v114 = vld [vmem:[%s1 + $0x318] sm:$0xff]
  %v115 = vld [vmem:[%s1 + $0x320] sm:$0xff]
  %v116 = vld [vmem:[%s1 + $0x328] sm:$0xff]
  %v117 = vld [vmem:[%s1 + $0x330] sm:$0xff]
  %v118 = vld [vmem:[%s1 + $0x338] sm:$0xff]
  %v119 = vld [vmem:[%s1 + $0x340] sm:$0xff]
  %v120 = vld [vmem:[%s1 + $0x348] sm:$0xff]
  %v121 = vld [vmem:[%s1 + $0x350] sm:$0xff]
  %v122 = vld [vmem:[%s1 + $0x358] sm:$0xff]
  %v123 = vld [vmem:[%s1 + $0x360] sm:$0xff]
  %v124 = vld [vmem:[%s1 + $0x368] sm:$0xff]
  %v125 = vld [vmem:[%s1 + $0x370] sm:$0xff]
  %v126 = vld [vmem:[%s1 + $0x378] sm:$0xff]
  %v127 = vld [vmem:[%s1 + $0x380] sm:$0xff]
  %v128 = vld [vmem:[%s1 + $0x388] sm:$0xff]
  %v129 = vld [vmem:[%s1 + $0x390] sm:$0xff]
  %v130 = vld [vmem:[%s1 + $0x398] sm:$0xff]
  %v131 = vld [vmem:[%s1 + $0x3a0] sm:$0xff]
  %v132 = vld [vmem:[%s1 + $0x3a8] sm:$0xff]
  %v133 = vld [vmem:[%s1 + $0x3b0] sm:$0xff]
  %v134 = vld [vmem:[%s1 + $0x3b8] sm:$0xff]
  %v135 = vld [vmem:[%s1 + $0x3c0] sm:$0xff]
  %v136 = vld [vmem:[%s1 + $0x3c8] sm:$0xff]
  %v137 = vld [vmem:[%s1 + $0x3d0] sm:$0xff]
  %v138 = vld [vmem:[%s1 + $0x3d8] sm:$0xff]
  %v139 = vld [vmem:[%s1 + $0x3e0] sm:$0xff]
  %v140 = vld [vmem:[%s1 + $0x3e8] sm:$0xff]
  %v141 = vld [vmem:[%s1 + $0x3f0] sm:$0xff]
  %v142 = vld [vmem:[%s1 + $0x3f8] sm:$0xff]
  %v145 = vunpack.c.l.b16 %v13
  %v146 = vunpack.c.h.b16 %v13
  %v147 = vunpack.c.l.b16 %v14
  %v148 = vunpack.c.h.b16 %v14
  %v149 = vpack.c.b16 %v147, %v145
  %v150 = vpack.c.b16 %v148, %v146
  %v281 = vunpack.c.l.b16 %v15
  %v282 = vunpack.c.h.b16 %v15
  %v283 = vunpack.c.l.b16 %v16
  %v284 = vunpack.c.h.b16 %v16
  %v285 = vunpack.c.l.b16 %v17
  %v286 = vunpack.c.h.b16 %v17
  %v287 = vunpack.c.l.b16 %v18
  %v288 = vunpack.c.h.b16 %v18
  %v289 = vunpack.c.l.b16 %v19
  %v290 = vunpack.c.h.b16 %v19
  %v291 = vunpack.c.l.b16 %v20
  %v292 = vunpack.c.h.b16 %v20
  %v293 = vunpack.c.l.b16 %v21
  %v294 = vunpack.c.h.b16 %v21
  %v295 = vunpack.c.l.b16 %v22
  %v296 = vunpack.c.h.b16 %v22
  %v297 = vunpack.c.l.b16 %v23
  %v298 = vunpack.c.h.b16 %v23
  %v299 = vunpack.c.l.b16 %v24
  %v300 = vunpack.c.h.b16 %v24
  %v301 = vunpack.c.l.b16 %v25
  %v302 = vunpack.c.h.b16 %v25
  %v303 = vunpack.c.l.b16 %v26
  %v304 = vunpack.c.h.b16 %v26
  %v305 = vunpack.c.l.b16 %v27
  %v306 = vunpack.c.h.b16 %v27
  %v307 = vunpack.c.l.b16 %v28
  %v308 = vunpack.c.h.b16 %v28
  %v309 = vunpack.c.l.b16 %v29
  %v310 = vunpack.c.h.b16 %v29
  %v311 = vunpack.c.l.b16 %v30
  %v312 = vunpack.c.h.b16 %v30
  %v313 = vunpack.c.l.b16 %v31
  %v314 = vunpack.c.h.b16 %v31
  %v315 = vunpack.c.l.b16 %v32
  %v316 = vunpack.c.h.b16 %v32
  %v317 = vunpack.c.l.b16 %v33
  %v318 = vunpack.c.h.b16 %v33
  %v319 = vunpack.c.l.b16 %v34
  %v320 = vunpack.c.h.b16 %v34
  %v321 = vunpack.c.l.b16 %v35
  %v322 = vunpack.c.h.b16 %v35
  %v323 = vunpack.c.l.b16 %v36
  %v324 = vunpack.c.h.b16 %v36
  %v325 = vunpack.c.l.b16 %v37
  %v326 = vunpack.c.h.b16 %v37
  %v327 = vunpack.c.l.b16 %v38
  %v328 = vunpack.c.h.b16 %v38
  %v329 = vunpack.c.l.b16 %v39
  %v330 = vunpack.c.h.b16 %v39
  %v331 = vunpack.c.l.b16 %v40
  %v332 = vunpack.c.h.b16 %v40
  %v333 = vunpack.c.l.b16 %v41
  %v334 = vunpack.c.h.b16 %v41
  %v335 = vunpack.c.l.b16 %v42
  %v336 = vunpack.c.h.b16 %v42
  %v337 = vunpack.c.l.b16 %v43
  %v338 = vunpack.c.h.b16 %v43
  %v339 = vunpack.c.l.b16 %v44
  %v340 = vunpack.c.h.b16 %v44
  %v341 = vunpack.c.l.b16 %v45
  %v342 = vunpack.c.h.b16 %v45
  %v343 = vunpack.c.l.b16 %v46
  %v344 = vunpack.c.h.b16 %v46
  %v345 = vunpack.c.l.b16 %v47
  %v346 = vunpack.c.h.b16 %v47
  %v347 = vunpack.c.l.b16 %v48
  %v348 = vunpack.c.h.b16 %v48
  %v349 = vunpack.c.l.b16 %v49
  %v350 = vunpack.c.h.b16 %v49
  %v351 = vunpack.c.l.b16 %v50
  %v352 = vunpack.c.h.b16 %v50
  %v353 = vunpack.c.l.b16 %v51
  %v354 = vunpack.c.h.b16 %v51
  %v355 = vunpack.c.l.b16 %v52
  %v356 = vunpack.c.h.b16 %v52
  %v357 = vunpack.c.l.b16 %v53
  %v358 = vunpack.c.h.b16 %v53
  %v359 = vunpack.c.l.b16 %v54
  %v360 = vunpack.c.h.b16 %v54
  %v361 = vunpack.c.l.b16 %v55
  %v362 = vunpack.c.h.b16 %v55
  %v363 = vunpack.c.l.b16 %v56
  %v364 = vunpack.c.h.b16 %v56
  %v365 = vunpack.c.l.b16 %v57
  %v366 = vunpack.c.h.b16 %v57
  %v367 = vunpack.c.l.b16 %v58
  %v368 = vunpack.c.h.b16 %v58
  %v369 = vunpack.c.l.b16 %v59
  %v370 = vunpack.c.h.b16 %v59
  %v371 = vunpack.c.l.b16 %v60
  %v372 = vunpack.c.h.b16 %v60
  %v373 = vunpack.c.l.b16 %v61
  %v374 = vunpack.c.h.b16 %v61
  %v375 = vunpack.c.l.b16 %v62
  %v376 = vunpack.c.h.b16 %v62
  %v377 = vunpack.c.l.b16 %v63
  %v378 = vunpack.c.h.b16 %v63
  %v379 = vunpack.c.l.b16 %v64
  %v380 = vunpack.c.h.b16 %v64
  %v381 = vunpack.c.l.b16 %v65
  %v382 = vunpack.c.h.b16 %v65
  %v383 = vunpack.c.l.b16 %v66
  %v384 = vunpack.c.h.b16 %v66
  %v385 = vunpack.c.l.b16 %v67
  %v386 = vunpack.c.h.b16 %v67
  %v387 = vunpack.c.l.b16 %v68
  %v388 = vunpack.c.h.b16 %v68
  %v389 = vunpack.c.l.b16 %v69
  %v390 = vunpack.c.h.b16 %v69
  %v391 = vunpack.c.l.b16 %v70
  %v392 = vunpack.c.h.b16 %v70
  %v393 = vunpack.c.l.b16 %v71
  %v394 = vunpack.c.h.b16 %v71
  %v395 = vunpack.c.l.b16 %v72
  %v396 = vunpack.c.h.b16 %v72
  %v397 = vunpack.c.l.b16 %v73
  %v398 = vunpack.c.h.b16 %v73
  %v399 = vunpack.c.l.b16 %v74
  %v400 = vunpack.c.h.b16 %v74
  %v401 = vunpack.c.l.b16 %v75
  %v402 = vunpack.c.h.b16 %v75
  %v403 = vunpack.c.l.b16 %v76
  %v404 = vunpack.c.h.b16 %v76
  %v405 = vunpack.c.l.b16 %v77
  %v406 = vunpack.c.h.b16 %v77
  %v407 = vunpack.c.l.b16 %v78
  %v408 = vunpack.c.h.b16 %v78
  %v409 = vunpack.c.l.b16 %v79
  %v410 = vunpack.c.h.b16 %v79
  %v411 = vunpack.c.l.b16 %v80
  %v412 = vunpack.c.h.b16 %v80
  %v413 = vunpack.c.l.b16 %v81
  %v414 = vunpack.c.h.b16 %v81
  %v415 = vunpack.c.l.b16 %v82
  %v416 = vunpack.c.h.b16 %v82
  %v417 = vunpack.c.l.b16 %v83
  %v418 = vunpack.c.h.b16 %v83
  %v419 = vunpack.c.l.b16 %v84
  %v420 = vunpack.c.h.b16 %v84
  %v421 = vunpack.c.l.b16 %v85
  %v422 = vunpack.c.h.b16 %v85
  %v423 = vunpack.c.l.b16 %v86
  %v424 = vunpack.c.h.b16 %v86
  %v425 = vunpack.c.l.b16 %v87
  %v426 = vunpack.c.h.b16 %v87
  %v427 = vunpack.c.l.b16 %v88
  %v428 = vunpack.c.h.b16 %v88
  %v429 = vunpack.c.l.b16 %v89
  %v430 = vunpack.c.h.b16 %v89
  %v431 = vunpack.c.l.b16 %v90
  %v432 = vunpack.c.h.b16 %v90
  %v433 = vunpack.c.l.b16 %v91
  %v434 = vunpack.c.h.b16 %v91
  %v435 = vunpack.c.l.b16 %v92
  %v436 = vunpack.c.h.b16 %v92
  %v437 = vunpack.c.l.b16 %v93
  %v438 = vunpack.c.h.b16 %v93
  %v439 = vunpack.c.l.b16 %v94
  %v440 = vunpack.c.h.b16 %v94
  %v441 = vunpack.c.l.b16 %v95
  %v442 = vunpack.c.h.b16 %v95
  %v443 = vunpack.c.l.b16 %v96
  %v444 = vunpack.c.h.b16 %v96
  %v445 = vunpack.c.l.b16 %v97
  %v446 = vunpack.c.h.b16 %v97
  %v447 = vunpack.c.l.b16 %v98
  %v448 = vunpack.c.h.b16 %v98
  %v449 = vunpack.c.l.b16 %v99
  %v450 = vunpack.c.h.b16 %v99
  %v451 = vunpack.c.l.b16 %v100
  %v452 = vunpack.c.h.b16 %v100
  %v453 = vunpack.c.l.b16 %v101
  %v454 = vunpack.c.h.b16 %v101
  %v455 = vunpack.c.l.b16 %v102
  %v456 = vunpack.c.h.b16 %v102
  %v457 = vunpack.c.l.b16 %v103
  %v458 = vunpack.c.h.b16 %v103
  %v459 = vunpack.c.l.b16 %v104
  %v460 = vunpack.c.h.b16 %v104
  %v461 = vunpack.c.l.b16 %v105
  %v462 = vunpack.c.h.b16 %v105
  %v463 = vunpack.c.l.b16 %v106
  %v464 = vunpack.c.h.b16 %v106
  %v465 = vunpack.c.l.b16 %v107
  %v466 = vunpack.c.h.b16 %v107
  %v467 = vunpack.c.l.b16 %v108
  %v468 = vunpack.c.h.b16 %v108
  %v469 = vunpack.c.l.b16 %v109
  %v470 = vunpack.c.h.b16 %v109
  %v471 = vunpack.c.l.b16 %v110
  %v472 = vunpack.c.h.b16 %v110
  %v473 = vunpack.c.l.b16 %v111
  %v474 = vunpack.c.h.b16 %v111
  %v475 = vunpack.c.l.b16 %v112
  %v476 = vunpack.c.h.b16 %v112
  %v477 = vunpack.c.l.b16 %v113
  %v478 = vunpack.c.h.b16 %v113
  %v479 = vunpack.c.l.b16 %v114
  %v480 = vunpack.c.h.b16 %v114
  %v481 = vunpack.c.l.b16 %v115
  %v482 = vunpack.c.h.b16 %v115
  %v483 = vunpack.c.l.b16 %v116
  %v484 = vunpack.c.h.b16 %v116
  %v485 = vunpack.c.l.b16 %v117
  %v486 = vunpack.c.h.b16 %v117
  %v487 = vunpack.c.l.b16 %v118
  %v488 = vunpack.c.h.b16 %v118
  %v489 = vunpack.c.l.b16 %v119
  %v490 = vunpack.c.h.b16 %v119
  %v491 = vunpack.c.l.b16 %v120
  %v492 = vunpack.c.h.b16 %v120
  %v493 = vunpack.c.l.b16 %v121
  %v494 = vunpack.c.h.b16 %v121
  %v495 = vunpack.c.l.b16 %v122
  %v496 = vunpack.c.h.b16 %v122
  %v497 = vunpack.c.l.b16 %v123
  %v498 = vunpack.c.h.b16 %v123
  %v499 = vunpack.c.l.b16 %v124
  %v500 = vunpack.c.h.b16 %v124
  %v501 = vunpack.c.l.b16 %v125
  %v502 = vunpack.c.h.b16 %v125
  %v503 = vunpack.c.l.b16 %v126
  %v504 = vunpack.c.h.b16 %v126
  %v505 = vunpack.c.l.b16 %v127
  %v506 = vunpack.c.h.b16 %v127
  %v507 = vunpack.c.l.b16 %v128
  %v508 = vunpack.c.h.b16 %v128
  %v509 = vunpack.c.l.b16 %v129
  %v510 = vunpack.c.h.b16 %v129
  %v511 = vunpack.c.l.b16 %v130
  %v512 = vunpack.c.h.b16 %v130
  %v513 = vunpack.c.l.b16 %v131
  %v514 = vunpack.c.h.b16 %v131
  %v515 = vunpack.c.l.b16 %v132
  %v516 = vunpack.c.h.b16 %v132
  %v517 = vunpack.c.l.b16 %v133
  %v518 = vunpack.c.h.b16 %v133
  %v519 = vunpack.c.l.b16 %v134
  %v520 = vunpack.c.h.b16 %v134
  %v521 = vunpack.c.l.b16 %v135
  %v522 = vunpack.c.h.b16 %v135
  %v523 = vunpack.c.l.b16 %v136
  %v524 = vunpack.c.h.b16 %v136
  %v525 = vunpack.c.l.b16 %v137
  %v526 = vunpack.c.h.b16 %v137
  %v527 = vunpack.c.l.b16 %v138
  %v528 = vunpack.c.h.b16 %v138
  %v529 = vunpack.c.l.b16 %v139
  %v530 = vunpack.c.h.b16 %v139
  %v531 = vunpack.c.l.b16 %v140
  %v532 = vunpack.c.h.b16 %v140
  %v533 = vunpack.c.l.b16 %v141
  %v534 = vunpack.c.h.b16 %v141
  %v535 = vunpack.c.l.b16 %v142
  %v536 = vunpack.c.h.b16 %v142
  %v537 = vpack.c.b16 %v289, %v281
  %v538 = vpack.c.b16 %v290, %v282
  %v539 = vpack.c.b16 %v291, %v283
  %v540 = vpack.c.b16 %v292, %v284
  %v541 = vpack.c.b16 %v293, %v285
  %v542 = vpack.c.b16 %v294, %v286
  %v543 = vpack.c.b16 %v295, %v287
  %v544 = vpack.c.b16 %v296, %v288
  %v545 = vpack.c.b16 %v305, %v297
  %v546 = vpack.c.b16 %v306, %v298
  %v547 = vpack.c.b16 %v307, %v299
  %v548 = vpack.c.b16 %v308, %v300
  %v549 = vpack.c.b16 %v309, %v301
  %v550 = vpack.c.b16 %v310, %v302
  %v551 = vpack.c.b16 %v311, %v303
  %v552 = vpack.c.b16 %v312, %v304
  %v553 = vpack.c.b16 %v321, %v313
  %v554 = vpack.c.b16 %v322, %v314
  %v555 = vpack.c.b16 %v323, %v315
  %v556 = vpack.c.b16 %v324, %v316
  %v557 = vpack.c.b16 %v325, %v317
  %v558 = vpack.c.b16 %v326, %v318
  %v559 = vpack.c.b16 %v327, %v319
  %v560 = vpack.c.b16 %v328, %v320
  %v561 = vpack.c.b16 %v337, %v329
  %v562 = vpack.c.b16 %v338, %v330
  %v563 = vpack.c.b16 %v339, %v331
  %v564 = vpack.c.b16 %v340, %v332
  %v565 = vpack.c.b16 %v341, %v333
  %v566 = vpack.c.b16 %v342, %v334
  %v567 = vpack.c.b16 %v343, %v335
  %v568 = vpack.c.b16 %v344, %v336
  %v569 = vpack.c.b16 %v353, %v345
  %v570 = vpack.c.b16 %v354, %v346
  %v571 = vpack.c.b16 %v355, %v347
  %v572 = vpack.c.b16 %v356, %v348
  %v573 = vpack.c.b16 %v357, %v349
  %v574 = vpack.c.b16 %v358, %v350
  %v575 = vpack.c.b16 %v359, %v351
  %v576 = vpack.c.b16 %v360, %v352
  %v577 = vpack.c.b16 %v369, %v361
  %v578 = vpack.c.b16 %v370, %v362
  %v579 = vpack.c.b16 %v371, %v363
  %v580 = vpack.c.b16 %v372, %v364
  %v581 = vpack.c.b16 %v373, %v365
  %v582 = vpack.c.b16 %v374, %v366
  %v583 = vpack.c.b16 %v375, %v367
  %v584 = vpack.c.b16 %v376, %v368
  %v585 = vpack.c.b16 %v385, %v377
  %v586 = vpack.c.b16 %v386, %v378
  %v587 = vpack.c.b16 %v387, %v379
  %v588 = vpack.c.b16 %v388, %v380
  %v589 = vpack.c.b16 %v389, %v381
  %v590 = vpack.c.b16 %v390, %v382
  %v591 = vpack.c.b16 %v391, %v383
  %v592 = vpack.c.b16 %v392, %v384
  %v593 = vpack.c.b16 %v401, %v393
  %v594 = vpack.c.b16 %v402, %v394
  %v595 = vpack.c.b16 %v403, %v395
  %v596 = vpack.c.b16 %v404, %v396
  %v597 = vpack.c.b16 %v405, %v397
  %v598 = vpack.c.b16 %v406, %v398
  %v599 = vpack.c.b16 %v407, %v399
  %v600 = vpack.c.b16 %v408, %v400
  %v601 = vpack.c.b16 %v417, %v409
  %v602 = vpack.c.b16 %v418, %v410
  %v603 = vpack.c.b16 %v419, %v411
  %v604 = vpack.c.b16 %v420, %v412
  %v605 = vpack.c.b16 %v421, %v413
  %v606 = vpack.c.b16 %v422, %v414
  %v607 = vpack.c.b16 %v423, %v415
  %v608 = vpack.c.b16 %v424, %v416
  %v609 = vpack.c.b16 %v433, %v425
  %v610 = vpack.c.b16 %v434, %v426
  %v611 = vpack.c.b16 %v435, %v427
  %v612 = vpack.c.b16 %v436, %v428
  %v613 = vpack.c.b16 %v437, %v429
  %v614 = vpack.c.b16 %v438, %v430
  %v615 = vpack.c.b16 %v439, %v431
  %v616 = vpack.c.b16 %v440, %v432
  %v617 = vpack.c.b16 %v449, %v441
  %v618 = vpack.c.b16 %v450, %v442
  %v619 = vpack.c.b16 %v451, %v443
  %v620 = vpack.c.b16 %v452, %v444
  %v621 = vpack.c.b16 %v453, %v445
  %v622 = vpack.c.b16 %v454, %v446
  %v623 = vpack.c.b16 %v455, %v447
  %v624 = vpack.c.b16 %v456, %v448
  %v625 = vpack.c.b16 %v465, %v457
  %v626 = vpack.c.b16 %v466, %v458
  %v627 = vpack.c.b16 %v467, %v459
  %v628 = vpack.c.b16 %v468, %v460
  %v629 = vpack.c.b16 %v469, %v461
  %v630 = vpack.c.b16 %v470, %v462
  %v631 = vpack.c.b16 %v471, %v463
  %v632 = vpack.c.b16 %v472, %v464
  %v633 = vpack.c.b16 %v481, %v473
  %v634 = vpack.c.b16 %v482, %v474
  %v635 = vpack.c.b16 %v483, %v475
  %v636 = vpack.c.b16 %v484, %v476
  %v637 = vpack.c.b16 %v485, %v477
  %v638 = vpack.c.b16 %v486, %v478
  %v639 = vpack.c.b16 %v487, %v479
  %v640 = vpack.c.b16 %v488, %v480
  %v641 = vpack.c.b16 %v497, %v489
  %v642 = vpack.c.b16 %v498, %v490
  %v643 = vpack.c.b16 %v499, %v491
  %v644 = vpack.c.b16 %v500, %v492
  %v645 = vpack.c.b16 %v501, %v493
  %v646 = vpack.c.b16 %v502, %v494
  %v647 = vpack.c.b16 %v503, %v495
  %v648 = vpack.c.b16 %v504, %v496
  %v649 = vpack.c.b16 %v513, %v505
  %v650 = vpack.c.b16 %v514, %v506
  %v651 = vpack.c.b16 %v515, %v507
  %v652 = vpack.c.b16 %v516, %v508
  %v653 = vpack.c.b16 %v517, %v509
  %v654 = vpack.c.b16 %v518, %v510
  %v655 = vpack.c.b16 %v519, %v511
  %v656 = vpack.c.b16 %v520, %v512
  %v657 = vpack.c.b16 %v529, %v521
  %v658 = vpack.c.b16 %v530, %v522
  %v659 = vpack.c.b16 %v531, %v523
  %v660 = vpack.c.b16 %v532, %v524
  %v661 = vpack.c.b16 %v533, %v525
  %v662 = vpack.c.b16 %v534, %v526
  %v663 = vpack.c.b16 %v535, %v527
  %v664 = vpack.c.b16 %v536, %v528
  %793 = vmatprep.subr.bf16.mxu0 %v538
  %794 = vmatpush1.bf16.msra.mxu0 %v537
  %795 = vmatprep.subr.bf16.mxu0 %v546
  %796 = vmatpush1.bf16.msra.mxu0 %v545
  %797 = vmatprep.subr.bf16.mxu0 %v554
  %798 = vmatpush1.bf16.msra.mxu0 %v553
  %799 = vmatprep.subr.bf16.mxu0 %v562
  %800 = vmatpush1.bf16.msra.mxu0 %v561
  %801 = vmatprep.subr.bf16.mxu0 %v570
  %802 = vmatpush1.bf16.msra.mxu0 %v569
  %803 = vmatprep.subr.bf16.mxu0 %v578
  %804 = vmatpush1.bf16.msra.mxu0 %v577
  %805 = vmatprep.subr.bf16.mxu0 %v586
  %806 = vmatpush1.bf16.msra.mxu0 %v585
  %807 = vmatprep.subr.bf16.mxu0 %v594
  %808 = vmatpush1.bf16.msra.mxu0 %v593
  %809 = vmatprep.subr.bf16.mxu0 %v602
  %810 = vmatpush1.bf16.msra.mxu0 %v601
  %811 = vmatprep.subr.bf16.mxu0 %v610
  %812 = vmatpush1.bf16.msra.mxu0 %v609
  %813 = vmatprep.subr.bf16.mxu0 %v618
  %814 = vmatpush1.bf16.msra.mxu0 %v617
  %815 = vmatprep.subr.bf16.mxu0 %v626
  %816 = vmatpush1.bf16.msra.mxu0 %v625
  %817 = vmatprep.subr.bf16.mxu0 %v634
  %818 = vmatpush1.bf16.msra.mxu0 %v633
  %819 = vmatprep.subr.bf16.mxu0 %v642
  %820 = vmatpush1.bf16.msra.mxu0 %v641
  %821 = vmatprep.subr.bf16.mxu0 %v650
  %822 = vmatpush1.bf16.msra.mxu0 %v649
  %823 = vmatprep.subr.bf16.mxu0 %v658
  %824 = vmatpush1.bf16.msra.mxu0 %v657
  %825 = vmatprep.mubr.bf16.mxu0 %v150
  %826 = vmatmul.mubr.bf16.gmra.mrb[0].mxu0 %v149
  %v827 = vpop.f32.mrb[0].mxu0
  %v828 = vadd.f32 0.0, %v827
  %v829 = vpop.f32.mrb[0].mxu0
  %v830 = vadd.f32 0.0, %v829
  %v831 = vpop.f32.mrb[0].mxu0
  %v832 = vadd.f32 0.0, %v831
  %v833 = vpop.f32.mrb[0].mxu0
  %v834 = vadd.f32 0.0, %v833
  %835 = vdwg.mxu0
  %836 = vmatprep.subr.bf16.mxu0 %v540
  %837 = vmatpush1.bf16.msra.mxu0 %v539
  %838 = vmatprep.subr.bf16.mxu0 %v548
  %839 = vmatpush1.bf16.msra.mxu0 %v547
  %840 = vmatprep.subr.bf16.mxu0 %v556
  %841 = vmatpush1.bf16.msra.mxu0 %v555
  %842 = vmatprep.subr.bf16.mxu0 %v564
  %843 = vmatpush1.bf16.msra.mxu0 %v563
  %844 = vmatprep.subr.bf16.mxu0 %v572
  %845 = vmatpush1.bf16.msra.mxu0 %v571
  %846 = vmatprep.subr.bf16.mxu0 %v580
  %847 = vmatpush1.bf16.msra.mxu0 %v579
  %848 = vmatprep.subr.bf16.mxu0 %v588
  %849 = vmatpush1.bf16.msra.mxu0 %v587
  %850 = vmatprep.subr.bf16.mxu0 %v596
  %851 = vmatpush1.bf16.msra.mxu0 %v595
  %852 = vmatprep.subr.bf16.mxu0 %v604
  %853 = vmatpush1.bf16.msra.mxu0 %v603
  %854 = vmatprep.subr.bf16.mxu0 %v612
  %855 = vmatpush1.bf16.msra.mxu0 %v611
  %856 = vmatprep.subr.bf16.mxu0 %v620
  %857 = vmatpush1.bf16.msra.mxu0 %v619
  %858 = vmatprep.subr.bf16.mxu0 %v628
  %859 = vmatpush1.bf16.msra.mxu0 %v627
  %860 = vmatprep.subr.bf16.mxu0 %v636
  %861 = vmatpush1.bf16.msra.mxu0 %v635
  %862 = vmatprep.subr.bf16.mxu0 %v644
  %863 = vmatpush1.bf16.msra.mxu0 %v643
  %864 = vmatprep.subr.bf16.mxu0 %v652
  %865 = vmatpush1.bf16.msra.mxu0 %v651
  %866 = vmatprep.subr.bf16.mxu0 %v660
  %867 = vmatpush1.bf16.msra.mxu0 %v659
  %868 = vmatprep.mubr.bf16.mxu0 %v150
  %869 = vmatmul.mubr.bf16.gmra.mrb[0].mxu0 %v149
  %v870 = vpop.f32.mrb[0].mxu0
  %v871 = vadd.f32 0.0, %v870
  %v872 = vpop.f32.mrb[0].mxu0
  %v873 = vadd.f32 0.0, %v872
  %v874 = vpop.f32.mrb[0].mxu0
  %v875 = vadd.f32 0.0, %v874
  %v876 = vpop.f32.mrb[0].mxu0
  %v877 = vadd.f32 0.0, %v876
  %878 = vdwg.mxu0
  %879 = vmatprep.subr.bf16.mxu0 %v542
  %880 = vmatpush1.bf16.msra.mxu0 %v541
  %881 = vmatprep.subr.bf16.mxu0 %v550
  %882 = vmatpush1.bf16.msra.mxu0 %v549
  %883 = vmatprep.subr.bf16.mxu0 %v558
  %884 = vmatpush1.bf16.msra.mxu0 %v557
  %885 = vmatprep.subr.bf16.mxu0 %v566
  %886 = vmatpush1.bf16.msra.mxu0 %v565
  %887 = vmatprep.subr.bf16.mxu0 %v574
  %888 = vmatpush1.bf16.msra.mxu0 %v573
  %889 = vmatprep.subr.bf16.mxu0 %v582
  %890 = vmatpush1.bf16.msra.mxu0 %v581
  %891 = vmatprep.subr.bf16.mxu0 %v590
  %892 = vmatpush1.bf16.msra.mxu0 %v589
  %893 = vmatprep.subr.bf16.mxu0 %v598
  %894 = vmatpush1.bf16.msra.mxu0 %v597
  %895 = vmatprep.subr.bf16.mxu0 %v606
  %896 = vmatpush1.bf16.msra.mxu0 %v605
  %897 = vmatprep.subr.bf16.mxu0 %v614
  %898 = vmatpush1.bf16.msra.mxu0 %v613
  %899 = vmatprep.subr.bf16.mxu0 %v622
  %900 = vmatpush1.bf16.msra.mxu0 %v621
  %901 = vmatprep.subr.bf16.mxu0 %v630
  %902 = vmatpush1.bf16.msra.mxu0 %v629
  %903 = vmatprep.subr.bf16.mxu0 %v638
  %904 = vmatpush1.bf16.msra.mxu0 %v637
  %905 = vmatprep.subr.bf16.mxu0 %v646
  %906 = vmatpush1.bf16.msra.mxu0 %v645
  %907 = vmatprep.subr.bf16.mxu0 %v654
  %908 = vmatpush1.bf16.msra.mxu0 %v653
  %909 = vmatprep.subr.bf16.mxu0 %v662
  %910 = vmatpush1.bf16.msra.mxu0 %v661
  %911 = vmatprep.mubr.bf16.mxu0 %v150
  %912 = vmatmul.mubr.bf16.gmra.mrb[0].mxu0 %v149
  %v913 = vpop.f32.mrb[0].mxu0
  %v914 = vadd.f32 0.0, %v913
  %v915 = vpop.f32.mrb[0].mxu0
  %v916 = vadd.f32 0.0, %v915
  %v917 = vpop.f32.mrb[0].mxu0
  %v918 = vadd.f32 0.0, %v917
  %v919 = vpop.f32.mrb[0].mxu0
  %v920 = vadd.f32 0.0, %v919
  %921 = vdwg.mxu0
  %922 = vmatprep.subr.bf16.mxu0 %v544
  %923 = vmatpush1.bf16.msra.mxu0 %v543
  %924 = vmatprep.subr.bf16.mxu0 %v552
  %925 = vmatpush1.bf16.msra.mxu0 %v551
  %926 = vmatprep.subr.bf16.mxu0 %v560
  %927 = vmatpush1.bf16.msra.mxu0 %v559
  %928 = vmatprep.subr.bf16.mxu0 %v568
  %929 = vmatpush1.bf16.msra.mxu0 %v567
  %930 = vmatprep.subr.bf16.mxu0 %v576
  %931 = vmatpush1.bf16.msra.mxu0 %v575
  %932 = vmatprep.subr.bf16.mxu0 %v584
  %933 = vmatpush1.bf16.msra.mxu0 %v583
  %934 = vmatprep.subr.bf16.mxu0 %v592
  %935 = vmatpush1.bf16.msra.mxu0 %v591
  %936 = vmatprep.subr.bf16.mxu0 %v600
  %937 = vmatpush1.bf16.msra.mxu0 %v599
  %938 = vmatprep.subr.bf16.mxu0 %v608
  %939 = vmatpush1.bf16.msra.mxu0 %v607
  %940 = vmatprep.subr.bf16.mxu0 %v616
  %941 = vmatpush1.bf16.msra.mxu0 %v615
  %942 = vmatprep.subr.bf16.mxu0 %v624
  %943 = vmatpush1.bf16.msra.mxu0 %v623
  %944 = vmatprep.subr.bf16.mxu0 %v632
  %945 = vmatpush1.bf16.msra.mxu0 %v631
  %946 = vmatprep.subr.bf16.mxu0 %v640
  %947 = vmatpush1.bf16.msra.mxu0 %v639
  %948 = vmatprep.subr.bf16.mxu0 %v648
  %949 = vmatpush1.bf16.msra.mxu0 %v647
  %950 = vmatprep.subr.bf16.mxu0 %v656
  %951 = vmatpush1.bf16.msra.mxu0 %v655
  %952 = vmatprep.subr.bf16.mxu0 %v664
  %953 = vmatpush1.bf16.msra.mxu0 %v663
  %954 = vmatprep.mubr.bf16.mxu0 %v150
  %955 = vmatmul.mubr.bf16.gmra.mrb[0].mxu0 %v149
  %v956 = vpop.f32.mrb[0].mxu0
  %v957 = vadd.f32 0.0, %v956
  %v958 = vpop.f32.mrb[0].mxu0
  %v959 = vadd.f32 0.0, %v958
  %v960 = vpop.f32.mrb[0].mxu0
  %v961 = vadd.f32 0.0, %v960
  %v962 = vpop.f32.mrb[0].mxu0
  %v963 = vadd.f32 0.0, %v962
  %964 = vdwg.mxu0
  %v965 = vpack.c.bf16 %v832, %v828
  %v966 = vpack.c.bf16 %v834, %v830
  %v967 = vpack.c.bf16 %v875, %v871
  %v968 = vpack.c.bf16 %v877, %v873
  %v969 = vpack.c.bf16 %v918, %v914
  %v970 = vpack.c.bf16 %v920, %v916
  %v971 = vpack.c.bf16 %v961, %v957
  %v972 = vpack.c.bf16 %v963, %v959
  %v981 = vunpack.c.l.b16 %v965
  %v982 = vunpack.c.l.b16 %v966
  %v983 = vunpack.c.l.b16 %v967
  %v984 = vunpack.c.l.b16 %v968
  %v985 = vunpack.c.l.b16 %v969
  %v986 = vunpack.c.l.b16 %v970
  %v987 = vunpack.c.l.b16 %v971
  %v988 = vunpack.c.l.b16 %v972
  %v989 = vunpack.c.h.b16 %v965
  %v990 = vunpack.c.h.b16 %v966
  %v991 = vunpack.c.h.b16 %v967
  %v992 = vunpack.c.h.b16 %v968
  %v993 = vunpack.c.h.b16 %v969
  %v994 = vunpack.c.h.b16 %v970
  %v995 = vunpack.c.h.b16 %v971
  %v996 = vunpack.c.h.b16 %v972
  %v997 = vpack.c.b16 %v982, %v981
  %v998 = vpack.c.b16 %v984, %v983
  %v999 = vpack.c.b16 %v986, %v985
  %v1000 = vpack.c.b16 %v988, %v987
  %v1001 = vpack.c.b16 %v990, %v989
  %v1002 = vpack.c.b16 %v992, %v991
  %v1003 = vpack.c.b16 %v994, %v993
  %v1004 = vpack.c.b16 %v996, %v995
  %1013 = vst [vmem:[%s2] sm:$0xff] %v997
  %1014 = vst [vmem:[%s2 + $0x8] sm:$0xff] %v998
  %1015 = vst [vmem:[%s2 + $0x10] sm:$0xff] %v999
  %1016 = vst [vmem:[%s2 + $0x18] sm:$0xff] %v1000
  %1017 = vst [vmem:[%s2 + $0x20] sm:$0xff] %v1001
  %1018 = vst [vmem:[%s2 + $0x28] sm:$0xff] %v1002
  %1019 = vst [vmem:[%s2 + $0x30] sm:$0xff] %v1003
  %1020 = vst [vmem:[%s2 + $0x38] sm:$0xff] %v1004
  %v1021 = vadd.f32 %v828, %v832
  %v1022 = vrot.slane %v1021, 4
  %v1023 = vadd.f32 %v1021, %v1022
  %v1024 = vrot.slane %v1023, 2
  %v1025 = vadd.f32 %v1023, %v1024
  %v1026 = vrot.slane %v1025, 1
  %v1027 = vadd.f32 %v1025, %v1026
  %v1028 = vadd.f32 %v830, %v834
  %v1029 = vrot.slane %v1028, 4
  %v1030 = vadd.f32 %v1028, %v1029
  %v1031 = vrot.slane %v1030, 2
  %v1032 = vadd.f32 %v1030, %v1031
  %v1033 = vrot.slane %v1032, 1
  %v1034 = vadd.f32 %v1032, %v1033
  %v1035 = vadd.f32 %v871, %v875
  %v1036 = vrot.slane %v1035, 4
  %v1037 = vadd.f32 %v1035, %v1036
  %v1038 = vrot.slane %v1037, 2
  %v1039 = vadd.f32 %v1037, %v1038
  %v1040 = vrot.slane %v1039, 1
  %v1041 = vadd.f32 %v1039, %v1040
  %v1042 = vadd.f32 %v873, %v877
  %v1043 = vrot.slane %v1042, 4
  %v1044 = vadd.f32 %v1042, %v1043
  %v1045 = vrot.slane %v1044, 2
  %v1046 = vadd.f32 %v1044, %v1045
  %v1047 = vrot.slane %v1046, 1
  %v1048 = vadd.f32 %v1046, %v1047
  %v1049 = vadd.f32 %v914, %v918
  %v1050 = vrot.slane %v1049, 4
  %v1051 = vadd.f32 %v1049, %v1050
  %v1052 = vrot.slane %v1051, 2
  %v1053 = vadd.f32 %v1051, %v1052
  %v1054 = vrot.slane %v1053, 1
  %v1055 = vadd.f32 %v1053, %v1054
  %v1056 = vadd.f32 %v916, %v920
  %v1057 = vrot.slane %v1056, 4
  %v1058 = vadd.f32 %v1056, %v1057
  %v1059 = vrot.slane %v1058, 2
  %v1060 = vadd.f32 %v1058, %v1059
  %v1061 = vrot.slane %v1060, 1
  %v1062 = vadd.f32 %v1060, %v1061
  %v1063 = vadd.f32 %v957, %v961
  %v1064 = vrot.slane %v1063, 4
  %v1065 = vadd.f32 %v1063, %v1064
  %v1066 = vrot.slane %v1065, 2
  %v1067 = vadd.f32 %v1065, %v1066
  %v1068 = vrot.slane %v1067, 1
  %v1069 = vadd.f32 %v1067, %v1068
  %v1070 = vadd.f32 %v959, %v963
  %v1071 = vrot.slane %v1070, 4
  %v1072 = vadd.f32 %v1070, %v1071
  %v1073 = vrot.slane %v1072, 2
  %v1074 = vadd.f32 %v1072, %v1073
  %v1075 = vrot.slane %v1074, 1
  %v1076 = vadd.f32 %v1074, %v1075
  %v1077 = vmul.f32 %v828, %v828
  %v1078 = vmul.f32 %v830, %v830
  %v1079 = vmul.f32 %v871, %v871
  %v1080 = vmul.f32 %v873, %v873
  %v1081 = vmul.f32 %v914, %v914
  %v1082 = vmul.f32 %v916, %v916
  %v1083 = vmul.f32 %v957, %v957
  %v1084 = vmul.f32 %v959, %v959
  %v1085 = vmul.f32 %v832, %v832
  %v1086 = vmul.f32 %v834, %v834
  %v1087 = vmul.f32 %v875, %v875
  %v1088 = vmul.f32 %v877, %v877
  %v1089 = vmul.f32 %v918, %v918
  %v1090 = vmul.f32 %v920, %v920
  %v1091 = vmul.f32 %v961, %v961
  %v1092 = vmul.f32 %v963, %v963
  %v1093 = vadd.f32 %v1077, %v1085
  %v1094 = vrot.slane %v1093, 4
  %v1095 = vadd.f32 %v1093, %v1094
  %v1096 = vrot.slane %v1095, 2
  %v1097 = vadd.f32 %v1095, %v1096
  %v1098 = vrot.slane %v1097, 1
  %v1099 = vadd.f32 %v1097, %v1098
  %v1100 = vadd.f32 %v1078, %v1086
  %v1101 = vrot.slane %v1100, 4
  %v1102 = vadd.f32 %v1100, %v1101
  %v1103 = vrot.slane %v1102, 2
  %v1104 = vadd.f32 %v1102, %v1103
  %v1105 = vrot.slane %v1104, 1
  %v1106 = vadd.f32 %v1104, %v1105
  %v1107 = vadd.f32 %v1079, %v1087
  %v1108 = vrot.slane %v1107, 4
  %v1109 = vadd.f32 %v1107, %v1108
  %v1110 = vrot.slane %v1109, 2
  %v1111 = vadd.f32 %v1109, %v1110
  %v1112 = vrot.slane %v1111, 1
  %v1113 = vadd.f32 %v1111, %v1112
  %v1114 = vadd.f32 %v1080, %v1088
  %v1115 = vrot.slane %v1114, 4
  %v1116 = vadd.f32 %v1114, %v1115
  %v1117 = vrot.slane %v1116, 2
  %v1118 = vadd.f32 %v1116, %v1117
  %v1119 = vrot.slane %v1118, 1
  %v1120 = vadd.f32 %v1118, %v1119
  %v1121 = vadd.f32 %v1081, %v1089
  %v1122 = vrot.slane %v1121, 4
  %v1123 = vadd.f32 %v1121, %v1122
  %v1124 = vrot.slane %v1123, 2
  %v1125 = vadd.f32 %v1123, %v1124
  %v1126 = vrot.slane %v1125, 1
  %v1127 = vadd.f32 %v1125, %v1126
  %v1128 = vadd.f32 %v1082, %v1090
  %v1129 = vrot.slane %v1128, 4
  %v1130 = vadd.f32 %v1128, %v1129
  %v1131 = vrot.slane %v1130, 2
  %v1132 = vadd.f32 %v1130, %v1131
  %v1133 = vrot.slane %v1132, 1
  %v1134 = vadd.f32 %v1132, %v1133
  %v1135 = vadd.f32 %v1083, %v1091
  %v1136 = vrot.slane %v1135, 4
  %v1137 = vadd.f32 %v1135, %v1136
  %v1138 = vrot.slane %v1137, 2
  %v1139 = vadd.f32 %v1137, %v1138
  %v1140 = vrot.slane %v1139, 1
  %v1141 = vadd.f32 %v1139, %v1140
  %v1142 = vadd.f32 %v1084, %v1092
  %v1143 = vrot.slane %v1142, 4
  %v1144 = vadd.f32 %v1142, %v1143
  %v1145 = vrot.slane %v1144, 2
  %v1146 = vadd.f32 %v1144, %v1145
  %v1147 = vrot.slane %v1146, 1
  %v1148 = vadd.f32 %v1146, %v1147
  %vm1149 = vcmask 1040384
  %v1150 = vsel %vm1149, %v1027, %v1099
  %v1151 = vsel %vm1149, %v1034, %v1106
  %v1152 = vsel %vm1149, %v1041, %v1113
  %v1153 = vsel %vm1149, %v1048, %v1120
  %v1154 = vsel %vm1149, %v1055, %v1127
  %v1155 = vsel %vm1149, %v1062, %v1134
  %v1156 = vsel %vm1149, %v1069, %v1141
  %v1157 = vsel %vm1149, %v1076, %v1148
  %v1166 = vcombine.low %v1150, %v1151
  %v1167 = vcombine.low %v1152, %v1153
  %v1169 = vunpack.c.l.s4 1983009808
  %v1170 = vunpack.c.0.s8 %v1169
  %v1171 = vlaneseq
  %v1172 = vshrl.u32 %v1171, 7
  %v1173 = vsub.s32 %v1170, %v1172
  %v1174 = vrot.slane %v1166, %v1173
  %v1176 = vunpack.c.l.s4 1983009808
  %v1177 = vunpack.c.0.s8 %v1176
  %v1178 = vlaneseq
  %v1179 = vshrl.u32 %v1178, 7
  %v1180 = vsub.s32 %v1177, %v1179
  %v1181 = vrot.slane %v1167, %v1180
  %v1182 = vcombine.low %v1174, %v1181
  %v1183 = vcombine.low %v1154, %v1155
  %v1184 = vcombine.low %v1156, %v1157
  %v1186 = vunpack.c.l.s4 1983009808
  %v1187 = vunpack.c.0.s8 %v1186
  %v1188 = vlaneseq
  %v1189 = vshrl.u32 %v1188, 7
  %v1190 = vsub.s32 %v1187, %v1189
  %v1191 = vrot.slane %v1183, %v1190
  %v1193 = vunpack.c.l.s4 1983009808
  %v1194 = vunpack.c.0.s8 %v1193
  %v1195 = vlaneseq
  %v1196 = vshrl.u32 %v1195, 7
  %v1197 = vsub.s32 %v1194, %v1196
  %v1198 = vrot.slane %v1184, %v1197
  %v1199 = vcombine.low %v1191, %v1198
  %1202 = vst [vmem:[%s3] sm:$0xff] %v1182
  %1203 = vst [vmem:[%s3 + $0x8] sm:$0xff] %v1199
  // Predicated region
  $region10: #{_lambda_.18} parent=0 // pred_check
    _
  $region11: #{_lambda_.18} parent=0 // pred_check_branch
    %1205 = sbr.rel (0) target = $region13
  $region12: #{_lambda_.18} parent=0 // pred_region
    _
  $region13: #{_lambda_.18} parent=0 // pred_fallthru
    _
  // Predicated region
  $region14: #{_lambda_.18} parent=0 // pred_check
    _
  $region15: #{_lambda_.18} parent=0 // pred_check_branch
    %1207 = sbr.rel (0) target = $region17
  $region16: #{_lambda_.18} parent=0 // pred_region
    _
  $region17: #{_lambda_.18} parent=0 // pred_fallthru
    _
  // Predicated region
  $region18: #{_lambda_.18} parent=0 // pred_check
    _
  $region19: #{_lambda_.18} parent=0 // pred_check_branch
    %1209 = sbr.rel (0) target = $region21
  $region20: #{_lambda_.18} parent=0 // pred_region
    _
  $region21: #{_lambda_.18} parent=0 // pred_fallthru
    _
  // Predicated region
  $region22: #{_lambda_.18} parent=0 // pred_check
    _
  $region23: #{_lambda_.18} parent=0 // pred_check_branch
    %1211 = sbr.rel (0) target = $region25
  $region24: #{_lambda_.18} parent=0 // pred_region
    _
  $region25: #{_lambda_.18} parent=0 // pred_fallthru
    _

// kernel: _lambda_.19
$region0: #{_lambda_.19}
  #allocation0 [shape = 'u32[]', space=smem, size = 0x4, offset = 0x4, fixed_abs, tag = 'smem constant byte address 0x4 - core index']
  #allocation1 [shape = 'u32[144,128]{1,0:T(1,128)}', space=vmem, size = 0x12000, scoped, tag = 'internal scratch']
  %s0 = inlined_call_operand.vmem [shape: bf16[2,8,1024], index: 0, kind: input, shape index: {}]
  %s1 = inlined_call_operand.vmem [shape: f32[1,1024], index: 1, kind: input, shape index: {}]
  %s2 = inlined_call_operand.vmem [shape: f32[1,1024], index: 2, kind: input, shape index: {}]
  %s3 = inlined_call_operand.vmem [shape: bf16[2,8,1024], index: 3, kind: output, shape index: {}]
  %s4 = sld [smem:[#allocation0]]
  $region22: #{_lambda_.19} parent=0
    _
  %s6 = ssub.s32 1, %s4
  %s7 = scalar_select 0, %s6, %s4
  // Predicated region
  $region2: #{_lambda_.19} parent=0 // pred_check
    _
  $region3: #{_lambda_.19} parent=0 // pred_check_branch
    %9 = sbr.rel (0) target = $region5
  $region4: #{_lambda_.19} parent=0 // pred_region
    _
  $region5: #{_lambda_.19} parent=0 // pred_fallthru
    _
  // Predicated region
  $region6: #{_lambda_.19} parent=0 // pred_check
    _
  $region7: #{_lambda_.19} parent=0 // pred_check_branch
    %11 = sbr.rel (0) target = $region9
  $region8: #{_lambda_.19} parent=0 // pred_region
    _
  $region9: #{_lambda_.19} parent=0 // pred_fallthru
    _
  // Predicated region
  $region10: #{_lambda_.19} parent=0 // pred_check
    _
  $region11: #{_lambda_.19} parent=0 // pred_check_branch
    %13 = sbr.rel (0) target = $region13
  $region12: #{_lambda_.19} parent=0 // pred_region
    _
  $region13: #{_lambda_.19} parent=0 // pred_fallthru
    _
  %v14 = vld [vmem:[%s1] sm:$0xff]
  %v15 = vld [vmem:[%s2] sm:$0xff]
  %v16 = vld [vmem:[%s0] sm:$0xff]
  %v17 = vld [vmem:[%s0 + $0x8] sm:$0xff]
  %v18 = vld [vmem:[%s0 + $0x10] sm:$0xff]
  %v19 = vld [vmem:[%s0 + $0x18] sm:$0xff]
  %v20 = vunpack.c.l.bf16 %v16
  %v21 = vunpack.c.h.bf16 %v16
  %v22 = vunpack.c.l.bf16 %v17
  %v23 = vunpack.c.h.bf16 %v17
  %v24 = vunpack.c.l.bf16 %v18
  %v25 = vunpack.c.h.bf16 %v18
  %v26 = vunpack.c.l.bf16 %v19
  %v27 = vunpack.c.h.bf16 %v19
  %v29 = vlaneseq
  %v30 = vshrl.u32 %v29, 7
  %v31 = vsub.s32 0, %v30
  %v32 = vrot.slane %v14, %v31
  %v33 = vlaneseq
  %v34 = vshrl.u32 %v33, 7
  %v35 = vsub.s32 1, %v34
  %v36 = vrot.slane %v14, %v35
  %v37 = vlaneseq
  %v38 = vshrl.u32 %v37, 7
  %v39 = vsub.s32 2, %v38
  %v40 = vrot.slane %v14, %v39
  %v41 = vlaneseq
  %v42 = vshrl.u32 %v41, 7
  %v43 = vsub.s32 3, %v42
  %v44 = vrot.slane %v14, %v43
  %v45 = vlaneseq
  %v46 = vshrl.u32 %v45, 7
  %v47 = vsub.s32 4, %v46
  %v48 = vrot.slane %v14, %v47
  %v49 = vlaneseq
  %v50 = vshrl.u32 %v49, 7
  %v51 = vsub.s32 5, %v50
  %v52 = vrot.slane %v14, %v51
  %v53 = vlaneseq
  %v54 = vshrl.u32 %v53, 7
  %v55 = vsub.s32 6, %v54
  %v56 = vrot.slane %v14, %v55
  %v57 = vlaneseq
  %v58 = vshrl.u32 %v57, 7
  %v59 = vsub.s32 7, %v58
  %v60 = vrot.slane %v14, %v59
  %v69 = vmul.f32 %v20, %v32
  %v70 = vmul.f32 %v21, %v36
  %v71 = vmul.f32 %v22, %v40
  %v72 = vmul.f32 %v23, %v44
  %v73 = vmul.f32 %v24, %v48
  %v74 = vmul.f32 %v25, %v52
  %v75 = vmul.f32 %v26, %v56
  %v76 = vmul.f32 %v27, %v60
  %v78 = vlaneseq
  %v79 = vshrl.u32 %v78, 7
  %v80 = vsub.s32 0, %v79
  %v81 = vrot.slane %v15, %v80
  %v82 = vlaneseq
  %v83 = vshrl.u32 %v82, 7
  %v84 = vsub.s32 1, %v83
  %v85 = vrot.slane %v15, %v84
  %v86 = vlaneseq
  %v87 = vshrl.u32 %v86, 7
  %v88 = vsub.s32 2, %v87
  %v89 = vrot.slane %v15, %v88
  %v90 = vlaneseq
  %v91 = vshrl.u32 %v90, 7
  %v92 = vsub.s32 3, %v91
  %v93 = vrot.slane %v15, %v92
  %v94 = vlaneseq
  %v95 = vshrl.u32 %v94, 7
  %v96 = vsub.s32 4, %v95
  %v97 = vrot.slane %v15, %v96
  %v98 = vlaneseq
  %v99 = vshrl.u32 %v98, 7
  %v100 = vsub.s32 5, %v99
  %v101 = vrot.slane %v15, %v100
  %v102 = vlaneseq
  %v103 = vshrl.u32 %v102, 7
  %v104 = vsub.s32 6, %v103
  %v105 = vrot.slane %v15, %v104
  %v106 = vlaneseq
  %v107 = vshrl.u32 %v106, 7
  %v108 = vsub.s32 7, %v107
  %v109 = vrot.slane %v15, %v108
  %v118 = vadd.f32 %v69, %v81
  %v119 = vadd.f32 %v70, %v85
  %v120 = vadd.f32 %v71, %v89
  %v121 = vadd.f32 %v72, %v93
  %v122 = vadd.f32 %v73, %v97
  %v123 = vadd.f32 %v74, %v101
  %v124 = vadd.f32 %v75, %v105
  %v125 = vadd.f32 %v76, %v109
  %v126 = vmul.f32 %v118, 0.5
  %v127 = vmul.f32 %v119, 0.5
  %v128 = vmul.f32 %v120, 0.5
  %v129 = vmul.f32 %v121, 0.5
  %v130 = vmul.f32 %v122, 0.5
  %v131 = vmul.f32 %v123, 0.5
  %v132 = vmul.f32 %v124, 0.5
  %v133 = vmul.f32 %v125, 0.5
  %v134 = vadd.f32 %v126, 0.0
  %v135 = vadd.f32 %v127, 0.0
  %v136 = vadd.f32 %v128, 0.0
  %v137 = vadd.f32 %v129, 0.0
  %v138 = vadd.f32 %v130, 0.0
  %v139 = vadd.f32 %v131, 0.0
  %v140 = vadd.f32 %v132, 0.0
  %v141 = vadd.f32 %v133, 0.0
  %vm142 = vcmp.ge.f32.partialorder %v134, 1.0
  %vm143 = vcmp.ge.f32.partialorder %v135, 1.0
  %vm144 = vcmp.ge.f32.partialorder %v136, 1.0
  %vm145 = vcmp.ge.f32.partialorder %v137, 1.0
  %vm146 = vcmp.ge.f32.partialorder %v138, 1.0
  %vm147 = vcmp.ge.f32.partialorder %v139, 1.0
  %vm148 = vcmp.ge.f32.partialorder %v140, 1.0
  %vm149 = vcmp.ge.f32.partialorder %v141, 1.0
  %v150 = vsel %vm142, 1, 0
  %v151 = vsel %vm143, 1, 0
  %v152 = vsel %vm144, 1, 0
  %v153 = vsel %vm145, 1, 0
  %v154 = vsel %vm146, 1, 0
  %v155 = vsel %vm147, 1, 0
  %v156 = vsel %vm148, 1, 0
  %v157 = vsel %vm149, 1, 0
  %v158 = vcvt.s32.f32 %v150
  %v159 = vcvt.s32.f32 %v151
  %v160 = vcvt.s32.f32 %v152
  %v161 = vcvt.s32.f32 %v153
  %v162 = vcvt.s32.f32 %v154
  %v163 = vcvt.s32.f32 %v155
  %v164 = vcvt.s32.f32 %v156
  %v165 = vcvt.s32.f32 %v157
  %v166 = vpack.c.bf16 %v158, %v158
  %v167 = vpack.c.bf16 %v159, %v159
  %v168 = vpack.c.bf16 %v160, %v160
  %v169 = vpack.c.bf16 %v161, %v161
  %v170 = vpack.c.bf16 %v162, %v162
  %v171 = vpack.c.bf16 %v163, %v163
  %v172 = vpack.c.bf16 %v164, %v164
  %v173 = vpack.c.bf16 %v165, %v165
  %v182 = vunpack.c.l.b16 %v166
  %v183 = vunpack.c.l.b16 %v167
  %v184 = vunpack.c.l.b16 %v168
  %v185 = vunpack.c.l.b16 %v169
  %v186 = vunpack.c.l.b16 %v170
  %v187 = vunpack.c.l.b16 %v171
  %v188 = vunpack.c.l.b16 %v172
  %v189 = vunpack.c.l.b16 %v173
  %v190 = vpack.c.b16 %v183, %v182
  %v191 = vpack.c.b16 %v185, %v184
  %v192 = vpack.c.b16 %v187, %v186
  %v193 = vpack.c.b16 %v189, %v188
  %198 = vst [vmem:[%s3] sm:$0xff] %v190
  %199 = vst [vmem:[%s3 + $0x8] sm:$0xff] %v191
  %200 = vst [vmem:[%s3 + $0x10] sm:$0xff] %v192
  %201 = vst [vmem:[%s3 + $0x18] sm:$0xff] %v193
  %v202 = vsel %vm142, 0.0, %v134
  %v203 = vsel %vm143, 0.0, %v135
  %v204 = vsel %vm144, 0.0, %v136
  %v205 = vsel %vm145, 0.0, %v137
  %v206 = vsel %vm146, 0.0, %v138
  %v207 = vsel %vm147, 0.0, %v139
  %v208 = vsel %vm148, 0.0, %v140
  %v209 = vsel %vm149, 0.0, %v141
  %s210 = scalar_lea.vmem %s0, 32
  %v211 = vld [vmem:[%s210] sm:$0xff]
  %v212 = vld [vmem:[%s210 + $0x8] sm:$0xff]
  %v213 = vld [vmem:[%s210 + $0x10] sm:$0xff]
  %v214 = vld [vmem:[%s210 + $0x18] sm:$0xff]
  %v215 = vunpack.c.l.bf16 %v211
  %v216 = vunpack.c.h.bf16 %v211
  %v217 = vunpack.c.l.bf16 %v212
  %v218 = vunpack.c.h.bf16 %v212
  %v219 = vunpack.c.l.bf16 %v213
  %v220 = vunpack.c.h.bf16 %v213
  %v221 = vunpack.c.l.bf16 %v214
  %v222 = vunpack.c.h.bf16 %v214
  %v223 = vmul.f32 %v215, %v32
  %v224 = vmul.f32 %v216, %v36
  %v225 = vmul.f32 %v217, %v40
  %v226 = vmul.f32 %v218, %v44
  %v227 = vmul.f32 %v219, %v48
  %v228 = vmul.f32 %v220, %v52
  %v229 = vmul.f32 %v221, %v56
  %v230 = vmul.f32 %v222, %v60
  %v231 = vadd.f32 %v223, %v81
  %v232 = vadd.f32 %v224, %v85
  %v233 = vadd.f32 %v225, %v89
  %v234 = vadd.f32 %v226, %v93
  %v235 = vadd.f32 %v227, %v97
  %v236 = vadd.f32 %v228, %v101
  %v237 = vadd.f32 %v229, %v105
  %v238 = vadd.f32 %v230, %v109
  %v239 = vsub.f32 %v231, %v202
  %v240 = vsub.f32 %v232, %v203
  %v241 = vsub.f32 %v233, %v204
  %v242 = vsub.f32 %v234, %v205
  %v243 = vsub.f32 %v235, %v206
  %v244 = vsub.f32 %v236, %v207
  %v245 = vsub.f32 %v237, %v208
  %v246 = vsub.f32 %v238, %v209
  %v247 = vmul.f32 %v239, 0.5
  %v248 = vmul.f32 %v240, 0.5
  %v249 = vmul.f32 %v241, 0.5
  %v250 = vmul.f32 %v242, 0.5
  %v251 = vmul.f32 %v243, 0.5
  %v252 = vmul.f32 %v244, 0.5
  %v253 = vmul.f32 %v245, 0.5
  %v254 = vmul.f32 %v246, 0.5
  %v255 = vadd.f32 %v202, %v247
  %v256 = vadd.f32 %v203, %v248
  %v257 = vadd.f32 %v204, %v249
  %v258 = vadd.f32 %v205, %v250
  %v259 = vadd.f32 %v206, %v251
  %v260 = vadd.f32 %v207, %v252
  %v261 = vadd.f32 %v208, %v253
  %v262 = vadd.f32 %v209, %v254
  %vm263 = vcmp.ge.f32.partialorder %v255, 1.0
  %vm264 = vcmp.ge.f32.partialorder %v256, 1.0
  %vm265 = vcmp.ge.f32.partialorder %v257, 1.0
  %vm266 = vcmp.ge.f32.partialorder %v258, 1.0
  %vm267 = vcmp.ge.f32.partialorder %v259, 1.0
  %vm268 = vcmp.ge.f32.partialorder %v260, 1.0
  %vm269 = vcmp.ge.f32.partialorder %v261, 1.0
  %vm270 = vcmp.ge.f32.partialorder %v262, 1.0
  %v271 = vsel %vm263, 1, 0
  %v272 = vsel %vm264, 1, 0
  %v273 = vsel %vm265, 1, 0
  %v274 = vsel %vm266, 1, 0
  %v275 = vsel %vm267, 1, 0
  %v276 = vsel %vm268, 1, 0
  %v277 = vsel %vm269, 1, 0
  %v278 = vsel %vm270, 1, 0
  %v279 = vcvt.s32.f32 %v271
  %v280 = vcvt.s32.f32 %v272
  %v281 = vcvt.s32.f32 %v273
  %v282 = vcvt.s32.f32 %v274
  %v283 = vcvt.s32.f32 %v275
  %v284 = vcvt.s32.f32 %v276
  %v285 = vcvt.s32.f32 %v277
  %v286 = vcvt.s32.f32 %v278
  %v287 = vpack.c.bf16 %v279, %v279
  %v288 = vpack.c.bf16 %v280, %v280
  %v289 = vpack.c.bf16 %v281, %v281
  %v290 = vpack.c.bf16 %v282, %v282
  %v291 = vpack.c.bf16 %v283, %v283
  %v292 = vpack.c.bf16 %v284, %v284
  %v293 = vpack.c.bf16 %v285, %v285
  %v294 = vpack.c.bf16 %v286, %v286
  %v303 = vunpack.c.l.b16 %v287
  %v304 = vunpack.c.l.b16 %v288
  %v305 = vunpack.c.l.b16 %v289
  %v306 = vunpack.c.l.b16 %v290
  %v307 = vunpack.c.l.b16 %v291
  %v308 = vunpack.c.l.b16 %v292
  %v309 = vunpack.c.l.b16 %v293
  %v310 = vunpack.c.l.b16 %v294
  %v311 = vpack.c.b16 %v304, %v303
  %v312 = vpack.c.b16 %v306, %v305
  %v313 = vpack.c.b16 %v308, %v307
  %v314 = vpack.c.b16 %v310, %v309
  %s319 = scalar_lea.vmem %s3, 32
  %320 = vst [vmem:[%s319] sm:$0xff] %v311
  %321 = vst [vmem:[%s319 + $0x8] sm:$0xff] %v312
  %322 = vst [vmem:[%s319 + $0x10] sm:$0xff] %v313
  %323 = vst [vmem:[%s319 + $0x18] sm:$0xff] %v314
  // Predicated region
  $region14: #{_lambda_.19} parent=0 // pred_check
    _
  $region15: #{_lambda_.19} parent=0 // pred_check_branch
    %325 = sbr.rel (0) target = $region17
  $region16: #{_lambda_.19} parent=0 // pred_region
    _
  $region17: #{_lambda_.19} parent=0 // pred_fallthru
    _
  // Predicated region
  $region18: #{_lambda_.19} parent=0 // pred_check
    _
  $region19: #{_lambda_.19} parent=0 // pred_check_branch
    %327 = sbr.rel (0) target = $region21
  $region20: #{_lambda_.19} parent=0 // pred_region
    _
  $region21: #{_lambda_.19} parent=0 // pred_fallthru
    _

// kernel: _lambda_.21
$region0: #{_lambda_.21}
  #allocation0 [shape = 'u32[]', space=smem, size = 0x4, offset = 0x4, fixed_abs, tag = 'smem constant byte address 0x4 - core index']
  #allocation1 [shape = 'u32[144,128]{1,0:T(1,128)}', space=vmem, size = 0x12000, scoped, tag = 'internal scratch']
  %s0 = inlined_call_operand.vmem [shape: f32[2,1024], index: 0, kind: input, shape index: {}]
  %s1 = inlined_call_operand.vmem [shape: f32[1,1024], index: 1, kind: input, shape index: {}]
  %s2 = inlined_call_operand.vmem [shape: bf16[4,1024], index: 2, kind: input, shape index: {}]
  %s3 = inlined_call_operand.vmem [shape: bf16[4,1024], index: 3, kind: input, shape index: {}]
  %s4 = inlined_call_operand.vmem [shape: f32[4,1024], index: 4, kind: output, shape index: {}]
  %s5 = sld [smem:[#allocation0]]
  $region26: #{_lambda_.21} parent=0
    _
  %s7 = ssub.s32 1, %s5
  %s8 = scalar_select 0, %s7, %s5
  // Predicated region
  $region2: #{_lambda_.21} parent=0 // pred_check
    _
  $region3: #{_lambda_.21} parent=0 // pred_check_branch
    %10 = sbr.rel (0) target = $region5
  $region4: #{_lambda_.21} parent=0 // pred_region
    _
  $region5: #{_lambda_.21} parent=0 // pred_fallthru
    _
  // Predicated region
  $region6: #{_lambda_.21} parent=0 // pred_check
    _
  $region7: #{_lambda_.21} parent=0 // pred_check_branch
    %12 = sbr.rel (0) target = $region9
  $region8: #{_lambda_.21} parent=0 // pred_region
    _
  $region9: #{_lambda_.21} parent=0 // pred_fallthru
    _
  // Predicated region
  $region10: #{_lambda_.21} parent=0 // pred_check
    _
  $region11: #{_lambda_.21} parent=0 // pred_check_branch
    %14 = sbr.rel (0) target = $region13
  $region12: #{_lambda_.21} parent=0 // pred_region
    _
  $region13: #{_lambda_.21} parent=0 // pred_fallthru
    _
  // Predicated region
  $region14: #{_lambda_.21} parent=0 // pred_check
    _
  $region15: #{_lambda_.21} parent=0 // pred_check_branch
    %16 = sbr.rel (0) target = $region17
  $region16: #{_lambda_.21} parent=0 // pred_region
    _
  $region17: #{_lambda_.21} parent=0 // pred_fallthru
    _
  %v17 = vld [vmem:[%s0] sm:$0xff]
  %v18 = vld [vmem:[%s0 + $0x8] sm:$0xff]
  %v19 = vld [vmem:[%s2] sm:$0xff]
  %v20 = vld [vmem:[%s2 + $0x8] sm:$0xff]
  %v21 = vunpack.c.l.bf16 %v19
  %v22 = vunpack.c.h.bf16 %v19
  %v23 = vunpack.c.l.bf16 %v20
  %v24 = vunpack.c.h.bf16 %v20
  %v27 = vlaneseq
  %v28 = vshrl.u32 %v27, 7
  %v29 = vsub.s32 0, %v28
  %v30 = vrot.slane %v17, %v29
  %v31 = vlaneseq
  %v32 = vshrl.u32 %v31, 7
  %v33 = vsub.s32 2, %v32
  %v34 = vrot.slane %v17, %v33
  %v35 = vlaneseq
  %v36 = vshrl.u32 %v35, 7
  %v37 = vsub.s32 4, %v36
  %v38 = vrot.slane %v17, %v37
  %v39 = vlaneseq
  %v40 = vshrl.u32 %v39, 7
  %v41 = vsub.s32 6, %v40
  %v42 = vrot.slane %v17, %v41
  %v43 = vlaneseq
  %v44 = vshrl.u32 %v43, 7
  %v45 = vsub.s32 0, %v44
  %v46 = vrot.slane %v18, %v45
  %v47 = vlaneseq
  %v48 = vshrl.u32 %v47, 7
  %v49 = vsub.s32 2, %v48
  %v50 = vrot.slane %v18, %v49
  %v51 = vlaneseq
  %v52 = vshrl.u32 %v51, 7
  %v53 = vsub.s32 4, %v52
  %v54 = vrot.slane %v18, %v53
  %v55 = vlaneseq
  %v56 = vshrl.u32 %v55, 7
  %v57 = vsub.s32 6, %v56
  %v58 = vrot.slane %v18, %v57
  %v67 = vlaneseq
  %v68 = vshrl.u32 %v67, 7
  %v69 = vsub.s32 0, %v68
  %v70 = vrot.slane %v30, %v69
  %v71 = vlaneseq
  %v72 = vshrl.u32 %v71, 7
  %v73 = vsub.s32 0, %v72
  %v74 = vrot.slane %v34, %v73
  %v75 = vlaneseq
  %v76 = vshrl.u32 %v75, 7
  %v77 = vsub.s32 0, %v76
  %v78 = vrot.slane %v38, %v77
  %v79 = vlaneseq
  %v80 = vshrl.u32 %v79, 7
  %v81 = vsub.s32 0, %v80
  %v82 = vrot.slane %v42, %v81
  %v83 = vlaneseq
  %v84 = vshrl.u32 %v83, 7
  %v85 = vsub.s32 0, %v84
  %v86 = vrot.slane %v46, %v85
  %v87 = vlaneseq
  %v88 = vshrl.u32 %v87, 7
  %v89 = vsub.s32 0, %v88
  %v90 = vrot.slane %v50, %v89
  %v91 = vlaneseq
  %v92 = vshrl.u32 %v91, 7
  %v93 = vsub.s32 0, %v92
  %v94 = vrot.slane %v54, %v93
  %v95 = vlaneseq
  %v96 = vshrl.u32 %v95, 7
  %v97 = vsub.s32 0, %v96
  %v98 = vrot.slane %v58, %v97
  %v107 = vcombine.low %v70, %v74
  %v108 = vcombine.low %v78, %v82
  %v109 = vcombine.low %v86, %v90
  %v110 = vcombine.low %v94, %v98
  %v115 = vmul.f32 %v21, %v107
  %v116 = vmul.f32 %v22, %v108
  %v117 = vmul.f32 %v23, %v109
  %v118 = vmul.f32 %v24, %v110
  %v119 = vld [vmem:[%s1] sm:$0xff]
  %v121 = vlaneseq
  %v122 = vshrl.u32 %v121, 7
  %v123 = vsub.s32 0, %v122
  %v124 = vrot.slane %v119, %v123
  %v125 = vlaneseq
  %v126 = vshrl.u32 %v125, 7
  %v127 = vsub.s32 1, %v126
  %v128 = vrot.slane %v119, %v127
  %v129 = vlaneseq
  %v130 = vshrl.u32 %v129, 7
  %v131 = vsub.s32 2, %v130
  %v132 = vrot.slane %v119, %v131
  %v133 = vlaneseq
  %v134 = vshrl.u32 %v133, 7
  %v135 = vsub.s32 3, %v134
  %v136 = vrot.slane %v119, %v135
  %v137 = vlaneseq
  %v138 = vshrl.u32 %v137, 7
  %v139 = vsub.s32 4, %v138
  %v140 = vrot.slane %v119, %v139
  %v141 = vlaneseq
  %v142 = vshrl.u32 %v141, 7
  %v143 = vsub.s32 5, %v142
  %v144 = vrot.slane %v119, %v143
  %v145 = vlaneseq
  %v146 = vshrl.u32 %v145, 7
  %v147 = vsub.s32 6, %v146
  %v148 = vrot.slane %v119, %v147
  %v149 = vlaneseq
  %v150 = vshrl.u32 %v149, 7
  %v151 = vsub.s32 7, %v150
  %v152 = vrot.slane %v119, %v151
  %v153 = vcombine.low %v124, %v128
  %v154 = vcombine.low %v132, %v136
  %v155 = vcombine.low %v140, %v144
  %v156 = vcombine.low %v148, %v152
  %v161 = vadd.f32 %v115, %v153
  %v162 = vadd.f32 %v116, %v154
  %v163 = vadd.f32 %v117, %v155
  %v164 = vadd.f32 %v118, %v156
  %v165 = vld [vmem:[%s3] sm:$0xff]
  %v166 = vld [vmem:[%s3 + $0x8] sm:$0xff]
  %v167 = vunpack.c.l.bf16 %v165
  %v168 = vunpack.c.h.bf16 %v165
  %v169 = vunpack.c.l.bf16 %v166
  %v170 = vunpack.c.h.bf16 %v166
  %v171 = vlaneseq
  %v172 = vshrl.u32 %v171, 7
  %v173 = vsub.s32 1, %v172
  %v174 = vrot.slane %v17, %v173
  %v175 = vlaneseq
  %v176 = vshrl.u32 %v175, 7
  %v177 = vsub.s32 3, %v176
  %v178 = vrot.slane %v17, %v177
  %v179 = vlaneseq
  %v180 = vshrl.u32 %v179, 7
  %v181 = vsub.s32 5, %v180
  %v182 = vrot.slane %v17, %v181
  %v183 = vlaneseq
  %v184 = vshrl.u32 %v183, 7
  %v185 = vsub.s32 7, %v184
  %v186 = vrot.slane %v17, %v185
  %v187 = vlaneseq
  %v188 = vshrl.u32 %v187, 7
  %v189 = vsub.s32 1, %v188
  %v190 = vrot.slane %v18, %v189
  %v191 = vlaneseq
  %v192 = vshrl.u32 %v191, 7
  %v193 = vsub.s32 3, %v192
  %v194 = vrot.slane %v18, %v193
  %v195 = vlaneseq
  %v196 = vshrl.u32 %v195, 7
  %v197 = vsub.s32 5, %v196
  %v198 = vrot.slane %v18, %v197
  %v199 = vlaneseq
  %v200 = vshrl.u32 %v199, 7
  %v201 = vsub.s32 7, %v200
  %v202 = vrot.slane %v18, %v201
  %v211 = vlaneseq
  %v212 = vshrl.u32 %v211, 7
  %v213 = vsub.s32 1, %v212
  %v214 = vrot.slane %v174, %v213
  %v215 = vlaneseq
  %v216 = vshrl.u32 %v215, 7
  %v217 = vsub.s32 1, %v216
  %v218 = vrot.slane %v178, %v217
  %v219 = vlaneseq
  %v220 = vshrl.u32 %v219, 7
  %v221 = vsub.s32 1, %v220
  %v222 = vrot.slane %v182, %v221
  %v223 = vlaneseq
  %v224 = vshrl.u32 %v223, 7
  %v225 = vsub.s32 1, %v224
  %v226 = vrot.slane %v186, %v225
  %v227 = vlaneseq
  %v228 = vshrl.u32 %v227, 7
  %v229 = vsub.s32 1, %v228
  %v230 = vrot.slane %v190, %v229
  %v231 = vlaneseq
  %v232 = vshrl.u32 %v231, 7
  %v233 = vsub.s32 1, %v232
  %v234 = vrot.slane %v194, %v233
  %v235 = vlaneseq
  %v236 = vshrl.u32 %v235, 7
  %v237 = vsub.s32 1, %v236
  %v238 = vrot.slane %v198, %v237
  %v239 = vlaneseq
  %v240 = vshrl.u32 %v239, 7
  %v241 = vsub.s32 1, %v240
  %v242 = vrot.slane %v202, %v241
  %v251 = vcombine.low %v214, %v218
  %v252 = vcombine.low %v222, %v226
  %v253 = vcombine.low %v230, %v234
  %v254 = vcombine.low %v238, %v242
  %v259 = vmul.f32 %v167, %v251
  %v260 = vmul.f32 %v168, %v252
  %v261 = vmul.f32 %v169, %v253
  %v262 = vmul.f32 %v170, %v254
  %v263 = vadd.f32 %v161, %v259
  %v264 = vadd.f32 %v162, %v260
  %v265 = vadd.f32 %v163, %v261
  %v266 = vadd.f32 %v164, %v262
  %267 = vst [vmem:[%s4] sm:$0xff] %v263
  %268 = vst [vmem:[%s4 + $0x8] sm:$0xff] %v264
  %269 = vst [vmem:[%s4 + $0x10] sm:$0xff] %v265
  %270 = vst [vmem:[%s4 + $0x18] sm:$0xff] %v266
  // Predicated region
  $region18: #{_lambda_.21} parent=0 // pred_check
    _
  $region19: #{_lambda_.21} parent=0 // pred_check_branch
    %272 = sbr.rel (0) target = $region21
  $region20: #{_lambda_.21} parent=0 // pred_region
    _
  $region21: #{_lambda_.21} parent=0 // pred_fallthru
    _
  // Predicated region
  $region22: #{_lambda_.21} parent=0 // pred_check
    _
  $region23: #{_lambda_.21} parent=0 // pred_check_branch
    %274 = sbr.rel (0) target = $region25
  $region24: #{_lambda_.21} parent=0 // pred_region
    _
  $region25: #{_lambda_.21} parent=0 // pred_fallthru
    _

// kernel: _lambda_.20
$region0: #{_lambda_.20}
  #allocation0 [shape = 'u32[]', space=smem, size = 0x4, offset = 0x4, fixed_abs, tag = 'smem constant byte address 0x4 - core index']
  #allocation1 [shape = 'u32[144,128]{1,0:T(1,128)}', space=vmem, size = 0x12000, scoped, tag = 'internal scratch']
  %s0 = inlined_call_operand.vmem [shape: bf16[16,1024], index: 0, kind: input, shape index: {}]
  %s1 = inlined_call_operand.vmem [shape: bf16[1024,256], index: 1, kind: input, shape index: {}]
  %s2 = inlined_call_operand.vmem [shape: bf16[16,256], index: 2, kind: output, shape index: {0}]
  %s3 = inlined_call_operand.vmem [shape: f32[1,2,256], index: 3, kind: output, shape index: {1}]
  %4 = xla_tuple %s2, %s3
  %s5 = sld [smem:[#allocation0]]
  $region26: #{_lambda_.20} parent=0
    _
  %s7 = ssub.s32 1, %s5
  %s8 = scalar_select 0, %s7, %s5
  // Predicated region
  $region2: #{_lambda_.20} parent=0 // pred_check
    _
  $region3: #{_lambda_.20} parent=0 // pred_check_branch
    %10 = sbr.rel (0) target = $region5
  $region4: #{_lambda_.20} parent=0 // pred_region
    _
  $region5: #{_lambda_.20} parent=0 // pred_fallthru
    _
  // Predicated region
  $region6: #{_lambda_.20} parent=0 // pred_check
    _
  $region7: #{_lambda_.20} parent=0 // pred_check_branch
    %12 = sbr.rel (0) target = $region9
  $region8: #{_lambda_.20} parent=0 // pred_region
    _
  $region9: #{_lambda_.20} parent=0 // pred_fallthru
    _
  %v13 = vld [vmem:[%s0] sm:$0xff]
  %v14 = vld [vmem:[%s0 + $0x8] sm:$0xff]
  %v15 = vld [vmem:[%s0 + $0x10] sm:$0xff]
  %v16 = vld [vmem:[%s0 + $0x18] sm:$0xff]
  %v17 = vld [vmem:[%s0 + $0x20] sm:$0xff]
  %v18 = vld [vmem:[%s0 + $0x28] sm:$0xff]
  %v19 = vld [vmem:[%s0 + $0x30] sm:$0xff]
  %v20 = vld [vmem:[%s0 + $0x38] sm:$0xff]
  %v21 = vld [vmem:[%s1] sm:$0xff]
  %v22 = vld [vmem:[%s1 + $0x8] sm:$0xff]
  %v23 = vld [vmem:[%s1 + $0x10] sm:$0xff]
  %v24 = vld [vmem:[%s1 + $0x18] sm:$0xff]
  %v25 = vld [vmem:[%s1 + $0x20] sm:$0xff]
  %v26 = vld [vmem:[%s1 + $0x28] sm:$0xff]
  %v27 = vld [vmem:[%s1 + $0x30] sm:$0xff]
  %v28 = vld [vmem:[%s1 + $0x38] sm:$0xff]
  %v29 = vld [vmem:[%s1 + $0x40] sm:$0xff]
  %v30 = vld [vmem:[%s1 + $0x48] sm:$0xff]
  %v31 = vld [vmem:[%s1 + $0x50] sm:$0xff]
  %v32 = vld [vmem:[%s1 + $0x58] sm:$0xff]
  %v33 = vld [vmem:[%s1 + $0x60] sm:$0xff]
  %v34 = vld [vmem:[%s1 + $0x68] sm:$0xff]
  %v35 = vld [vmem:[%s1 + $0x70] sm:$0xff]
  %v36 = vld [vmem:[%s1 + $0x78] sm:$0xff]
  %v37 = vld [vmem:[%s1 + $0x80] sm:$0xff]
  %v38 = vld [vmem:[%s1 + $0x88] sm:$0xff]
  %v39 = vld [vmem:[%s1 + $0x90] sm:$0xff]
  %v40 = vld [vmem:[%s1 + $0x98] sm:$0xff]
  %v41 = vld [vmem:[%s1 + $0xa0] sm:$0xff]
  %v42 = vld [vmem:[%s1 + $0xa8] sm:$0xff]
  %v43 = vld [vmem:[%s1 + $0xb0] sm:$0xff]
  %v44 = vld [vmem:[%s1 + $0xb8] sm:$0xff]
  %v45 = vld [vmem:[%s1 + $0xc0] sm:$0xff]
  %v46 = vld [vmem:[%s1 + $0xc8] sm:$0xff]
  %v47 = vld [vmem:[%s1 + $0xd0] sm:$0xff]
  %v48 = vld [vmem:[%s1 + $0xd8] sm:$0xff]
  %v49 = vld [vmem:[%s1 + $0xe0] sm:$0xff]
  %v50 = vld [vmem:[%s1 + $0xe8] sm:$0xff]
  %v51 = vld [vmem:[%s1 + $0xf0] sm:$0xff]
  %v52 = vld [vmem:[%s1 + $0xf8] sm:$0xff]
  %v53 = vld [vmem:[%s1 + $0x100] sm:$0xff]
  %v54 = vld [vmem:[%s1 + $0x108] sm:$0xff]
  %v55 = vld [vmem:[%s1 + $0x110] sm:$0xff]
  %v56 = vld [vmem:[%s1 + $0x118] sm:$0xff]
  %v57 = vld [vmem:[%s1 + $0x120] sm:$0xff]
  %v58 = vld [vmem:[%s1 + $0x128] sm:$0xff]
  %v59 = vld [vmem:[%s1 + $0x130] sm:$0xff]
  %v60 = vld [vmem:[%s1 + $0x138] sm:$0xff]
  %v61 = vld [vmem:[%s1 + $0x140] sm:$0xff]
  %v62 = vld [vmem:[%s1 + $0x148] sm:$0xff]
  %v63 = vld [vmem:[%s1 + $0x150] sm:$0xff]
  %v64 = vld [vmem:[%s1 + $0x158] sm:$0xff]
  %v65 = vld [vmem:[%s1 + $0x160] sm:$0xff]
  %v66 = vld [vmem:[%s1 + $0x168] sm:$0xff]
  %v67 = vld [vmem:[%s1 + $0x170] sm:$0xff]
  %v68 = vld [vmem:[%s1 + $0x178] sm:$0xff]
  %v69 = vld [vmem:[%s1 + $0x180] sm:$0xff]
  %v70 = vld [vmem:[%s1 + $0x188] sm:$0xff]
  %v71 = vld [vmem:[%s1 + $0x190] sm:$0xff]
  %v72 = vld [vmem:[%s1 + $0x198] sm:$0xff]
  %v73 = vld [vmem:[%s1 + $0x1a0] sm:$0xff]
  %v74 = vld [vmem:[%s1 + $0x1a8] sm:$0xff]
  %v75 = vld [vmem:[%s1 + $0x1b0] sm:$0xff]
  %v76 = vld [vmem:[%s1 + $0x1b8] sm:$0xff]
  %v77 = vld [vmem:[%s1 + $0x1c0] sm:$0xff]
  %v78 = vld [vmem:[%s1 + $0x1c8] sm:$0xff]
  %v79 = vld [vmem:[%s1 + $0x1d0] sm:$0xff]
  %v80 = vld [vmem:[%s1 + $0x1d8] sm:$0xff]
  %v81 = vld [vmem:[%s1 + $0x1e0] sm:$0xff]
  %v82 = vld [vmem:[%s1 + $0x1e8] sm:$0xff]
  %v83 = vld [vmem:[%s1 + $0x1f0] sm:$0xff]
  %v84 = vld [vmem:[%s1 + $0x1f8] sm:$0xff]
  %v85 = vld [vmem:[%s1 + $0x200] sm:$0xff]
  %v86 = vld [vmem:[%s1 + $0x208] sm:$0xff]
  %v87 = vld [vmem:[%s1 + $0x210] sm:$0xff]
  %v88 = vld [vmem:[%s1 + $0x218] sm:$0xff]
  %v89 = vld [vmem:[%s1 + $0x220] sm:$0xff]
  %v90 = vld [vmem:[%s1 + $0x228] sm:$0xff]
  %v91 = vld [vmem:[%s1 + $0x230] sm:$0xff]
  %v92 = vld [vmem:[%s1 + $0x238] sm:$0xff]
  %v93 = vld [vmem:[%s1 + $0x240] sm:$0xff]
  %v94 = vld [vmem:[%s1 + $0x248] sm:$0xff]
  %v95 = vld [vmem:[%s1 + $0x250] sm:$0xff]
  %v96 = vld [vmem:[%s1 + $0x258] sm:$0xff]
  %v97 = vld [vmem:[%s1 + $0x260] sm:$0xff]
  %v98 = vld [vmem:[%s1 + $0x268] sm:$0xff]
  %v99 = vld [vmem:[%s1 + $0x270] sm:$0xff]
  %v100 = vld [vmem:[%s1 + $0x278] sm:$0xff]
  %v101 = vld [vmem:[%s1 + $0x280] sm:$0xff]
  %v102 = vld [vmem:[%s1 + $0x288] sm:$0xff]
  %v103 = vld [vmem:[%s1 + $0x290] sm:$0xff]
  %v104 = vld [vmem:[%s1 + $0x298] sm:$0xff]
  %v105 = vld [vmem:[%s1 + $0x2a0] sm:$0xff]
  %v106 = vld [vmem:[%s1 + $0x2a8] sm:$0xff]
  %v107 = vld [vmem:[%s1 + $0x2b0] sm:$0xff]
  %v108 = vld [vmem:[%s1 + $0x2b8] sm:$0xff]
  %v109 = vld [vmem:[%s1 + $0x2c0] sm:$0xff]
  %v110 = vld [vmem:[%s1 + $0x2c8] sm:$0xff]
  %v111 = vld [vmem:[%s1 + $0x2d0] sm:$0xff]
  %v112 = vld [vmem:[%s1 + $0x2d8] sm:$0xff]
  %v113 = vld [vmem:[%s1 + $0x2e0] sm:$0xff]
  %v114 = vld [vmem:[%s1 + $0x2e8] sm:$0xff]
  %v115 = vld [vmem:[%s1 + $0x2f0] sm:$0xff]
  %v116 = vld [vmem:[%s1 + $0x2f8] sm:$0xff]
  %v117 = vld [vmem:[%s1 + $0x300] sm:$0xff]
  %v118 = vld [vmem:[%s1 + $0x308] sm:$0xff]
  %v119 = vld [vmem:[%s1 + $0x310] sm:$0xff]
  %v120 = vld [vmem:[%s1 + $0x318] sm:$0xff]
  %v121 = vld [vmem:[%s1 + $0x320] sm:$0xff]
  %v122 = vld [vmem:[%s1 + $0x328] sm:$0xff]
  %v123 = vld [vmem:[%s1 + $0x330] sm:$0xff]
  %v124 = vld [vmem:[%s1 + $0x338] sm:$0xff]
  %v125 = vld [vmem:[%s1 + $0x340] sm:$0xff]
  %v126 = vld [vmem:[%s1 + $0x348] sm:$0xff]
  %v127 = vld [vmem:[%s1 + $0x350] sm:$0xff]
  %v128 = vld [vmem:[%s1 + $0x358] sm:$0xff]
  %v129 = vld [vmem:[%s1 + $0x360] sm:$0xff]
  %v130 = vld [vmem:[%s1 + $0x368] sm:$0xff]
  %v131 = vld [vmem:[%s1 + $0x370] sm:$0xff]
  %v132 = vld [vmem:[%s1 + $0x378] sm:$0xff]
  %v133 = vld [vmem:[%s1 + $0x380] sm:$0xff]
  %v134 = vld [vmem:[%s1 + $0x388] sm:$0xff]
  %v135 = vld [vmem:[%s1 + $0x390] sm:$0xff]
  %v136 = vld [vmem:[%s1 + $0x398] sm:$0xff]
  %v137 = vld [vmem:[%s1 + $0x3a0] sm:$0xff]
  %v138 = vld [vmem:[%s1 + $0x3a8] sm:$0xff]
  %v139 = vld [vmem:[%s1 + $0x3b0] sm:$0xff]
  %v140 = vld [vmem:[%s1 + $0x3b8] sm:$0xff]
  %v141 = vld [vmem:[%s1 + $0x3c0] sm:$0xff]
  %v142 = vld [vmem:[%s1 + $0x3c8] sm:$0xff]
  %v143 = vld [vmem:[%s1 + $0x3d0] sm:$0xff]
  %v144 = vld [vmem:[%s1 + $0x3d8] sm:$0xff]
  %v145 = vld [vmem:[%s1 + $0x3e0] sm:$0xff]
  %v146 = vld [vmem:[%s1 + $0x3e8] sm:$0xff]
  %v147 = vld [vmem:[%s1 + $0x3f0] sm:$0xff]
  %v148 = vld [vmem:[%s1 + $0x3f8] sm:$0xff]
  %v157 = vunpack.c.l.b16 %v13
  %v158 = vunpack.c.h.b16 %v13
  %v159 = vunpack.c.l.b16 %v14
  %v160 = vunpack.c.h.b16 %v14
  %v161 = vunpack.c.l.b16 %v15
  %v162 = vunpack.c.h.b16 %v15
  %v163 = vunpack.c.l.b16 %v16
  %v164 = vunpack.c.h.b16 %v16
  %v165 = vunpack.c.l.b16 %v17
  %v166 = vunpack.c.h.b16 %v17
  %v167 = vunpack.c.l.b16 %v18
  %v168 = vunpack.c.h.b16 %v18
  %v169 = vunpack.c.l.b16 %v19
  %v170 = vunpack.c.h.b16 %v19
  %v171 = vunpack.c.l.b16 %v20
  %v172 = vunpack.c.h.b16 %v20
  %v173 = vpack.c.b16 %v165, %v157
  %v174 = vpack.c.b16 %v166, %v158
  %v175 = vpack.c.b16 %v167, %v159
  %v176 = vpack.c.b16 %v168, %v160
  %v177 = vpack.c.b16 %v169, %v161
  %v178 = vpack.c.b16 %v170, %v162
  %v179 = vpack.c.b16 %v171, %v163
  %v180 = vpack.c.b16 %v172, %v164
  %v317 = vunpack.c.l.b16 %v21
  %v318 = vunpack.c.h.b16 %v21
  %v319 = vunpack.c.l.b16 %v22
  %v320 = vunpack.c.h.b16 %v22
  %v321 = vunpack.c.l.b16 %v23
  %v322 = vunpack.c.h.b16 %v23
  %v323 = vunpack.c.l.b16 %v24
  %v324 = vunpack.c.h.b16 %v24
  %v325 = vunpack.c.l.b16 %v25
  %v326 = vunpack.c.h.b16 %v25
  %v327 = vunpack.c.l.b16 %v26
  %v328 = vunpack.c.h.b16 %v26
  %v329 = vunpack.c.l.b16 %v27
  %v330 = vunpack.c.h.b16 %v27
  %v331 = vunpack.c.l.b16 %v28
  %v332 = vunpack.c.h.b16 %v28
  %v333 = vunpack.c.l.b16 %v29
  %v334 = vunpack.c.h.b16 %v29
  %v335 = vunpack.c.l.b16 %v30
  %v336 = vunpack.c.h.b16 %v30
  %v337 = vunpack.c.l.b16 %v31
  %v338 = vunpack.c.h.b16 %v31
  %v339 = vunpack.c.l.b16 %v32
  %v340 = vunpack.c.h.b16 %v32
  %v341 = vunpack.c.l.b16 %v33
  %v342 = vunpack.c.h.b16 %v33
  %v343 = vunpack.c.l.b16 %v34
  %v344 = vunpack.c.h.b16 %v34
  %v345 = vunpack.c.l.b16 %v35
  %v346 = vunpack.c.h.b16 %v35
  %v347 = vunpack.c.l.b16 %v36
  %v348 = vunpack.c.h.b16 %v36
  %v349 = vunpack.c.l.b16 %v37
  %v350 = vunpack.c.h.b16 %v37
  %v351 = vunpack.c.l.b16 %v38
  %v352 = vunpack.c.h.b16 %v38
  %v353 = vunpack.c.l.b16 %v39
  %v354 = vunpack.c.h.b16 %v39
  %v355 = vunpack.c.l.b16 %v40
  %v356 = vunpack.c.h.b16 %v40
  %v357 = vunpack.c.l.b16 %v41
  %v358 = vunpack.c.h.b16 %v41
  %v359 = vunpack.c.l.b16 %v42
  %v360 = vunpack.c.h.b16 %v42
  %v361 = vunpack.c.l.b16 %v43
  %v362 = vunpack.c.h.b16 %v43
  %v363 = vunpack.c.l.b16 %v44
  %v364 = vunpack.c.h.b16 %v44
  %v365 = vunpack.c.l.b16 %v45
  %v366 = vunpack.c.h.b16 %v45
  %v367 = vunpack.c.l.b16 %v46
  %v368 = vunpack.c.h.b16 %v46
  %v369 = vunpack.c.l.b16 %v47
  %v370 = vunpack.c.h.b16 %v47
  %v371 = vunpack.c.l.b16 %v48
  %v372 = vunpack.c.h.b16 %v48
  %v373 = vunpack.c.l.b16 %v49
  %v374 = vunpack.c.h.b16 %v49
  %v375 = vunpack.c.l.b16 %v50
  %v376 = vunpack.c.h.b16 %v50
  %v377 = vunpack.c.l.b16 %v51
  %v378 = vunpack.c.h.b16 %v51
  %v379 = vunpack.c.l.b16 %v52
  %v380 = vunpack.c.h.b16 %v52
  %v381 = vunpack.c.l.b16 %v53
  %v382 = vunpack.c.h.b16 %v53
  %v383 = vunpack.c.l.b16 %v54
  %v384 = vunpack.c.h.b16 %v54
  %v385 = vunpack.c.l.b16 %v55
  %v386 = vunpack.c.h.b16 %v55
  %v387 = vunpack.c.l.b16 %v56
  %v388 = vunpack.c.h.b16 %v56
  %v389 = vunpack.c.l.b16 %v57
  %v390 = vunpack.c.h.b16 %v57
  %v391 = vunpack.c.l.b16 %v58
  %v392 = vunpack.c.h.b16 %v58
  %v393 = vunpack.c.l.b16 %v59
  %v394 = vunpack.c.h.b16 %v59
  %v395 = vunpack.c.l.b16 %v60
  %v396 = vunpack.c.h.b16 %v60
  %v397 = vunpack.c.l.b16 %v61
  %v398 = vunpack.c.h.b16 %v61
  %v399 = vunpack.c.l.b16 %v62
  %v400 = vunpack.c.h.b16 %v62
  %v401 = vunpack.c.l.b16 %v63
  %v402 = vunpack.c.h.b16 %v63
  %v403 = vunpack.c.l.b16 %v64
  %v404 = vunpack.c.h.b16 %v64
  %v405 = vunpack.c.l.b16 %v65
  %v406 = vunpack.c.h.b16 %v65
  %v407 = vunpack.c.l.b16 %v66
  %v408 = vunpack.c.h.b16 %v66
  %v409 = vunpack.c.l.b16 %v67
  %v410 = vunpack.c.h.b16 %v67
  %v411 = vunpack.c.l.b16 %v68
  %v412 = vunpack.c.h.b16 %v68
  %v413 = vunpack.c.l.b16 %v69
  %v414 = vunpack.c.h.b16 %v69
  %v415 = vunpack.c.l.b16 %v70
  %v416 = vunpack.c.h.b16 %v70
  %v417 = vunpack.c.l.b16 %v71
  %v418 = vunpack.c.h.b16 %v71
  %v419 = vunpack.c.l.b16 %v72
  %v420 = vunpack.c.h.b16 %v72
  %v421 = vunpack.c.l.b16 %v73
  %v422 = vunpack.c.h.b16 %v73
  %v423 = vunpack.c.l.b16 %v74
  %v424 = vunpack.c.h.b16 %v74
  %v425 = vunpack.c.l.b16 %v75
  %v426 = vunpack.c.h.b16 %v75
  %v427 = vunpack.c.l.b16 %v76
  %v428 = vunpack.c.h.b16 %v76
  %v429 = vunpack.c.l.b16 %v77
  %v430 = vunpack.c.h.b16 %v77
  %v431 = vunpack.c.l.b16 %v78
  %v432 = vunpack.c.h.b16 %v78
  %v433 = vunpack.c.l.b16 %v79
  %v434 = vunpack.c.h.b16 %v79
  %v435 = vunpack.c.l.b16 %v80
  %v436 = vunpack.c.h.b16 %v80
  %v437 = vunpack.c.l.b16 %v81
  %v438 = vunpack.c.h.b16 %v81
  %v439 = vunpack.c.l.b16 %v82
  %v440 = vunpack.c.h.b16 %v82
  %v441 = vunpack.c.l.b16 %v83
  %v442 = vunpack.c.h.b16 %v83
  %v443 = vunpack.c.l.b16 %v84
  %v444 = vunpack.c.h.b16 %v84
  %v445 = vunpack.c.l.b16 %v85
  %v446 = vunpack.c.h.b16 %v85
  %v447 = vunpack.c.l.b16 %v86
  %v448 = vunpack.c.h.b16 %v86
  %v449 = vunpack.c.l.b16 %v87
  %v450 = vunpack.c.h.b16 %v87
  %v451 = vunpack.c.l.b16 %v88
  %v452 = vunpack.c.h.b16 %v88
  %v453 = vunpack.c.l.b16 %v89
  %v454 = vunpack.c.h.b16 %v89
  %v455 = vunpack.c.l.b16 %v90
  %v456 = vunpack.c.h.b16 %v90
  %v457 = vunpack.c.l.b16 %v91
  %v458 = vunpack.c.h.b16 %v91
  %v459 = vunpack.c.l.b16 %v92
  %v460 = vunpack.c.h.b16 %v92
  %v461 = vunpack.c.l.b16 %v93
  %v462 = vunpack.c.h.b16 %v93
  %v463 = vunpack.c.l.b16 %v94
  %v464 = vunpack.c.h.b16 %v94
  %v465 = vunpack.c.l.b16 %v95
  %v466 = vunpack.c.h.b16 %v95
  %v467 = vunpack.c.l.b16 %v96
  %v468 = vunpack.c.h.b16 %v96
  %v469 = vunpack.c.l.b16 %v97
  %v470 = vunpack.c.h.b16 %v97
  %v471 = vunpack.c.l.b16 %v98
  %v472 = vunpack.c.h.b16 %v98
  %v473 = vunpack.c.l.b16 %v99
  %v474 = vunpack.c.h.b16 %v99
  %v475 = vunpack.c.l.b16 %v100
  %v476 = vunpack.c.h.b16 %v100
  %v477 = vunpack.c.l.b16 %v101
  %v478 = vunpack.c.h.b16 %v101
  %v479 = vunpack.c.l.b16 %v102
  %v480 = vunpack.c.h.b16 %v102
  %v481 = vunpack.c.l.b16 %v103
  %v482 = vunpack.c.h.b16 %v103
  %v483 = vunpack.c.l.b16 %v104
  %v484 = vunpack.c.h.b16 %v104
  %v485 = vunpack.c.l.b16 %v105
  %v486 = vunpack.c.h.b16 %v105
  %v487 = vunpack.c.l.b16 %v106
  %v488 = vunpack.c.h.b16 %v106
  %v489 = vunpack.c.l.b16 %v107
  %v490 = vunpack.c.h.b16 %v107
  %v491 = vunpack.c.l.b16 %v108
  %v492 = vunpack.c.h.b16 %v108
  %v493 = vunpack.c.l.b16 %v109
  %v494 = vunpack.c.h.b16 %v109
  %v495 = vunpack.c.l.b16 %v110
  %v496 = vunpack.c.h.b16 %v110
  %v497 = vunpack.c.l.b16 %v111
  %v498 = vunpack.c.h.b16 %v111
  %v499 = vunpack.c.l.b16 %v112
  %v500 = vunpack.c.h.b16 %v112
  %v501 = vunpack.c.l.b16 %v113
  %v502 = vunpack.c.h.b16 %v113
  %v503 = vunpack.c.l.b16 %v114
  %v504 = vunpack.c.h.b16 %v114
  %v505 = vunpack.c.l.b16 %v115
  %v506 = vunpack.c.h.b16 %v115
  %v507 = vunpack.c.l.b16 %v116
  %v508 = vunpack.c.h.b16 %v116
  %v509 = vunpack.c.l.b16 %v117
  %v510 = vunpack.c.h.b16 %v117
  %v511 = vunpack.c.l.b16 %v118
  %v512 = vunpack.c.h.b16 %v118
  %v513 = vunpack.c.l.b16 %v119
  %v514 = vunpack.c.h.b16 %v119
  %v515 = vunpack.c.l.b16 %v120
  %v516 = vunpack.c.h.b16 %v120
  %v517 = vunpack.c.l.b16 %v121
  %v518 = vunpack.c.h.b16 %v121
  %v519 = vunpack.c.l.b16 %v122
  %v520 = vunpack.c.h.b16 %v122
  %v521 = vunpack.c.l.b16 %v123
  %v522 = vunpack.c.h.b16 %v123
  %v523 = vunpack.c.l.b16 %v124
  %v524 = vunpack.c.h.b16 %v124
  %v525 = vunpack.c.l.b16 %v125
  %v526 = vunpack.c.h.b16 %v125
  %v527 = vunpack.c.l.b16 %v126
  %v528 = vunpack.c.h.b16 %v126
  %v529 = vunpack.c.l.b16 %v127
  %v530 = vunpack.c.h.b16 %v127
  %v531 = vunpack.c.l.b16 %v128
  %v532 = vunpack.c.h.b16 %v128
  %v533 = vunpack.c.l.b16 %v129
  %v534 = vunpack.c.h.b16 %v129
  %v535 = vunpack.c.l.b16 %v130
  %v536 = vunpack.c.h.b16 %v130
  %v537 = vunpack.c.l.b16 %v131
  %v538 = vunpack.c.h.b16 %v131
  %v539 = vunpack.c.l.b16 %v132
  %v540 = vunpack.c.h.b16 %v132
  %v541 = vunpack.c.l.b16 %v133
  %v542 = vunpack.c.h.b16 %v133
  %v543 = vunpack.c.l.b16 %v134
  %v544 = vunpack.c.h.b16 %v134
  %v545 = vunpack.c.l.b16 %v135
  %v546 = vunpack.c.h.b16 %v135
  %v547 = vunpack.c.l.b16 %v136
  %v548 = vunpack.c.h.b16 %v136
  %v549 = vunpack.c.l.b16 %v137
  %v550 = vunpack.c.h.b16 %v137
  %v551 = vunpack.c.l.b16 %v138
  %v552 = vunpack.c.h.b16 %v138
  %v553 = vunpack.c.l.b16 %v139
  %v554 = vunpack.c.h.b16 %v139
  %v555 = vunpack.c.l.b16 %v140
  %v556 = vunpack.c.h.b16 %v140
  %v557 = vunpack.c.l.b16 %v141
  %v558 = vunpack.c.h.b16 %v141
  %v559 = vunpack.c.l.b16 %v142
  %v560 = vunpack.c.h.b16 %v142
  %v561 = vunpack.c.l.b16 %v143
  %v562 = vunpack.c.h.b16 %v143
  %v563 = vunpack.c.l.b16 %v144
  %v564 = vunpack.c.h.b16 %v144
  %v565 = vunpack.c.l.b16 %v145
  %v566 = vunpack.c.h.b16 %v145
  %v567 = vunpack.c.l.b16 %v146
  %v568 = vunpack.c.h.b16 %v146
  %v569 = vunpack.c.l.b16 %v147
  %v570 = vunpack.c.h.b16 %v147
  %v571 = vunpack.c.l.b16 %v148
  %v572 = vunpack.c.h.b16 %v148
  %v573 = vpack.c.b16 %v319, %v317
  %v574 = vpack.c.b16 %v320, %v318
  %v575 = vpack.c.b16 %v323, %v321
  %v576 = vpack.c.b16 %v324, %v322
  %v577 = vpack.c.b16 %v327, %v325
  %v578 = vpack.c.b16 %v328, %v326
  %v579 = vpack.c.b16 %v331, %v329
  %v580 = vpack.c.b16 %v332, %v330
  %v581 = vpack.c.b16 %v335, %v333
  %v582 = vpack.c.b16 %v336, %v334
  %v583 = vpack.c.b16 %v339, %v337
  %v584 = vpack.c.b16 %v340, %v338
  %v585 = vpack.c.b16 %v343, %v341
  %v586 = vpack.c.b16 %v344, %v342
  %v587 = vpack.c.b16 %v347, %v345
  %v588 = vpack.c.b16 %v348, %v346
  %v589 = vpack.c.b16 %v351, %v349
  %v590 = vpack.c.b16 %v352, %v350
  %v591 = vpack.c.b16 %v355, %v353
  %v592 = vpack.c.b16 %v356, %v354
  %v593 = vpack.c.b16 %v359, %v357
  %v594 = vpack.c.b16 %v360, %v358
  %v595 = vpack.c.b16 %v363, %v361
  %v596 = vpack.c.b16 %v364, %v362
  %v597 = vpack.c.b16 %v367, %v365
  %v598 = vpack.c.b16 %v368, %v366
  %v599 = vpack.c.b16 %v371, %v369
  %v600 = vpack.c.b16 %v372, %v370
  %v601 = vpack.c.b16 %v375, %v373
  %v602 = vpack.c.b16 %v376, %v374
  %v603 = vpack.c.b16 %v379, %v377
  %v604 = vpack.c.b16 %v380, %v378
  %v605 = vpack.c.b16 %v383, %v381
  %v606 = vpack.c.b16 %v384, %v382
  %v607 = vpack.c.b16 %v387, %v385
  %v608 = vpack.c.b16 %v388, %v386
  %v609 = vpack.c.b16 %v391, %v389
  %v610 = vpack.c.b16 %v392, %v390
  %v611 = vpack.c.b16 %v395, %v393
  %v612 = vpack.c.b16 %v396, %v394
  %v613 = vpack.c.b16 %v399, %v397
  %v614 = vpack.c.b16 %v400, %v398
  %v615 = vpack.c.b16 %v403, %v401
  %v616 = vpack.c.b16 %v404, %v402
  %v617 = vpack.c.b16 %v407, %v405
  %v618 = vpack.c.b16 %v408, %v406
  %v619 = vpack.c.b16 %v411, %v409
  %v620 = vpack.c.b16 %v412, %v410
  %v621 = vpack.c.b16 %v415, %v413
  %v622 = vpack.c.b16 %v416, %v414
  %v623 = vpack.c.b16 %v419, %v417
  %v624 = vpack.c.b16 %v420, %v418
  %v625 = vpack.c.b16 %v423, %v421
  %v626 = vpack.c.b16 %v424, %v422
  %v627 = vpack.c.b16 %v427, %v425
  %v628 = vpack.c.b16 %v428, %v426
  %v629 = vpack.c.b16 %v431, %v429
  %v630 = vpack.c.b16 %v432, %v430
  %v631 = vpack.c.b16 %v435, %v433
  %v632 = vpack.c.b16 %v436, %v434
  %v633 = vpack.c.b16 %v439, %v437
  %v634 = vpack.c.b16 %v440, %v438
  %v635 = vpack.c.b16 %v443, %v441
  %v636 = vpack.c.b16 %v444, %v442
  %v637 = vpack.c.b16 %v447, %v445
  %v638 = vpack.c.b16 %v448, %v446
  %v639 = vpack.c.b16 %v451, %v449
  %v640 = vpack.c.b16 %v452, %v450
  %v641 = vpack.c.b16 %v455, %v453
  %v642 = vpack.c.b16 %v456, %v454
  %v643 = vpack.c.b16 %v459, %v457
  %v644 = vpack.c.b16 %v460, %v458
  %v645 = vpack.c.b16 %v463, %v461
  %v646 = vpack.c.b16 %v464, %v462
  %v647 = vpack.c.b16 %v467, %v465
  %v648 = vpack.c.b16 %v468, %v466
  %v649 = vpack.c.b16 %v471, %v469
  %v650 = vpack.c.b16 %v472, %v470
  %v651 = vpack.c.b16 %v475, %v473
  %v652 = vpack.c.b16 %v476, %v474
  %v653 = vpack.c.b16 %v479, %v477
  %v654 = vpack.c.b16 %v480, %v478
  %v655 = vpack.c.b16 %v483, %v481
  %v656 = vpack.c.b16 %v484, %v482
  %v657 = vpack.c.b16 %v487, %v485
  %v658 = vpack.c.b16 %v488, %v486
  %v659 = vpack.c.b16 %v491, %v489
  %v660 = vpack.c.b16 %v492, %v490
  %v661 = vpack.c.b16 %v495, %v493
  %v662 = vpack.c.b16 %v496, %v494
  %v663 = vpack.c.b16 %v499, %v497
  %v664 = vpack.c.b16 %v500, %v498
  %v665 = vpack.c.b16 %v503, %v501
  %v666 = vpack.c.b16 %v504, %v502
  %v667 = vpack.c.b16 %v507, %v505
  %v668 = vpack.c.b16 %v508, %v506
  %v669 = vpack.c.b16 %v511, %v509
  %v670 = vpack.c.b16 %v512, %v510
  %v671 = vpack.c.b16 %v515, %v513
  %v672 = vpack.c.b16 %v516, %v514
  %v673 = vpack.c.b16 %v519, %v517
  %v674 = vpack.c.b16 %v520, %v518
  %v675 = vpack.c.b16 %v523, %v521
  %v676 = vpack.c.b16 %v524, %v522
  %v677 = vpack.c.b16 %v527, %v525
  %v678 = vpack.c.b16 %v528, %v526
  %v679 = vpack.c.b16 %v531, %v529
  %v680 = vpack.c.b16 %v532, %v530
  %v681 = vpack.c.b16 %v535, %v533
  %v682 = vpack.c.b16 %v536, %v534
  %v683 = vpack.c.b16 %v539, %v537
  %v684 = vpack.c.b16 %v540, %v538
  %v685 = vpack.c.b16 %v543, %v541
  %v686 = vpack.c.b16 %v544, %v542
  %v687 = vpack.c.b16 %v547, %v545
  %v688 = vpack.c.b16 %v548, %v546
  %v689 = vpack.c.b16 %v551, %v549
  %v690 = vpack.c.b16 %v552, %v550
  %v691 = vpack.c.b16 %v555, %v553
  %v692 = vpack.c.b16 %v556, %v554
  %v693 = vpack.c.b16 %v559, %v557
  %v694 = vpack.c.b16 %v560, %v558
  %v695 = vpack.c.b16 %v563, %v561
  %v696 = vpack.c.b16 %v564, %v562
  %v697 = vpack.c.b16 %v567, %v565
  %v698 = vpack.c.b16 %v568, %v566
  %v699 = vpack.c.b16 %v571, %v569
  %v700 = vpack.c.b16 %v572, %v570
  %829 = vmatprep.subr.bf16.mxu0 %v574
  %830 = vmatpush1.bf16.msra.mxu0 %v573
  %831 = vmatprep.subr.bf16.mxu0 %v576
  %832 = vmatpush1.bf16.msra.mxu0 %v575
  %833 = vmatprep.subr.bf16.mxu0 %v578
  %834 = vmatpush1.bf16.msra.mxu0 %v577
  %835 = vmatprep.subr.bf16.mxu0 %v580
  %836 = vmatpush1.bf16.msra.mxu0 %v579
  %837 = vmatprep.subr.bf16.mxu0 %v582
  %838 = vmatpush1.bf16.msra.mxu0 %v581
  %839 = vmatprep.subr.bf16.mxu0 %v584
  %840 = vmatpush1.bf16.msra.mxu0 %v583
  %841 = vmatprep.subr.bf16.mxu0 %v586
  %842 = vmatpush1.bf16.msra.mxu0 %v585
  %843 = vmatprep.subr.bf16.mxu0 %v588
  %844 = vmatpush1.bf16.msra.mxu0 %v587
  %845 = vmatprep.subr.bf16.mxu0 %v590
  %846 = vmatpush1.bf16.msra.mxu0 %v589
  %847 = vmatprep.subr.bf16.mxu0 %v592
  %848 = vmatpush1.bf16.msra.mxu0 %v591
  %849 = vmatprep.subr.bf16.mxu0 %v594
  %850 = vmatpush1.bf16.msra.mxu0 %v593
  %851 = vmatprep.subr.bf16.mxu0 %v596
  %852 = vmatpush1.bf16.msra.mxu0 %v595
  %853 = vmatprep.subr.bf16.mxu0 %v598
  %854 = vmatpush1.bf16.msra.mxu0 %v597
  %855 = vmatprep.subr.bf16.mxu0 %v600
  %856 = vmatpush1.bf16.msra.mxu0 %v599
  %857 = vmatprep.subr.bf16.mxu0 %v602
  %858 = vmatpush1.bf16.msra.mxu0 %v601
  %859 = vmatprep.subr.bf16.mxu0 %v604
  %860 = vmatpush1.bf16.msra.mxu0 %v603
  %861 = vmatprep.mubr.bf16.mxu0 %v174
  %862 = vmatmul.mubr.bf16.gmra.mrb[0].mxu0 %v173
  %v863 = vpop.f32.mrb[0].mxu0
  %v864 = vadd.f32 0.0, %v863
  %v865 = vpop.f32.mrb[0].mxu0
  %v866 = vadd.f32 0.0, %v865
  %v867 = vpop.f32.mrb[0].mxu0
  %v868 = vadd.f32 0.0, %v867
  %v869 = vpop.f32.mrb[0].mxu0
  %v870 = vadd.f32 0.0, %v869
  %871 = vdwg.mxu0
  %872 = vmatprep.subr.bf16.mxu0 %v606
  %873 = vmatpush1.bf16.msra.mxu0 %v605
  %874 = vmatprep.subr.bf16.mxu0 %v608
  %875 = vmatpush1.bf16.msra.mxu0 %v607
  %876 = vmatprep.subr.bf16.mxu0 %v610
  %877 = vmatpush1.bf16.msra.mxu0 %v609
  %878 = vmatprep.subr.bf16.mxu0 %v612
  %879 = vmatpush1.bf16.msra.mxu0 %v611
  %880 = vmatprep.subr.bf16.mxu0 %v614
  %881 = vmatpush1.bf16.msra.mxu0 %v613
  %882 = vmatprep.subr.bf16.mxu0 %v616
  %883 = vmatpush1.bf16.msra.mxu0 %v615
  %884 = vmatprep.subr.bf16.mxu0 %v618
  %885 = vmatpush1.bf16.msra.mxu0 %v617
  %886 = vmatprep.subr.bf16.mxu0 %v620
  %887 = vmatpush1.bf16.msra.mxu0 %v619
  %888 = vmatprep.subr.bf16.mxu0 %v622
  %889 = vmatpush1.bf16.msra.mxu0 %v621
  %890 = vmatprep.subr.bf16.mxu0 %v624
  %891 = vmatpush1.bf16.msra.mxu0 %v623
  %892 = vmatprep.subr.bf16.mxu0 %v626
  %893 = vmatpush1.bf16.msra.mxu0 %v625
  %894 = vmatprep.subr.bf16.mxu0 %v628
  %895 = vmatpush1.bf16.msra.mxu0 %v627
  %896 = vmatprep.subr.bf16.mxu0 %v630
  %897 = vmatpush1.bf16.msra.mxu0 %v629
  %898 = vmatprep.subr.bf16.mxu0 %v632
  %899 = vmatpush1.bf16.msra.mxu0 %v631
  %900 = vmatprep.subr.bf16.mxu0 %v634
  %901 = vmatpush1.bf16.msra.mxu0 %v633
  %902 = vmatprep.subr.bf16.mxu0 %v636
  %903 = vmatpush1.bf16.msra.mxu0 %v635
  %904 = vmatprep.mubr.bf16.mxu0 %v176
  %905 = vmatmul.mubr.bf16.gmra.mrb[0].mxu0 %v175
  %v906 = vpop.f32.mrb[0].mxu0
  %v907 = vadd.f32 %v864, %v906
  %v908 = vpop.f32.mrb[0].mxu0
  %v909 = vadd.f32 %v866, %v908
  %v910 = vpop.f32.mrb[0].mxu0
  %v911 = vadd.f32 %v868, %v910
  %v912 = vpop.f32.mrb[0].mxu0
  %v913 = vadd.f32 %v870, %v912
  %914 = vdwg.mxu0
  %915 = vmatprep.subr.bf16.mxu0 %v638
  %916 = vmatpush1.bf16.msra.mxu0 %v637
  %917 = vmatprep.subr.bf16.mxu0 %v640
  %918 = vmatpush1.bf16.msra.mxu0 %v639
  %919 = vmatprep.subr.bf16.mxu0 %v642
  %920 = vmatpush1.bf16.msra.mxu0 %v641
  %921 = vmatprep.subr.bf16.mxu0 %v644
  %922 = vmatpush1.bf16.msra.mxu0 %v643
  %923 = vmatprep.subr.bf16.mxu0 %v646
  %924 = vmatpush1.bf16.msra.mxu0 %v645
  %925 = vmatprep.subr.bf16.mxu0 %v648
  %926 = vmatpush1.bf16.msra.mxu0 %v647
  %927 = vmatprep.subr.bf16.mxu0 %v650
  %928 = vmatpush1.bf16.msra.mxu0 %v649
  %929 = vmatprep.subr.bf16.mxu0 %v652
  %930 = vmatpush1.bf16.msra.mxu0 %v651
  %931 = vmatprep.subr.bf16.mxu0 %v654
  %932 = vmatpush1.bf16.msra.mxu0 %v653
  %933 = vmatprep.subr.bf16.mxu0 %v656
  %934 = vmatpush1.bf16.msra.mxu0 %v655
  %935 = vmatprep.subr.bf16.mxu0 %v658
  %936 = vmatpush1.bf16.msra.mxu0 %v657
  %937 = vmatprep.subr.bf16.mxu0 %v660
  %938 = vmatpush1.bf16.msra.mxu0 %v659
  %939 = vmatprep.subr.bf16.mxu0 %v662
  %940 = vmatpush1.bf16.msra.mxu0 %v661
  %941 = vmatprep.subr.bf16.mxu0 %v664
  %942 = vmatpush1.bf16.msra.mxu0 %v663
  %943 = vmatprep.subr.bf16.mxu0 %v666
  %944 = vmatpush1.bf16.msra.mxu0 %v665
  %945 = vmatprep.subr.bf16.mxu0 %v668
  %946 = vmatpush1.bf16.msra.mxu0 %v667
  %947 = vmatprep.mubr.bf16.mxu0 %v178
  %948 = vmatmul.mubr.bf16.gmra.mrb[0].mxu0 %v177
  %v949 = vpop.f32.mrb[0].mxu0
  %v950 = vadd.f32 %v907, %v949
  %v951 = vpop.f32.mrb[0].mxu0
  %v952 = vadd.f32 %v909, %v951
  %v953 = vpop.f32.mrb[0].mxu0
  %v954 = vadd.f32 %v911, %v953
  %v955 = vpop.f32.mrb[0].mxu0
  %v956 = vadd.f32 %v913, %v955
  %957 = vdwg.mxu0
  %958 = vmatprep.subr.bf16.mxu0 %v670
  %959 = vmatpush1.bf16.msra.mxu0 %v669
  %960 = vmatprep.subr.bf16.mxu0 %v672
  %961 = vmatpush1.bf16.msra.mxu0 %v671
  %962 = vmatprep.subr.bf16.mxu0 %v674
  %963 = vmatpush1.bf16.msra.mxu0 %v673
  %964 = vmatprep.subr.bf16.mxu0 %v676
  %965 = vmatpush1.bf16.msra.mxu0 %v675
  %966 = vmatprep.subr.bf16.mxu0 %v678
  %967 = vmatpush1.bf16.msra.mxu0 %v677
  %968 = vmatprep.subr.bf16.mxu0 %v680
  %969 = vmatpush1.bf16.msra.mxu0 %v679
  %970 = vmatprep.subr.bf16.mxu0 %v682
  %971 = vmatpush1.bf16.msra.mxu0 %v681
  %972 = vmatprep.subr.bf16.mxu0 %v684
  %973 = vmatpush1.bf16.msra.mxu0 %v683
  %974 = vmatprep.subr.bf16.mxu0 %v686
  %975 = vmatpush1.bf16.msra.mxu0 %v685
  %976 = vmatprep.subr.bf16.mxu0 %v688
  %977 = vmatpush1.bf16.msra.mxu0 %v687
  %978 = vmatprep.subr.bf16.mxu0 %v690
  %979 = vmatpush1.bf16.msra.mxu0 %v689
  %980 = vmatprep.subr.bf16.mxu0 %v692
  %981 = vmatpush1.bf16.msra.mxu0 %v691
  %982 = vmatprep.subr.bf16.mxu0 %v694
  %983 = vmatpush1.bf16.msra.mxu0 %v693
  %984 = vmatprep.subr.bf16.mxu0 %v696
  %985 = vmatpush1.bf16.msra.mxu0 %v695
  %986 = vmatprep.subr.bf16.mxu0 %v698
  %987 = vmatpush1.bf16.msra.mxu0 %v697
  %988 = vmatprep.subr.bf16.mxu0 %v700
  %989 = vmatpush1.bf16.msra.mxu0 %v699
  %990 = vmatprep.mubr.bf16.mxu0 %v180
  %991 = vmatmul.mubr.bf16.gmra.mrb[0].mxu0 %v179
  %v992 = vpop.f32.mrb[0].mxu0
  %v993 = vadd.f32 %v950, %v992
  %v994 = vpop.f32.mrb[0].mxu0
  %v995 = vadd.f32 %v952, %v994
  %v996 = vpop.f32.mrb[0].mxu0
  %v997 = vadd.f32 %v954, %v996
  %v998 = vpop.f32.mrb[0].mxu0
  %v999 = vadd.f32 %v956, %v998
  %1000 = vdwg.mxu0
  %v1001 = vpack.c.bf16 %v997, %v993
  %v1002 = vpack.c.bf16 %v999, %v995
  %v1005 = vunpack.c.l.b16 %v1001
  %v1006 = vunpack.c.l.b16 %v1002
  %v1007 = vunpack.c.h.b16 %v1001
  %v1008 = vunpack.c.h.b16 %v1002
  %v1009 = vpack.c.b16 %v1006, %v1005
  %v1010 = vpack.c.b16 %v1008, %v1007
  %1013 = vst [vmem:[%s2] sm:$0xff] %v1009
  %1014 = vst [vmem:[%s2 + $0x8] sm:$0xff] %v1010
  %v1015 = vadd.f32 %v993, %v997
  %v1016 = vrot.slane %v1015, 4
  %v1017 = vadd.f32 %v1015, %v1016
  %v1018 = vrot.slane %v1017, 2
  %v1019 = vadd.f32 %v1017, %v1018
  %v1020 = vrot.slane %v1019, 1
  %v1021 = vadd.f32 %v1019, %v1020
  %v1022 = vadd.f32 %v995, %v999
  %v1023 = vrot.slane %v1022, 4
  %v1024 = vadd.f32 %v1022, %v1023
  %v1025 = vrot.slane %v1024, 2
  %v1026 = vadd.f32 %v1024, %v1025
  %v1027 = vrot.slane %v1026, 1
  %v1028 = vadd.f32 %v1026, %v1027
  %v1029 = vmul.f32 %v993, %v993
  %v1030 = vmul.f32 %v995, %v995
  %v1031 = vmul.f32 %v997, %v997
  %v1032 = vmul.f32 %v999, %v999
  %v1033 = vadd.f32 %v1029, %v1031
  %v1034 = vrot.slane %v1033, 4
  %v1035 = vadd.f32 %v1033, %v1034
  %v1036 = vrot.slane %v1035, 2
  %v1037 = vadd.f32 %v1035, %v1036
  %v1038 = vrot.slane %v1037, 1
  %v1039 = vadd.f32 %v1037, %v1038
  %v1040 = vadd.f32 %v1030, %v1032
  %v1041 = vrot.slane %v1040, 4
  %v1042 = vadd.f32 %v1040, %v1041
  %v1043 = vrot.slane %v1042, 2
  %v1044 = vadd.f32 %v1042, %v1043
  %v1045 = vrot.slane %v1044, 1
  %v1046 = vadd.f32 %v1044, %v1045
  %vm1047 = vcmask 1040384
  %v1048 = vsel %vm1047, %v1021, %v1039
  %v1049 = vsel %vm1047, %v1028, %v1046
  %v1052 = vcombine.low %v1048, %v1049
  %v1054 = vunpack.c.l.s4 1983009808
  %v1055 = vunpack.c.0.s8 %v1054
  %v1056 = vlaneseq
  %v1057 = vshrl.u32 %v1056, 7
  %v1058 = vsub.s32 %v1055, %v1057
  %v1059 = vrot.slane %v1052, %v1058
  %1061 = vst [vmem:[%s3] sm:$0xf] %v1059
  // Predicated region
  $region10: #{_lambda_.20} parent=0 // pred_check
    _
  $region11: #{_lambda_.20} parent=0 // pred_check_branch
    %1063 = sbr.rel (0) target = $region13
  $region12: #{_lambda_.20} parent=0 // pred_region
    _
  $region13: #{_lambda_.20} parent=0 // pred_fallthru
    _
  // Predicated region
  $region14: #{_lambda_.20} parent=0 // pred_check
    _
  $region15: #{_lambda_.20} parent=0 // pred_check_branch
    %1065 = sbr.rel (0) target = $region17
  $region16: #{_lambda_.20} parent=0 // pred_region
    _
  $region17: #{_lambda_.20} parent=0 // pred_fallthru
    _
  // Predicated region
  $region18: #{_lambda_.20} parent=0 // pred_check
    _
  $region19: #{_lambda_.20} parent=0 // pred_check_branch
    %1067 = sbr.rel (0) target = $region21
  $region20: #{_lambda_.20} parent=0 // pred_region
    _
  $region21: #{_lambda_.20} parent=0 // pred_fallthru
    _
  // Predicated region
  $region22: #{_lambda_.20} parent=0 // pred_check
    _
  $region23: #{_lambda_.20} parent=0 // pred_check_branch
    %1069 = sbr.rel (0) target = $region25
  $region24: #{_lambda_.20} parent=0 // pred_region
    _
  $region25: #{_lambda_.20} parent=0 // pred_fallthru
    _

</llo_original>
